<compile_context>
chip_gen: v7x
topology: tpu7x:2x2x1
jax: 0.10.0
libtpu: 0.0.40
codegen_flags: <defaults>
</compile_context>

<pallas_src>
import functools

import numpy as np
import jax
import jax.numpy as jnp
from jax.experimental import pallas as pl
from jax.experimental.pallas import tpu as pltpu

_LANES = 128


def _round_up(x, m):
    return ((x + m - 1) // m) * m


def _vmem_capacity_bytes():
    try:
        return int(pltpu.get_tpu_info().vmem_capacity_bytes)
    except Exception:
        return 64 * 1024 * 1024        # conservative fallback (v7x per-core VMEM)


def _pick_block_batch(batch, input_dim, x_itemsize, vmem_cap):
    """Batch tile: multiple of 128, <= 2048, with the *full* per-step VMEM
    footprint (double-buffered x tile + f32 temporaries x_f32 and x*x + matmul
    results) kept within ~55% of the chip's VMEM (headroom for RHS / outputs /
    compiler scratch)."""
    budget = int(0.55 * vmem_cap)
    per_row = input_dim * (2 * x_itemsize + 2 * 4) + 2 * _LANES * 4
    bt = min(2048, _round_up(batch, 128))
    while bt > 128 and bt * per_row > budget:
        bt //= 2
    return bt


# ---------------------------------------------------------------------------
# Pallas kernel: cast + two MXU matmuls per batch tile, no cross-step carry.
# ---------------------------------------------------------------------------
def _fm_kernel(x_ref, rhs1_ref, rhs2_ref, out_ref):
    # x_ref   : (bt, D)   integer tile (pipelined, double-buffered by Pallas)
    # rhs1_ref: (D, 128)  f32, col0 = v.sum(1), col1 = w^T, rest 0   (resident)
    # rhs2_ref: (D, 128)  f32, col0 = (v*v).sum(1), rest 0           (resident)
    # out_ref : (bt, 2)   f32, col0 = linear logit, col1 = s^2 - t   (pipelined)
    x = x_ref[...].astype(jnp.float32)                       # x.float()
    r1 = jnp.dot(x, rhs1_ref[...],
                 preferred_element_type=jnp.float32,
                 precision=jax.lax.Precision.HIGHEST)        # (bt, 128) MXU
    r2 = jnp.dot(x * x, rhs2_ref[...],
                 preferred_element_type=jnp.float32,
                 precision=jax.lax.Precision.HIGHEST)        # (bt, 128) MXU
    s = r1[:, 0:1]             # sum_k (x @ v)          per row
    lin = r1[:, 1:2]           # x @ w^T (linear term)  per row
    t = r2[:, 0:1]             # sum_k ((x*x) @ (v*v))  per row
    out_ref[...] = jnp.concatenate([lin, s * s - t], axis=1)


def fm_forward(x, v, w, b, *, block_batch=None):
    """x: int (B, D); v: (D, K) f32; w: (1, D) f32; b: (1,) f32 -> (B,) f32."""
    B, D = x.shape
    vmem_cap = _vmem_capacity_bytes()
    bt = block_batch or _pick_block_batch(B, D, x.dtype.itemsize, vmem_cap)
    B_pad = _round_up(B, bt)
    if B_pad != B:
        x = jnp.pad(x, ((0, B_pad - B), (0, 0)))   # zero rows: 0 FM / lin contribution

    # Fold the linear weight and both K-reductions into the MXU RHS.  Output is
    # a single lane block (columns << 128), so the extra columns cost nothing.
    rhs1 = jnp.zeros((D, _LANES), jnp.float32)
    rhs1 = rhs1.at[:, 0].set(jnp.sum(v, axis=1)).at[:, 1].set(w[0])
    rhs2 = jnp.zeros((D, _LANES), jnp.float32)
    rhs2 = rhs2.at[:, 0].set(jnp.sum(v * v, axis=1))

    out = pl.pallas_call(
        _fm_kernel,
        out_shape=jax.ShapeDtypeStruct((B_pad, 2), jnp.float32),
        grid=(B_pad // bt,),
        in_specs=[
            pl.BlockSpec((bt, D), lambda i: (i, 0)),          # x tile (pipelined)
            pl.BlockSpec((D, _LANES), lambda i: (0, 0)),      # rhs1 (resident)
            pl.BlockSpec((D, _LANES), lambda i: (0, 0)),      # rhs2 (resident)
        ],
        out_specs=pl.BlockSpec((bt, 2), lambda i: (i, 0)),    # pipelined writeback
        compiler_params=pltpu.CompilerParams(
            dimension_semantics=("parallel",),   # no carry -> both TCs on v7x
            vmem_limit_bytes=min(int(0.75 * vmem_cap), 96 * 1024 * 1024),
        ),
    )(x, rhs1, rhs2)

    out = out[:B]
    lin = out[:, 0]
    fm = 0.5 * jnp.sum(out[:, 1])                 # batch-global FM scalar (pairwise)
    return jax.nn.sigmoid(lin + fm + b[0])        # trivial fused XLA epilogue


# ---------------------------------------------------------------------------
# Parameter container mirroring the PyTorch module's init.
# ---------------------------------------------------------------------------
class FactorizationMachine:
    def __init__(self, input_dim, factor_dim, key):
        k_w, k_v = jax.random.split(key)
        # nn.Linear(input_dim, 1): weight ~ N(0, 0.01), bias = 0 (torch layout (1, D))
        self.w = (0.01 * jax.random.normal(k_w, (1, input_dim))).astype(jnp.float32)
        self.b = jnp.zeros((1,), dtype=jnp.float32)
        # FMLayer.v ~ N(0, 0.01): (input_dim, factor_dim)
        self.v = (0.01 * jax.random.normal(k_v, (input_dim, factor_dim))).astype(jnp.float32)

    def __call__(self, x, *, block_batch=None):
        return fm_forward(x, self.v, self.w, self.b, block_batch=block_batch)


# ---------------------------------------------------------------------------
# Pure-JAX reference mirroring the PyTorch forward exactly.
# ---------------------------------------------------------------------------
def reference_forward(model, x):
    hp = jax.lax.Precision.HIGHEST
    xf = x.astype(jnp.float32)
    xv = jnp.matmul(xf, model.v, precision=hp)                           # (B, K)
    square_of_sum = jnp.square(jnp.sum(xv, axis=1))                      # (B,)
    x2v2 = jnp.matmul(xf * xf, model.v * model.v, precision=hp)          # (B, K)
    sum_of_square = jnp.sum(x2v2, axis=1)                                # (B,)
    fm = 0.5 * jnp.sum(square_of_sum - sum_of_square, axis=0)            # scalar
    lin = jnp.sum(xf * model.w, axis=1) + model.b[0]                     # (B,)
    return jax.nn.sigmoid(lin + fm)


if __name__ == "__main__":
    input_dim = 384      # sparse multi-hot feature width (2652 in MovieLens-100k)
    factor_dim = 16
    batch = 200          # not a multiple of the 128-row tile -> exercises padding

    key = jax.random.PRNGKey(0)
    k_param, k_x = jax.random.split(key)
    model = FactorizationMachine(input_dim, factor_dim, k_param)

    # "Long tensor" input: multi-hot 0/1 indicators, as in sparse CTR data.
    x_i32 = (jax.random.uniform(k_x, (batch, input_dim)) < 0.05).astype(jnp.int32)
    x_i8 = x_i32.astype(jnp.int8)     # exact for 0/1 data; 4x less x HBM traffic

    fwd = jax.jit(functools.partial(
        fm_forward, v=model.v, w=model.w, b=model.b, block_batch=128))

    out_i32 = jax.block_until_ready(fwd(x_i32))    # 2 grid tiles, Long-like input
    out_i8 = jax.block_until_ready(fwd(x_i8))      # int8 input path (4x less DMA)
    ref = jax.block_until_ready(reference_forward(model, x_i32))

    assert out_i32.shape == (batch,)
    np.testing.assert_allclose(np.asarray(out_i32), np.asarray(ref), rtol=1e-4, atol=1e-5)
    np.testing.assert_allclose(np.asarray(out_i8), np.asarray(ref), rtol=1e-4, atol=1e-5)
    print("KERNEL_OK")
</pallas_src>

<mosaic_0001>
module attributes {stable_mosaic.version = 11 : i64} {
  func.func @_fm_kernel(%arg0: i32, %arg1: memref<128x384xi32, #tpu.memory_space<vmem>>, %arg2: memref<384x128xf32, #tpu.memory_space<vmem>>, %arg3: memref<384x128xf32, #tpu.memory_space<vmem>>, %arg4: memref<128x2xf32, #tpu.memory_space<vmem>>) attributes {dimension_semantics = [#tpu.dimension_semantics<parallel>], iteration_bounds = array<i64: 2>, scalar_prefetch = 0 : i64, scratch_operands = 0 : i64, tpu.core_type = #tpu.core_type<tc>, window_params = [{transform_indices = @transform_0, window_bounds = array<i64: 128, 384>}, {pipeline_mode = #tpu.pipeline_mode<synchronous>, transform_indices = @transform_1, window_bounds = array<i64: 384, 128>}, {pipeline_mode = #tpu.pipeline_mode<synchronous>, transform_indices = @transform_2, window_bounds = array<i64: 384, 128>}, {transform_indices = @transform_3, window_bounds = array<i64: 128, 2>}]} {
    %c0 = arith.constant 0 : index
    %c0_0 = arith.constant 0 : index
    %0 = vector.load %arg1[%c0, %c0_0] : memref<128x384xi32, #tpu.memory_space<vmem>>, vector<128x384xi32>
    %1 = arith.sitofp %0 : vector<128x384xi32> to vector<128x384xf32>
    %c0_1 = arith.constant 0 : index
    %c0_2 = arith.constant 0 : index
    %2 = vector.load %arg2[%c0_1, %c0_2] : memref<384x128xf32, #tpu.memory_space<vmem>>, vector<384x128xf32>
    %cst = arith.constant dense<0.000000e+00> : vector<128x128xf32>
    %3 = tpu.matmul %1, %2, %cst {dimension_numbers = #tpu.dot_dimension_numbers<[1], [0], [0], [1], [0, 0, 1, 1], [], []>, precision = #tpu.contract_precision<fp32>} : vector<128x384xf32>, vector<384x128xf32>, vector<128x128xf32> -> vector<128x128xf32>
    %4 = arith.mulf %1, %1 : vector<128x384xf32>
    %c0_3 = arith.constant 0 : index
    %c0_4 = arith.constant 0 : index
    %5 = vector.load %arg3[%c0_3, %c0_4] : memref<384x128xf32, #tpu.memory_space<vmem>>, vector<384x128xf32>
    %cst_5 = arith.constant dense<0.000000e+00> : vector<128x128xf32>
    %6 = tpu.matmul %4, %5, %cst_5 {dimension_numbers = #tpu.dot_dimension_numbers<[1], [0], [0], [1], [0, 0, 1, 1], [], []>, precision = #tpu.contract_precision<fp32>} : vector<128x384xf32>, vector<384x128xf32>, vector<128x128xf32> -> vector<128x128xf32>
    %7 = vector.extract_strided_slice %3 {offsets = [0, 0], sizes = [128, 1], strides = [1, 1]} : vector<128x128xf32> to vector<128x1xf32>
    %8 = vector.extract_strided_slice %3 {offsets = [0, 1], sizes = [128, 1], strides = [1, 1]} : vector<128x128xf32> to vector<128x1xf32>
    %9 = vector.extract_strided_slice %6 {offsets = [0, 0], sizes = [128, 1], strides = [1, 1]} : vector<128x128xf32> to vector<128x1xf32>
    %10 = arith.mulf %7, %7 : vector<128x1xf32>
    %11 = arith.subf %10, %9 : vector<128x1xf32>
    %12 = tpu.concatenate %8, %11 in 1 : vector<128x1xf32>, vector<128x1xf32> -> vector<128x2xf32>
    %c0_6 = arith.constant 0 : index
    %c0_7 = arith.constant 0 : index
    %13 = vector.load %arg4[%c0_6, %c0_7] : memref<128x2xf32, #tpu.memory_space<vmem>>, vector<128x2xf32>
    tpu.vector_store %arg4[%c0_6, %c0_7], %12 {strides = array<i32>} : memref<128x2xf32, #tpu.memory_space<vmem>>, vector<128x2xf32>,
    return
  }
  func.func @transform_0(%arg0: i32) -> (i32, i32) {
    %c0_i32 = arith.constant 0 : i32
    %c0_i32_0 = arith.constant 0 : i32
    return %arg0, %c0_i32 : i32, i32
  }
  func.func @transform_1(%arg0: i32) -> (i32, i32) {
    %c0_i32 = arith.constant 0 : i32
    %c0_i32_0 = arith.constant 0 : i32
    %c0_i32_1 = arith.constant 0 : i32
    return %c0_i32, %c0_i32_0 : i32, i32
  }
  func.func @transform_2(%arg0: i32) -> (i32, i32) {
    %c0_i32 = arith.constant 0 : i32
    %c0_i32_0 = arith.constant 0 : i32
    %c0_i32_1 = arith.constant 0 : i32
    return %c0_i32, %c0_i32_0 : i32, i32
  }
  func.func @transform_3(%arg0: i32) -> (i32, i32) {
    %c0_i32 = arith.constant 0 : i32
    %c0_i32_0 = arith.constant 0 : i32
    return %arg0, %c0_i32 : i32, i32
  }
}

</mosaic_0001>

<llo_original>
// kernel: fm_forward.1
$region0: #{fm_forward.1}
  #allocation0 [shape = 'u32[]', space=smem, size = 0x4, offset = 0x4, fixed_abs, tag = 'smem constant byte address 0x4 - core index']
  #allocation1 [shape = 'u32[144,128]{1,0:T(1,128)}', space=vmem, size = 0x12000, scoped, tag = 'internal scratch']
  %s0 = inlined_call_operand.vmem [shape: s32[256,384], index: 0, kind: input, shape index: {}]
  %s1 = inlined_call_operand.vmem [shape: f32[384,128], index: 1, kind: input, shape index: {}]
  %s2 = inlined_call_operand.vmem [shape: f32[384,128], index: 2, kind: input, shape index: {}]
  %s3 = inlined_call_operand.vmem [shape: f32[256,2], index: 3, kind: output, shape index: {}]
  %s4 = sld [smem:[#allocation0]]
  $region45: #{fm_forward.1} parent=0
    _
  %s6 = ssub.s32 1, %s4
  %s7 = scalar_select 0, %s6, %s4
  loop: start=0, step=1, limit=4
  $region2: #{fm_forward.1} parent=0 // loop_pre_header
    _
  $region3: #{fm_forward.1} parent=0 // loop_header
    %s9 = sphi 0, %s13
    %p10 = scmp.ge.s32.totalorder %s9, 4
    %s19 = sphi 0, %s21
    %s22 = sphi 0, %s19
    %s23 = sphi 0, %s22
    %s39 = sphi 0, %s23
    %s43 = sphi 0, %s43
    %s45 = sphi 0, %s43
    %s46 = sphi 0, %s45
    %s60 = sphi 0, %s46
    %s64 = sphi 0, %s64
    %s66 = sphi 0, %s64
    %s67 = sphi 0, %s66
    %s81 = sphi 0, %s67
    %s87 = sphi 0, %s89
    %s90 = sphi 0, %s87
    %s91 = sphi 0, %s90
    %s107 = sphi 0, %s91
  $region4: #{fm_forward.1} parent=0 // loop_header_branch
    %12 = sbr.rel (%p10) target = $region8
  $region5: #{fm_forward.1} parent=0 // loop_body
    %s14 = ssub.s32 %s9, 1
    %s15 = ssub.s32 %s9, 2
    %s16 = sadd.s32 %s9, 1
    %s17 = ssub.s32 %s9, %s16
    %p18 = scmp.eq.s32.totalorder %s17, 0
    %s20 = sadd.s32 %s19, 1
    %s21 = scalar_select %p18, %s19, %s20
    %p24 = pneg %p18
    %p25 = scmp.eq.s32.totalorder %s9, 1
    %p26 = por %p24, %p25
    %p27 = scmp.ne.s32.totalorder %s19, %s22
    %p28 = scmp.eq.s32.totalorder %s9, 0
    %p29 = por %p27, %p28
    %p30 = scmp.ne.s32.totalorder %s19, %s22
    %p31 = scmp.eq.s32.totalorder %s14, 1
    %p32 = por %p30, %p31
    %p33 = scmp.ne.s32.totalorder %s22, %s23
    %p34 = scmp.eq.s32.totalorder %s14, 0
    %p35 = por %p33, %p34
    %p36 = scmp.ne.s32.totalorder %s22, %s23
    %p37 = scmp.eq.s32.totalorder %s15, 1
    %p38 = por %p36, %p37
    %p40 = scmp.ne.s32.totalorder %s23, %s39
    %p41 = scmp.eq.s32.totalorder %s15, 0
    %p42 = por %p40, %p41
    %s44 = sadd.s32 %s43, 1
    %p47 = scmp.eq.s32.totalorder %s9, 1
    %p48 = scmp.ne.s32.totalorder %s43, %s45
    %p49 = scmp.eq.s32.totalorder %s9, 0
    %p50 = por %p48, %p49
    %p51 = scmp.ne.s32.totalorder %s43, %s45
    %p52 = scmp.eq.s32.totalorder %s14, 1
    %p53 = por %p51, %p52
    %p54 = scmp.ne.s32.totalorder %s45, %s46
    %p55 = scmp.eq.s32.totalorder %s14, 0
    %p56 = por %p54, %p55
    %p57 = scmp.ne.s32.totalorder %s45, %s46
    %p58 = scmp.eq.s32.totalorder %s15, 1
    %p59 = por %p57, %p58
    %p61 = scmp.ne.s32.totalorder %s46, %s60
    %p62 = scmp.eq.s32.totalorder %s15, 0
    %p63 = por %p61, %p62
    %s65 = sadd.s32 %s64, 1
    %p68 = scmp.eq.s32.totalorder %s9, 1
    %p69 = scmp.ne.s32.totalorder %s64, %s66
    %p70 = scmp.eq.s32.totalorder %s9, 0
    %p71 = por %p69, %p70
    %p72 = scmp.ne.s32.totalorder %s64, %s66
    %p73 = scmp.eq.s32.totalorder %s14, 1
    %p74 = por %p72, %p73
    %p75 = scmp.ne.s32.totalorder %s66, %s67
    %p76 = scmp.eq.s32.totalorder %s14, 0
    %p77 = por %p75, %p76
    %p78 = scmp.ne.s32.totalorder %s66, %s67
    %p79 = scmp.eq.s32.totalorder %s15, 1
    %p80 = por %p78, %p79
    %p82 = scmp.ne.s32.totalorder %s67, %s81
    %p83 = scmp.eq.s32.totalorder %s15, 0
    %p84 = por %p82, %p83
    %s85 = ssub.s32 %s9, %s16
    %p86 = scmp.eq.s32.totalorder %s85, 0
    %s88 = sadd.s32 %s87, 1
    %s89 = scalar_select %p86, %s87, %s88
    %p92 = pneg %p86
    %p93 = scmp.eq.s32.totalorder %s9, 1
    %p94 = por %p92, %p93
    %p95 = scmp.ne.s32.totalorder %s87, %s90
    %p96 = scmp.eq.s32.totalorder %s9, 0
    %p97 = por %p95, %p96
    %p98 = scmp.ne.s32.totalorder %s87, %s90
    %p99 = scmp.eq.s32.totalorder %s14, 1
    %p100 = por %p98, %p99
    %p101 = scmp.ne.s32.totalorder %s90, %s91
    %p102 = scmp.eq.s32.totalorder %s14, 0
    %p103 = por %p101, %p102
    %p104 = scmp.ne.s32.totalorder %s90, %s91
    %p105 = scmp.eq.s32.totalorder %s15, 1
    %p106 = por %p104, %p105
    %p108 = scmp.ne.s32.totalorder %s91, %s107
    %p109 = scmp.eq.s32.totalorder %s15, 0
    %p110 = por %p108, %p109
    %p111 = scmp.le.s32.totalorder 1, %s9
    %p112 = scmp.lt.s32.totalorder %s9, 3
    %p113 = pnand %p111, %p112
    %p114 = pneg %p113
    // Predicated region
    $region9: #{fm_forward.1} parent=5 // pred_check
      _
    $region10: #{fm_forward.1} parent=5 // pred_check_branch
      %116 = sbr.rel (%p113) target = $region12
    $region11: #{fm_forward.1} parent=5 // pred_region
      %s117 = ssub.s32 %s9, 1
      // Predicated region
      $region13: #{fm_forward.1} parent=11 // pred_check
        %p118 = pneg %p56
      $region14: #{fm_forward.1} parent=11 // pred_check_branch
        %120 = sbr.rel (%p118) target = $region16
      $region15: #{fm_forward.1} parent=11 // pred_region
        _
      $region16: #{fm_forward.1} parent=11 // pred_fallthru
        _
      // Predicated region
      $region17: #{fm_forward.1} parent=11 // pred_check
        %p121 = pneg %p77
      $region18: #{fm_forward.1} parent=11 // pred_check_branch
        %123 = sbr.rel (%p121) target = $region20
      $region19: #{fm_forward.1} parent=11 // pred_region
        _
      $region20: #{fm_forward.1} parent=11 // pred_fallthru
        _
    $region12: #{fm_forward.1} parent=5 // pred_fallthru
      _
    %p124 = scmp.lt.s32.totalorder %s9, 2
    // Predicated region
    $region21: #{fm_forward.1} parent=5 // pred_check
      %p125 = pneg %p124
    $region22: #{fm_forward.1} parent=5 // pred_check_branch
      %127 = sbr.rel (%p125) target = $region24
    $region23: #{fm_forward.1} parent=5 // pred_region
      // Predicated region
      $region25: #{fm_forward.1} parent=23 // pred_check
        %p128 = pneg %p29
      $region26: #{fm_forward.1} parent=23 // pred_check_branch
        %130 = sbr.rel (%p128) target = $region28
      $region27: #{fm_forward.1} parent=23 // pred_region
        %s131 = smul.u32 16, %s9
        %p132 = scmp.lt.s32.totalorder %s131, 31
        %s133 = scalar_select %p132, %s131, 31
        %s134 = smul.addr %s133, 3
        %s135 = smul.addr %s134, 8
        %s136 = scalar_lea.vmem %s0, %s135
        %s137 = smul.u32 16, %s9
      $region28: #{fm_forward.1} parent=23 // pred_fallthru
        _
    $region24: #{fm_forward.1} parent=5 // pred_fallthru
      _
    %p138 = scmp.le.s32.totalorder 1, %s9
    %p139 = scmp.lt.s32.totalorder %s9, 3
    %p140 = pnand %p138, %p139
    %p141 = pneg %p140
    // Predicated region
    $region29: #{fm_forward.1} parent=5 // pred_check
      _
    $region30: #{fm_forward.1} parent=5 // pred_check_branch
      %143 = sbr.rel (%p140) target = $region32
    $region31: #{fm_forward.1} parent=5 // pred_region
      %s144 = ssub.s32 %s9, 1
      %s145 = smul.u32 16, %s14
      %p146 = scmp.lt.s32.totalorder %s145, 31
      %s147 = scalar_select %p146, %s145, 31
      %s148 = smul.addr %s147, 3
      %s149 = smul.addr %s148, 8
      %s150 = scalar_lea.vmem %s0, %s149
      %p151 = pneg %p35
      %p152 = pneg %p32
      %p153 = pneg %p56
      %p154 = pneg %p53
      %p155 = pneg %p77
      %p156 = pneg %p74
      %p157 = pneg %p103
      %p158 = pneg %p100
      %s159 = smul.u32 16, %s14
      %p160 = scmp.lt.s32.totalorder %s159, 31
      %s161 = scalar_select %p160, %s159, 31
      %s162 = smul.addr %s161, 8
      %s163 = scalar_lea.vmem %s3, %s162
      %s164 = smul.u32 16, %s14
      %p165 = scmp.lt.s32.totalorder %s164, 31
      %s166 = scalar_select %p165, %s164, 31
      %s167 = smul.addr %s166, 3
      %s168 = smul.addr %s167, 8
      %s169 = scalar_lea.vmem %s0, %s168
      %s170 = smul.u32 16, %s14
      %s171 = smul.u32 16, %s14
      %p172 = scmp.lt.s32.totalorder %s171, 31
      %s173 = scalar_select %p172, %s171, 31
      %s174 = smul.addr %s173, 8
      %s175 = scalar_lea.vmem %s3, %s174
      %s176 = smul.u32 16, %s14
      %v177 = vld [vmem:[%s169] sm:$0xff]
      %v178 = vld [vmem:[%s169 + $0x8] sm:$0xff]
      %v179 = vld [vmem:[%s169 + $0x10] sm:$0xff]
      %v180 = vld [vmem:[%s169 + $0x18] sm:$0xff]
      %v181 = vld [vmem:[%s169 + $0x20] sm:$0xff]
      %v182 = vld [vmem:[%s169 + $0x28] sm:$0xff]
      %v183 = vld [vmem:[%s169 + $0x30] sm:$0xff]
      %v184 = vld [vmem:[%s169 + $0x38] sm:$0xff]
      %v185 = vld [vmem:[%s169 + $0x40] sm:$0xff]
      %v186 = vld [vmem:[%s169 + $0x48] sm:$0xff]
      %v187 = vld [vmem:[%s169 + $0x50] sm:$0xff]
      %v188 = vld [vmem:[%s169 + $0x58] sm:$0xff]
      %v189 = vld [vmem:[%s169 + $0x60] sm:$0xff]
      %v190 = vld [vmem:[%s169 + $0x68] sm:$0xff]
      %v191 = vld [vmem:[%s169 + $0x70] sm:$0xff]
      %v192 = vld [vmem:[%s169 + $0x78] sm:$0xff]
      %v193 = vld [vmem:[%s169 + $0x80] sm:$0xff]
      %v194 = vld [vmem:[%s169 + $0x88] sm:$0xff]
      %v195 = vld [vmem:[%s169 + $0x90] sm:$0xff]
      %v196 = vld [vmem:[%s169 + $0x98] sm:$0xff]
      %v197 = vld [vmem:[%s169 + $0xa0] sm:$0xff]
      %v198 = vld [vmem:[%s169 + $0xa8] sm:$0xff]
      %v199 = vld [vmem:[%s169 + $0xb0] sm:$0xff]
      %v200 = vld [vmem:[%s169 + $0xb8] sm:$0xff]
      %v201 = vld [vmem:[%s169 + $0xc0] sm:$0xff]
      %v202 = vld [vmem:[%s169 + $0xc8] sm:$0xff]
      %v203 = vld [vmem:[%s169 + $0xd0] sm:$0xff]
      %v204 = vld [vmem:[%s169 + $0xd8] sm:$0xff]
      %v205 = vld [vmem:[%s169 + $0xe0] sm:$0xff]
      %v206 = vld [vmem:[%s169 + $0xe8] sm:$0xff]
      %v207 = vld [vmem:[%s169 + $0xf0] sm:$0xff]
      %v208 = vld [vmem:[%s169 + $0xf8] sm:$0xff]
      %v209 = vld [vmem:[%s169 + $0x100] sm:$0xff]
      %v210 = vld [vmem:[%s169 + $0x108] sm:$0xff]
      %v211 = vld [vmem:[%s169 + $0x110] sm:$0xff]
      %v212 = vld [vmem:[%s169 + $0x118] sm:$0xff]
      %v213 = vld [vmem:[%s169 + $0x120] sm:$0xff]
      %v214 = vld [vmem:[%s169 + $0x128] sm:$0xff]
      %v215 = vld [vmem:[%s169 + $0x130] sm:$0xff]
      %v216 = vld [vmem:[%s169 + $0x138] sm:$0xff]
      %v217 = vld [vmem:[%s169 + $0x140] sm:$0xff]
      %v218 = vld [vmem:[%s169 + $0x148] sm:$0xff]
      %v219 = vld [vmem:[%s169 + $0x150] sm:$0xff]
      %v220 = vld [vmem:[%s169 + $0x158] sm:$0xff]
      %v221 = vld [vmem:[%s169 + $0x160] sm:$0xff]
      %v222 = vld [vmem:[%s169 + $0x168] sm:$0xff]
      %v223 = vld [vmem:[%s169 + $0x170] sm:$0xff]
      %v224 = vld [vmem:[%s169 + $0x178] sm:$0xff]
      %v225 = vcvt.s32.f32 %v177
      %v226 = vcvt.s32.f32 %v178
      %v227 = vcvt.s32.f32 %v179
      %v228 = vcvt.s32.f32 %v180
      %v229 = vcvt.s32.f32 %v181
      %v230 = vcvt.s32.f32 %v182
      %v231 = vcvt.s32.f32 %v183
      %v232 = vcvt.s32.f32 %v184
      %v233 = vcvt.s32.f32 %v185
      %v234 = vcvt.s32.f32 %v186
      %v235 = vcvt.s32.f32 %v187
      %v236 = vcvt.s32.f32 %v188
      %v237 = vcvt.s32.f32 %v189
      %v238 = vcvt.s32.f32 %v190
      %v239 = vcvt.s32.f32 %v191
      %v240 = vcvt.s32.f32 %v192
      %v241 = vcvt.s32.f32 %v193
      %v242 = vcvt.s32.f32 %v194
      %v243 = vcvt.s32.f32 %v195
      %v244 = vcvt.s32.f32 %v196
      %v245 = vcvt.s32.f32 %v197
      %v246 = vcvt.s32.f32 %v198
      %v247 = vcvt.s32.f32 %v199
      %v248 = vcvt.s32.f32 %v200
      %v249 = vcvt.s32.f32 %v201
      %v250 = vcvt.s32.f32 %v202
      %v251 = vcvt.s32.f32 %v203
      %v252 = vcvt.s32.f32 %v204
      %v253 = vcvt.s32.f32 %v205
      %v254 = vcvt.s32.f32 %v206
      %v255 = vcvt.s32.f32 %v207
      %v256 = vcvt.s32.f32 %v208
      %v257 = vcvt.s32.f32 %v209
      %v258 = vcvt.s32.f32 %v210
      %v259 = vcvt.s32.f32 %v211
      %v260 = vcvt.s32.f32 %v212
      %v261 = vcvt.s32.f32 %v213
      %v262 = vcvt.s32.f32 %v214
      %v263 = vcvt.s32.f32 %v215
      %v264 = vcvt.s32.f32 %v216
      %v265 = vcvt.s32.f32 %v217
      %v266 = vcvt.s32.f32 %v218
      %v267 = vcvt.s32.f32 %v219
      %v268 = vcvt.s32.f32 %v220
      %v269 = vcvt.s32.f32 %v221
      %v270 = vcvt.s32.f32 %v222
      %v271 = vcvt.s32.f32 %v223
      %v272 = vcvt.s32.f32 %v224
      %v273 = vld [vmem:[%s1] sm:$0xff]
      %v274 = vld [vmem:[%s1 + $0x8] sm:$0xff]
      %v275 = vld [vmem:[%s1 + $0x10] sm:$0xff]
      %v276 = vld [vmem:[%s1 + $0x18] sm:$0xff]
      %v277 = vld [vmem:[%s1 + $0x20] sm:$0xff]
      %v278 = vld [vmem:[%s1 + $0x28] sm:$0xff]
      %v279 = vld [vmem:[%s1 + $0x30] sm:$0xff]
      %v280 = vld [vmem:[%s1 + $0x38] sm:$0xff]
      %v281 = vld [vmem:[%s1 + $0x40] sm:$0xff]
      %v282 = vld [vmem:[%s1 + $0x48] sm:$0xff]
      %v283 = vld [vmem:[%s1 + $0x50] sm:$0xff]
      %v284 = vld [vmem:[%s1 + $0x58] sm:$0xff]
      %v285 = vld [vmem:[%s1 + $0x60] sm:$0xff]
      %v286 = vld [vmem:[%s1 + $0x68] sm:$0xff]
      %v287 = vld [vmem:[%s1 + $0x70] sm:$0xff]
      %v288 = vld [vmem:[%s1 + $0x78] sm:$0xff]
      %v289 = vld [vmem:[%s1 + $0x80] sm:$0xff]
      %v290 = vld [vmem:[%s1 + $0x88] sm:$0xff]
      %v291 = vld [vmem:[%s1 + $0x90] sm:$0xff]
      %v292 = vld [vmem:[%s1 + $0x98] sm:$0xff]
      %v293 = vld [vmem:[%s1 + $0xa0] sm:$0xff]
      %v294 = vld [vmem:[%s1 + $0xa8] sm:$0xff]
      %v295 = vld [vmem:[%s1 + $0xb0] sm:$0xff]
      %v296 = vld [vmem:[%s1 + $0xb8] sm:$0xff]
      %v297 = vld [vmem:[%s1 + $0xc0] sm:$0xff]
      %v298 = vld [vmem:[%s1 + $0xc8] sm:$0xff]
      %v299 = vld [vmem:[%s1 + $0xd0] sm:$0xff]
      %v300 = vld [vmem:[%s1 + $0xd8] sm:$0xff]
      %v301 = vld [vmem:[%s1 + $0xe0] sm:$0xff]
      %v302 = vld [vmem:[%s1 + $0xe8] sm:$0xff]
      %v303 = vld [vmem:[%s1 + $0xf0] sm:$0xff]
      %v304 = vld [vmem:[%s1 + $0xf8] sm:$0xff]
      %v305 = vld [vmem:[%s1 + $0x100] sm:$0xff]
      %v306 = vld [vmem:[%s1 + $0x108] sm:$0xff]
      %v307 = vld [vmem:[%s1 + $0x110] sm:$0xff]
      %v308 = vld [vmem:[%s1 + $0x118] sm:$0xff]
      %v309 = vld [vmem:[%s1 + $0x120] sm:$0xff]
      %v310 = vld [vmem:[%s1 + $0x128] sm:$0xff]
      %v311 = vld [vmem:[%s1 + $0x130] sm:$0xff]
      %v312 = vld [vmem:[%s1 + $0x138] sm:$0xff]
      %v313 = vld [vmem:[%s1 + $0x140] sm:$0xff]
      %v314 = vld [vmem:[%s1 + $0x148] sm:$0xff]
      %v315 = vld [vmem:[%s1 + $0x150] sm:$0xff]
      %v316 = vld [vmem:[%s1 + $0x158] sm:$0xff]
      %v317 = vld [vmem:[%s1 + $0x160] sm:$0xff]
      %v318 = vld [vmem:[%s1 + $0x168] sm:$0xff]
      %v319 = vld [vmem:[%s1 + $0x170] sm:$0xff]
      %v320 = vld [vmem:[%s1 + $0x178] sm:$0xff]
      %321 = vmatprep.subr.mxu0 0.0
      %v322 = vand.u32 %v273, 4294901760
      %323 = vmatpush1.msra.mxu0 %v322
      %324 = vmatprep.subr.mxu0 0.0
      %v325 = vand.u32 %v274, 4294901760
      %326 = vmatpush1.msra.mxu0 %v325
      %327 = vmatprep.subr.mxu0 0.0
      %v328 = vand.u32 %v275, 4294901760
      %329 = vmatpush1.msra.mxu0 %v328
      %330 = vmatprep.subr.mxu0 0.0
      %v331 = vand.u32 %v276, 4294901760
      %332 = vmatpush1.msra.mxu0 %v331
      %333 = vmatprep.subr.mxu0 0.0
      %v334 = vand.u32 %v277, 4294901760
      %335 = vmatpush1.msra.mxu0 %v334
      %336 = vmatprep.subr.mxu0 0.0
      %v337 = vand.u32 %v278, 4294901760
      %338 = vmatpush1.msra.mxu0 %v337
      %339 = vmatprep.subr.mxu0 0.0
      %v340 = vand.u32 %v279, 4294901760
      %341 = vmatpush1.msra.mxu0 %v340
      %342 = vmatprep.subr.mxu0 0.0
      %v343 = vand.u32 %v280, 4294901760
      %344 = vmatpush1.msra.mxu0 %v343
      %345 = vmatprep.subr.mxu0 0.0
      %v346 = vand.u32 %v281, 4294901760
      %347 = vmatpush1.msra.mxu0 %v346
      %348 = vmatprep.subr.mxu0 0.0
      %v349 = vand.u32 %v282, 4294901760
      %350 = vmatpush1.msra.mxu0 %v349
      %351 = vmatprep.subr.mxu0 0.0
      %v352 = vand.u32 %v283, 4294901760
      %353 = vmatpush1.msra.mxu0 %v352
      %354 = vmatprep.subr.mxu0 0.0
      %v355 = vand.u32 %v284, 4294901760
      %356 = vmatpush1.msra.mxu0 %v355
      %357 = vmatprep.subr.mxu0 0.0
      %v358 = vand.u32 %v285, 4294901760
      %359 = vmatpush1.msra.mxu0 %v358
      %360 = vmatprep.subr.mxu0 0.0
      %v361 = vand.u32 %v286, 4294901760
      %362 = vmatpush1.msra.mxu0 %v361
      %363 = vmatprep.subr.mxu0 0.0
      %v364 = vand.u32 %v287, 4294901760
      %365 = vmatpush1.msra.mxu0 %v364
      %366 = vmatprep.subr.mxu0 0.0
      %v367 = vand.u32 %v288, 4294901760
      %368 = vmatpush1.msra.mxu0 %v367
      %369 = vmatprep.subr.mxu0 0.0
      %v370 = vand.u32 %v289, 4294901760
      %371 = vmatpush1.msra.mxu0 %v370
      %372 = vmatprep.subr.mxu0 0.0
      %v373 = vand.u32 %v290, 4294901760
      %374 = vmatpush1.msra.mxu0 %v373
      %375 = vmatprep.subr.mxu0 0.0
      %v376 = vand.u32 %v291, 4294901760
      %377 = vmatpush1.msra.mxu0 %v376
      %378 = vmatprep.subr.mxu0 0.0
      %v379 = vand.u32 %v292, 4294901760
      %380 = vmatpush1.msra.mxu0 %v379
      %381 = vmatprep.subr.mxu0 0.0
      %v382 = vand.u32 %v293, 4294901760
      %383 = vmatpush1.msra.mxu0 %v382
      %384 = vmatprep.subr.mxu0 0.0
      %v385 = vand.u32 %v294, 4294901760
      %386 = vmatpush1.msra.mxu0 %v385
      %387 = vmatprep.subr.mxu0 0.0
      %v388 = vand.u32 %v295, 4294901760
      %389 = vmatpush1.msra.mxu0 %v388
      %390 = vmatprep.subr.mxu0 0.0
      %v391 = vand.u32 %v296, 4294901760
      %392 = vmatpush1.msra.mxu0 %v391
      %393 = vmatprep.subr.mxu0 0.0
      %v394 = vand.u32 %v297, 4294901760
      %395 = vmatpush1.msra.mxu0 %v394
      %396 = vmatprep.subr.mxu0 0.0
      %v397 = vand.u32 %v298, 4294901760
      %398 = vmatpush1.msra.mxu0 %v397
      %399 = vmatprep.subr.mxu0 0.0
      %v400 = vand.u32 %v299, 4294901760
      %401 = vmatpush1.msra.mxu0 %v400
      %402 = vmatprep.subr.mxu0 0.0
      %v403 = vand.u32 %v300, 4294901760
      %404 = vmatpush1.msra.mxu0 %v403
      %405 = vmatprep.subr.mxu0 0.0
      %v406 = vand.u32 %v301, 4294901760
      %407 = vmatpush1.msra.mxu0 %v406
      %408 = vmatprep.subr.mxu0 0.0
      %v409 = vand.u32 %v302, 4294901760
      %410 = vmatpush1.msra.mxu0 %v409
      %411 = vmatprep.subr.mxu0 0.0
      %v412 = vand.u32 %v303, 4294901760
      %413 = vmatpush1.msra.mxu0 %v412
      %414 = vmatprep.subr.mxu0 0.0
      %v415 = vand.u32 %v304, 4294901760
      %416 = vmatpush1.msra.mxu0 %v415
      %v417 = vand.u32 %v226, 4294901760
      %v418 = vsub.f32 %v226, %v417
      %v419 = vand.u32 %v418, 4294901760
      %v420 = vsub.f32 %v418, %v419
      %v421 = vand.u32 %v420, 4294901760
      %422 = vmatprep.mubr.f32.mxu0 %v421
      %v423 = vand.u32 %v225, 4294901760
      %v424 = vsub.f32 %v225, %v423
      %v425 = vand.u32 %v424, 4294901760
      %v426 = vsub.f32 %v424, %v425
      %v427 = vand.u32 %v426, 4294901760
      %428 = vmatmul.mubr.f32.gmra.mrb[0].mxu0 %v427
      %v429 = vpop.f32.mrb[0].mxu0
      %v430 = vadd.f32 0.0, %v429
      %v431 = vpop.f32.mrb[0].mxu0
      %v432 = vand.u32 %v229, 4294901760
      %v433 = vsub.f32 %v229, %v432
      %v434 = vand.u32 %v433, 4294901760
      %v435 = vsub.f32 %v433, %v434
      %v436 = vand.u32 %v435, 4294901760
      %437 = vmatprep.mubr.f32.mxu0 %v436
      %v438 = vand.u32 %v228, 4294901760
      %v439 = vsub.f32 %v228, %v438
      %v440 = vand.u32 %v439, 4294901760
      %v441 = vsub.f32 %v439, %v440
      %v442 = vand.u32 %v441, 4294901760
      %443 = vmatmul.mubr.f32.gmra.mrb[0].mxu0 %v442
      %v444 = vpop.f32.mrb[0].mxu0
      %v445 = vadd.f32 0.0, %v444
      %v446 = vpop.f32.mrb[0].mxu0
      %v447 = vand.u32 %v232, 4294901760
      %v448 = vsub.f32 %v232, %v447
      %v449 = vand.u32 %v448, 4294901760
      %v450 = vsub.f32 %v448, %v449
      %v451 = vand.u32 %v450, 4294901760
      %452 = vmatprep.mubr.f32.mxu0 %v451
      %v453 = vand.u32 %v231, 4294901760
      %v454 = vsub.f32 %v231, %v453
      %v455 = vand.u32 %v454, 4294901760
      %v456 = vsub.f32 %v454, %v455
      %v457 = vand.u32 %v456, 4294901760
      %458 = vmatmul.mubr.f32.gmra.mrb[0].mxu0 %v457
      %v459 = vpop.f32.mrb[0].mxu0
      %v460 = vadd.f32 0.0, %v459
      %v461 = vpop.f32.mrb[0].mxu0
      %v462 = vand.u32 %v235, 4294901760
      %v463 = vsub.f32 %v235, %v462
      %v464 = vand.u32 %v463, 4294901760
      %v465 = vsub.f32 %v463, %v464
      %v466 = vand.u32 %v465, 4294901760
      %467 = vmatprep.mubr.f32.mxu0 %v466
      %v468 = vand.u32 %v234, 4294901760
      %v469 = vsub.f32 %v234, %v468
      %v470 = vand.u32 %v469, 4294901760
      %v471 = vsub.f32 %v469, %v470
      %v472 = vand.u32 %v471, 4294901760
      %473 = vmatmul.mubr.f32.gmra.mrb[0].mxu0 %v472
      %v474 = vpop.f32.mrb[0].mxu0
      %v475 = vadd.f32 0.0, %v474
      %v476 = vpop.f32.mrb[0].mxu0
      %v477 = vand.u32 %v238, 4294901760
      %v478 = vsub.f32 %v238, %v477
      %v479 = vand.u32 %v478, 4294901760
      %v480 = vsub.f32 %v478, %v479
      %v481 = vand.u32 %v480, 4294901760
      %482 = vmatprep.mubr.f32.mxu0 %v481
      %v483 = vand.u32 %v237, 4294901760
      %v484 = vsub.f32 %v237, %v483
      %v485 = vand.u32 %v484, 4294901760
      %v486 = vsub.f32 %v484, %v485
      %v487 = vand.u32 %v486, 4294901760
      %488 = vmatmul.mubr.f32.gmra.mrb[0].mxu0 %v487
      %v489 = vpop.f32.mrb[0].mxu0
      %v490 = vadd.f32 0.0, %v489
      %v491 = vpop.f32.mrb[0].mxu0
      %v492 = vand.u32 %v241, 4294901760
      %v493 = vsub.f32 %v241, %v492
      %v494 = vand.u32 %v493, 4294901760
      %v495 = vsub.f32 %v493, %v494
      %v496 = vand.u32 %v495, 4294901760
      %497 = vmatprep.mubr.f32.mxu0 %v496
      %v498 = vand.u32 %v240, 4294901760
      %v499 = vsub.f32 %v240, %v498
      %v500 = vand.u32 %v499, 4294901760
      %v501 = vsub.f32 %v499, %v500
      %v502 = vand.u32 %v501, 4294901760
      %503 = vmatmul.mubr.f32.gmra.mrb[0].mxu0 %v502
      %v504 = vpop.f32.mrb[0].mxu0
      %v505 = vadd.f32 0.0, %v504
      %v506 = vpop.f32.mrb[0].mxu0
      %v507 = vand.u32 %v244, 4294901760
      %v508 = vsub.f32 %v244, %v507
      %v509 = vand.u32 %v508, 4294901760
      %v510 = vsub.f32 %v508, %v509
      %v511 = vand.u32 %v510, 4294901760
      %512 = vmatprep.mubr.f32.mxu0 %v511
      %v513 = vand.u32 %v243, 4294901760
      %v514 = vsub.f32 %v243, %v513
      %v515 = vand.u32 %v514, 4294901760
      %v516 = vsub.f32 %v514, %v515
      %v517 = vand.u32 %v516, 4294901760
      %518 = vmatmul.mubr.f32.gmra.mrb[0].mxu0 %v517
      %v519 = vpop.f32.mrb[0].mxu0
      %v520 = vadd.f32 0.0, %v519
      %v521 = vpop.f32.mrb[0].mxu0
      %v522 = vand.u32 %v247, 4294901760
      %v523 = vsub.f32 %v247, %v522
      %v524 = vand.u32 %v523, 4294901760
      %v525 = vsub.f32 %v523, %v524
      %v526 = vand.u32 %v525, 4294901760
      %527 = vmatprep.mubr.f32.mxu0 %v526
      %v528 = vand.u32 %v246, 4294901760
      %v529 = vsub.f32 %v246, %v528
      %v530 = vand.u32 %v529, 4294901760
      %v531 = vsub.f32 %v529, %v530
      %v532 = vand.u32 %v531, 4294901760
      %533 = vmatmul.mubr.f32.gmra.mrb[0].mxu0 %v532
      %v534 = vpop.f32.mrb[0].mxu0
      %v535 = vadd.f32 0.0, %v534
      %v536 = vpop.f32.mrb[0].mxu0
      %v537 = vand.u32 %v250, 4294901760
      %v538 = vsub.f32 %v250, %v537
      %v539 = vand.u32 %v538, 4294901760
      %v540 = vsub.f32 %v538, %v539
      %v541 = vand.u32 %v540, 4294901760
      %542 = vmatprep.mubr.f32.mxu0 %v541
      %v543 = vand.u32 %v249, 4294901760
      %v544 = vsub.f32 %v249, %v543
      %v545 = vand.u32 %v544, 4294901760
      %v546 = vsub.f32 %v544, %v545
      %v547 = vand.u32 %v546, 4294901760
      %548 = vmatmul.mubr.f32.gmra.mrb[0].mxu0 %v547
      %v549 = vpop.f32.mrb[0].mxu0
      %v550 = vadd.f32 0.0, %v549
      %v551 = vpop.f32.mrb[0].mxu0
      %v552 = vand.u32 %v253, 4294901760
      %v553 = vsub.f32 %v253, %v552
      %v554 = vand.u32 %v553, 4294901760
      %v555 = vsub.f32 %v553, %v554
      %v556 = vand.u32 %v555, 4294901760
      %557 = vmatprep.mubr.f32.mxu0 %v556
      %v558 = vand.u32 %v252, 4294901760
      %v559 = vsub.f32 %v252, %v558
      %v560 = vand.u32 %v559, 4294901760
      %v561 = vsub.f32 %v559, %v560
      %v562 = vand.u32 %v561, 4294901760
      %563 = vmatmul.mubr.f32.gmra.mrb[0].mxu0 %v562
      %v564 = vpop.f32.mrb[0].mxu0
      %v565 = vadd.f32 0.0, %v564
      %v566 = vpop.f32.mrb[0].mxu0
      %v567 = vand.u32 %v256, 4294901760
      %v568 = vsub.f32 %v256, %v567
      %v569 = vand.u32 %v568, 4294901760
      %v570 = vsub.f32 %v568, %v569
      %v571 = vand.u32 %v570, 4294901760
      %572 = vmatprep.mubr.f32.mxu0 %v571
      %v573 = vand.u32 %v255, 4294901760
      %v574 = vsub.f32 %v255, %v573
      %v575 = vand.u32 %v574, 4294901760
      %v576 = vsub.f32 %v574, %v575
      %v577 = vand.u32 %v576, 4294901760
      %578 = vmatmul.mubr.f32.gmra.mrb[0].mxu0 %v577
      %v579 = vpop.f32.mrb[0].mxu0
      %v580 = vadd.f32 0.0, %v579
      %v581 = vpop.f32.mrb[0].mxu0
      %v582 = vand.u32 %v259, 4294901760
      %v583 = vsub.f32 %v259, %v582
      %v584 = vand.u32 %v583, 4294901760
      %v585 = vsub.f32 %v583, %v584
      %v586 = vand.u32 %v585, 4294901760
      %587 = vmatprep.mubr.f32.mxu0 %v586
      %v588 = vand.u32 %v258, 4294901760
      %v589 = vsub.f32 %v258, %v588
      %v590 = vand.u32 %v589, 4294901760
      %v591 = vsub.f32 %v589, %v590
      %v592 = vand.u32 %v591, 4294901760
      %593 = vmatmul.mubr.f32.gmra.mrb[0].mxu0 %v592
      %v594 = vpop.f32.mrb[0].mxu0
      %v595 = vadd.f32 0.0, %v594
      %v596 = vpop.f32.mrb[0].mxu0
      %v597 = vand.u32 %v262, 4294901760
      %v598 = vsub.f32 %v262, %v597
      %v599 = vand.u32 %v598, 4294901760
      %v600 = vsub.f32 %v598, %v599
      %v601 = vand.u32 %v600, 4294901760
      %602 = vmatprep.mubr.f32.mxu0 %v601
      %v603 = vand.u32 %v261, 4294901760
      %v604 = vsub.f32 %v261, %v603
      %v605 = vand.u32 %v604, 4294901760
      %v606 = vsub.f32 %v604, %v605
      %v607 = vand.u32 %v606, 4294901760
      %608 = vmatmul.mubr.f32.gmra.mrb[0].mxu0 %v607
      %v609 = vpop.f32.mrb[0].mxu0
      %v610 = vadd.f32 0.0, %v609
      %v611 = vpop.f32.mrb[0].mxu0
      %v612 = vand.u32 %v265, 4294901760
      %v613 = vsub.f32 %v265, %v612
      %v614 = vand.u32 %v613, 4294901760
      %v615 = vsub.f32 %v613, %v614
      %v616 = vand.u32 %v615, 4294901760
      %617 = vmatprep.mubr.f32.mxu0 %v616
      %v618 = vand.u32 %v264, 4294901760
      %v619 = vsub.f32 %v264, %v618
      %v620 = vand.u32 %v619, 4294901760
      %v621 = vsub.f32 %v619, %v620
      %v622 = vand.u32 %v621, 4294901760
      %623 = vmatmul.mubr.f32.gmra.mrb[0].mxu0 %v622
      %v624 = vpop.f32.mrb[0].mxu0
      %v625 = vadd.f32 0.0, %v624
      %v626 = vpop.f32.mrb[0].mxu0
      %v627 = vand.u32 %v268, 4294901760
      %v628 = vsub.f32 %v268, %v627
      %v629 = vand.u32 %v628, 4294901760
      %v630 = vsub.f32 %v628, %v629
      %v631 = vand.u32 %v630, 4294901760
      %632 = vmatprep.mubr.f32.mxu0 %v631
      %v633 = vand.u32 %v267, 4294901760
      %v634 = vsub.f32 %v267, %v633
      %v635 = vand.u32 %v634, 4294901760
      %v636 = vsub.f32 %v634, %v635
      %v637 = vand.u32 %v636, 4294901760
      %638 = vmatmul.mubr.f32.gmra.mrb[0].mxu0 %v637
      %v639 = vpop.f32.mrb[0].mxu0
      %v640 = vadd.f32 0.0, %v639
      %v641 = vpop.f32.mrb[0].mxu0
      %v642 = vand.u32 %v271, 4294901760
      %v643 = vsub.f32 %v271, %v642
      %v644 = vand.u32 %v643, 4294901760
      %v645 = vsub.f32 %v643, %v644
      %v646 = vand.u32 %v645, 4294901760
      %647 = vmatprep.mubr.f32.mxu0 %v646
      %v648 = vand.u32 %v270, 4294901760
      %v649 = vsub.f32 %v270, %v648
      %v650 = vand.u32 %v649, 4294901760
      %v651 = vsub.f32 %v649, %v650
      %v652 = vand.u32 %v651, 4294901760
      %653 = vmatmul.mubr.f32.gmra.mrb[0].mxu0 %v652
      %v654 = vpop.f32.mrb[0].mxu0
      %v655 = vadd.f32 0.0, %v654
      %v656 = vpop.f32.mrb[0].mxu0
      %657 = vdwg.mxu0
      %658 = vmatprep.subr.mxu0 0.0
      %v659 = vand.u32 %v273, 4294901760
      %v660 = vsub.f32 %v273, %v659
      %v661 = vand.u32 %v660, 4294901760
      %v662 = vsub.f32 %v660, %v661
      %v663 = vand.u32 %v662, 4294901760
      %664 = vmatpush1.msra.mxu0 %v663
      %665 = vmatprep.subr.mxu0 0.0
      %v666 = vand.u32 %v274, 4294901760
      %v667 = vsub.f32 %v274, %v666
      %v668 = vand.u32 %v667, 4294901760
      %v669 = vsub.f32 %v667, %v668
      %v670 = vand.u32 %v669, 4294901760
      %671 = vmatpush1.msra.mxu0 %v670
      %672 = vmatprep.subr.mxu0 0.0
      %v673 = vand.u32 %v275, 4294901760
      %v674 = vsub.f32 %v275, %v673
      %v675 = vand.u32 %v674, 4294901760
      %v676 = vsub.f32 %v674, %v675
      %v677 = vand.u32 %v676, 4294901760
      %678 = vmatpush1.msra.mxu0 %v677
      %679 = vmatprep.subr.mxu0 0.0
      %v680 = vand.u32 %v276, 4294901760
      %v681 = vsub.f32 %v276, %v680
      %v682 = vand.u32 %v681, 4294901760
      %v683 = vsub.f32 %v681, %v682
      %v684 = vand.u32 %v683, 4294901760
      %685 = vmatpush1.msra.mxu0 %v684
      %686 = vmatprep.subr.mxu0 0.0
      %v687 = vand.u32 %v277, 4294901760
      %v688 = vsub.f32 %v277, %v687
      %v689 = vand.u32 %v688, 4294901760
      %v690 = vsub.f32 %v688, %v689
      %v691 = vand.u32 %v690, 4294901760
      %692 = vmatpush1.msra.mxu0 %v691
      %693 = vmatprep.subr.mxu0 0.0
      %v694 = vand.u32 %v278, 4294901760
      %v695 = vsub.f32 %v278, %v694
      %v696 = vand.u32 %v695, 4294901760
      %v697 = vsub.f32 %v695, %v696
      %v698 = vand.u32 %v697, 4294901760
      %699 = vmatpush1.msra.mxu0 %v698
      %700 = vmatprep.subr.mxu0 0.0
      %v701 = vand.u32 %v279, 4294901760
      %v702 = vsub.f32 %v279, %v701
      %v703 = vand.u32 %v702, 4294901760
      %v704 = vsub.f32 %v702, %v703
      %v705 = vand.u32 %v704, 4294901760
      %706 = vmatpush1.msra.mxu0 %v705
      %707 = vmatprep.subr.mxu0 0.0
      %v708 = vand.u32 %v280, 4294901760
      %v709 = vsub.f32 %v280, %v708
      %v710 = vand.u32 %v709, 4294901760
      %v711 = vsub.f32 %v709, %v710
      %v712 = vand.u32 %v711, 4294901760
      %713 = vmatpush1.msra.mxu0 %v712
      %714 = vmatprep.subr.mxu0 0.0
      %v715 = vand.u32 %v281, 4294901760
      %v716 = vsub.f32 %v281, %v715
      %v717 = vand.u32 %v716, 4294901760
      %v718 = vsub.f32 %v716, %v717
      %v719 = vand.u32 %v718, 4294901760
      %720 = vmatpush1.msra.mxu0 %v719
      %721 = vmatprep.subr.mxu0 0.0
      %v722 = vand.u32 %v282, 4294901760
      %v723 = vsub.f32 %v282, %v722
      %v724 = vand.u32 %v723, 4294901760
      %v725 = vsub.f32 %v723, %v724
      %v726 = vand.u32 %v725, 4294901760
      %727 = vmatpush1.msra.mxu0 %v726
      %728 = vmatprep.subr.mxu0 0.0
      %v729 = vand.u32 %v283, 4294901760
      %v730 = vsub.f32 %v283, %v729
      %v731 = vand.u32 %v730, 4294901760
      %v732 = vsub.f32 %v730, %v731
      %v733 = vand.u32 %v732, 4294901760
      %734 = vmatpush1.msra.mxu0 %v733
      %735 = vmatprep.subr.mxu0 0.0
      %v736 = vand.u32 %v284, 4294901760
      %v737 = vsub.f32 %v284, %v736
      %v738 = vand.u32 %v737, 4294901760
      %v739 = vsub.f32 %v737, %v738
      %v740 = vand.u32 %v739, 4294901760
      %741 = vmatpush1.msra.mxu0 %v740
      %742 = vmatprep.subr.mxu0 0.0
      %v743 = vand.u32 %v285, 4294901760
      %v744 = vsub.f32 %v285, %v743
      %v745 = vand.u32 %v744, 4294901760
      %v746 = vsub.f32 %v744, %v745
      %v747 = vand.u32 %v746, 4294901760
      %748 = vmatpush1.msra.mxu0 %v747
      %749 = vmatprep.subr.mxu0 0.0
      %v750 = vand.u32 %v286, 4294901760
      %v751 = vsub.f32 %v286, %v750
      %v752 = vand.u32 %v751, 4294901760
      %v753 = vsub.f32 %v751, %v752
      %v754 = vand.u32 %v753, 4294901760
      %755 = vmatpush1.msra.mxu0 %v754
      %756 = vmatprep.subr.mxu0 0.0
      %v757 = vand.u32 %v287, 4294901760
      %v758 = vsub.f32 %v287, %v757
      %v759 = vand.u32 %v758, 4294901760
      %v760 = vsub.f32 %v758, %v759
      %v761 = vand.u32 %v760, 4294901760
      %762 = vmatpush1.msra.mxu0 %v761
      %763 = vmatprep.subr.mxu0 0.0
      %v764 = vand.u32 %v288, 4294901760
      %v765 = vsub.f32 %v288, %v764
      %v766 = vand.u32 %v765, 4294901760
      %v767 = vsub.f32 %v765, %v766
      %v768 = vand.u32 %v767, 4294901760
      %769 = vmatpush1.msra.mxu0 %v768
      %770 = vmatprep.subr.mxu0 0.0
      %v771 = vand.u32 %v289, 4294901760
      %v772 = vsub.f32 %v289, %v771
      %v773 = vand.u32 %v772, 4294901760
      %v774 = vsub.f32 %v772, %v773
      %v775 = vand.u32 %v774, 4294901760
      %776 = vmatpush1.msra.mxu0 %v775
      %777 = vmatprep.subr.mxu0 0.0
      %v778 = vand.u32 %v290, 4294901760
      %v779 = vsub.f32 %v290, %v778
      %v780 = vand.u32 %v779, 4294901760
      %v781 = vsub.f32 %v779, %v780
      %v782 = vand.u32 %v781, 4294901760
      %783 = vmatpush1.msra.mxu0 %v782
      %784 = vmatprep.subr.mxu0 0.0
      %v785 = vand.u32 %v291, 4294901760
      %v786 = vsub.f32 %v291, %v785
      %v787 = vand.u32 %v786, 4294901760
      %v788 = vsub.f32 %v786, %v787
      %v789 = vand.u32 %v788, 4294901760
      %790 = vmatpush1.msra.mxu0 %v789
      %791 = vmatprep.subr.mxu0 0.0
      %v792 = vand.u32 %v292, 4294901760
      %v793 = vsub.f32 %v292, %v792
      %v794 = vand.u32 %v793, 4294901760
      %v795 = vsub.f32 %v793, %v794
      %v796 = vand.u32 %v795, 4294901760
      %797 = vmatpush1.msra.mxu0 %v796
      %798 = vmatprep.subr.mxu0 0.0
      %v799 = vand.u32 %v293, 4294901760
      %v800 = vsub.f32 %v293, %v799
      %v801 = vand.u32 %v800, 4294901760
      %v802 = vsub.f32 %v800, %v801
      %v803 = vand.u32 %v802, 4294901760
      %804 = vmatpush1.msra.mxu0 %v803
      %805 = vmatprep.subr.mxu0 0.0
      %v806 = vand.u32 %v294, 4294901760
      %v807 = vsub.f32 %v294, %v806
      %v808 = vand.u32 %v807, 4294901760
      %v809 = vsub.f32 %v807, %v808
      %v810 = vand.u32 %v809, 4294901760
      %811 = vmatpush1.msra.mxu0 %v810
      %812 = vmatprep.subr.mxu0 0.0
      %v813 = vand.u32 %v295, 4294901760
      %v814 = vsub.f32 %v295, %v813
      %v815 = vand.u32 %v814, 4294901760
      %v816 = vsub.f32 %v814, %v815
      %v817 = vand.u32 %v816, 4294901760
      %818 = vmatpush1.msra.mxu0 %v817
      %819 = vmatprep.subr.mxu0 0.0
      %v820 = vand.u32 %v296, 4294901760
      %v821 = vsub.f32 %v296, %v820
      %v822 = vand.u32 %v821, 4294901760
      %v823 = vsub.f32 %v821, %v822
      %v824 = vand.u32 %v823, 4294901760
      %825 = vmatpush1.msra.mxu0 %v824
      %826 = vmatprep.subr.mxu0 0.0
      %v827 = vand.u32 %v297, 4294901760
      %v828 = vsub.f32 %v297, %v827
      %v829 = vand.u32 %v828, 4294901760
      %v830 = vsub.f32 %v828, %v829
      %v831 = vand.u32 %v830, 4294901760
      %832 = vmatpush1.msra.mxu0 %v831
      %833 = vmatprep.subr.mxu0 0.0
      %v834 = vand.u32 %v298, 4294901760
      %v835 = vsub.f32 %v298, %v834
      %v836 = vand.u32 %v835, 4294901760
      %v837 = vsub.f32 %v835, %v836
      %v838 = vand.u32 %v837, 4294901760
      %839 = vmatpush1.msra.mxu0 %v838
      %840 = vmatprep.subr.mxu0 0.0
      %v841 = vand.u32 %v299, 4294901760
      %v842 = vsub.f32 %v299, %v841
      %v843 = vand.u32 %v842, 4294901760
      %v844 = vsub.f32 %v842, %v843
      %v845 = vand.u32 %v844, 4294901760
      %846 = vmatpush1.msra.mxu0 %v845
      %847 = vmatprep.subr.mxu0 0.0
      %v848 = vand.u32 %v300, 4294901760
      %v849 = vsub.f32 %v300, %v848
      %v850 = vand.u32 %v849, 4294901760
      %v851 = vsub.f32 %v849, %v850
      %v852 = vand.u32 %v851, 4294901760
      %853 = vmatpush1.msra.mxu0 %v852
      %854 = vmatprep.subr.mxu0 0.0
      %v855 = vand.u32 %v301, 4294901760
      %v856 = vsub.f32 %v301, %v855
      %v857 = vand.u32 %v856, 4294901760
      %v858 = vsub.f32 %v856, %v857
      %v859 = vand.u32 %v858, 4294901760
      %860 = vmatpush1.msra.mxu0 %v859
      %861 = vmatprep.subr.mxu0 0.0
      %v862 = vand.u32 %v302, 4294901760
      %v863 = vsub.f32 %v302, %v862
      %v864 = vand.u32 %v863, 4294901760
      %v865 = vsub.f32 %v863, %v864
      %v866 = vand.u32 %v865, 4294901760
      %867 = vmatpush1.msra.mxu0 %v866
      %868 = vmatprep.subr.mxu0 0.0
      %v869 = vand.u32 %v303, 4294901760
      %v870 = vsub.f32 %v303, %v869
      %v871 = vand.u32 %v870, 4294901760
      %v872 = vsub.f32 %v870, %v871
      %v873 = vand.u32 %v872, 4294901760
      %874 = vmatpush1.msra.mxu0 %v873
      %875 = vmatprep.subr.mxu0 0.0
      %v876 = vand.u32 %v304, 4294901760
      %v877 = vsub.f32 %v304, %v876
      %v878 = vand.u32 %v877, 4294901760
      %v879 = vsub.f32 %v877, %v878
      %v880 = vand.u32 %v879, 4294901760
      %881 = vmatpush1.msra.mxu0 %v880
      %v882 = vand.u32 %v226, 4294901760
      %883 = vmatprep.mubr.f32.mxu0 %v882
      %v884 = vand.u32 %v225, 4294901760
      %885 = vmatmul.mubr.f32.gmra.mrb[0].mxu0 %v884
      %v886 = vpop.f32.mrb[0].mxu0
      %v887 = vadd.f32 %v430, %v886
      %v888 = vpop.f32.mrb[0].mxu0
      %v889 = vand.u32 %v229, 4294901760
      %890 = vmatprep.mubr.f32.mxu0 %v889
      %v891 = vand.u32 %v228, 4294901760
      %892 = vmatmul.mubr.f32.gmra.mrb[0].mxu0 %v891
      %v893 = vpop.f32.mrb[0].mxu0
      %v894 = vadd.f32 %v445, %v893
      %v895 = vpop.f32.mrb[0].mxu0
      %v896 = vand.u32 %v232, 4294901760
      %897 = vmatprep.mubr.f32.mxu0 %v896
      %v898 = vand.u32 %v231, 4294901760
      %899 = vmatmul.mubr.f32.gmra.mrb[0].mxu0 %v898
      %v900 = vpop.f32.mrb[0].mxu0
      %v901 = vadd.f32 %v460, %v900
      %v902 = vpop.f32.mrb[0].mxu0
      %v903 = vand.u32 %v235, 4294901760
      %904 = vmatprep.mubr.f32.mxu0 %v903
      %v905 = vand.u32 %v234, 4294901760
      %906 = vmatmul.mubr.f32.gmra.mrb[0].mxu0 %v905
      %v907 = vpop.f32.mrb[0].mxu0
      %v908 = vadd.f32 %v475, %v907
      %v909 = vpop.f32.mrb[0].mxu0
      %v910 = vand.u32 %v238, 4294901760
      %911 = vmatprep.mubr.f32.mxu0 %v910
      %v912 = vand.u32 %v237, 4294901760
      %913 = vmatmul.mubr.f32.gmra.mrb[0].mxu0 %v912
      %v914 = vpop.f32.mrb[0].mxu0
      %v915 = vadd.f32 %v490, %v914
      %v916 = vpop.f32.mrb[0].mxu0
      %v917 = vand.u32 %v241, 4294901760
      %918 = vmatprep.mubr.f32.mxu0 %v917
      %v919 = vand.u32 %v240, 4294901760
      %920 = vmatmul.mubr.f32.gmra.mrb[0].mxu0 %v919
      %v921 = vpop.f32.mrb[0].mxu0
      %v922 = vadd.f32 %v505, %v921
      %v923 = vpop.f32.mrb[0].mxu0
      %v924 = vand.u32 %v244, 4294901760
      %925 = vmatprep.mubr.f32.mxu0 %v924
      %v926 = vand.u32 %v243, 4294901760
      %927 = vmatmul.mubr.f32.gmra.mrb[0].mxu0 %v926
      %v928 = vpop.f32.mrb[0].mxu0
      %v929 = vadd.f32 %v520, %v928
      %v930 = vpop.f32.mrb[0].mxu0
      %v931 = vand.u32 %v247, 4294901760
      %932 = vmatprep.mubr.f32.mxu0 %v931
      %v933 = vand.u32 %v246, 4294901760
      %934 = vmatmul.mubr.f32.gmra.mrb[0].mxu0 %v933
      %v935 = vpop.f32.mrb[0].mxu0
      %v936 = vadd.f32 %v535, %v935
      %v937 = vpop.f32.mrb[0].mxu0
      %v938 = vand.u32 %v250, 4294901760
      %939 = vmatprep.mubr.f32.mxu0 %v938
      %v940 = vand.u32 %v249, 4294901760
      %941 = vmatmul.mubr.f32.gmra.mrb[0].mxu0 %v940
      %v942 = vpop.f32.mrb[0].mxu0
      %v943 = vadd.f32 %v550, %v942
      %v944 = vpop.f32.mrb[0].mxu0
      %v945 = vand.u32 %v253, 4294901760
      %946 = vmatprep.mubr.f32.mxu0 %v945
      %v947 = vand.u32 %v252, 4294901760
      %948 = vmatmul.mubr.f32.gmra.mrb[0].mxu0 %v947
      %v949 = vpop.f32.mrb[0].mxu0
      %v950 = vadd.f32 %v565, %v949
      %v951 = vpop.f32.mrb[0].mxu0
      %v952 = vand.u32 %v256, 4294901760
      %953 = vmatprep.mubr.f32.mxu0 %v952
      %v954 = vand.u32 %v255, 4294901760
      %955 = vmatmul.mubr.f32.gmra.mrb[0].mxu0 %v954
      %v956 = vpop.f32.mrb[0].mxu0
      %v957 = vadd.f32 %v580, %v956
      %v958 = vpop.f32.mrb[0].mxu0
      %v959 = vand.u32 %v259, 4294901760
      %960 = vmatprep.mubr.f32.mxu0 %v959
      %v961 = vand.u32 %v258, 4294901760
      %962 = vmatmul.mubr.f32.gmra.mrb[0].mxu0 %v961
      %v963 = vpop.f32.mrb[0].mxu0
      %v964 = vadd.f32 %v595, %v963
      %v965 = vpop.f32.mrb[0].mxu0
      %v966 = vand.u32 %v262, 4294901760
      %967 = vmatprep.mubr.f32.mxu0 %v966
      %v968 = vand.u32 %v261, 4294901760
      %969 = vmatmul.mubr.f32.gmra.mrb[0].mxu0 %v968
      %v970 = vpop.f32.mrb[0].mxu0
      %v971 = vadd.f32 %v610, %v970
      %v972 = vpop.f32.mrb[0].mxu0
      %v973 = vand.u32 %v265, 4294901760
      %974 = vmatprep.mubr.f32.mxu0 %v973
      %v975 = vand.u32 %v264, 4294901760
      %976 = vmatmul.mubr.f32.gmra.mrb[0].mxu0 %v975
      %v977 = vpop.f32.mrb[0].mxu0
      %v978 = vadd.f32 %v625, %v977
      %v979 = vpop.f32.mrb[0].mxu0
      %v980 = vand.u32 %v268, 4294901760
      %981 = vmatprep.mubr.f32.mxu0 %v980
      %v982 = vand.u32 %v267, 4294901760
      %983 = vmatmul.mubr.f32.gmra.mrb[0].mxu0 %v982
      %v984 = vpop.f32.mrb[0].mxu0
      %v985 = vadd.f32 %v640, %v984
      %v986 = vpop.f32.mrb[0].mxu0
      %v987 = vand.u32 %v271, 4294901760
      %988 = vmatprep.mubr.f32.mxu0 %v987
      %v989 = vand.u32 %v270, 4294901760
      %990 = vmatmul.mubr.f32.gmra.mrb[0].mxu0 %v989
      %v991 = vpop.f32.mrb[0].mxu0
      %v992 = vadd.f32 %v655, %v991
      %v993 = vpop.f32.mrb[0].mxu0
      %994 = vdwg.mxu0
      %995 = vmatprep.subr.mxu0 0.0
      %v996 = vand.u32 %v273, 4294901760
      %v997 = vsub.f32 %v273, %v996
      %998 = vmatpush1.msra.mxu0 %v997
      %999 = vmatprep.subr.mxu0 0.0
      %v1000 = vand.u32 %v274, 4294901760
      %v1001 = vsub.f32 %v274, %v1000
      %1002 = vmatpush1.msra.mxu0 %v1001
      %1003 = vmatprep.subr.mxu0 0.0
      %v1004 = vand.u32 %v275, 4294901760
      %v1005 = vsub.f32 %v275, %v1004
      %1006 = vmatpush1.msra.mxu0 %v1005
      %1007 = vmatprep.subr.mxu0 0.0
      %v1008 = vand.u32 %v276, 4294901760
      %v1009 = vsub.f32 %v276, %v1008
      %1010 = vmatpush1.msra.mxu0 %v1009
      %1011 = vmatprep.subr.mxu0 0.0
      %v1012 = vand.u32 %v277, 4294901760
      %v1013 = vsub.f32 %v277, %v1012
      %1014 = vmatpush1.msra.mxu0 %v1013
      %1015 = vmatprep.subr.mxu0 0.0
      %v1016 = vand.u32 %v278, 4294901760
      %v1017 = vsub.f32 %v278, %v1016
      %1018 = vmatpush1.msra.mxu0 %v1017
      %1019 = vmatprep.subr.mxu0 0.0
      %v1020 = vand.u32 %v279, 4294901760
      %v1021 = vsub.f32 %v279, %v1020
      %1022 = vmatpush1.msra.mxu0 %v1021
      %1023 = vmatprep.subr.mxu0 0.0
      %v1024 = vand.u32 %v280, 4294901760
      %v1025 = vsub.f32 %v280, %v1024
      %1026 = vmatpush1.msra.mxu0 %v1025
      %1027 = vmatprep.subr.mxu0 0.0
      %v1028 = vand.u32 %v281, 4294901760
      %v1029 = vsub.f32 %v281, %v1028
      %1030 = vmatpush1.msra.mxu0 %v1029
      %1031 = vmatprep.subr.mxu0 0.0
      %v1032 = vand.u32 %v282, 4294901760
      %v1033 = vsub.f32 %v282, %v1032
      %1034 = vmatpush1.msra.mxu0 %v1033
      %1035 = vmatprep.subr.mxu0 0.0
      %v1036 = vand.u32 %v283, 4294901760
      %v1037 = vsub.f32 %v283, %v1036
      %1038 = vmatpush1.msra.mxu0 %v1037
      %1039 = vmatprep.subr.mxu0 0.0
      %v1040 = vand.u32 %v284, 4294901760
      %v1041 = vsub.f32 %v284, %v1040
      %1042 = vmatpush1.msra.mxu0 %v1041
      %1043 = vmatprep.subr.mxu0 0.0
      %v1044 = vand.u32 %v285, 4294901760
      %v1045 = vsub.f32 %v285, %v1044
      %1046 = vmatpush1.msra.mxu0 %v1045
      %1047 = vmatprep.subr.mxu0 0.0
      %v1048 = vand.u32 %v286, 4294901760
      %v1049 = vsub.f32 %v286, %v1048
      %1050 = vmatpush1.msra.mxu0 %v1049
      %1051 = vmatprep.subr.mxu0 0.0
      %v1052 = vand.u32 %v287, 4294901760
      %v1053 = vsub.f32 %v287, %v1052
      %1054 = vmatpush1.msra.mxu0 %v1053
      %1055 = vmatprep.subr.mxu0 0.0
      %v1056 = vand.u32 %v288, 4294901760
      %v1057 = vsub.f32 %v288, %v1056
      %1058 = vmatpush1.msra.mxu0 %v1057
      %1059 = vmatprep.subr.mxu0 0.0
      %v1060 = vand.u32 %v289, 4294901760
      %v1061 = vsub.f32 %v289, %v1060
      %1062 = vmatpush1.msra.mxu0 %v1061
      %1063 = vmatprep.subr.mxu0 0.0
      %v1064 = vand.u32 %v290, 4294901760
      %v1065 = vsub.f32 %v290, %v1064
      %1066 = vmatpush1.msra.mxu0 %v1065
      %1067 = vmatprep.subr.mxu0 0.0
      %v1068 = vand.u32 %v291, 4294901760
      %v1069 = vsub.f32 %v291, %v1068
      %1070 = vmatpush1.msra.mxu0 %v1069
      %1071 = vmatprep.subr.mxu0 0.0
      %v1072 = vand.u32 %v292, 4294901760
      %v1073 = vsub.f32 %v292, %v1072
      %1074 = vmatpush1.msra.mxu0 %v1073
      %1075 = vmatprep.subr.mxu0 0.0
      %v1076 = vand.u32 %v293, 4294901760
      %v1077 = vsub.f32 %v293, %v1076
      %1078 = vmatpush1.msra.mxu0 %v1077
      %1079 = vmatprep.subr.mxu0 0.0
      %v1080 = vand.u32 %v294, 4294901760
      %v1081 = vsub.f32 %v294, %v1080
      %1082 = vmatpush1.msra.mxu0 %v1081
      %1083 = vmatprep.subr.mxu0 0.0
      %v1084 = vand.u32 %v295, 4294901760
      %v1085 = vsub.f32 %v295, %v1084
      %1086 = vmatpush1.msra.mxu0 %v1085
      %1087 = vmatprep.subr.mxu0 0.0
      %v1088 = vand.u32 %v296, 4294901760
      %v1089 = vsub.f32 %v296, %v1088
      %1090 = vmatpush1.msra.mxu0 %v1089
      %1091 = vmatprep.subr.mxu0 0.0
      %v1092 = vand.u32 %v297, 4294901760
      %v1093 = vsub.f32 %v297, %v1092
      %1094 = vmatpush1.msra.mxu0 %v1093
      %1095 = vmatprep.subr.mxu0 0.0
      %v1096 = vand.u32 %v298, 4294901760
      %v1097 = vsub.f32 %v298, %v1096
      %1098 = vmatpush1.msra.mxu0 %v1097
      %1099 = vmatprep.subr.mxu0 0.0
      %v1100 = vand.u32 %v299, 4294901760
      %v1101 = vsub.f32 %v299, %v1100
      %1102 = vmatpush1.msra.mxu0 %v1101
      %1103 = vmatprep.subr.mxu0 0.0
      %v1104 = vand.u32 %v300, 4294901760
      %v1105 = vsub.f32 %v300, %v1104
      %1106 = vmatpush1.msra.mxu0 %v1105
      %1107 = vmatprep.subr.mxu0 0.0
      %v1108 = vand.u32 %v301, 4294901760
      %v1109 = vsub.f32 %v301, %v1108
      %1110 = vmatpush1.msra.mxu0 %v1109
      %1111 = vmatprep.subr.mxu0 0.0
      %v1112 = vand.u32 %v302, 4294901760
      %v1113 = vsub.f32 %v302, %v1112
      %1114 = vmatpush1.msra.mxu0 %v1113
      %1115 = vmatprep.subr.mxu0 0.0
      %v1116 = vand.u32 %v303, 4294901760
      %v1117 = vsub.f32 %v303, %v1116
      %1118 = vmatpush1.msra.mxu0 %v1117
      %1119 = vmatprep.subr.mxu0 0.0
      %v1120 = vand.u32 %v304, 4294901760
      %v1121 = vsub.f32 %v304, %v1120
      %1122 = vmatpush1.msra.mxu0 %v1121
      %v1123 = vand.u32 %v226, 4294901760
      %v1124 = vsub.f32 %v226, %v1123
      %1125 = vmatprep.mubr.f32.mxu0 %v1124
      %v1126 = vand.u32 %v225, 4294901760
      %v1127 = vsub.f32 %v225, %v1126
      %1128 = vmatmul.mubr.f32.gmra.mrb[0].mxu0 %v1127
      %v1129 = vpop.f32.mrb[0].mxu0
      %v1130 = vadd.f32 %v887, %v1129
      %v1131 = vpop.f32.mrb[0].mxu0
      %v1132 = vand.u32 %v229, 4294901760
      %v1133 = vsub.f32 %v229, %v1132
      %1134 = vmatprep.mubr.f32.mxu0 %v1133
      %v1135 = vand.u32 %v228, 4294901760
      %v1136 = vsub.f32 %v228, %v1135
      %1137 = vmatmul.mubr.f32.gmra.mrb[0].mxu0 %v1136
      %v1138 = vpop.f32.mrb[0].mxu0
      %v1139 = vadd.f32 %v894, %v1138
      %v1140 = vpop.f32.mrb[0].mxu0
      %v1141 = vand.u32 %v232, 4294901760
      %v1142 = vsub.f32 %v232, %v1141
      %1143 = vmatprep.mubr.f32.mxu0 %v1142
      %v1144 = vand.u32 %v231, 4294901760
      %v1145 = vsub.f32 %v231, %v1144
      %1146 = vmatmul.mubr.f32.gmra.mrb[0].mxu0 %v1145
      %v1147 = vpop.f32.mrb[0].mxu0
      %v1148 = vadd.f32 %v901, %v1147
      %v1149 = vpop.f32.mrb[0].mxu0
      %v1150 = vand.u32 %v235, 4294901760
      %v1151 = vsub.f32 %v235, %v1150
      %1152 = vmatprep.mubr.f32.mxu0 %v1151
      %v1153 = vand.u32 %v234, 4294901760
      %v1154 = vsub.f32 %v234, %v1153
      %1155 = vmatmul.mubr.f32.gmra.mrb[0].mxu0 %v1154
      %v1156 = vpop.f32.mrb[0].mxu0
      %v1157 = vadd.f32 %v908, %v1156
      %v1158 = vpop.f32.mrb[0].mxu0
      %v1159 = vand.u32 %v238, 4294901760
      %v1160 = vsub.f32 %v238, %v1159
      %1161 = vmatprep.mubr.f32.mxu0 %v1160
      %v1162 = vand.u32 %v237, 4294901760
      %v1163 = vsub.f32 %v237, %v1162
      %1164 = vmatmul.mubr.f32.gmra.mrb[0].mxu0 %v1163
      %v1165 = vpop.f32.mrb[0].mxu0
      %v1166 = vadd.f32 %v915, %v1165
      %v1167 = vpop.f32.mrb[0].mxu0
      %v1168 = vand.u32 %v241, 4294901760
      %v1169 = vsub.f32 %v241, %v1168
      %1170 = vmatprep.mubr.f32.mxu0 %v1169
      %v1171 = vand.u32 %v240, 4294901760
      %v1172 = vsub.f32 %v240, %v1171
      %1173 = vmatmul.mubr.f32.gmra.mrb[0].mxu0 %v1172
      %v1174 = vpop.f32.mrb[0].mxu0
      %v1175 = vadd.f32 %v922, %v1174
      %v1176 = vpop.f32.mrb[0].mxu0
      %v1177 = vand.u32 %v244, 4294901760
      %v1178 = vsub.f32 %v244, %v1177
      %1179 = vmatprep.mubr.f32.mxu0 %v1178
      %v1180 = vand.u32 %v243, 4294901760
      %v1181 = vsub.f32 %v243, %v1180
      %1182 = vmatmul.mubr.f32.gmra.mrb[0].mxu0 %v1181
      %v1183 = vpop.f32.mrb[0].mxu0
      %v1184 = vadd.f32 %v929, %v1183
      %v1185 = vpop.f32.mrb[0].mxu0
      %v1186 = vand.u32 %v247, 4294901760
      %v1187 = vsub.f32 %v247, %v1186
      %1188 = vmatprep.mubr.f32.mxu0 %v1187
      %v1189 = vand.u32 %v246, 4294901760
      %v1190 = vsub.f32 %v246, %v1189
      %1191 = vmatmul.mubr.f32.gmra.mrb[0].mxu0 %v1190
      %v1192 = vpop.f32.mrb[0].mxu0
      %v1193 = vadd.f32 %v936, %v1192
      %v1194 = vpop.f32.mrb[0].mxu0
      %v1195 = vand.u32 %v250, 4294901760
      %v1196 = vsub.f32 %v250, %v1195
      %1197 = vmatprep.mubr.f32.mxu0 %v1196
      %v1198 = vand.u32 %v249, 4294901760
      %v1199 = vsub.f32 %v249, %v1198
      %1200 = vmatmul.mubr.f32.gmra.mrb[0].mxu0 %v1199
      %v1201 = vpop.f32.mrb[0].mxu0
      %v1202 = vadd.f32 %v943, %v1201
      %v1203 = vpop.f32.mrb[0].mxu0
      %v1204 = vand.u32 %v253, 4294901760
      %v1205 = vsub.f32 %v253, %v1204
      %1206 = vmatprep.mubr.f32.mxu0 %v1205
      %v1207 = vand.u32 %v252, 4294901760
      %v1208 = vsub.f32 %v252, %v1207
      %1209 = vmatmul.mubr.f32.gmra.mrb[0].mxu0 %v1208
      %v1210 = vpop.f32.mrb[0].mxu0
      %v1211 = vadd.f32 %v950, %v1210
      %v1212 = vpop.f32.mrb[0].mxu0
      %v1213 = vand.u32 %v256, 4294901760
      %v1214 = vsub.f32 %v256, %v1213
      %1215 = vmatprep.mubr.f32.mxu0 %v1214
      %v1216 = vand.u32 %v255, 4294901760
      %v1217 = vsub.f32 %v255, %v1216
      %1218 = vmatmul.mubr.f32.gmra.mrb[0].mxu0 %v1217
      %v1219 = vpop.f32.mrb[0].mxu0
      %v1220 = vadd.f32 %v957, %v1219
      %v1221 = vpop.f32.mrb[0].mxu0
      %v1222 = vand.u32 %v259, 4294901760
      %v1223 = vsub.f32 %v259, %v1222
      %1224 = vmatprep.mubr.f32.mxu0 %v1223
      %v1225 = vand.u32 %v258, 4294901760
      %v1226 = vsub.f32 %v258, %v1225
      %1227 = vmatmul.mubr.f32.gmra.mrb[0].mxu0 %v1226
      %v1228 = vpop.f32.mrb[0].mxu0
      %v1229 = vadd.f32 %v964, %v1228
      %v1230 = vpop.f32.mrb[0].mxu0
      %v1231 = vand.u32 %v262, 4294901760
      %v1232 = vsub.f32 %v262, %v1231
      %1233 = vmatprep.mubr.f32.mxu0 %v1232
      %v1234 = vand.u32 %v261, 4294901760
      %v1235 = vsub.f32 %v261, %v1234
      %1236 = vmatmul.mubr.f32.gmra.mrb[0].mxu0 %v1235
      %v1237 = vpop.f32.mrb[0].mxu0
      %v1238 = vadd.f32 %v971, %v1237
      %v1239 = vpop.f32.mrb[0].mxu0
      %v1240 = vand.u32 %v265, 4294901760
      %v1241 = vsub.f32 %v265, %v1240
      %1242 = vmatprep.mubr.f32.mxu0 %v1241
      %v1243 = vand.u32 %v264, 4294901760
      %v1244 = vsub.f32 %v264, %v1243
      %1245 = vmatmul.mubr.f32.gmra.mrb[0].mxu0 %v1244
      %v1246 = vpop.f32.mrb[0].mxu0
      %v1247 = vadd.f32 %v978, %v1246
      %v1248 = vpop.f32.mrb[0].mxu0
      %v1249 = vand.u32 %v268, 4294901760
      %v1250 = vsub.f32 %v268, %v1249
      %1251 = vmatprep.mubr.f32.mxu0 %v1250
      %v1252 = vand.u32 %v267, 4294901760
      %v1253 = vsub.f32 %v267, %v1252
      %1254 = vmatmul.mubr.f32.gmra.mrb[0].mxu0 %v1253
      %v1255 = vpop.f32.mrb[0].mxu0
      %v1256 = vadd.f32 %v985, %v1255
      %v1257 = vpop.f32.mrb[0].mxu0
      %v1258 = vand.u32 %v271, 4294901760
      %v1259 = vsub.f32 %v271, %v1258
      %1260 = vmatprep.mubr.f32.mxu0 %v1259
      %v1261 = vand.u32 %v270, 4294901760
      %v1262 = vsub.f32 %v270, %v1261
      %1263 = vmatmul.mubr.f32.gmra.mrb[0].mxu0 %v1262
      %v1264 = vpop.f32.mrb[0].mxu0
      %v1265 = vadd.f32 %v992, %v1264
      %v1266 = vpop.f32.mrb[0].mxu0
      %1267 = vdwg.mxu0
      %1268 = vmatprep.subr.mxu0 0.0
      %v1269 = vand.u32 %v273, 4294901760
      %1270 = vmatpush1.msra.mxu0 %v1269
      %1271 = vmatprep.subr.mxu0 0.0
      %v1272 = vand.u32 %v274, 4294901760
      %1273 = vmatpush1.msra.mxu0 %v1272
      %1274 = vmatprep.subr.mxu0 0.0
      %v1275 = vand.u32 %v275, 4294901760
      %1276 = vmatpush1.msra.mxu0 %v1275
      %1277 = vmatprep.subr.mxu0 0.0
      %v1278 = vand.u32 %v276, 4294901760
      %1279 = vmatpush1.msra.mxu0 %v1278
      %1280 = vmatprep.subr.mxu0 0.0
      %v1281 = vand.u32 %v277, 4294901760
      %1282 = vmatpush1.msra.mxu0 %v1281
      %1283 = vmatprep.subr.mxu0 0.0
      %v1284 = vand.u32 %v278, 4294901760
      %1285 = vmatpush1.msra.mxu0 %v1284
      %1286 = vmatprep.subr.mxu0 0.0
      %v1287 = vand.u32 %v279, 4294901760
      %1288 = vmatpush1.msra.mxu0 %v1287
      %1289 = vmatprep.subr.mxu0 0.0
      %v1290 = vand.u32 %v280, 4294901760
      %1291 = vmatpush1.msra.mxu0 %v1290
      %1292 = vmatprep.subr.mxu0 0.0
      %v1293 = vand.u32 %v281, 4294901760
      %1294 = vmatpush1.msra.mxu0 %v1293
      %1295 = vmatprep.subr.mxu0 0.0
      %v1296 = vand.u32 %v282, 4294901760
      %1297 = vmatpush1.msra.mxu0 %v1296
      %1298 = vmatprep.subr.mxu0 0.0
      %v1299 = vand.u32 %v283, 4294901760
      %1300 = vmatpush1.msra.mxu0 %v1299
      %1301 = vmatprep.subr.mxu0 0.0
      %v1302 = vand.u32 %v284, 4294901760
      %1303 = vmatpush1.msra.mxu0 %v1302
      %1304 = vmatprep.subr.mxu0 0.0
      %v1305 = vand.u32 %v285, 4294901760
      %1306 = vmatpush1.msra.mxu0 %v1305
      %1307 = vmatprep.subr.mxu0 0.0
      %v1308 = vand.u32 %v286, 4294901760
      %1309 = vmatpush1.msra.mxu0 %v1308
      %1310 = vmatprep.subr.mxu0 0.0
      %v1311 = vand.u32 %v287, 4294901760
      %1312 = vmatpush1.msra.mxu0 %v1311
      %1313 = vmatprep.subr.mxu0 0.0
      %v1314 = vand.u32 %v288, 4294901760
      %1315 = vmatpush1.msra.mxu0 %v1314
      %1316 = vmatprep.subr.mxu0 0.0
      %v1317 = vand.u32 %v289, 4294901760
      %1318 = vmatpush1.msra.mxu0 %v1317
      %1319 = vmatprep.subr.mxu0 0.0
      %v1320 = vand.u32 %v290, 4294901760
      %1321 = vmatpush1.msra.mxu0 %v1320
      %1322 = vmatprep.subr.mxu0 0.0
      %v1323 = vand.u32 %v291, 4294901760
      %1324 = vmatpush1.msra.mxu0 %v1323
      %1325 = vmatprep.subr.mxu0 0.0
      %v1326 = vand.u32 %v292, 4294901760
      %1327 = vmatpush1.msra.mxu0 %v1326
      %1328 = vmatprep.subr.mxu0 0.0
      %v1329 = vand.u32 %v293, 4294901760
      %1330 = vmatpush1.msra.mxu0 %v1329
      %1331 = vmatprep.subr.mxu0 0.0
      %v1332 = vand.u32 %v294, 4294901760
      %1333 = vmatpush1.msra.mxu0 %v1332
      %1334 = vmatprep.subr.mxu0 0.0
      %v1335 = vand.u32 %v295, 4294901760
      %1336 = vmatpush1.msra.mxu0 %v1335
      %1337 = vmatprep.subr.mxu0 0.0
      %v1338 = vand.u32 %v296, 4294901760
      %1339 = vmatpush1.msra.mxu0 %v1338
      %1340 = vmatprep.subr.mxu0 0.0
      %v1341 = vand.u32 %v297, 4294901760
      %1342 = vmatpush1.msra.mxu0 %v1341
      %1343 = vmatprep.subr.mxu0 0.0
      %v1344 = vand.u32 %v298, 4294901760
      %1345 = vmatpush1.msra.mxu0 %v1344
      %1346 = vmatprep.subr.mxu0 0.0
      %v1347 = vand.u32 %v299, 4294901760
      %1348 = vmatpush1.msra.mxu0 %v1347
      %1349 = vmatprep.subr.mxu0 0.0
      %v1350 = vand.u32 %v300, 4294901760
      %1351 = vmatpush1.msra.mxu0 %v1350
      %1352 = vmatprep.subr.mxu0 0.0
      %v1353 = vand.u32 %v301, 4294901760
      %1354 = vmatpush1.msra.mxu0 %v1353
      %1355 = vmatprep.subr.mxu0 0.0
      %v1356 = vand.u32 %v302, 4294901760
      %1357 = vmatpush1.msra.mxu0 %v1356
      %1358 = vmatprep.subr.mxu0 0.0
      %v1359 = vand.u32 %v303, 4294901760
      %1360 = vmatpush1.msra.mxu0 %v1359
      %1361 = vmatprep.subr.mxu0 0.0
      %v1362 = vand.u32 %v304, 4294901760
      %1363 = vmatpush1.msra.mxu0 %v1362
      %v1364 = vand.u32 %v226, 4294901760
      %v1365 = vsub.f32 %v226, %v1364
      %v1366 = vand.u32 %v1365, 4294901760
      %1367 = vmatprep.mubr.f32.mxu0 %v1366
      %v1368 = vand.u32 %v225, 4294901760
      %v1369 = vsub.f32 %v225, %v1368
      %v1370 = vand.u32 %v1369, 4294901760
      %1371 = vmatmul.mubr.f32.gmra.mrb[0].mxu0 %v1370
      %v1372 = vpop.f32.mrb[0].mxu0
      %v1373 = vadd.f32 %v1130, %v1372
      %v1374 = vpop.f32.mrb[0].mxu0
      %v1375 = vand.u32 %v229, 4294901760
      %v1376 = vsub.f32 %v229, %v1375
      %v1377 = vand.u32 %v1376, 4294901760
      %1378 = vmatprep.mubr.f32.mxu0 %v1377
      %v1379 = vand.u32 %v228, 4294901760
      %v1380 = vsub.f32 %v228, %v1379
      %v1381 = vand.u32 %v1380, 4294901760
      %1382 = vmatmul.mubr.f32.gmra.mrb[0].mxu0 %v1381
      %v1383 = vpop.f32.mrb[0].mxu0
      %v1384 = vadd.f32 %v1139, %v1383
      %v1385 = vpop.f32.mrb[0].mxu0
      %v1386 = vand.u32 %v232, 4294901760
      %v1387 = vsub.f32 %v232, %v1386
      %v1388 = vand.u32 %v1387, 4294901760
      %1389 = vmatprep.mubr.f32.mxu0 %v1388
      %v1390 = vand.u32 %v231, 4294901760
      %v1391 = vsub.f32 %v231, %v1390
      %v1392 = vand.u32 %v1391, 4294901760
      %1393 = vmatmul.mubr.f32.gmra.mrb[0].mxu0 %v1392
      %v1394 = vpop.f32.mrb[0].mxu0
      %v1395 = vadd.f32 %v1148, %v1394
      %v1396 = vpop.f32.mrb[0].mxu0
      %v1397 = vand.u32 %v235, 4294901760
      %v1398 = vsub.f32 %v235, %v1397
      %v1399 = vand.u32 %v1398, 4294901760
      %1400 = vmatprep.mubr.f32.mxu0 %v1399
      %v1401 = vand.u32 %v234, 4294901760
      %v1402 = vsub.f32 %v234, %v1401
      %v1403 = vand.u32 %v1402, 4294901760
      %1404 = vmatmul.mubr.f32.gmra.mrb[0].mxu0 %v1403
      %v1405 = vpop.f32.mrb[0].mxu0
      %v1406 = vadd.f32 %v1157, %v1405
      %v1407 = vpop.f32.mrb[0].mxu0
      %v1408 = vand.u32 %v238, 4294901760
      %v1409 = vsub.f32 %v238, %v1408
      %v1410 = vand.u32 %v1409, 4294901760
      %1411 = vmatprep.mubr.f32.mxu0 %v1410
      %v1412 = vand.u32 %v237, 4294901760
      %v1413 = vsub.f32 %v237, %v1412
      %v1414 = vand.u32 %v1413, 4294901760
      %1415 = vmatmul.mubr.f32.gmra.mrb[0].mxu0 %v1414
      %v1416 = vpop.f32.mrb[0].mxu0
      %v1417 = vadd.f32 %v1166, %v1416
      %v1418 = vpop.f32.mrb[0].mxu0
      %v1419 = vand.u32 %v241, 4294901760
      %v1420 = vsub.f32 %v241, %v1419
      %v1421 = vand.u32 %v1420, 4294901760
      %1422 = vmatprep.mubr.f32.mxu0 %v1421
      %v1423 = vand.u32 %v240, 4294901760
      %v1424 = vsub.f32 %v240, %v1423
      %v1425 = vand.u32 %v1424, 4294901760
      %1426 = vmatmul.mubr.f32.gmra.mrb[0].mxu0 %v1425
      %v1427 = vpop.f32.mrb[0].mxu0
      %v1428 = vadd.f32 %v1175, %v1427
      %v1429 = vpop.f32.mrb[0].mxu0
      %v1430 = vand.u32 %v244, 4294901760
      %v1431 = vsub.f32 %v244, %v1430
      %v1432 = vand.u32 %v1431, 4294901760
      %1433 = vmatprep.mubr.f32.mxu0 %v1432
      %v1434 = vand.u32 %v243, 4294901760
      %v1435 = vsub.f32 %v243, %v1434
      %v1436 = vand.u32 %v1435, 4294901760
      %1437 = vmatmul.mubr.f32.gmra.mrb[0].mxu0 %v1436
      %v1438 = vpop.f32.mrb[0].mxu0
      %v1439 = vadd.f32 %v1184, %v1438
      %v1440 = vpop.f32.mrb[0].mxu0
      %v1441 = vand.u32 %v247, 4294901760
      %v1442 = vsub.f32 %v247, %v1441
      %v1443 = vand.u32 %v1442, 4294901760
      %1444 = vmatprep.mubr.f32.mxu0 %v1443
      %v1445 = vand.u32 %v246, 4294901760
      %v1446 = vsub.f32 %v246, %v1445
      %v1447 = vand.u32 %v1446, 4294901760
      %1448 = vmatmul.mubr.f32.gmra.mrb[0].mxu0 %v1447
      %v1449 = vpop.f32.mrb[0].mxu0
      %v1450 = vadd.f32 %v1193, %v1449
      %v1451 = vpop.f32.mrb[0].mxu0
      %v1452 = vand.u32 %v250, 4294901760
      %v1453 = vsub.f32 %v250, %v1452
      %v1454 = vand.u32 %v1453, 4294901760
      %1455 = vmatprep.mubr.f32.mxu0 %v1454
      %v1456 = vand.u32 %v249, 4294901760
      %v1457 = vsub.f32 %v249, %v1456
      %v1458 = vand.u32 %v1457, 4294901760
      %1459 = vmatmul.mubr.f32.gmra.mrb[0].mxu0 %v1458
      %v1460 = vpop.f32.mrb[0].mxu0
      %v1461 = vadd.f32 %v1202, %v1460
      %v1462 = vpop.f32.mrb[0].mxu0
      %v1463 = vand.u32 %v253, 4294901760
      %v1464 = vsub.f32 %v253, %v1463
      %v1465 = vand.u32 %v1464, 4294901760
      %1466 = vmatprep.mubr.f32.mxu0 %v1465
      %v1467 = vand.u32 %v252, 4294901760
      %v1468 = vsub.f32 %v252, %v1467
      %v1469 = vand.u32 %v1468, 4294901760
      %1470 = vmatmul.mubr.f32.gmra.mrb[0].mxu0 %v1469
      %v1471 = vpop.f32.mrb[0].mxu0
      %v1472 = vadd.f32 %v1211, %v1471
      %v1473 = vpop.f32.mrb[0].mxu0
      %v1474 = vand.u32 %v256, 4294901760
      %v1475 = vsub.f32 %v256, %v1474
      %v1476 = vand.u32 %v1475, 4294901760
      %1477 = vmatprep.mubr.f32.mxu0 %v1476
      %v1478 = vand.u32 %v255, 4294901760
      %v1479 = vsub.f32 %v255, %v1478
      %v1480 = vand.u32 %v1479, 4294901760
      %1481 = vmatmul.mubr.f32.gmra.mrb[0].mxu0 %v1480
      %v1482 = vpop.f32.mrb[0].mxu0
      %v1483 = vadd.f32 %v1220, %v1482
      %v1484 = vpop.f32.mrb[0].mxu0
      %v1485 = vand.u32 %v259, 4294901760
      %v1486 = vsub.f32 %v259, %v1485
      %v1487 = vand.u32 %v1486, 4294901760
      %1488 = vmatprep.mubr.f32.mxu0 %v1487
      %v1489 = vand.u32 %v258, 4294901760
      %v1490 = vsub.f32 %v258, %v1489
      %v1491 = vand.u32 %v1490, 4294901760
      %1492 = vmatmul.mubr.f32.gmra.mrb[0].mxu0 %v1491
      %v1493 = vpop.f32.mrb[0].mxu0
      %v1494 = vadd.f32 %v1229, %v1493
      %v1495 = vpop.f32.mrb[0].mxu0
      %v1496 = vand.u32 %v262, 4294901760
      %v1497 = vsub.f32 %v262, %v1496
      %v1498 = vand.u32 %v1497, 4294901760
      %1499 = vmatprep.mubr.f32.mxu0 %v1498
      %v1500 = vand.u32 %v261, 4294901760
      %v1501 = vsub.f32 %v261, %v1500
      %v1502 = vand.u32 %v1501, 4294901760
      %1503 = vmatmul.mubr.f32.gmra.mrb[0].mxu0 %v1502
      %v1504 = vpop.f32.mrb[0].mxu0
      %v1505 = vadd.f32 %v1238, %v1504
      %v1506 = vpop.f32.mrb[0].mxu0
      %v1507 = vand.u32 %v265, 4294901760
      %v1508 = vsub.f32 %v265, %v1507
      %v1509 = vand.u32 %v1508, 4294901760
      %1510 = vmatprep.mubr.f32.mxu0 %v1509
      %v1511 = vand.u32 %v264, 4294901760
      %v1512 = vsub.f32 %v264, %v1511
      %v1513 = vand.u32 %v1512, 4294901760
      %1514 = vmatmul.mubr.f32.gmra.mrb[0].mxu0 %v1513
      %v1515 = vpop.f32.mrb[0].mxu0
      %v1516 = vadd.f32 %v1247, %v1515
      %v1517 = vpop.f32.mrb[0].mxu0
      %v1518 = vand.u32 %v268, 4294901760
      %v1519 = vsub.f32 %v268, %v1518
      %v1520 = vand.u32 %v1519, 4294901760
      %1521 = vmatprep.mubr.f32.mxu0 %v1520
      %v1522 = vand.u32 %v267, 4294901760
      %v1523 = vsub.f32 %v267, %v1522
      %v1524 = vand.u32 %v1523, 4294901760
      %1525 = vmatmul.mubr.f32.gmra.mrb[0].mxu0 %v1524
      %v1526 = vpop.f32.mrb[0].mxu0
      %v1527 = vadd.f32 %v1256, %v1526
      %v1528 = vpop.f32.mrb[0].mxu0
      %v1529 = vand.u32 %v271, 4294901760
      %v1530 = vsub.f32 %v271, %v1529
      %v1531 = vand.u32 %v1530, 4294901760
      %1532 = vmatprep.mubr.f32.mxu0 %v1531
      %v1533 = vand.u32 %v270, 4294901760
      %v1534 = vsub.f32 %v270, %v1533
      %v1535 = vand.u32 %v1534, 4294901760
      %1536 = vmatmul.mubr.f32.gmra.mrb[0].mxu0 %v1535
      %v1537 = vpop.f32.mrb[0].mxu0
      %v1538 = vadd.f32 %v1265, %v1537
      %v1539 = vpop.f32.mrb[0].mxu0
      %1540 = vdwg.mxu0
      %1541 = vmatprep.subr.mxu0 0.0
      %v1542 = vand.u32 %v273, 4294901760
      %v1543 = vsub.f32 %v273, %v1542
      %v1544 = vand.u32 %v1543, 4294901760
      %1545 = vmatpush1.msra.mxu0 %v1544
      %1546 = vmatprep.subr.mxu0 0.0
      %v1547 = vand.u32 %v274, 4294901760
      %v1548 = vsub.f32 %v274, %v1547
      %v1549 = vand.u32 %v1548, 4294901760
      %1550 = vmatpush1.msra.mxu0 %v1549
      %1551 = vmatprep.subr.mxu0 0.0
      %v1552 = vand.u32 %v275, 4294901760
      %v1553 = vsub.f32 %v275, %v1552
      %v1554 = vand.u32 %v1553, 4294901760
      %1555 = vmatpush1.msra.mxu0 %v1554
      %1556 = vmatprep.subr.mxu0 0.0
      %v1557 = vand.u32 %v276, 4294901760
      %v1558 = vsub.f32 %v276, %v1557
      %v1559 = vand.u32 %v1558, 4294901760
      %1560 = vmatpush1.msra.mxu0 %v1559
      %1561 = vmatprep.subr.mxu0 0.0
      %v1562 = vand.u32 %v277, 4294901760
      %v1563 = vsub.f32 %v277, %v1562
      %v1564 = vand.u32 %v1563, 4294901760
      %1565 = vmatpush1.msra.mxu0 %v1564
      %1566 = vmatprep.subr.mxu0 0.0
      %v1567 = vand.u32 %v278, 4294901760
      %v1568 = vsub.f32 %v278, %v1567
      %v1569 = vand.u32 %v1568, 4294901760
      %1570 = vmatpush1.msra.mxu0 %v1569
      %1571 = vmatprep.subr.mxu0 0.0
      %v1572 = vand.u32 %v279, 4294901760
      %v1573 = vsub.f32 %v279, %v1572
      %v1574 = vand.u32 %v1573, 4294901760
      %1575 = vmatpush1.msra.mxu0 %v1574
      %1576 = vmatprep.subr.mxu0 0.0
      %v1577 = vand.u32 %v280, 4294901760
      %v1578 = vsub.f32 %v280, %v1577
      %v1579 = vand.u32 %v1578, 4294901760
      %1580 = vmatpush1.msra.mxu0 %v1579
      %1581 = vmatprep.subr.mxu0 0.0
      %v1582 = vand.u32 %v281, 4294901760
      %v1583 = vsub.f32 %v281, %v1582
      %v1584 = vand.u32 %v1583, 4294901760
      %1585 = vmatpush1.msra.mxu0 %v1584
      %1586 = vmatprep.subr.mxu0 0.0
      %v1587 = vand.u32 %v282, 4294901760
      %v1588 = vsub.f32 %v282, %v1587
      %v1589 = vand.u32 %v1588, 4294901760
      %1590 = vmatpush1.msra.mxu0 %v1589
      %1591 = vmatprep.subr.mxu0 0.0
      %v1592 = vand.u32 %v283, 4294901760
      %v1593 = vsub.f32 %v283, %v1592
      %v1594 = vand.u32 %v1593, 4294901760
      %1595 = vmatpush1.msra.mxu0 %v1594
      %1596 = vmatprep.subr.mxu0 0.0
      %v1597 = vand.u32 %v284, 4294901760
      %v1598 = vsub.f32 %v284, %v1597
      %v1599 = vand.u32 %v1598, 4294901760
      %1600 = vmatpush1.msra.mxu0 %v1599
      %1601 = vmatprep.subr.mxu0 0.0
      %v1602 = vand.u32 %v285, 4294901760
      %v1603 = vsub.f32 %v285, %v1602
      %v1604 = vand.u32 %v1603, 4294901760
      %1605 = vmatpush1.msra.mxu0 %v1604
      %1606 = vmatprep.subr.mxu0 0.0
      %v1607 = vand.u32 %v286, 4294901760
      %v1608 = vsub.f32 %v286, %v1607
      %v1609 = vand.u32 %v1608, 4294901760
      %1610 = vmatpush1.msra.mxu0 %v1609
      %1611 = vmatprep.subr.mxu0 0.0
      %v1612 = vand.u32 %v287, 4294901760
      %v1613 = vsub.f32 %v287, %v1612
      %v1614 = vand.u32 %v1613, 4294901760
      %1615 = vmatpush1.msra.mxu0 %v1614
      %1616 = vmatprep.subr.mxu0 0.0
      %v1617 = vand.u32 %v288, 4294901760
      %v1618 = vsub.f32 %v288, %v1617
      %v1619 = vand.u32 %v1618, 4294901760
      %1620 = vmatpush1.msra.mxu0 %v1619
      %1621 = vmatprep.subr.mxu0 0.0
      %v1622 = vand.u32 %v289, 4294901760
      %v1623 = vsub.f32 %v289, %v1622
      %v1624 = vand.u32 %v1623, 4294901760
      %1625 = vmatpush1.msra.mxu0 %v1624
      %1626 = vmatprep.subr.mxu0 0.0
      %v1627 = vand.u32 %v290, 4294901760
      %v1628 = vsub.f32 %v290, %v1627
      %v1629 = vand.u32 %v1628, 4294901760
      %1630 = vmatpush1.msra.mxu0 %v1629
      %1631 = vmatprep.subr.mxu0 0.0
      %v1632 = vand.u32 %v291, 4294901760
      %v1633 = vsub.f32 %v291, %v1632
      %v1634 = vand.u32 %v1633, 4294901760
      %1635 = vmatpush1.msra.mxu0 %v1634
      %1636 = vmatprep.subr.mxu0 0.0
      %v1637 = vand.u32 %v292, 4294901760
      %v1638 = vsub.f32 %v292, %v1637
      %v1639 = vand.u32 %v1638, 4294901760
      %1640 = vmatpush1.msra.mxu0 %v1639
      %1641 = vmatprep.subr.mxu0 0.0
      %v1642 = vand.u32 %v293, 4294901760
      %v1643 = vsub.f32 %v293, %v1642
      %v1644 = vand.u32 %v1643, 4294901760
      %1645 = vmatpush1.msra.mxu0 %v1644
      %1646 = vmatprep.subr.mxu0 0.0
      %v1647 = vand.u32 %v294, 4294901760
      %v1648 = vsub.f32 %v294, %v1647
      %v1649 = vand.u32 %v1648, 4294901760
      %1650 = vmatpush1.msra.mxu0 %v1649
      %1651 = vmatprep.subr.mxu0 0.0
      %v1652 = vand.u32 %v295, 4294901760
      %v1653 = vsub.f32 %v295, %v1652
      %v1654 = vand.u32 %v1653, 4294901760
      %1655 = vmatpush1.msra.mxu0 %v1654
      %1656 = vmatprep.subr.mxu0 0.0
      %v1657 = vand.u32 %v296, 4294901760
      %v1658 = vsub.f32 %v296, %v1657
      %v1659 = vand.u32 %v1658, 4294901760
      %1660 = vmatpush1.msra.mxu0 %v1659
      %1661 = vmatprep.subr.mxu0 0.0
      %v1662 = vand.u32 %v297, 4294901760
      %v1663 = vsub.f32 %v297, %v1662
      %v1664 = vand.u32 %v1663, 4294901760
      %1665 = vmatpush1.msra.mxu0 %v1664
      %1666 = vmatprep.subr.mxu0 0.0
      %v1667 = vand.u32 %v298, 4294901760
      %v1668 = vsub.f32 %v298, %v1667
      %v1669 = vand.u32 %v1668, 4294901760
      %1670 = vmatpush1.msra.mxu0 %v1669
      %1671 = vmatprep.subr.mxu0 0.0
      %v1672 = vand.u32 %v299, 4294901760
      %v1673 = vsub.f32 %v299, %v1672
      %v1674 = vand.u32 %v1673, 4294901760
      %1675 = vmatpush1.msra.mxu0 %v1674
      %1676 = vmatprep.subr.mxu0 0.0
      %v1677 = vand.u32 %v300, 4294901760
      %v1678 = vsub.f32 %v300, %v1677
      %v1679 = vand.u32 %v1678, 4294901760
      %1680 = vmatpush1.msra.mxu0 %v1679
      %1681 = vmatprep.subr.mxu0 0.0
      %v1682 = vand.u32 %v301, 4294901760
      %v1683 = vsub.f32 %v301, %v1682
      %v1684 = vand.u32 %v1683, 4294901760
      %1685 = vmatpush1.msra.mxu0 %v1684
      %1686 = vmatprep.subr.mxu0 0.0
      %v1687 = vand.u32 %v302, 4294901760
      %v1688 = vsub.f32 %v302, %v1687
      %v1689 = vand.u32 %v1688, 4294901760
      %1690 = vmatpush1.msra.mxu0 %v1689
      %1691 = vmatprep.subr.mxu0 0.0
      %v1692 = vand.u32 %v303, 4294901760
      %v1693 = vsub.f32 %v303, %v1692
      %v1694 = vand.u32 %v1693, 4294901760
      %1695 = vmatpush1.msra.mxu0 %v1694
      %1696 = vmatprep.subr.mxu0 0.0
      %v1697 = vand.u32 %v304, 4294901760
      %v1698 = vsub.f32 %v304, %v1697
      %v1699 = vand.u32 %v1698, 4294901760
      %1700 = vmatpush1.msra.mxu0 %v1699
      %v1701 = vand.u32 %v226, 4294901760
      %1702 = vmatprep.mubr.f32.mxu0 %v1701
      %v1703 = vand.u32 %v225, 4294901760
      %1704 = vmatmul.mubr.f32.gmra.mrb[0].mxu0 %v1703
      %v1705 = vpop.f32.mrb[0].mxu0
      %v1706 = vadd.f32 %v1373, %v1705
      %v1707 = vpop.f32.mrb[0].mxu0
      %v1708 = vand.u32 %v229, 4294901760
      %1709 = vmatprep.mubr.f32.mxu0 %v1708
      %v1710 = vand.u32 %v228, 4294901760
      %1711 = vmatmul.mubr.f32.gmra.mrb[0].mxu0 %v1710
      %v1712 = vpop.f32.mrb[0].mxu0
      %v1713 = vadd.f32 %v1384, %v1712
      %v1714 = vpop.f32.mrb[0].mxu0
      %v1715 = vand.u32 %v232, 4294901760
      %1716 = vmatprep.mubr.f32.mxu0 %v1715
      %v1717 = vand.u32 %v231, 4294901760
      %1718 = vmatmul.mubr.f32.gmra.mrb[0].mxu0 %v1717
      %v1719 = vpop.f32.mrb[0].mxu0
      %v1720 = vadd.f32 %v1395, %v1719
      %v1721 = vpop.f32.mrb[0].mxu0
      %v1722 = vand.u32 %v235, 4294901760
      %1723 = vmatprep.mubr.f32.mxu0 %v1722
      %v1724 = vand.u32 %v234, 4294901760
      %1725 = vmatmul.mubr.f32.gmra.mrb[0].mxu0 %v1724
      %v1726 = vpop.f32.mrb[0].mxu0
      %v1727 = vadd.f32 %v1406, %v1726
      %v1728 = vpop.f32.mrb[0].mxu0
      %v1729 = vand.u32 %v238, 4294901760
      %1730 = vmatprep.mubr.f32.mxu0 %v1729
      %v1731 = vand.u32 %v237, 4294901760
      %1732 = vmatmul.mubr.f32.gmra.mrb[0].mxu0 %v1731
      %v1733 = vpop.f32.mrb[0].mxu0
      %v1734 = vadd.f32 %v1417, %v1733
      %v1735 = vpop.f32.mrb[0].mxu0
      %v1736 = vand.u32 %v241, 4294901760
      %1737 = vmatprep.mubr.f32.mxu0 %v1736
      %v1738 = vand.u32 %v240, 4294901760
      %1739 = vmatmul.mubr.f32.gmra.mrb[0].mxu0 %v1738
      %v1740 = vpop.f32.mrb[0].mxu0
      %v1741 = vadd.f32 %v1428, %v1740
      %v1742 = vpop.f32.mrb[0].mxu0
      %v1743 = vand.u32 %v244, 4294901760
      %1744 = vmatprep.mubr.f32.mxu0 %v1743
      %v1745 = vand.u32 %v243, 4294901760
      %1746 = vmatmul.mubr.f32.gmra.mrb[0].mxu0 %v1745
      %v1747 = vpop.f32.mrb[0].mxu0
      %v1748 = vadd.f32 %v1439, %v1747
      %v1749 = vpop.f32.mrb[0].mxu0
      %v1750 = vand.u32 %v247, 4294901760
      %1751 = vmatprep.mubr.f32.mxu0 %v1750
      %v1752 = vand.u32 %v246, 4294901760
      %1753 = vmatmul.mubr.f32.gmra.mrb[0].mxu0 %v1752
      %v1754 = vpop.f32.mrb[0].mxu0
      %v1755 = vadd.f32 %v1450, %v1754
      %v1756 = vpop.f32.mrb[0].mxu0
      %v1757 = vand.u32 %v250, 4294901760
      %1758 = vmatprep.mubr.f32.mxu0 %v1757
      %v1759 = vand.u32 %v249, 4294901760
      %1760 = vmatmul.mubr.f32.gmra.mrb[0].mxu0 %v1759
      %v1761 = vpop.f32.mrb[0].mxu0
      %v1762 = vadd.f32 %v1461, %v1761
      %v1763 = vpop.f32.mrb[0].mxu0
      %v1764 = vand.u32 %v253, 4294901760
      %1765 = vmatprep.mubr.f32.mxu0 %v1764
      %v1766 = vand.u32 %v252, 4294901760
      %1767 = vmatmul.mubr.f32.gmra.mrb[0].mxu0 %v1766
      %v1768 = vpop.f32.mrb[0].mxu0
      %v1769 = vadd.f32 %v1472, %v1768
      %v1770 = vpop.f32.mrb[0].mxu0
      %v1771 = vand.u32 %v256, 4294901760
      %1772 = vmatprep.mubr.f32.mxu0 %v1771
      %v1773 = vand.u32 %v255, 4294901760
      %1774 = vmatmul.mubr.f32.gmra.mrb[0].mxu0 %v1773
      %v1775 = vpop.f32.mrb[0].mxu0
      %v1776 = vadd.f32 %v1483, %v1775
      %v1777 = vpop.f32.mrb[0].mxu0
      %v1778 = vand.u32 %v259, 4294901760
      %1779 = vmatprep.mubr.f32.mxu0 %v1778
      %v1780 = vand.u32 %v258, 4294901760
      %1781 = vmatmul.mubr.f32.gmra.mrb[0].mxu0 %v1780
      %v1782 = vpop.f32.mrb[0].mxu0
      %v1783 = vadd.f32 %v1494, %v1782
      %v1784 = vpop.f32.mrb[0].mxu0
      %v1785 = vand.u32 %v262, 4294901760
      %1786 = vmatprep.mubr.f32.mxu0 %v1785
      %v1787 = vand.u32 %v261, 4294901760
      %1788 = vmatmul.mubr.f32.gmra.mrb[0].mxu0 %v1787
      %v1789 = vpop.f32.mrb[0].mxu0
      %v1790 = vadd.f32 %v1505, %v1789
      %v1791 = vpop.f32.mrb[0].mxu0
      %v1792 = vand.u32 %v265, 4294901760
      %1793 = vmatprep.mubr.f32.mxu0 %v1792
      %v1794 = vand.u32 %v264, 4294901760
      %1795 = vmatmul.mubr.f32.gmra.mrb[0].mxu0 %v1794
      %v1796 = vpop.f32.mrb[0].mxu0
      %v1797 = vadd.f32 %v1516, %v1796
      %v1798 = vpop.f32.mrb[0].mxu0
      %v1799 = vand.u32 %v268, 4294901760
      %1800 = vmatprep.mubr.f32.mxu0 %v1799
      %v1801 = vand.u32 %v267, 4294901760
      %1802 = vmatmul.mubr.f32.gmra.mrb[0].mxu0 %v1801
      %v1803 = vpop.f32.mrb[0].mxu0
      %v1804 = vadd.f32 %v1527, %v1803
      %v1805 = vpop.f32.mrb[0].mxu0
      %v1806 = vand.u32 %v271, 4294901760
      %1807 = vmatprep.mubr.f32.mxu0 %v1806
      %v1808 = vand.u32 %v270, 4294901760
      %1809 = vmatmul.mubr.f32.gmra.mrb[0].mxu0 %v1808
      %v1810 = vpop.f32.mrb[0].mxu0
      %v1811 = vadd.f32 %v1538, %v1810
      %v1812 = vpop.f32.mrb[0].mxu0
      %1813 = vdwg.mxu0
      %1814 = vmatprep.subr.mxu0 0.0
      %v1815 = vand.u32 %v273, 4294901760
      %1816 = vmatpush1.msra.mxu0 %v1815
      %1817 = vmatprep.subr.mxu0 0.0
      %v1818 = vand.u32 %v274, 4294901760
      %1819 = vmatpush1.msra.mxu0 %v1818
      %1820 = vmatprep.subr.mxu0 0.0
      %v1821 = vand.u32 %v275, 4294901760
      %1822 = vmatpush1.msra.mxu0 %v1821
      %1823 = vmatprep.subr.mxu0 0.0
      %v1824 = vand.u32 %v276, 4294901760
      %1825 = vmatpush1.msra.mxu0 %v1824
      %1826 = vmatprep.subr.mxu0 0.0
      %v1827 = vand.u32 %v277, 4294901760
      %1828 = vmatpush1.msra.mxu0 %v1827
      %1829 = vmatprep.subr.mxu0 0.0
      %v1830 = vand.u32 %v278, 4294901760
      %1831 = vmatpush1.msra.mxu0 %v1830
      %1832 = vmatprep.subr.mxu0 0.0
      %v1833 = vand.u32 %v279, 4294901760
      %1834 = vmatpush1.msra.mxu0 %v1833
      %1835 = vmatprep.subr.mxu0 0.0
      %v1836 = vand.u32 %v280, 4294901760
      %1837 = vmatpush1.msra.mxu0 %v1836
      %1838 = vmatprep.subr.mxu0 0.0
      %v1839 = vand.u32 %v281, 4294901760
      %1840 = vmatpush1.msra.mxu0 %v1839
      %1841 = vmatprep.subr.mxu0 0.0
      %v1842 = vand.u32 %v282, 4294901760
      %1843 = vmatpush1.msra.mxu0 %v1842
      %1844 = vmatprep.subr.mxu0 0.0
      %v1845 = vand.u32 %v283, 4294901760
      %1846 = vmatpush1.msra.mxu0 %v1845
      %1847 = vmatprep.subr.mxu0 0.0
      %v1848 = vand.u32 %v284, 4294901760
      %1849 = vmatpush1.msra.mxu0 %v1848
      %1850 = vmatprep.subr.mxu0 0.0
      %v1851 = vand.u32 %v285, 4294901760
      %1852 = vmatpush1.msra.mxu0 %v1851
      %1853 = vmatprep.subr.mxu0 0.0
      %v1854 = vand.u32 %v286, 4294901760
      %1855 = vmatpush1.msra.mxu0 %v1854
      %1856 = vmatprep.subr.mxu0 0.0
      %v1857 = vand.u32 %v287, 4294901760
      %1858 = vmatpush1.msra.mxu0 %v1857
      %1859 = vmatprep.subr.mxu0 0.0
      %v1860 = vand.u32 %v288, 4294901760
      %1861 = vmatpush1.msra.mxu0 %v1860
      %1862 = vmatprep.subr.mxu0 0.0
      %v1863 = vand.u32 %v289, 4294901760
      %1864 = vmatpush1.msra.mxu0 %v1863
      %1865 = vmatprep.subr.mxu0 0.0
      %v1866 = vand.u32 %v290, 4294901760
      %1867 = vmatpush1.msra.mxu0 %v1866
      %1868 = vmatprep.subr.mxu0 0.0
      %v1869 = vand.u32 %v291, 4294901760
      %1870 = vmatpush1.msra.mxu0 %v1869
      %1871 = vmatprep.subr.mxu0 0.0
      %v1872 = vand.u32 %v292, 4294901760
      %1873 = vmatpush1.msra.mxu0 %v1872
      %1874 = vmatprep.subr.mxu0 0.0
      %v1875 = vand.u32 %v293, 4294901760
      %1876 = vmatpush1.msra.mxu0 %v1875
      %1877 = vmatprep.subr.mxu0 0.0
      %v1878 = vand.u32 %v294, 4294901760
      %1879 = vmatpush1.msra.mxu0 %v1878
      %1880 = vmatprep.subr.mxu0 0.0
      %v1881 = vand.u32 %v295, 4294901760
      %1882 = vmatpush1.msra.mxu0 %v1881
      %1883 = vmatprep.subr.mxu0 0.0
      %v1884 = vand.u32 %v296, 4294901760
      %1885 = vmatpush1.msra.mxu0 %v1884
      %1886 = vmatprep.subr.mxu0 0.0
      %v1887 = vand.u32 %v297, 4294901760
      %1888 = vmatpush1.msra.mxu0 %v1887
      %1889 = vmatprep.subr.mxu0 0.0
      %v1890 = vand.u32 %v298, 4294901760
      %1891 = vmatpush1.msra.mxu0 %v1890
      %1892 = vmatprep.subr.mxu0 0.0
      %v1893 = vand.u32 %v299, 4294901760
      %1894 = vmatpush1.msra.mxu0 %v1893
      %1895 = vmatprep.subr.mxu0 0.0
      %v1896 = vand.u32 %v300, 4294901760
      %1897 = vmatpush1.msra.mxu0 %v1896
      %1898 = vmatprep.subr.mxu0 0.0
      %v1899 = vand.u32 %v301, 4294901760
      %1900 = vmatpush1.msra.mxu0 %v1899
      %1901 = vmatprep.subr.mxu0 0.0
      %v1902 = vand.u32 %v302, 4294901760
      %1903 = vmatpush1.msra.mxu0 %v1902
      %1904 = vmatprep.subr.mxu0 0.0
      %v1905 = vand.u32 %v303, 4294901760
      %1906 = vmatpush1.msra.mxu0 %v1905
      %1907 = vmatprep.subr.mxu0 0.0
      %v1908 = vand.u32 %v304, 4294901760
      %1909 = vmatpush1.msra.mxu0 %v1908
      %v1910 = vand.u32 %v226, 4294901760
      %1911 = vmatprep.mubr.f32.mxu0 %v1910
      %v1912 = vand.u32 %v225, 4294901760
      %1913 = vmatmul.mubr.f32.gmra.mrb[0].mxu0 %v1912
      %v1914 = vpop.f32.mrb[0].mxu0
      %v1915 = vadd.f32 %v1706, %v1914
      %v1916 = vpop.f32.mrb[0].mxu0
      %v1917 = vand.u32 %v229, 4294901760
      %1918 = vmatprep.mubr.f32.mxu0 %v1917
      %v1919 = vand.u32 %v228, 4294901760
      %1920 = vmatmul.mubr.f32.gmra.mrb[0].mxu0 %v1919
      %v1921 = vpop.f32.mrb[0].mxu0
      %v1922 = vadd.f32 %v1713, %v1921
      %v1923 = vpop.f32.mrb[0].mxu0
      %v1924 = vand.u32 %v232, 4294901760
      %1925 = vmatprep.mubr.f32.mxu0 %v1924
      %v1926 = vand.u32 %v231, 4294901760
      %1927 = vmatmul.mubr.f32.gmra.mrb[0].mxu0 %v1926
      %v1928 = vpop.f32.mrb[0].mxu0
      %v1929 = vadd.f32 %v1720, %v1928
      %v1930 = vpop.f32.mrb[0].mxu0
      %v1931 = vand.u32 %v235, 4294901760
      %1932 = vmatprep.mubr.f32.mxu0 %v1931
      %v1933 = vand.u32 %v234, 4294901760
      %1934 = vmatmul.mubr.f32.gmra.mrb[0].mxu0 %v1933
      %v1935 = vpop.f32.mrb[0].mxu0
      %v1936 = vadd.f32 %v1727, %v1935
      %v1937 = vpop.f32.mrb[0].mxu0
      %v1938 = vand.u32 %v238, 4294901760
      %1939 = vmatprep.mubr.f32.mxu0 %v1938
      %v1940 = vand.u32 %v237, 4294901760
      %1941 = vmatmul.mubr.f32.gmra.mrb[0].mxu0 %v1940
      %v1942 = vpop.f32.mrb[0].mxu0
      %v1943 = vadd.f32 %v1734, %v1942
      %v1944 = vpop.f32.mrb[0].mxu0
      %v1945 = vand.u32 %v241, 4294901760
      %1946 = vmatprep.mubr.f32.mxu0 %v1945
      %v1947 = vand.u32 %v240, 4294901760
      %1948 = vmatmul.mubr.f32.gmra.mrb[0].mxu0 %v1947
      %v1949 = vpop.f32.mrb[0].mxu0
      %v1950 = vadd.f32 %v1741, %v1949
      %v1951 = vpop.f32.mrb[0].mxu0
      %v1952 = vand.u32 %v244, 4294901760
      %1953 = vmatprep.mubr.f32.mxu0 %v1952
      %v1954 = vand.u32 %v243, 4294901760
      %1955 = vmatmul.mubr.f32.gmra.mrb[0].mxu0 %v1954
      %v1956 = vpop.f32.mrb[0].mxu0
      %v1957 = vadd.f32 %v1748, %v1956
      %v1958 = vpop.f32.mrb[0].mxu0
      %v1959 = vand.u32 %v247, 4294901760
      %1960 = vmatprep.mubr.f32.mxu0 %v1959
      %v1961 = vand.u32 %v246, 4294901760
      %1962 = vmatmul.mubr.f32.gmra.mrb[0].mxu0 %v1961
      %v1963 = vpop.f32.mrb[0].mxu0
      %v1964 = vadd.f32 %v1755, %v1963
      %v1965 = vpop.f32.mrb[0].mxu0
      %v1966 = vand.u32 %v250, 4294901760
      %1967 = vmatprep.mubr.f32.mxu0 %v1966
      %v1968 = vand.u32 %v249, 4294901760
      %1969 = vmatmul.mubr.f32.gmra.mrb[0].mxu0 %v1968
      %v1970 = vpop.f32.mrb[0].mxu0
      %v1971 = vadd.f32 %v1762, %v1970
      %v1972 = vpop.f32.mrb[0].mxu0
      %v1973 = vand.u32 %v253, 4294901760
      %1974 = vmatprep.mubr.f32.mxu0 %v1973
      %v1975 = vand.u32 %v252, 4294901760
      %1976 = vmatmul.mubr.f32.gmra.mrb[0].mxu0 %v1975
      %v1977 = vpop.f32.mrb[0].mxu0
      %v1978 = vadd.f32 %v1769, %v1977
      %v1979 = vpop.f32.mrb[0].mxu0
      %v1980 = vand.u32 %v256, 4294901760
      %1981 = vmatprep.mubr.f32.mxu0 %v1980
      %v1982 = vand.u32 %v255, 4294901760
      %1983 = vmatmul.mubr.f32.gmra.mrb[0].mxu0 %v1982
      %v1984 = vpop.f32.mrb[0].mxu0
      %v1985 = vadd.f32 %v1776, %v1984
      %v1986 = vpop.f32.mrb[0].mxu0
      %v1987 = vand.u32 %v259, 4294901760
      %1988 = vmatprep.mubr.f32.mxu0 %v1987
      %v1989 = vand.u32 %v258, 4294901760
      %1990 = vmatmul.mubr.f32.gmra.mrb[0].mxu0 %v1989
      %v1991 = vpop.f32.mrb[0].mxu0
      %v1992 = vadd.f32 %v1783, %v1991
      %v1993 = vpop.f32.mrb[0].mxu0
      %v1994 = vand.u32 %v262, 4294901760
      %1995 = vmatprep.mubr.f32.mxu0 %v1994
      %v1996 = vand.u32 %v261, 4294901760
      %1997 = vmatmul.mubr.f32.gmra.mrb[0].mxu0 %v1996
      %v1998 = vpop.f32.mrb[0].mxu0
      %v1999 = vadd.f32 %v1790, %v1998
      %v2000 = vpop.f32.mrb[0].mxu0
      %v2001 = vand.u32 %v265, 4294901760
      %2002 = vmatprep.mubr.f32.mxu0 %v2001
      %v2003 = vand.u32 %v264, 4294901760
      %2004 = vmatmul.mubr.f32.gmra.mrb[0].mxu0 %v2003
      %v2005 = vpop.f32.mrb[0].mxu0
      %v2006 = vadd.f32 %v1797, %v2005
      %v2007 = vpop.f32.mrb[0].mxu0
      %v2008 = vand.u32 %v268, 4294901760
      %2009 = vmatprep.mubr.f32.mxu0 %v2008
      %v2010 = vand.u32 %v267, 4294901760
      %2011 = vmatmul.mubr.f32.gmra.mrb[0].mxu0 %v2010
      %v2012 = vpop.f32.mrb[0].mxu0
      %v2013 = vadd.f32 %v1804, %v2012
      %v2014 = vpop.f32.mrb[0].mxu0
      %v2015 = vand.u32 %v271, 4294901760
      %2016 = vmatprep.mubr.f32.mxu0 %v2015
      %v2017 = vand.u32 %v270, 4294901760
      %2018 = vmatmul.mubr.f32.gmra.mrb[0].mxu0 %v2017
      %v2019 = vpop.f32.mrb[0].mxu0
      %v2020 = vadd.f32 %v1811, %v2019
      %v2021 = vpop.f32.mrb[0].mxu0
      %2022 = vdwg.mxu0
      %2023 = vmatprep.subr.mxu0 0.0
      %v2024 = vand.u32 %v305, 4294901760
      %2025 = vmatpush1.msra.mxu0 %v2024
      %2026 = vmatprep.subr.mxu0 0.0
      %v2027 = vand.u32 %v306, 4294901760
      %2028 = vmatpush1.msra.mxu0 %v2027
      %2029 = vmatprep.subr.mxu0 0.0
      %v2030 = vand.u32 %v307, 4294901760
      %2031 = vmatpush1.msra.mxu0 %v2030
      %2032 = vmatprep.subr.mxu0 0.0
      %v2033 = vand.u32 %v308, 4294901760
      %2034 = vmatpush1.msra.mxu0 %v2033
      %2035 = vmatprep.subr.mxu0 0.0
      %v2036 = vand.u32 %v309, 4294901760
      %2037 = vmatpush1.msra.mxu0 %v2036
      %2038 = vmatprep.subr.mxu0 0.0
      %v2039 = vand.u32 %v310, 4294901760
      %2040 = vmatpush1.msra.mxu0 %v2039
      %2041 = vmatprep.subr.mxu0 0.0
      %v2042 = vand.u32 %v311, 4294901760
      %2043 = vmatpush1.msra.mxu0 %v2042
      %2044 = vmatprep.subr.mxu0 0.0
      %v2045 = vand.u32 %v312, 4294901760
      %2046 = vmatpush1.msra.mxu0 %v2045
      %2047 = vmatprep.subr.mxu0 0.0
      %v2048 = vand.u32 %v313, 4294901760
      %2049 = vmatpush1.msra.mxu0 %v2048
      %2050 = vmatprep.subr.mxu0 0.0
      %v2051 = vand.u32 %v314, 4294901760
      %2052 = vmatpush1.msra.mxu0 %v2051
      %2053 = vmatprep.subr.mxu0 0.0
      %v2054 = vand.u32 %v315, 4294901760
      %2055 = vmatpush1.msra.mxu0 %v2054
      %2056 = vmatprep.subr.mxu0 0.0
      %v2057 = vand.u32 %v316, 4294901760
      %2058 = vmatpush1.msra.mxu0 %v2057
      %2059 = vmatprep.subr.mxu0 0.0
      %v2060 = vand.u32 %v317, 4294901760
      %2061 = vmatpush1.msra.mxu0 %v2060
      %2062 = vmatprep.subr.mxu0 0.0
      %v2063 = vand.u32 %v318, 4294901760
      %2064 = vmatpush1.msra.mxu0 %v2063
      %2065 = vmatprep.subr.mxu0 0.0
      %v2066 = vand.u32 %v319, 4294901760
      %2067 = vmatpush1.msra.mxu0 %v2066
      %2068 = vmatprep.subr.mxu0 0.0
      %v2069 = vand.u32 %v320, 4294901760
      %2070 = vmatpush1.msra.mxu0 %v2069
      %2071 = vmatprep.subr.mxu0 0.0
      %2072 = vmatpush1.msra.mxu0 0.0
      %2073 = vmatprep.subr.mxu0 0.0
      %2074 = vmatpush1.msra.mxu0 0.0
      %2075 = vmatprep.subr.mxu0 0.0
      %2076 = vmatpush1.msra.mxu0 0.0
      %2077 = vmatprep.subr.mxu0 0.0
      %2078 = vmatpush1.msra.mxu0 0.0
      %2079 = vmatprep.subr.mxu0 0.0
      %2080 = vmatpush1.msra.mxu0 0.0
      %2081 = vmatprep.subr.mxu0 0.0
      %2082 = vmatpush1.msra.mxu0 0.0
      %2083 = vmatprep.subr.mxu0 0.0
      %2084 = vmatpush1.msra.mxu0 0.0
      %2085 = vmatprep.subr.mxu0 0.0
      %2086 = vmatpush1.msra.mxu0 0.0
      %2087 = vmatprep.subr.mxu0 0.0
      %2088 = vmatpush1.msra.mxu0 0.0
      %2089 = vmatprep.subr.mxu0 0.0
      %2090 = vmatpush1.msra.mxu0 0.0
      %2091 = vmatprep.subr.mxu0 0.0
      %2092 = vmatpush1.msra.mxu0 0.0
      %2093 = vmatprep.subr.mxu0 0.0
      %2094 = vmatpush1.msra.mxu0 0.0
      %2095 = vmatprep.subr.mxu0 0.0
      %2096 = vmatpush1.msra.mxu0 0.0
      %2097 = vmatprep.subr.mxu0 0.0
      %2098 = vmatpush1.msra.mxu0 0.0
      %2099 = vmatprep.subr.mxu0 0.0
      %2100 = vmatpush1.msra.mxu0 0.0
      %2101 = vmatprep.subr.mxu0 0.0
      %2102 = vmatpush1.msra.mxu0 0.0
      %2103 = vmatprep.mubr.f32.mxu0 0.0
      %v2104 = vand.u32 %v227, 4294901760
      %v2105 = vsub.f32 %v227, %v2104
      %v2106 = vand.u32 %v2105, 4294901760
      %v2107 = vsub.f32 %v2105, %v2106
      %v2108 = vand.u32 %v2107, 4294901760
      %2109 = vmatmul.mubr.f32.gmra.mrb[0].mxu0 %v2108
      %v2110 = vpop.f32.mrb[0].mxu0
      %v2111 = vadd.f32 %v1915, %v2110
      %v2112 = vpop.f32.mrb[0].mxu0
      %2113 = vmatprep.mubr.f32.mxu0 0.0
      %v2114 = vand.u32 %v230, 4294901760
      %v2115 = vsub.f32 %v230, %v2114
      %v2116 = vand.u32 %v2115, 4294901760
      %v2117 = vsub.f32 %v2115, %v2116
      %v2118 = vand.u32 %v2117, 4294901760
      %2119 = vmatmul.mubr.f32.gmra.mrb[0].mxu0 %v2118
      %v2120 = vpop.f32.mrb[0].mxu0
      %v2121 = vadd.f32 %v1922, %v2120
      %v2122 = vpop.f32.mrb[0].mxu0
      %2123 = vmatprep.mubr.f32.mxu0 0.0
      %v2124 = vand.u32 %v233, 4294901760
      %v2125 = vsub.f32 %v233, %v2124
      %v2126 = vand.u32 %v2125, 4294901760
      %v2127 = vsub.f32 %v2125, %v2126
      %v2128 = vand.u32 %v2127, 4294901760
      %2129 = vmatmul.mubr.f32.gmra.mrb[0].mxu0 %v2128
      %v2130 = vpop.f32.mrb[0].mxu0
      %v2131 = vadd.f32 %v1929, %v2130
      %v2132 = vpop.f32.mrb[0].mxu0
      %2133 = vmatprep.mubr.f32.mxu0 0.0
      %v2134 = vand.u32 %v236, 4294901760
      %v2135 = vsub.f32 %v236, %v2134
      %v2136 = vand.u32 %v2135, 4294901760
      %v2137 = vsub.f32 %v2135, %v2136
      %v2138 = vand.u32 %v2137, 4294901760
      %2139 = vmatmul.mubr.f32.gmra.mrb[0].mxu0 %v2138
      %v2140 = vpop.f32.mrb[0].mxu0
      %v2141 = vadd.f32 %v1936, %v2140
      %v2142 = vpop.f32.mrb[0].mxu0
      %2143 = vmatprep.mubr.f32.mxu0 0.0
      %v2144 = vand.u32 %v239, 4294901760
      %v2145 = vsub.f32 %v239, %v2144
      %v2146 = vand.u32 %v2145, 4294901760
      %v2147 = vsub.f32 %v2145, %v2146
      %v2148 = vand.u32 %v2147, 4294901760
      %2149 = vmatmul.mubr.f32.gmra.mrb[0].mxu0 %v2148
      %v2150 = vpop.f32.mrb[0].mxu0
      %v2151 = vadd.f32 %v1943, %v2150
      %v2152 = vpop.f32.mrb[0].mxu0
      %2153 = vmatprep.mubr.f32.mxu0 0.0
      %v2154 = vand.u32 %v242, 4294901760
      %v2155 = vsub.f32 %v242, %v2154
      %v2156 = vand.u32 %v2155, 4294901760
      %v2157 = vsub.f32 %v2155, %v2156
      %v2158 = vand.u32 %v2157, 4294901760
      %2159 = vmatmul.mubr.f32.gmra.mrb[0].mxu0 %v2158
      %v2160 = vpop.f32.mrb[0].mxu0
      %v2161 = vadd.f32 %v1950, %v2160
      %v2162 = vpop.f32.mrb[0].mxu0
      %2163 = vmatprep.mubr.f32.mxu0 0.0
      %v2164 = vand.u32 %v245, 4294901760
      %v2165 = vsub.f32 %v245, %v2164
      %v2166 = vand.u32 %v2165, 4294901760
      %v2167 = vsub.f32 %v2165, %v2166
      %v2168 = vand.u32 %v2167, 4294901760
      %2169 = vmatmul.mubr.f32.gmra.mrb[0].mxu0 %v2168
      %v2170 = vpop.f32.mrb[0].mxu0
      %v2171 = vadd.f32 %v1957, %v2170
      %v2172 = vpop.f32.mrb[0].mxu0
      %2173 = vmatprep.mubr.f32.mxu0 0.0
      %v2174 = vand.u32 %v248, 4294901760
      %v2175 = vsub.f32 %v248, %v2174
      %v2176 = vand.u32 %v2175, 4294901760
      %v2177 = vsub.f32 %v2175, %v2176
      %v2178 = vand.u32 %v2177, 4294901760
      %2179 = vmatmul.mubr.f32.gmra.mrb[0].mxu0 %v2178
      %v2180 = vpop.f32.mrb[0].mxu0
      %v2181 = vadd.f32 %v1964, %v2180
      %v2182 = vpop.f32.mrb[0].mxu0
      %2183 = vmatprep.mubr.f32.mxu0 0.0
      %v2184 = vand.u32 %v251, 4294901760
      %v2185 = vsub.f32 %v251, %v2184
      %v2186 = vand.u32 %v2185, 4294901760
      %v2187 = vsub.f32 %v2185, %v2186
      %v2188 = vand.u32 %v2187, 4294901760
      %2189 = vmatmul.mubr.f32.gmra.mrb[0].mxu0 %v2188
      %v2190 = vpop.f32.mrb[0].mxu0
      %v2191 = vadd.f32 %v1971, %v2190
      %v2192 = vpop.f32.mrb[0].mxu0
      %2193 = vmatprep.mubr.f32.mxu0 0.0
      %v2194 = vand.u32 %v254, 4294901760
      %v2195 = vsub.f32 %v254, %v2194
      %v2196 = vand.u32 %v2195, 4294901760
      %v2197 = vsub.f32 %v2195, %v2196
      %v2198 = vand.u32 %v2197, 4294901760
      %2199 = vmatmul.mubr.f32.gmra.mrb[0].mxu0 %v2198
      %v2200 = vpop.f32.mrb[0].mxu0
      %v2201 = vadd.f32 %v1978, %v2200
      %v2202 = vpop.f32.mrb[0].mxu0
      %2203 = vmatprep.mubr.f32.mxu0 0.0
      %v2204 = vand.u32 %v257, 4294901760
      %v2205 = vsub.f32 %v257, %v2204
      %v2206 = vand.u32 %v2205, 4294901760
      %v2207 = vsub.f32 %v2205, %v2206
      %v2208 = vand.u32 %v2207, 4294901760
      %2209 = vmatmul.mubr.f32.gmra.mrb[0].mxu0 %v2208
      %v2210 = vpop.f32.mrb[0].mxu0
      %v2211 = vadd.f32 %v1985, %v2210
      %v2212 = vpop.f32.mrb[0].mxu0
      %2213 = vmatprep.mubr.f32.mxu0 0.0
      %v2214 = vand.u32 %v260, 4294901760
      %v2215 = vsub.f32 %v260, %v2214
      %v2216 = vand.u32 %v2215, 4294901760
      %v2217 = vsub.f32 %v2215, %v2216
      %v2218 = vand.u32 %v2217, 4294901760
      %2219 = vmatmul.mubr.f32.gmra.mrb[0].mxu0 %v2218
      %v2220 = vpop.f32.mrb[0].mxu0
      %v2221 = vadd.f32 %v1992, %v2220
      %v2222 = vpop.f32.mrb[0].mxu0
      %2223 = vmatprep.mubr.f32.mxu0 0.0
      %v2224 = vand.u32 %v263, 4294901760
      %v2225 = vsub.f32 %v263, %v2224
      %v2226 = vand.u32 %v2225, 4294901760
      %v2227 = vsub.f32 %v2225, %v2226
      %v2228 = vand.u32 %v2227, 4294901760
      %2229 = vmatmul.mubr.f32.gmra.mrb[0].mxu0 %v2228
      %v2230 = vpop.f32.mrb[0].mxu0
      %v2231 = vadd.f32 %v1999, %v2230
      %v2232 = vpop.f32.mrb[0].mxu0
      %2233 = vmatprep.mubr.f32.mxu0 0.0
      %v2234 = vand.u32 %v266, 4294901760
      %v2235 = vsub.f32 %v266, %v2234
      %v2236 = vand.u32 %v2235, 4294901760
      %v2237 = vsub.f32 %v2235, %v2236
      %v2238 = vand.u32 %v2237, 4294901760
      %2239 = vmatmul.mubr.f32.gmra.mrb[0].mxu0 %v2238
      %v2240 = vpop.f32.mrb[0].mxu0
      %v2241 = vadd.f32 %v2006, %v2240
      %v2242 = vpop.f32.mrb[0].mxu0
      %2243 = vmatprep.mubr.f32.mxu0 0.0
      %v2244 = vand.u32 %v269, 4294901760
      %v2245 = vsub.f32 %v269, %v2244
      %v2246 = vand.u32 %v2245, 4294901760
      %v2247 = vsub.f32 %v2245, %v2246
      %v2248 = vand.u32 %v2247, 4294901760
      %2249 = vmatmul.mubr.f32.gmra.mrb[0].mxu0 %v2248
      %v2250 = vpop.f32.mrb[0].mxu0
      %v2251 = vadd.f32 %v2013, %v2250
      %v2252 = vpop.f32.mrb[0].mxu0
      %2253 = vmatprep.mubr.f32.mxu0 0.0
      %v2254 = vand.u32 %v272, 4294901760
      %v2255 = vsub.f32 %v272, %v2254
      %v2256 = vand.u32 %v2255, 4294901760
      %v2257 = vsub.f32 %v2255, %v2256
      %v2258 = vand.u32 %v2257, 4294901760
      %2259 = vmatmul.mubr.f32.gmra.mrb[0].mxu0 %v2258
      %v2260 = vpop.f32.mrb[0].mxu0
      %v2261 = vadd.f32 %v2020, %v2260
      %v2262 = vpop.f32.mrb[0].mxu0
      %2263 = vdwg.mxu0
      %2264 = vmatprep.subr.mxu0 0.0
      %v2265 = vand.u32 %v305, 4294901760
      %v2266 = vsub.f32 %v305, %v2265
      %v2267 = vand.u32 %v2266, 4294901760
      %v2268 = vsub.f32 %v2266, %v2267
      %v2269 = vand.u32 %v2268, 4294901760
      %2270 = vmatpush1.msra.mxu0 %v2269
      %2271 = vmatprep.subr.mxu0 0.0
      %v2272 = vand.u32 %v306, 4294901760
      %v2273 = vsub.f32 %v306, %v2272
      %v2274 = vand.u32 %v2273, 4294901760
      %v2275 = vsub.f32 %v2273, %v2274
      %v2276 = vand.u32 %v2275, 4294901760
      %2277 = vmatpush1.msra.mxu0 %v2276
      %2278 = vmatprep.subr.mxu0 0.0
      %v2279 = vand.u32 %v307, 4294901760
      %v2280 = vsub.f32 %v307, %v2279
      %v2281 = vand.u32 %v2280, 4294901760
      %v2282 = vsub.f32 %v2280, %v2281
      %v2283 = vand.u32 %v2282, 4294901760
      %2284 = vmatpush1.msra.mxu0 %v2283
      %2285 = vmatprep.subr.mxu0 0.0
      %v2286 = vand.u32 %v308, 4294901760
      %v2287 = vsub.f32 %v308, %v2286
      %v2288 = vand.u32 %v2287, 4294901760
      %v2289 = vsub.f32 %v2287, %v2288
      %v2290 = vand.u32 %v2289, 4294901760
      %2291 = vmatpush1.msra.mxu0 %v2290
      %2292 = vmatprep.subr.mxu0 0.0
      %v2293 = vand.u32 %v309, 4294901760
      %v2294 = vsub.f32 %v309, %v2293
      %v2295 = vand.u32 %v2294, 4294901760
      %v2296 = vsub.f32 %v2294, %v2295
      %v2297 = vand.u32 %v2296, 4294901760
      %2298 = vmatpush1.msra.mxu0 %v2297
      %2299 = vmatprep.subr.mxu0 0.0
      %v2300 = vand.u32 %v310, 4294901760
      %v2301 = vsub.f32 %v310, %v2300
      %v2302 = vand.u32 %v2301, 4294901760
      %v2303 = vsub.f32 %v2301, %v2302
      %v2304 = vand.u32 %v2303, 4294901760
      %2305 = vmatpush1.msra.mxu0 %v2304
      %2306 = vmatprep.subr.mxu0 0.0
      %v2307 = vand.u32 %v311, 4294901760
      %v2308 = vsub.f32 %v311, %v2307
      %v2309 = vand.u32 %v2308, 4294901760
      %v2310 = vsub.f32 %v2308, %v2309
      %v2311 = vand.u32 %v2310, 4294901760
      %2312 = vmatpush1.msra.mxu0 %v2311
      %2313 = vmatprep.subr.mxu0 0.0
      %v2314 = vand.u32 %v312, 4294901760
      %v2315 = vsub.f32 %v312, %v2314
      %v2316 = vand.u32 %v2315, 4294901760
      %v2317 = vsub.f32 %v2315, %v2316
      %v2318 = vand.u32 %v2317, 4294901760
      %2319 = vmatpush1.msra.mxu0 %v2318
      %2320 = vmatprep.subr.mxu0 0.0
      %v2321 = vand.u32 %v313, 4294901760
      %v2322 = vsub.f32 %v313, %v2321
      %v2323 = vand.u32 %v2322, 4294901760
      %v2324 = vsub.f32 %v2322, %v2323
      %v2325 = vand.u32 %v2324, 4294901760
      %2326 = vmatpush1.msra.mxu0 %v2325
      %2327 = vmatprep.subr.mxu0 0.0
      %v2328 = vand.u32 %v314, 4294901760
      %v2329 = vsub.f32 %v314, %v2328
      %v2330 = vand.u32 %v2329, 4294901760
      %v2331 = vsub.f32 %v2329, %v2330
      %v2332 = vand.u32 %v2331, 4294901760
      %2333 = vmatpush1.msra.mxu0 %v2332
      %2334 = vmatprep.subr.mxu0 0.0
      %v2335 = vand.u32 %v315, 4294901760
      %v2336 = vsub.f32 %v315, %v2335
      %v2337 = vand.u32 %v2336, 4294901760
      %v2338 = vsub.f32 %v2336, %v2337
      %v2339 = vand.u32 %v2338, 4294901760
      %2340 = vmatpush1.msra.mxu0 %v2339
      %2341 = vmatprep.subr.mxu0 0.0
      %v2342 = vand.u32 %v316, 4294901760
      %v2343 = vsub.f32 %v316, %v2342
      %v2344 = vand.u32 %v2343, 4294901760
      %v2345 = vsub.f32 %v2343, %v2344
      %v2346 = vand.u32 %v2345, 4294901760
      %2347 = vmatpush1.msra.mxu0 %v2346
      %2348 = vmatprep.subr.mxu0 0.0
      %v2349 = vand.u32 %v317, 4294901760
      %v2350 = vsub.f32 %v317, %v2349
      %v2351 = vand.u32 %v2350, 4294901760
      %v2352 = vsub.f32 %v2350, %v2351
      %v2353 = vand.u32 %v2352, 4294901760
      %2354 = vmatpush1.msra.mxu0 %v2353
      %2355 = vmatprep.subr.mxu0 0.0
      %v2356 = vand.u32 %v318, 4294901760
      %v2357 = vsub.f32 %v318, %v2356
      %v2358 = vand.u32 %v2357, 4294901760
      %v2359 = vsub.f32 %v2357, %v2358
      %v2360 = vand.u32 %v2359, 4294901760
      %2361 = vmatpush1.msra.mxu0 %v2360
      %2362 = vmatprep.subr.mxu0 0.0
      %v2363 = vand.u32 %v319, 4294901760
      %v2364 = vsub.f32 %v319, %v2363
      %v2365 = vand.u32 %v2364, 4294901760
      %v2366 = vsub.f32 %v2364, %v2365
      %v2367 = vand.u32 %v2366, 4294901760
      %2368 = vmatpush1.msra.mxu0 %v2367
      %2369 = vmatprep.subr.mxu0 0.0
      %v2370 = vand.u32 %v320, 4294901760
      %v2371 = vsub.f32 %v320, %v2370
      %v2372 = vand.u32 %v2371, 4294901760
      %v2373 = vsub.f32 %v2371, %v2372
      %v2374 = vand.u32 %v2373, 4294901760
      %2375 = vmatpush1.msra.mxu0 %v2374
      %2376 = vmatprep.subr.mxu0 0.0
      %2377 = vmatpush1.msra.mxu0 0.0
      %2378 = vmatprep.subr.mxu0 0.0
      %2379 = vmatpush1.msra.mxu0 0.0
      %2380 = vmatprep.subr.mxu0 0.0
      %2381 = vmatpush1.msra.mxu0 0.0
      %2382 = vmatprep.subr.mxu0 0.0
      %2383 = vmatpush1.msra.mxu0 0.0
      %2384 = vmatprep.subr.mxu0 0.0
      %2385 = vmatpush1.msra.mxu0 0.0
      %2386 = vmatprep.subr.mxu0 0.0
      %2387 = vmatpush1.msra.mxu0 0.0
      %2388 = vmatprep.subr.mxu0 0.0
      %2389 = vmatpush1.msra.mxu0 0.0
      %2390 = vmatprep.subr.mxu0 0.0
      %2391 = vmatpush1.msra.mxu0 0.0
      %2392 = vmatprep.subr.mxu0 0.0
      %2393 = vmatpush1.msra.mxu0 0.0
      %2394 = vmatprep.subr.mxu0 0.0
      %2395 = vmatpush1.msra.mxu0 0.0
      %2396 = vmatprep.subr.mxu0 0.0
      %2397 = vmatpush1.msra.mxu0 0.0
      %2398 = vmatprep.subr.mxu0 0.0
      %2399 = vmatpush1.msra.mxu0 0.0
      %2400 = vmatprep.subr.mxu0 0.0
      %2401 = vmatpush1.msra.mxu0 0.0
      %2402 = vmatprep.subr.mxu0 0.0
      %2403 = vmatpush1.msra.mxu0 0.0
      %2404 = vmatprep.subr.mxu0 0.0
      %2405 = vmatpush1.msra.mxu0 0.0
      %2406 = vmatprep.subr.mxu0 0.0
      %2407 = vmatpush1.msra.mxu0 0.0
      %2408 = vmatprep.mubr.f32.mxu0 0.0
      %v2409 = vand.u32 %v227, 4294901760
      %2410 = vmatmul.mubr.f32.gmra.mrb[0].mxu0 %v2409
      %v2411 = vpop.f32.mrb[0].mxu0
      %v2412 = vadd.f32 %v2111, %v2411
      %v2413 = vpop.f32.mrb[0].mxu0
      %2414 = vmatprep.mubr.f32.mxu0 0.0
      %v2415 = vand.u32 %v230, 4294901760
      %2416 = vmatmul.mubr.f32.gmra.mrb[0].mxu0 %v2415
      %v2417 = vpop.f32.mrb[0].mxu0
      %v2418 = vadd.f32 %v2121, %v2417
      %v2419 = vpop.f32.mrb[0].mxu0
      %2420 = vmatprep.mubr.f32.mxu0 0.0
      %v2421 = vand.u32 %v233, 4294901760
      %2422 = vmatmul.mubr.f32.gmra.mrb[0].mxu0 %v2421
      %v2423 = vpop.f32.mrb[0].mxu0
      %v2424 = vadd.f32 %v2131, %v2423
      %v2425 = vpop.f32.mrb[0].mxu0
      %2426 = vmatprep.mubr.f32.mxu0 0.0
      %v2427 = vand.u32 %v236, 4294901760
      %2428 = vmatmul.mubr.f32.gmra.mrb[0].mxu0 %v2427
      %v2429 = vpop.f32.mrb[0].mxu0
      %v2430 = vadd.f32 %v2141, %v2429
      %v2431 = vpop.f32.mrb[0].mxu0
      %2432 = vmatprep.mubr.f32.mxu0 0.0
      %v2433 = vand.u32 %v239, 4294901760
      %2434 = vmatmul.mubr.f32.gmra.mrb[0].mxu0 %v2433
      %v2435 = vpop.f32.mrb[0].mxu0
      %v2436 = vadd.f32 %v2151, %v2435
      %v2437 = vpop.f32.mrb[0].mxu0
      %2438 = vmatprep.mubr.f32.mxu0 0.0
      %v2439 = vand.u32 %v242, 4294901760
      %2440 = vmatmul.mubr.f32.gmra.mrb[0].mxu0 %v2439
      %v2441 = vpop.f32.mrb[0].mxu0
      %v2442 = vadd.f32 %v2161, %v2441
      %v2443 = vpop.f32.mrb[0].mxu0
      %2444 = vmatprep.mubr.f32.mxu0 0.0
      %v2445 = vand.u32 %v245, 4294901760
      %2446 = vmatmul.mubr.f32.gmra.mrb[0].mxu0 %v2445
      %v2447 = vpop.f32.mrb[0].mxu0
      %v2448 = vadd.f32 %v2171, %v2447
      %v2449 = vpop.f32.mrb[0].mxu0
      %2450 = vmatprep.mubr.f32.mxu0 0.0
      %v2451 = vand.u32 %v248, 4294901760
      %2452 = vmatmul.mubr.f32.gmra.mrb[0].mxu0 %v2451
      %v2453 = vpop.f32.mrb[0].mxu0
      %v2454 = vadd.f32 %v2181, %v2453
      %v2455 = vpop.f32.mrb[0].mxu0
      %2456 = vmatprep.mubr.f32.mxu0 0.0
      %v2457 = vand.u32 %v251, 4294901760
      %2458 = vmatmul.mubr.f32.gmra.mrb[0].mxu0 %v2457
      %v2459 = vpop.f32.mrb[0].mxu0
      %v2460 = vadd.f32 %v2191, %v2459
      %v2461 = vpop.f32.mrb[0].mxu0
      %2462 = vmatprep.mubr.f32.mxu0 0.0
      %v2463 = vand.u32 %v254, 4294901760
      %2464 = vmatmul.mubr.f32.gmra.mrb[0].mxu0 %v2463
      %v2465 = vpop.f32.mrb[0].mxu0
      %v2466 = vadd.f32 %v2201, %v2465
      %v2467 = vpop.f32.mrb[0].mxu0
      %2468 = vmatprep.mubr.f32.mxu0 0.0
      %v2469 = vand.u32 %v257, 4294901760
      %2470 = vmatmul.mubr.f32.gmra.mrb[0].mxu0 %v2469
      %v2471 = vpop.f32.mrb[0].mxu0
      %v2472 = vadd.f32 %v2211, %v2471
      %v2473 = vpop.f32.mrb[0].mxu0
      %2474 = vmatprep.mubr.f32.mxu0 0.0
      %v2475 = vand.u32 %v260, 4294901760
      %2476 = vmatmul.mubr.f32.gmra.mrb[0].mxu0 %v2475
      %v2477 = vpop.f32.mrb[0].mxu0
      %v2478 = vadd.f32 %v2221, %v2477
      %v2479 = vpop.f32.mrb[0].mxu0
      %2480 = vmatprep.mubr.f32.mxu0 0.0
      %v2481 = vand.u32 %v263, 4294901760
      %2482 = vmatmul.mubr.f32.gmra.mrb[0].mxu0 %v2481
      %v2483 = vpop.f32.mrb[0].mxu0
      %v2484 = vadd.f32 %v2231, %v2483
      %v2485 = vpop.f32.mrb[0].mxu0
      %2486 = vmatprep.mubr.f32.mxu0 0.0
      %v2487 = vand.u32 %v266, 4294901760
      %2488 = vmatmul.mubr.f32.gmra.mrb[0].mxu0 %v2487
      %v2489 = vpop.f32.mrb[0].mxu0
      %v2490 = vadd.f32 %v2241, %v2489
      %v2491 = vpop.f32.mrb[0].mxu0
      %2492 = vmatprep.mubr.f32.mxu0 0.0
      %v2493 = vand.u32 %v269, 4294901760
      %2494 = vmatmul.mubr.f32.gmra.mrb[0].mxu0 %v2493
      %v2495 = vpop.f32.mrb[0].mxu0
      %v2496 = vadd.f32 %v2251, %v2495
      %v2497 = vpop.f32.mrb[0].mxu0
      %2498 = vmatprep.mubr.f32.mxu0 0.0
      %v2499 = vand.u32 %v272, 4294901760
      %2500 = vmatmul.mubr.f32.gmra.mrb[0].mxu0 %v2499
      %v2501 = vpop.f32.mrb[0].mxu0
      %v2502 = vadd.f32 %v2261, %v2501
      %v2503 = vpop.f32.mrb[0].mxu0
      %2504 = vdwg.mxu0
      %2505 = vmatprep.subr.mxu0 0.0
      %v2506 = vand.u32 %v305, 4294901760
      %v2507 = vsub.f32 %v305, %v2506
      %2508 = vmatpush1.msra.mxu0 %v2507
      %2509 = vmatprep.subr.mxu0 0.0
      %v2510 = vand.u32 %v306, 4294901760
      %v2511 = vsub.f32 %v306, %v2510
      %2512 = vmatpush1.msra.mxu0 %v2511
      %2513 = vmatprep.subr.mxu0 0.0
      %v2514 = vand.u32 %v307, 4294901760
      %v2515 = vsub.f32 %v307, %v2514
      %2516 = vmatpush1.msra.mxu0 %v2515
      %2517 = vmatprep.subr.mxu0 0.0
      %v2518 = vand.u32 %v308, 4294901760
      %v2519 = vsub.f32 %v308, %v2518
      %2520 = vmatpush1.msra.mxu0 %v2519
      %2521 = vmatprep.subr.mxu0 0.0
      %v2522 = vand.u32 %v309, 4294901760
      %v2523 = vsub.f32 %v309, %v2522
      %2524 = vmatpush1.msra.mxu0 %v2523
      %2525 = vmatprep.subr.mxu0 0.0
      %v2526 = vand.u32 %v310, 4294901760
      %v2527 = vsub.f32 %v310, %v2526
      %2528 = vmatpush1.msra.mxu0 %v2527
      %2529 = vmatprep.subr.mxu0 0.0
      %v2530 = vand.u32 %v311, 4294901760
      %v2531 = vsub.f32 %v311, %v2530
      %2532 = vmatpush1.msra.mxu0 %v2531
      %2533 = vmatprep.subr.mxu0 0.0
      %v2534 = vand.u32 %v312, 4294901760
      %v2535 = vsub.f32 %v312, %v2534
      %2536 = vmatpush1.msra.mxu0 %v2535
      %2537 = vmatprep.subr.mxu0 0.0
      %v2538 = vand.u32 %v313, 4294901760
      %v2539 = vsub.f32 %v313, %v2538
      %2540 = vmatpush1.msra.mxu0 %v2539
      %2541 = vmatprep.subr.mxu0 0.0
      %v2542 = vand.u32 %v314, 4294901760
      %v2543 = vsub.f32 %v314, %v2542
      %2544 = vmatpush1.msra.mxu0 %v2543
      %2545 = vmatprep.subr.mxu0 0.0
      %v2546 = vand.u32 %v315, 4294901760
      %v2547 = vsub.f32 %v315, %v2546
      %2548 = vmatpush1.msra.mxu0 %v2547
      %2549 = vmatprep.subr.mxu0 0.0
      %v2550 = vand.u32 %v316, 4294901760
      %v2551 = vsub.f32 %v316, %v2550
      %2552 = vmatpush1.msra.mxu0 %v2551
      %2553 = vmatprep.subr.mxu0 0.0
      %v2554 = vand.u32 %v317, 4294901760
      %v2555 = vsub.f32 %v317, %v2554
      %2556 = vmatpush1.msra.mxu0 %v2555
      %2557 = vmatprep.subr.mxu0 0.0
      %v2558 = vand.u32 %v318, 4294901760
      %v2559 = vsub.f32 %v318, %v2558
      %2560 = vmatpush1.msra.mxu0 %v2559
      %2561 = vmatprep.subr.mxu0 0.0
      %v2562 = vand.u32 %v319, 4294901760
      %v2563 = vsub.f32 %v319, %v2562
      %2564 = vmatpush1.msra.mxu0 %v2563
      %2565 = vmatprep.subr.mxu0 0.0
      %v2566 = vand.u32 %v320, 4294901760
      %v2567 = vsub.f32 %v320, %v2566
      %2568 = vmatpush1.msra.mxu0 %v2567
      %2569 = vmatprep.subr.mxu0 0.0
      %2570 = vmatpush1.msra.mxu0 0.0
      %2571 = vmatprep.subr.mxu0 0.0
      %2572 = vmatpush1.msra.mxu0 0.0
      %2573 = vmatprep.subr.mxu0 0.0
      %2574 = vmatpush1.msra.mxu0 0.0
      %2575 = vmatprep.subr.mxu0 0.0
      %2576 = vmatpush1.msra.mxu0 0.0
      %2577 = vmatprep.subr.mxu0 0.0
      %2578 = vmatpush1.msra.mxu0 0.0
      %2579 = vmatprep.subr.mxu0 0.0
      %2580 = vmatpush1.msra.mxu0 0.0
      %2581 = vmatprep.subr.mxu0 0.0
      %2582 = vmatpush1.msra.mxu0 0.0
      %2583 = vmatprep.subr.mxu0 0.0
      %2584 = vmatpush1.msra.mxu0 0.0
      %2585 = vmatprep.subr.mxu0 0.0
      %2586 = vmatpush1.msra.mxu0 0.0
      %2587 = vmatprep.subr.mxu0 0.0
      %2588 = vmatpush1.msra.mxu0 0.0
      %2589 = vmatprep.subr.mxu0 0.0
      %2590 = vmatpush1.msra.mxu0 0.0
      %2591 = vmatprep.subr.mxu0 0.0
      %2592 = vmatpush1.msra.mxu0 0.0
      %2593 = vmatprep.subr.mxu0 0.0
      %2594 = vmatpush1.msra.mxu0 0.0
      %2595 = vmatprep.subr.mxu0 0.0
      %2596 = vmatpush1.msra.mxu0 0.0
      %2597 = vmatprep.subr.mxu0 0.0
      %2598 = vmatpush1.msra.mxu0 0.0
      %2599 = vmatprep.subr.mxu0 0.0
      %2600 = vmatpush1.msra.mxu0 0.0
      %2601 = vmatprep.mubr.f32.mxu0 0.0
      %v2602 = vand.u32 %v227, 4294901760
      %v2603 = vsub.f32 %v227, %v2602
      %2604 = vmatmul.mubr.f32.gmra.mrb[0].mxu0 %v2603
      %v2605 = vpop.f32.mrb[0].mxu0
      %v2606 = vadd.f32 %v2412, %v2605
      %v2607 = vpop.f32.mrb[0].mxu0
      %2608 = vmatprep.mubr.f32.mxu0 0.0
      %v2609 = vand.u32 %v230, 4294901760
      %v2610 = vsub.f32 %v230, %v2609
      %2611 = vmatmul.mubr.f32.gmra.mrb[0].mxu0 %v2610
      %v2612 = vpop.f32.mrb[0].mxu0
      %v2613 = vadd.f32 %v2418, %v2612
      %v2614 = vpop.f32.mrb[0].mxu0
      %2615 = vmatprep.mubr.f32.mxu0 0.0
      %v2616 = vand.u32 %v233, 4294901760
      %v2617 = vsub.f32 %v233, %v2616
      %2618 = vmatmul.mubr.f32.gmra.mrb[0].mxu0 %v2617
      %v2619 = vpop.f32.mrb[0].mxu0
      %v2620 = vadd.f32 %v2424, %v2619
      %v2621 = vpop.f32.mrb[0].mxu0
      %2622 = vmatprep.mubr.f32.mxu0 0.0
      %v2623 = vand.u32 %v236, 4294901760
      %v2624 = vsub.f32 %v236, %v2623
      %2625 = vmatmul.mubr.f32.gmra.mrb[0].mxu0 %v2624
      %v2626 = vpop.f32.mrb[0].mxu0
      %v2627 = vadd.f32 %v2430, %v2626
      %v2628 = vpop.f32.mrb[0].mxu0
      %2629 = vmatprep.mubr.f32.mxu0 0.0
      %v2630 = vand.u32 %v239, 4294901760
      %v2631 = vsub.f32 %v239, %v2630
      %2632 = vmatmul.mubr.f32.gmra.mrb[0].mxu0 %v2631
      %v2633 = vpop.f32.mrb[0].mxu0
      %v2634 = vadd.f32 %v2436, %v2633
      %v2635 = vpop.f32.mrb[0].mxu0
      %2636 = vmatprep.mubr.f32.mxu0 0.0
      %v2637 = vand.u32 %v242, 4294901760
      %v2638 = vsub.f32 %v242, %v2637
      %2639 = vmatmul.mubr.f32.gmra.mrb[0].mxu0 %v2638
      %v2640 = vpop.f32.mrb[0].mxu0
      %v2641 = vadd.f32 %v2442, %v2640
      %v2642 = vpop.f32.mrb[0].mxu0
      %2643 = vmatprep.mubr.f32.mxu0 0.0
      %v2644 = vand.u32 %v245, 4294901760
      %v2645 = vsub.f32 %v245, %v2644
      %2646 = vmatmul.mubr.f32.gmra.mrb[0].mxu0 %v2645
      %v2647 = vpop.f32.mrb[0].mxu0
      %v2648 = vadd.f32 %v2448, %v2647
      %v2649 = vpop.f32.mrb[0].mxu0
      %2650 = vmatprep.mubr.f32.mxu0 0.0
      %v2651 = vand.u32 %v248, 4294901760
      %v2652 = vsub.f32 %v248, %v2651
      %2653 = vmatmul.mubr.f32.gmra.mrb[0].mxu0 %v2652
      %v2654 = vpop.f32.mrb[0].mxu0
      %v2655 = vadd.f32 %v2454, %v2654
      %v2656 = vpop.f32.mrb[0].mxu0
      %2657 = vmatprep.mubr.f32.mxu0 0.0
      %v2658 = vand.u32 %v251, 4294901760
      %v2659 = vsub.f32 %v251, %v2658
      %2660 = vmatmul.mubr.f32.gmra.mrb[0].mxu0 %v2659
      %v2661 = vpop.f32.mrb[0].mxu0
      %v2662 = vadd.f32 %v2460, %v2661
      %v2663 = vpop.f32.mrb[0].mxu0
      %2664 = vmatprep.mubr.f32.mxu0 0.0
      %v2665 = vand.u32 %v254, 4294901760
      %v2666 = vsub.f32 %v254, %v2665
      %2667 = vmatmul.mubr.f32.gmra.mrb[0].mxu0 %v2666
      %v2668 = vpop.f32.mrb[0].mxu0
      %v2669 = vadd.f32 %v2466, %v2668
      %v2670 = vpop.f32.mrb[0].mxu0
      %2671 = vmatprep.mubr.f32.mxu0 0.0
      %v2672 = vand.u32 %v257, 4294901760
      %v2673 = vsub.f32 %v257, %v2672
      %2674 = vmatmul.mubr.f32.gmra.mrb[0].mxu0 %v2673
      %v2675 = vpop.f32.mrb[0].mxu0
      %v2676 = vadd.f32 %v2472, %v2675
      %v2677 = vpop.f32.mrb[0].mxu0
      %2678 = vmatprep.mubr.f32.mxu0 0.0
      %v2679 = vand.u32 %v260, 4294901760
      %v2680 = vsub.f32 %v260, %v2679
      %2681 = vmatmul.mubr.f32.gmra.mrb[0].mxu0 %v2680
      %v2682 = vpop.f32.mrb[0].mxu0
      %v2683 = vadd.f32 %v2478, %v2682
      %v2684 = vpop.f32.mrb[0].mxu0
      %2685 = vmatprep.mubr.f32.mxu0 0.0
      %v2686 = vand.u32 %v263, 4294901760
      %v2687 = vsub.f32 %v263, %v2686
      %2688 = vmatmul.mubr.f32.gmra.mrb[0].mxu0 %v2687
      %v2689 = vpop.f32.mrb[0].mxu0
      %v2690 = vadd.f32 %v2484, %v2689
      %v2691 = vpop.f32.mrb[0].mxu0
      %2692 = vmatprep.mubr.f32.mxu0 0.0
      %v2693 = vand.u32 %v266, 4294901760
      %v2694 = vsub.f32 %v266, %v2693
      %2695 = vmatmul.mubr.f32.gmra.mrb[0].mxu0 %v2694
      %v2696 = vpop.f32.mrb[0].mxu0
      %v2697 = vadd.f32 %v2490, %v2696
      %v2698 = vpop.f32.mrb[0].mxu0
      %2699 = vmatprep.mubr.f32.mxu0 0.0
      %v2700 = vand.u32 %v269, 4294901760
      %v2701 = vsub.f32 %v269, %v2700
      %2702 = vmatmul.mubr.f32.gmra.mrb[0].mxu0 %v2701
      %v2703 = vpop.f32.mrb[0].mxu0
      %v2704 = vadd.f32 %v2496, %v2703
      %v2705 = vpop.f32.mrb[0].mxu0
      %2706 = vmatprep.mubr.f32.mxu0 0.0
      %v2707 = vand.u32 %v272, 4294901760
      %v2708 = vsub.f32 %v272, %v2707
      %2709 = vmatmul.mubr.f32.gmra.mrb[0].mxu0 %v2708
      %v2710 = vpop.f32.mrb[0].mxu0
      %v2711 = vadd.f32 %v2502, %v2710
      %v2712 = vpop.f32.mrb[0].mxu0
      %2713 = vdwg.mxu0
      %2714 = vmatprep.subr.mxu0 0.0
      %v2715 = vand.u32 %v305, 4294901760
      %2716 = vmatpush1.msra.mxu0 %v2715
      %2717 = vmatprep.subr.mxu0 0.0
      %v2718 = vand.u32 %v306, 4294901760
      %2719 = vmatpush1.msra.mxu0 %v2718
      %2720 = vmatprep.subr.mxu0 0.0
      %v2721 = vand.u32 %v307, 4294901760
      %2722 = vmatpush1.msra.mxu0 %v2721
      %2723 = vmatprep.subr.mxu0 0.0
      %v2724 = vand.u32 %v308, 4294901760
      %2725 = vmatpush1.msra.mxu0 %v2724
      %2726 = vmatprep.subr.mxu0 0.0
      %v2727 = vand.u32 %v309, 4294901760
      %2728 = vmatpush1.msra.mxu0 %v2727
      %2729 = vmatprep.subr.mxu0 0.0
      %v2730 = vand.u32 %v310, 4294901760
      %2731 = vmatpush1.msra.mxu0 %v2730
      %2732 = vmatprep.subr.mxu0 0.0
      %v2733 = vand.u32 %v311, 4294901760
      %2734 = vmatpush1.msra.mxu0 %v2733
      %2735 = vmatprep.subr.mxu0 0.0
      %v2736 = vand.u32 %v312, 4294901760
      %2737 = vmatpush1.msra.mxu0 %v2736
      %2738 = vmatprep.subr.mxu0 0.0
      %v2739 = vand.u32 %v313, 4294901760
      %2740 = vmatpush1.msra.mxu0 %v2739
      %2741 = vmatprep.subr.mxu0 0.0
      %v2742 = vand.u32 %v314, 4294901760
      %2743 = vmatpush1.msra.mxu0 %v2742
      %2744 = vmatprep.subr.mxu0 0.0
      %v2745 = vand.u32 %v315, 4294901760
      %2746 = vmatpush1.msra.mxu0 %v2745
      %2747 = vmatprep.subr.mxu0 0.0
      %v2748 = vand.u32 %v316, 4294901760
      %2749 = vmatpush1.msra.mxu0 %v2748
      %2750 = vmatprep.subr.mxu0 0.0
      %v2751 = vand.u32 %v317, 4294901760
      %2752 = vmatpush1.msra.mxu0 %v2751
      %2753 = vmatprep.subr.mxu0 0.0
      %v2754 = vand.u32 %v318, 4294901760
      %2755 = vmatpush1.msra.mxu0 %v2754
      %2756 = vmatprep.subr.mxu0 0.0
      %v2757 = vand.u32 %v319, 4294901760
      %2758 = vmatpush1.msra.mxu0 %v2757
      %2759 = vmatprep.subr.mxu0 0.0
      %v2760 = vand.u32 %v320, 4294901760
      %2761 = vmatpush1.msra.mxu0 %v2760
      %2762 = vmatprep.subr.mxu0 0.0
      %2763 = vmatpush1.msra.mxu0 0.0
      %2764 = vmatprep.subr.mxu0 0.0
      %2765 = vmatpush1.msra.mxu0 0.0
      %2766 = vmatprep.subr.mxu0 0.0
      %2767 = vmatpush1.msra.mxu0 0.0
      %2768 = vmatprep.subr.mxu0 0.0
      %2769 = vmatpush1.msra.mxu0 0.0
      %2770 = vmatprep.subr.mxu0 0.0
      %2771 = vmatpush1.msra.mxu0 0.0
      %2772 = vmatprep.subr.mxu0 0.0
      %2773 = vmatpush1.msra.mxu0 0.0
      %2774 = vmatprep.subr.mxu0 0.0
      %2775 = vmatpush1.msra.mxu0 0.0
      %2776 = vmatprep.subr.mxu0 0.0
      %2777 = vmatpush1.msra.mxu0 0.0
      %2778 = vmatprep.subr.mxu0 0.0
      %2779 = vmatpush1.msra.mxu0 0.0
      %2780 = vmatprep.subr.mxu0 0.0
      %2781 = vmatpush1.msra.mxu0 0.0
      %2782 = vmatprep.subr.mxu0 0.0
      %2783 = vmatpush1.msra.mxu0 0.0
      %2784 = vmatprep.subr.mxu0 0.0
      %2785 = vmatpush1.msra.mxu0 0.0
      %2786 = vmatprep.subr.mxu0 0.0
      %2787 = vmatpush1.msra.mxu0 0.0
      %2788 = vmatprep.subr.mxu0 0.0
      %2789 = vmatpush1.msra.mxu0 0.0
      %2790 = vmatprep.subr.mxu0 0.0
      %2791 = vmatpush1.msra.mxu0 0.0
      %2792 = vmatprep.subr.mxu0 0.0
      %2793 = vmatpush1.msra.mxu0 0.0
      %2794 = vmatprep.mubr.f32.mxu0 0.0
      %v2795 = vand.u32 %v227, 4294901760
      %v2796 = vsub.f32 %v227, %v2795
      %v2797 = vand.u32 %v2796, 4294901760
      %2798 = vmatmul.mubr.f32.gmra.mrb[0].mxu0 %v2797
      %v2799 = vpop.f32.mrb[0].mxu0
      %v2800 = vadd.f32 %v2606, %v2799
      %v2801 = vpop.f32.mrb[0].mxu0
      %2802 = vmatprep.mubr.f32.mxu0 0.0
      %v2803 = vand.u32 %v230, 4294901760
      %v2804 = vsub.f32 %v230, %v2803
      %v2805 = vand.u32 %v2804, 4294901760
      %2806 = vmatmul.mubr.f32.gmra.mrb[0].mxu0 %v2805
      %v2807 = vpop.f32.mrb[0].mxu0
      %v2808 = vadd.f32 %v2613, %v2807
      %v2809 = vpop.f32.mrb[0].mxu0
      %2810 = vmatprep.mubr.f32.mxu0 0.0
      %v2811 = vand.u32 %v233, 4294901760
      %v2812 = vsub.f32 %v233, %v2811
      %v2813 = vand.u32 %v2812, 4294901760
      %2814 = vmatmul.mubr.f32.gmra.mrb[0].mxu0 %v2813
      %v2815 = vpop.f32.mrb[0].mxu0
      %v2816 = vadd.f32 %v2620, %v2815
      %v2817 = vpop.f32.mrb[0].mxu0
      %2818 = vmatprep.mubr.f32.mxu0 0.0
      %v2819 = vand.u32 %v236, 4294901760
      %v2820 = vsub.f32 %v236, %v2819
      %v2821 = vand.u32 %v2820, 4294901760
      %2822 = vmatmul.mubr.f32.gmra.mrb[0].mxu0 %v2821
      %v2823 = vpop.f32.mrb[0].mxu0
      %v2824 = vadd.f32 %v2627, %v2823
      %v2825 = vpop.f32.mrb[0].mxu0
      %2826 = vmatprep.mubr.f32.mxu0 0.0
      %v2827 = vand.u32 %v239, 4294901760
      %v2828 = vsub.f32 %v239, %v2827
      %v2829 = vand.u32 %v2828, 4294901760
      %2830 = vmatmul.mubr.f32.gmra.mrb[0].mxu0 %v2829
      %v2831 = vpop.f32.mrb[0].mxu0
      %v2832 = vadd.f32 %v2634, %v2831
      %v2833 = vpop.f32.mrb[0].mxu0
      %2834 = vmatprep.mubr.f32.mxu0 0.0
      %v2835 = vand.u32 %v242, 4294901760
      %v2836 = vsub.f32 %v242, %v2835
      %v2837 = vand.u32 %v2836, 4294901760
      %2838 = vmatmul.mubr.f32.gmra.mrb[0].mxu0 %v2837
      %v2839 = vpop.f32.mrb[0].mxu0
      %v2840 = vadd.f32 %v2641, %v2839
      %v2841 = vpop.f32.mrb[0].mxu0
      %2842 = vmatprep.mubr.f32.mxu0 0.0
      %v2843 = vand.u32 %v245, 4294901760
      %v2844 = vsub.f32 %v245, %v2843
      %v2845 = vand.u32 %v2844, 4294901760
      %2846 = vmatmul.mubr.f32.gmra.mrb[0].mxu0 %v2845
      %v2847 = vpop.f32.mrb[0].mxu0
      %v2848 = vadd.f32 %v2648, %v2847
      %v2849 = vpop.f32.mrb[0].mxu0
      %2850 = vmatprep.mubr.f32.mxu0 0.0
      %v2851 = vand.u32 %v248, 4294901760
      %v2852 = vsub.f32 %v248, %v2851
      %v2853 = vand.u32 %v2852, 4294901760
      %2854 = vmatmul.mubr.f32.gmra.mrb[0].mxu0 %v2853
      %v2855 = vpop.f32.mrb[0].mxu0
      %v2856 = vadd.f32 %v2655, %v2855
      %v2857 = vpop.f32.mrb[0].mxu0
      %2858 = vmatprep.mubr.f32.mxu0 0.0
      %v2859 = vand.u32 %v251, 4294901760
      %v2860 = vsub.f32 %v251, %v2859
      %v2861 = vand.u32 %v2860, 4294901760
      %2862 = vmatmul.mubr.f32.gmra.mrb[0].mxu0 %v2861
      %v2863 = vpop.f32.mrb[0].mxu0
      %v2864 = vadd.f32 %v2662, %v2863
      %v2865 = vpop.f32.mrb[0].mxu0
      %2866 = vmatprep.mubr.f32.mxu0 0.0
      %v2867 = vand.u32 %v254, 4294901760
      %v2868 = vsub.f32 %v254, %v2867
      %v2869 = vand.u32 %v2868, 4294901760
      %2870 = vmatmul.mubr.f32.gmra.mrb[0].mxu0 %v2869
      %v2871 = vpop.f32.mrb[0].mxu0
      %v2872 = vadd.f32 %v2669, %v2871
      %v2873 = vpop.f32.mrb[0].mxu0
      %2874 = vmatprep.mubr.f32.mxu0 0.0
      %v2875 = vand.u32 %v257, 4294901760
      %v2876 = vsub.f32 %v257, %v2875
      %v2877 = vand.u32 %v2876, 4294901760
      %2878 = vmatmul.mubr.f32.gmra.mrb[0].mxu0 %v2877
      %v2879 = vpop.f32.mrb[0].mxu0
      %v2880 = vadd.f32 %v2676, %v2879
      %v2881 = vpop.f32.mrb[0].mxu0
      %2882 = vmatprep.mubr.f32.mxu0 0.0
      %v2883 = vand.u32 %v260, 4294901760
      %v2884 = vsub.f32 %v260, %v2883
      %v2885 = vand.u32 %v2884, 4294901760
      %2886 = vmatmul.mubr.f32.gmra.mrb[0].mxu0 %v2885
      %v2887 = vpop.f32.mrb[0].mxu0
      %v2888 = vadd.f32 %v2683, %v2887
      %v2889 = vpop.f32.mrb[0].mxu0
      %2890 = vmatprep.mubr.f32.mxu0 0.0
      %v2891 = vand.u32 %v263, 4294901760
      %v2892 = vsub.f32 %v263, %v2891
      %v2893 = vand.u32 %v2892, 4294901760
      %2894 = vmatmul.mubr.f32.gmra.mrb[0].mxu0 %v2893
      %v2895 = vpop.f32.mrb[0].mxu0
      %v2896 = vadd.f32 %v2690, %v2895
      %v2897 = vpop.f32.mrb[0].mxu0
      %2898 = vmatprep.mubr.f32.mxu0 0.0
      %v2899 = vand.u32 %v266, 4294901760
      %v2900 = vsub.f32 %v266, %v2899
      %v2901 = vand.u32 %v2900, 4294901760
      %2902 = vmatmul.mubr.f32.gmra.mrb[0].mxu0 %v2901
      %v2903 = vpop.f32.mrb[0].mxu0
      %v2904 = vadd.f32 %v2697, %v2903
      %v2905 = vpop.f32.mrb[0].mxu0
      %2906 = vmatprep.mubr.f32.mxu0 0.0
      %v2907 = vand.u32 %v269, 4294901760
      %v2908 = vsub.f32 %v269, %v2907
      %v2909 = vand.u32 %v2908, 4294901760
      %2910 = vmatmul.mubr.f32.gmra.mrb[0].mxu0 %v2909
      %v2911 = vpop.f32.mrb[0].mxu0
      %v2912 = vadd.f32 %v2704, %v2911
      %v2913 = vpop.f32.mrb[0].mxu0
      %2914 = vmatprep.mubr.f32.mxu0 0.0
      %v2915 = vand.u32 %v272, 4294901760
      %v2916 = vsub.f32 %v272, %v2915
      %v2917 = vand.u32 %v2916, 4294901760
      %2918 = vmatmul.mubr.f32.gmra.mrb[0].mxu0 %v2917
      %v2919 = vpop.f32.mrb[0].mxu0
      %v2920 = vadd.f32 %v2711, %v2919
      %v2921 = vpop.f32.mrb[0].mxu0
      %2922 = vdwg.mxu0
      %2923 = vmatprep.subr.mxu0 0.0
      %v2924 = vand.u32 %v305, 4294901760
      %v2925 = vsub.f32 %v305, %v2924
      %v2926 = vand.u32 %v2925, 4294901760
      %2927 = vmatpush1.msra.mxu0 %v2926
      %2928 = vmatprep.subr.mxu0 0.0
      %v2929 = vand.u32 %v306, 4294901760
      %v2930 = vsub.f32 %v306, %v2929
      %v2931 = vand.u32 %v2930, 4294901760
      %2932 = vmatpush1.msra.mxu0 %v2931
      %2933 = vmatprep.subr.mxu0 0.0
      %v2934 = vand.u32 %v307, 4294901760
      %v2935 = vsub.f32 %v307, %v2934
      %v2936 = vand.u32 %v2935, 4294901760
      %2937 = vmatpush1.msra.mxu0 %v2936
      %2938 = vmatprep.subr.mxu0 0.0
      %v2939 = vand.u32 %v308, 4294901760
      %v2940 = vsub.f32 %v308, %v2939
      %v2941 = vand.u32 %v2940, 4294901760
      %2942 = vmatpush1.msra.mxu0 %v2941
      %2943 = vmatprep.subr.mxu0 0.0
      %v2944 = vand.u32 %v309, 4294901760
      %v2945 = vsub.f32 %v309, %v2944
      %v2946 = vand.u32 %v2945, 4294901760
      %2947 = vmatpush1.msra.mxu0 %v2946
      %2948 = vmatprep.subr.mxu0 0.0
      %v2949 = vand.u32 %v310, 4294901760
      %v2950 = vsub.f32 %v310, %v2949
      %v2951 = vand.u32 %v2950, 4294901760
      %2952 = vmatpush1.msra.mxu0 %v2951
      %2953 = vmatprep.subr.mxu0 0.0
      %v2954 = vand.u32 %v311, 4294901760
      %v2955 = vsub.f32 %v311, %v2954
      %v2956 = vand.u32 %v2955, 4294901760
      %2957 = vmatpush1.msra.mxu0 %v2956
      %2958 = vmatprep.subr.mxu0 0.0
      %v2959 = vand.u32 %v312, 4294901760
      %v2960 = vsub.f32 %v312, %v2959
      %v2961 = vand.u32 %v2960, 4294901760
      %2962 = vmatpush1.msra.mxu0 %v2961
      %2963 = vmatprep.subr.mxu0 0.0
      %v2964 = vand.u32 %v313, 4294901760
      %v2965 = vsub.f32 %v313, %v2964
      %v2966 = vand.u32 %v2965, 4294901760
      %2967 = vmatpush1.msra.mxu0 %v2966
      %2968 = vmatprep.subr.mxu0 0.0
      %v2969 = vand.u32 %v314, 4294901760
      %v2970 = vsub.f32 %v314, %v2969
      %v2971 = vand.u32 %v2970, 4294901760
      %2972 = vmatpush1.msra.mxu0 %v2971
      %2973 = vmatprep.subr.mxu0 0.0
      %v2974 = vand.u32 %v315, 4294901760
      %v2975 = vsub.f32 %v315, %v2974
      %v2976 = vand.u32 %v2975, 4294901760
      %2977 = vmatpush1.msra.mxu0 %v2976
      %2978 = vmatprep.subr.mxu0 0.0
      %v2979 = vand.u32 %v316, 4294901760
      %v2980 = vsub.f32 %v316, %v2979
      %v2981 = vand.u32 %v2980, 4294901760
      %2982 = vmatpush1.msra.mxu0 %v2981
      %2983 = vmatprep.subr.mxu0 0.0
      %v2984 = vand.u32 %v317, 4294901760
      %v2985 = vsub.f32 %v317, %v2984
      %v2986 = vand.u32 %v2985, 4294901760
      %2987 = vmatpush1.msra.mxu0 %v2986
      %2988 = vmatprep.subr.mxu0 0.0
      %v2989 = vand.u32 %v318, 4294901760
      %v2990 = vsub.f32 %v318, %v2989
      %v2991 = vand.u32 %v2990, 4294901760
      %2992 = vmatpush1.msra.mxu0 %v2991
      %2993 = vmatprep.subr.mxu0 0.0
      %v2994 = vand.u32 %v319, 4294901760
      %v2995 = vsub.f32 %v319, %v2994
      %v2996 = vand.u32 %v2995, 4294901760
      %2997 = vmatpush1.msra.mxu0 %v2996
      %2998 = vmatprep.subr.mxu0 0.0
      %v2999 = vand.u32 %v320, 4294901760
      %v3000 = vsub.f32 %v320, %v2999
      %v3001 = vand.u32 %v3000, 4294901760
      %3002 = vmatpush1.msra.mxu0 %v3001
      %3003 = vmatprep.subr.mxu0 0.0
      %3004 = vmatpush1.msra.mxu0 0.0
      %3005 = vmatprep.subr.mxu0 0.0
      %3006 = vmatpush1.msra.mxu0 0.0
      %3007 = vmatprep.subr.mxu0 0.0
      %3008 = vmatpush1.msra.mxu0 0.0
      %3009 = vmatprep.subr.mxu0 0.0
      %3010 = vmatpush1.msra.mxu0 0.0
      %3011 = vmatprep.subr.mxu0 0.0
      %3012 = vmatpush1.msra.mxu0 0.0
      %3013 = vmatprep.subr.mxu0 0.0
      %3014 = vmatpush1.msra.mxu0 0.0
      %3015 = vmatprep.subr.mxu0 0.0
      %3016 = vmatpush1.msra.mxu0 0.0
      %3017 = vmatprep.subr.mxu0 0.0
      %3018 = vmatpush1.msra.mxu0 0.0
      %3019 = vmatprep.subr.mxu0 0.0
      %3020 = vmatpush1.msra.mxu0 0.0
      %3021 = vmatprep.subr.mxu0 0.0
      %3022 = vmatpush1.msra.mxu0 0.0
      %3023 = vmatprep.subr.mxu0 0.0
      %3024 = vmatpush1.msra.mxu0 0.0
      %3025 = vmatprep.subr.mxu0 0.0
      %3026 = vmatpush1.msra.mxu0 0.0
      %3027 = vmatprep.subr.mxu0 0.0
      %3028 = vmatpush1.msra.mxu0 0.0
      %3029 = vmatprep.subr.mxu0 0.0
      %3030 = vmatpush1.msra.mxu0 0.0
      %3031 = vmatprep.subr.mxu0 0.0
      %3032 = vmatpush1.msra.mxu0 0.0
      %3033 = vmatprep.subr.mxu0 0.0
      %3034 = vmatpush1.msra.mxu0 0.0
      %3035 = vmatprep.mubr.f32.mxu0 0.0
      %v3036 = vand.u32 %v227, 4294901760
      %3037 = vmatmul.mubr.f32.gmra.mrb[0].mxu0 %v3036
      %v3038 = vpop.f32.mrb[0].mxu0
      %v3039 = vadd.f32 %v2800, %v3038
      %v3040 = vpop.f32.mrb[0].mxu0
      %3041 = vmatprep.mubr.f32.mxu0 0.0
      %v3042 = vand.u32 %v230, 4294901760
      %3043 = vmatmul.mubr.f32.gmra.mrb[0].mxu0 %v3042
      %v3044 = vpop.f32.mrb[0].mxu0
      %v3045 = vadd.f32 %v2808, %v3044
      %v3046 = vpop.f32.mrb[0].mxu0
      %3047 = vmatprep.mubr.f32.mxu0 0.0
      %v3048 = vand.u32 %v233, 4294901760
      %3049 = vmatmul.mubr.f32.gmra.mrb[0].mxu0 %v3048
      %v3050 = vpop.f32.mrb[0].mxu0
      %v3051 = vadd.f32 %v2816, %v3050
      %v3052 = vpop.f32.mrb[0].mxu0
      %3053 = vmatprep.mubr.f32.mxu0 0.0
      %v3054 = vand.u32 %v236, 4294901760
      %3055 = vmatmul.mubr.f32.gmra.mrb[0].mxu0 %v3054
      %v3056 = vpop.f32.mrb[0].mxu0
      %v3057 = vadd.f32 %v2824, %v3056
      %v3058 = vpop.f32.mrb[0].mxu0
      %3059 = vmatprep.mubr.f32.mxu0 0.0
      %v3060 = vand.u32 %v239, 4294901760
      %3061 = vmatmul.mubr.f32.gmra.mrb[0].mxu0 %v3060
      %v3062 = vpop.f32.mrb[0].mxu0
      %v3063 = vadd.f32 %v2832, %v3062
      %v3064 = vpop.f32.mrb[0].mxu0
      %3065 = vmatprep.mubr.f32.mxu0 0.0
      %v3066 = vand.u32 %v242, 4294901760
      %3067 = vmatmul.mubr.f32.gmra.mrb[0].mxu0 %v3066
      %v3068 = vpop.f32.mrb[0].mxu0
      %v3069 = vadd.f32 %v2840, %v3068
      %v3070 = vpop.f32.mrb[0].mxu0
      %3071 = vmatprep.mubr.f32.mxu0 0.0
      %v3072 = vand.u32 %v245, 4294901760
      %3073 = vmatmul.mubr.f32.gmra.mrb[0].mxu0 %v3072
      %v3074 = vpop.f32.mrb[0].mxu0
      %v3075 = vadd.f32 %v2848, %v3074
      %v3076 = vpop.f32.mrb[0].mxu0
      %3077 = vmatprep.mubr.f32.mxu0 0.0
      %v3078 = vand.u32 %v248, 4294901760
      %3079 = vmatmul.mubr.f32.gmra.mrb[0].mxu0 %v3078
      %v3080 = vpop.f32.mrb[0].mxu0
      %v3081 = vadd.f32 %v2856, %v3080
      %v3082 = vpop.f32.mrb[0].mxu0
      %3083 = vmatprep.mubr.f32.mxu0 0.0
      %v3084 = vand.u32 %v251, 4294901760
      %3085 = vmatmul.mubr.f32.gmra.mrb[0].mxu0 %v3084
      %v3086 = vpop.f32.mrb[0].mxu0
      %v3087 = vadd.f32 %v2864, %v3086
      %v3088 = vpop.f32.mrb[0].mxu0
      %3089 = vmatprep.mubr.f32.mxu0 0.0
      %v3090 = vand.u32 %v254, 4294901760
      %3091 = vmatmul.mubr.f32.gmra.mrb[0].mxu0 %v3090
      %v3092 = vpop.f32.mrb[0].mxu0
      %v3093 = vadd.f32 %v2872, %v3092
      %v3094 = vpop.f32.mrb[0].mxu0
      %3095 = vmatprep.mubr.f32.mxu0 0.0
      %v3096 = vand.u32 %v257, 4294901760
      %3097 = vmatmul.mubr.f32.gmra.mrb[0].mxu0 %v3096
      %v3098 = vpop.f32.mrb[0].mxu0
      %v3099 = vadd.f32 %v2880, %v3098
      %v3100 = vpop.f32.mrb[0].mxu0
      %3101 = vmatprep.mubr.f32.mxu0 0.0
      %v3102 = vand.u32 %v260, 4294901760
      %3103 = vmatmul.mubr.f32.gmra.mrb[0].mxu0 %v3102
      %v3104 = vpop.f32.mrb[0].mxu0
      %v3105 = vadd.f32 %v2888, %v3104
      %v3106 = vpop.f32.mrb[0].mxu0
      %3107 = vmatprep.mubr.f32.mxu0 0.0
      %v3108 = vand.u32 %v263, 4294901760
      %3109 = vmatmul.mubr.f32.gmra.mrb[0].mxu0 %v3108
      %v3110 = vpop.f32.mrb[0].mxu0
      %v3111 = vadd.f32 %v2896, %v3110
      %v3112 = vpop.f32.mrb[0].mxu0
      %3113 = vmatprep.mubr.f32.mxu0 0.0
      %v3114 = vand.u32 %v266, 4294901760
      %3115 = vmatmul.mubr.f32.gmra.mrb[0].mxu0 %v3114
      %v3116 = vpop.f32.mrb[0].mxu0
      %v3117 = vadd.f32 %v2904, %v3116
      %v3118 = vpop.f32.mrb[0].mxu0
      %3119 = vmatprep.mubr.f32.mxu0 0.0
      %v3120 = vand.u32 %v269, 4294901760
      %3121 = vmatmul.mubr.f32.gmra.mrb[0].mxu0 %v3120
      %v3122 = vpop.f32.mrb[0].mxu0
      %v3123 = vadd.f32 %v2912, %v3122
      %v3124 = vpop.f32.mrb[0].mxu0
      %3125 = vmatprep.mubr.f32.mxu0 0.0
      %v3126 = vand.u32 %v272, 4294901760
      %3127 = vmatmul.mubr.f32.gmra.mrb[0].mxu0 %v3126
      %v3128 = vpop.f32.mrb[0].mxu0
      %v3129 = vadd.f32 %v2920, %v3128
      %v3130 = vpop.f32.mrb[0].mxu0
      %3131 = vdwg.mxu0
      %3132 = vmatprep.subr.mxu0 0.0
      %v3133 = vand.u32 %v305, 4294901760
      %3134 = vmatpush1.msra.mxu0 %v3133
      %3135 = vmatprep.subr.mxu0 0.0
      %v3136 = vand.u32 %v306, 4294901760
      %3137 = vmatpush1.msra.mxu0 %v3136
      %3138 = vmatprep.subr.mxu0 0.0
      %v3139 = vand.u32 %v307, 4294901760
      %3140 = vmatpush1.msra.mxu0 %v3139
      %3141 = vmatprep.subr.mxu0 0.0
      %v3142 = vand.u32 %v308, 4294901760
      %3143 = vmatpush1.msra.mxu0 %v3142
      %3144 = vmatprep.subr.mxu0 0.0
      %v3145 = vand.u32 %v309, 4294901760
      %3146 = vmatpush1.msra.mxu0 %v3145
      %3147 = vmatprep.subr.mxu0 0.0
      %v3148 = vand.u32 %v310, 4294901760
      %3149 = vmatpush1.msra.mxu0 %v3148
      %3150 = vmatprep.subr.mxu0 0.0
      %v3151 = vand.u32 %v311, 4294901760
      %3152 = vmatpush1.msra.mxu0 %v3151
      %3153 = vmatprep.subr.mxu0 0.0
      %v3154 = vand.u32 %v312, 4294901760
      %3155 = vmatpush1.msra.mxu0 %v3154
      %3156 = vmatprep.subr.mxu0 0.0
      %v3157 = vand.u32 %v313, 4294901760
      %3158 = vmatpush1.msra.mxu0 %v3157
      %3159 = vmatprep.subr.mxu0 0.0
      %v3160 = vand.u32 %v314, 4294901760
      %3161 = vmatpush1.msra.mxu0 %v3160
      %3162 = vmatprep.subr.mxu0 0.0
      %v3163 = vand.u32 %v315, 4294901760
      %3164 = vmatpush1.msra.mxu0 %v3163
      %3165 = vmatprep.subr.mxu0 0.0
      %v3166 = vand.u32 %v316, 4294901760
      %3167 = vmatpush1.msra.mxu0 %v3166
      %3168 = vmatprep.subr.mxu0 0.0
      %v3169 = vand.u32 %v317, 4294901760
      %3170 = vmatpush1.msra.mxu0 %v3169
      %3171 = vmatprep.subr.mxu0 0.0
      %v3172 = vand.u32 %v318, 4294901760
      %3173 = vmatpush1.msra.mxu0 %v3172
      %3174 = vmatprep.subr.mxu0 0.0
      %v3175 = vand.u32 %v319, 4294901760
      %3176 = vmatpush1.msra.mxu0 %v3175
      %3177 = vmatprep.subr.mxu0 0.0
      %v3178 = vand.u32 %v320, 4294901760
      %3179 = vmatpush1.msra.mxu0 %v3178
      %3180 = vmatprep.subr.mxu0 0.0
      %3181 = vmatpush1.msra.mxu0 0.0
      %3182 = vmatprep.subr.mxu0 0.0
      %3183 = vmatpush1.msra.mxu0 0.0
      %3184 = vmatprep.subr.mxu0 0.0
      %3185 = vmatpush1.msra.mxu0 0.0
      %3186 = vmatprep.subr.mxu0 0.0
      %3187 = vmatpush1.msra.mxu0 0.0
      %3188 = vmatprep.subr.mxu0 0.0
      %3189 = vmatpush1.msra.mxu0 0.0
      %3190 = vmatprep.subr.mxu0 0.0
      %3191 = vmatpush1.msra.mxu0 0.0
      %3192 = vmatprep.subr.mxu0 0.0
      %3193 = vmatpush1.msra.mxu0 0.0
      %3194 = vmatprep.subr.mxu0 0.0
      %3195 = vmatpush1.msra.mxu0 0.0
      %3196 = vmatprep.subr.mxu0 0.0
      %3197 = vmatpush1.msra.mxu0 0.0
      %3198 = vmatprep.subr.mxu0 0.0
      %3199 = vmatpush1.msra.mxu0 0.0
      %3200 = vmatprep.subr.mxu0 0.0
      %3201 = vmatpush1.msra.mxu0 0.0
      %3202 = vmatprep.subr.mxu0 0.0
      %3203 = vmatpush1.msra.mxu0 0.0
      %3204 = vmatprep.subr.mxu0 0.0
      %3205 = vmatpush1.msra.mxu0 0.0
      %3206 = vmatprep.subr.mxu0 0.0
      %3207 = vmatpush1.msra.mxu0 0.0
      %3208 = vmatprep.subr.mxu0 0.0
      %3209 = vmatpush1.msra.mxu0 0.0
      %3210 = vmatprep.subr.mxu0 0.0
      %3211 = vmatpush1.msra.mxu0 0.0
      %3212 = vmatprep.mubr.f32.mxu0 0.0
      %v3213 = vand.u32 %v227, 4294901760
      %3214 = vmatmul.mubr.f32.gmra.mrb[0].mxu0 %v3213
      %v3215 = vpop.f32.mrb[0].mxu0
      %v3216 = vadd.f32 %v3039, %v3215
      %v3217 = vpop.f32.mrb[0].mxu0
      %3218 = vmatprep.mubr.f32.mxu0 0.0
      %v3219 = vand.u32 %v230, 4294901760
      %3220 = vmatmul.mubr.f32.gmra.mrb[0].mxu0 %v3219
      %v3221 = vpop.f32.mrb[0].mxu0
      %v3222 = vadd.f32 %v3045, %v3221
      %v3223 = vpop.f32.mrb[0].mxu0
      %3224 = vmatprep.mubr.f32.mxu0 0.0
      %v3225 = vand.u32 %v233, 4294901760
      %3226 = vmatmul.mubr.f32.gmra.mrb[0].mxu0 %v3225
      %v3227 = vpop.f32.mrb[0].mxu0
      %v3228 = vadd.f32 %v3051, %v3227
      %v3229 = vpop.f32.mrb[0].mxu0
      %3230 = vmatprep.mubr.f32.mxu0 0.0
      %v3231 = vand.u32 %v236, 4294901760
      %3232 = vmatmul.mubr.f32.gmra.mrb[0].mxu0 %v3231
      %v3233 = vpop.f32.mrb[0].mxu0
      %v3234 = vadd.f32 %v3057, %v3233
      %v3235 = vpop.f32.mrb[0].mxu0
      %3236 = vmatprep.mubr.f32.mxu0 0.0
      %v3237 = vand.u32 %v239, 4294901760
      %3238 = vmatmul.mubr.f32.gmra.mrb[0].mxu0 %v3237
      %v3239 = vpop.f32.mrb[0].mxu0
      %v3240 = vadd.f32 %v3063, %v3239
      %v3241 = vpop.f32.mrb[0].mxu0
      %3242 = vmatprep.mubr.f32.mxu0 0.0
      %v3243 = vand.u32 %v242, 4294901760
      %3244 = vmatmul.mubr.f32.gmra.mrb[0].mxu0 %v3243
      %v3245 = vpop.f32.mrb[0].mxu0
      %v3246 = vadd.f32 %v3069, %v3245
      %v3247 = vpop.f32.mrb[0].mxu0
      %3248 = vmatprep.mubr.f32.mxu0 0.0
      %v3249 = vand.u32 %v245, 4294901760
      %3250 = vmatmul.mubr.f32.gmra.mrb[0].mxu0 %v3249
      %v3251 = vpop.f32.mrb[0].mxu0
      %v3252 = vadd.f32 %v3075, %v3251
      %v3253 = vpop.f32.mrb[0].mxu0
      %3254 = vmatprep.mubr.f32.mxu0 0.0
      %v3255 = vand.u32 %v248, 4294901760
      %3256 = vmatmul.mubr.f32.gmra.mrb[0].mxu0 %v3255
      %v3257 = vpop.f32.mrb[0].mxu0
      %v3258 = vadd.f32 %v3081, %v3257
      %v3259 = vpop.f32.mrb[0].mxu0
      %3260 = vmatprep.mubr.f32.mxu0 0.0
      %v3261 = vand.u32 %v251, 4294901760
      %3262 = vmatmul.mubr.f32.gmra.mrb[0].mxu0 %v3261
      %v3263 = vpop.f32.mrb[0].mxu0
      %v3264 = vadd.f32 %v3087, %v3263
      %v3265 = vpop.f32.mrb[0].mxu0
      %3266 = vmatprep.mubr.f32.mxu0 0.0
      %v3267 = vand.u32 %v254, 4294901760
      %3268 = vmatmul.mubr.f32.gmra.mrb[0].mxu0 %v3267
      %v3269 = vpop.f32.mrb[0].mxu0
      %v3270 = vadd.f32 %v3093, %v3269
      %v3271 = vpop.f32.mrb[0].mxu0
      %3272 = vmatprep.mubr.f32.mxu0 0.0
      %v3273 = vand.u32 %v257, 4294901760
      %3274 = vmatmul.mubr.f32.gmra.mrb[0].mxu0 %v3273
      %v3275 = vpop.f32.mrb[0].mxu0
      %v3276 = vadd.f32 %v3099, %v3275
      %v3277 = vpop.f32.mrb[0].mxu0
      %3278 = vmatprep.mubr.f32.mxu0 0.0
      %v3279 = vand.u32 %v260, 4294901760
      %3280 = vmatmul.mubr.f32.gmra.mrb[0].mxu0 %v3279
      %v3281 = vpop.f32.mrb[0].mxu0
      %v3282 = vadd.f32 %v3105, %v3281
      %v3283 = vpop.f32.mrb[0].mxu0
      %3284 = vmatprep.mubr.f32.mxu0 0.0
      %v3285 = vand.u32 %v263, 4294901760
      %3286 = vmatmul.mubr.f32.gmra.mrb[0].mxu0 %v3285
      %v3287 = vpop.f32.mrb[0].mxu0
      %v3288 = vadd.f32 %v3111, %v3287
      %v3289 = vpop.f32.mrb[0].mxu0
      %3290 = vmatprep.mubr.f32.mxu0 0.0
      %v3291 = vand.u32 %v266, 4294901760
      %3292 = vmatmul.mubr.f32.gmra.mrb[0].mxu0 %v3291
      %v3293 = vpop.f32.mrb[0].mxu0
      %v3294 = vadd.f32 %v3117, %v3293
      %v3295 = vpop.f32.mrb[0].mxu0
      %3296 = vmatprep.mubr.f32.mxu0 0.0
      %v3297 = vand.u32 %v269, 4294901760
      %3298 = vmatmul.mubr.f32.gmra.mrb[0].mxu0 %v3297
      %v3299 = vpop.f32.mrb[0].mxu0
      %v3300 = vadd.f32 %v3123, %v3299
      %v3301 = vpop.f32.mrb[0].mxu0
      %3302 = vmatprep.mubr.f32.mxu0 0.0
      %v3303 = vand.u32 %v272, 4294901760
      %3304 = vmatmul.mubr.f32.gmra.mrb[0].mxu0 %v3303
      %v3305 = vpop.f32.mrb[0].mxu0
      %v3306 = vadd.f32 %v3129, %v3305
      %v3307 = vpop.f32.mrb[0].mxu0
      %3308 = vdwg.mxu0
      %v3309 = vmul.f32 %v225, %v225
      %v3310 = vmul.f32 %v226, %v226
      %v3311 = vmul.f32 %v227, %v227
      %v3312 = vmul.f32 %v228, %v228
      %v3313 = vmul.f32 %v229, %v229
      %v3314 = vmul.f32 %v230, %v230
      %v3315 = vmul.f32 %v231, %v231
      %v3316 = vmul.f32 %v232, %v232
      %v3317 = vmul.f32 %v233, %v233
      %v3318 = vmul.f32 %v234, %v234
      %v3319 = vmul.f32 %v235, %v235
      %v3320 = vmul.f32 %v236, %v236
      %v3321 = vmul.f32 %v237, %v237
      %v3322 = vmul.f32 %v238, %v238
      %v3323 = vmul.f32 %v239, %v239
      %v3324 = vmul.f32 %v240, %v240
      %v3325 = vmul.f32 %v241, %v241
      %v3326 = vmul.f32 %v242, %v242
      %v3327 = vmul.f32 %v243, %v243
      %v3328 = vmul.f32 %v244, %v244
      %v3329 = vmul.f32 %v245, %v245
      %v3330 = vmul.f32 %v246, %v246
      %v3331 = vmul.f32 %v247, %v247
      %v3332 = vmul.f32 %v248, %v248
      %v3333 = vmul.f32 %v249, %v249
      %v3334 = vmul.f32 %v250, %v250
      %v3335 = vmul.f32 %v251, %v251
      %v3336 = vmul.f32 %v252, %v252
      %v3337 = vmul.f32 %v253, %v253
      %v3338 = vmul.f32 %v254, %v254
      %v3339 = vmul.f32 %v255, %v255
      %v3340 = vmul.f32 %v256, %v256
      %v3341 = vmul.f32 %v257, %v257
      %v3342 = vmul.f32 %v258, %v258
      %v3343 = vmul.f32 %v259, %v259
      %v3344 = vmul.f32 %v260, %v260
      %v3345 = vmul.f32 %v261, %v261
      %v3346 = vmul.f32 %v262, %v262
      %v3347 = vmul.f32 %v263, %v263
      %v3348 = vmul.f32 %v264, %v264
      %v3349 = vmul.f32 %v265, %v265
      %v3350 = vmul.f32 %v266, %v266
      %v3351 = vmul.f32 %v267, %v267
      %v3352 = vmul.f32 %v268, %v268
      %v3353 = vmul.f32 %v269, %v269
      %v3354 = vmul.f32 %v270, %v270
      %v3355 = vmul.f32 %v271, %v271
      %v3356 = vmul.f32 %v272, %v272
      %v3357 = vld [vmem:[%s2] sm:$0xff]
      %v3358 = vld [vmem:[%s2 + $0x8] sm:$0xff]
      %v3359 = vld [vmem:[%s2 + $0x10] sm:$0xff]
      %v3360 = vld [vmem:[%s2 + $0x18] sm:$0xff]
      %v3361 = vld [vmem:[%s2 + $0x20] sm:$0xff]
      %v3362 = vld [vmem:[%s2 + $0x28] sm:$0xff]
      %v3363 = vld [vmem:[%s2 + $0x30] sm:$0xff]
      %v3364 = vld [vmem:[%s2 + $0x38] sm:$0xff]
      %v3365 = vld [vmem:[%s2 + $0x40] sm:$0xff]
      %v3366 = vld [vmem:[%s2 + $0x48] sm:$0xff]
      %v3367 = vld [vmem:[%s2 + $0x50] sm:$0xff]
      %v3368 = vld [vmem:[%s2 + $0x58] sm:$0xff]
      %v3369 = vld [vmem:[%s2 + $0x60] sm:$0xff]
      %v3370 = vld [vmem:[%s2 + $0x68] sm:$0xff]
      %v3371 = vld [vmem:[%s2 + $0x70] sm:$0xff]
      %v3372 = vld [vmem:[%s2 + $0x78] sm:$0xff]
      %v3373 = vld [vmem:[%s2 + $0x80] sm:$0xff]
      %v3374 = vld [vmem:[%s2 + $0x88] sm:$0xff]
      %v3375 = vld [vmem:[%s2 + $0x90] sm:$0xff]
      %v3376 = vld [vmem:[%s2 + $0x98] sm:$0xff]
      %v3377 = vld [vmem:[%s2 + $0xa0] sm:$0xff]
      %v3378 = vld [vmem:[%s2 + $0xa8] sm:$0xff]
      %v3379 = vld [vmem:[%s2 + $0xb0] sm:$0xff]
      %v3380 = vld [vmem:[%s2 + $0xb8] sm:$0xff]
      %v3381 = vld [vmem:[%s2 + $0xc0] sm:$0xff]
      %v3382 = vld [vmem:[%s2 + $0xc8] sm:$0xff]
      %v3383 = vld [vmem:[%s2 + $0xd0] sm:$0xff]
      %v3384 = vld [vmem:[%s2 + $0xd8] sm:$0xff]
      %v3385 = vld [vmem:[%s2 + $0xe0] sm:$0xff]
      %v3386 = vld [vmem:[%s2 + $0xe8] sm:$0xff]
      %v3387 = vld [vmem:[%s2 + $0xf0] sm:$0xff]
      %v3388 = vld [vmem:[%s2 + $0xf8] sm:$0xff]
      %v3389 = vld [vmem:[%s2 + $0x100] sm:$0xff]
      %v3390 = vld [vmem:[%s2 + $0x108] sm:$0xff]
      %v3391 = vld [vmem:[%s2 + $0x110] sm:$0xff]
      %v3392 = vld [vmem:[%s2 + $0x118] sm:$0xff]
      %v3393 = vld [vmem:[%s2 + $0x120] sm:$0xff]
      %v3394 = vld [vmem:[%s2 + $0x128] sm:$0xff]
      %v3395 = vld [vmem:[%s2 + $0x130] sm:$0xff]
      %v3396 = vld [vmem:[%s2 + $0x138] sm:$0xff]
      %v3397 = vld [vmem:[%s2 + $0x140] sm:$0xff]
      %v3398 = vld [vmem:[%s2 + $0x148] sm:$0xff]
      %v3399 = vld [vmem:[%s2 + $0x150] sm:$0xff]
      %v3400 = vld [vmem:[%s2 + $0x158] sm:$0xff]
      %v3401 = vld [vmem:[%s2 + $0x160] sm:$0xff]
      %v3402 = vld [vmem:[%s2 + $0x168] sm:$0xff]
      %v3403 = vld [vmem:[%s2 + $0x170] sm:$0xff]
      %v3404 = vld [vmem:[%s2 + $0x178] sm:$0xff]
      %3405 = vmatprep.subr.mxu0 0.0
      %v3406 = vand.u32 %v3357, 4294901760
      %3407 = vmatpush1.msra.mxu0 %v3406
      %3408 = vmatprep.subr.mxu0 0.0
      %v3409 = vand.u32 %v3358, 4294901760
      %3410 = vmatpush1.msra.mxu0 %v3409
      %3411 = vmatprep.subr.mxu0 0.0
      %v3412 = vand.u32 %v3359, 4294901760
      %3413 = vmatpush1.msra.mxu0 %v3412
      %3414 = vmatprep.subr.mxu0 0.0
      %v3415 = vand.u32 %v3360, 4294901760
      %3416 = vmatpush1.msra.mxu0 %v3415
      %3417 = vmatprep.subr.mxu0 0.0
      %v3418 = vand.u32 %v3361, 4294901760
      %3419 = vmatpush1.msra.mxu0 %v3418
      %3420 = vmatprep.subr.mxu0 0.0
      %v3421 = vand.u32 %v3362, 4294901760
      %3422 = vmatpush1.msra.mxu0 %v3421
      %3423 = vmatprep.subr.mxu0 0.0
      %v3424 = vand.u32 %v3363, 4294901760
      %3425 = vmatpush1.msra.mxu0 %v3424
      %3426 = vmatprep.subr.mxu0 0.0
      %v3427 = vand.u32 %v3364, 4294901760
      %3428 = vmatpush1.msra.mxu0 %v3427
      %3429 = vmatprep.subr.mxu0 0.0
      %v3430 = vand.u32 %v3365, 4294901760
      %3431 = vmatpush1.msra.mxu0 %v3430
      %3432 = vmatprep.subr.mxu0 0.0
      %v3433 = vand.u32 %v3366, 4294901760
      %3434 = vmatpush1.msra.mxu0 %v3433
      %3435 = vmatprep.subr.mxu0 0.0
      %v3436 = vand.u32 %v3367, 4294901760
      %3437 = vmatpush1.msra.mxu0 %v3436
      %3438 = vmatprep.subr.mxu0 0.0
      %v3439 = vand.u32 %v3368, 4294901760
      %3440 = vmatpush1.msra.mxu0 %v3439
      %3441 = vmatprep.subr.mxu0 0.0
      %v3442 = vand.u32 %v3369, 4294901760
      %3443 = vmatpush1.msra.mxu0 %v3442
      %3444 = vmatprep.subr.mxu0 0.0
      %v3445 = vand.u32 %v3370, 4294901760
      %3446 = vmatpush1.msra.mxu0 %v3445
      %3447 = vmatprep.subr.mxu0 0.0
      %v3448 = vand.u32 %v3371, 4294901760
      %3449 = vmatpush1.msra.mxu0 %v3448
      %3450 = vmatprep.subr.mxu0 0.0
      %v3451 = vand.u32 %v3372, 4294901760
      %3452 = vmatpush1.msra.mxu0 %v3451
      %3453 = vmatprep.subr.mxu0 0.0
      %v3454 = vand.u32 %v3373, 4294901760
      %3455 = vmatpush1.msra.mxu0 %v3454
      %3456 = vmatprep.subr.mxu0 0.0
      %v3457 = vand.u32 %v3374, 4294901760
      %3458 = vmatpush1.msra.mxu0 %v3457
      %3459 = vmatprep.subr.mxu0 0.0
      %v3460 = vand.u32 %v3375, 4294901760
      %3461 = vmatpush1.msra.mxu0 %v3460
      %3462 = vmatprep.subr.mxu0 0.0
      %v3463 = vand.u32 %v3376, 4294901760
      %3464 = vmatpush1.msra.mxu0 %v3463
      %3465 = vmatprep.subr.mxu0 0.0
      %v3466 = vand.u32 %v3377, 4294901760
      %3467 = vmatpush1.msra.mxu0 %v3466
      %3468 = vmatprep.subr.mxu0 0.0
      %v3469 = vand.u32 %v3378, 4294901760
      %3470 = vmatpush1.msra.mxu0 %v3469
      %3471 = vmatprep.subr.mxu0 0.0
      %v3472 = vand.u32 %v3379, 4294901760
      %3473 = vmatpush1.msra.mxu0 %v3472
      %3474 = vmatprep.subr.mxu0 0.0
      %v3475 = vand.u32 %v3380, 4294901760
      %3476 = vmatpush1.msra.mxu0 %v3475
      %3477 = vmatprep.subr.mxu0 0.0
      %v3478 = vand.u32 %v3381, 4294901760
      %3479 = vmatpush1.msra.mxu0 %v3478
      %3480 = vmatprep.subr.mxu0 0.0
      %v3481 = vand.u32 %v3382, 4294901760
      %3482 = vmatpush1.msra.mxu0 %v3481
      %3483 = vmatprep.subr.mxu0 0.0
      %v3484 = vand.u32 %v3383, 4294901760
      %3485 = vmatpush1.msra.mxu0 %v3484
      %3486 = vmatprep.subr.mxu0 0.0
      %v3487 = vand.u32 %v3384, 4294901760
      %3488 = vmatpush1.msra.mxu0 %v3487
      %3489 = vmatprep.subr.mxu0 0.0
      %v3490 = vand.u32 %v3385, 4294901760
      %3491 = vmatpush1.msra.mxu0 %v3490
      %3492 = vmatprep.subr.mxu0 0.0
      %v3493 = vand.u32 %v3386, 4294901760
      %3494 = vmatpush1.msra.mxu0 %v3493
      %3495 = vmatprep.subr.mxu0 0.0
      %v3496 = vand.u32 %v3387, 4294901760
      %3497 = vmatpush1.msra.mxu0 %v3496
      %3498 = vmatprep.subr.mxu0 0.0
      %v3499 = vand.u32 %v3388, 4294901760
      %3500 = vmatpush1.msra.mxu0 %v3499
      %v3501 = vand.u32 %v3310, 4294901760
      %v3502 = vsub.f32 %v3310, %v3501
      %v3503 = vand.u32 %v3502, 4294901760
      %v3504 = vsub.f32 %v3502, %v3503
      %v3505 = vand.u32 %v3504, 4294901760
      %3506 = vmatprep.mubr.f32.mxu0 %v3505
      %v3507 = vand.u32 %v3309, 4294901760
      %v3508 = vsub.f32 %v3309, %v3507
      %v3509 = vand.u32 %v3508, 4294901760
      %v3510 = vsub.f32 %v3508, %v3509
      %v3511 = vand.u32 %v3510, 4294901760
      %3512 = vmatmul.mubr.f32.gmra.mrb[0].mxu0 %v3511
      %v3513 = vpop.f32.mrb[0].mxu0
      %v3514 = vadd.f32 0.0, %v3513
      %v3515 = vpop.f32.mrb[0].mxu0
      %v3516 = vand.u32 %v3313, 4294901760
      %v3517 = vsub.f32 %v3313, %v3516
      %v3518 = vand.u32 %v3517, 4294901760
      %v3519 = vsub.f32 %v3517, %v3518
      %v3520 = vand.u32 %v3519, 4294901760
      %3521 = vmatprep.mubr.f32.mxu0 %v3520
      %v3522 = vand.u32 %v3312, 4294901760
      %v3523 = vsub.f32 %v3312, %v3522
      %v3524 = vand.u32 %v3523, 4294901760
      %v3525 = vsub.f32 %v3523, %v3524
      %v3526 = vand.u32 %v3525, 4294901760
      %3527 = vmatmul.mubr.f32.gmra.mrb[0].mxu0 %v3526
      %v3528 = vpop.f32.mrb[0].mxu0
      %v3529 = vadd.f32 0.0, %v3528
      %v3530 = vpop.f32.mrb[0].mxu0
      %v3531 = vand.u32 %v3316, 4294901760
      %v3532 = vsub.f32 %v3316, %v3531
      %v3533 = vand.u32 %v3532, 4294901760
      %v3534 = vsub.f32 %v3532, %v3533
      %v3535 = vand.u32 %v3534, 4294901760
      %3536 = vmatprep.mubr.f32.mxu0 %v3535
      %v3537 = vand.u32 %v3315, 4294901760
      %v3538 = vsub.f32 %v3315, %v3537
      %v3539 = vand.u32 %v3538, 4294901760
      %v3540 = vsub.f32 %v3538, %v3539
      %v3541 = vand.u32 %v3540, 4294901760
      %3542 = vmatmul.mubr.f32.gmra.mrb[0].mxu0 %v3541
      %v3543 = vpop.f32.mrb[0].mxu0
      %v3544 = vadd.f32 0.0, %v3543
      %v3545 = vpop.f32.mrb[0].mxu0
      %v3546 = vand.u32 %v3319, 4294901760
      %v3547 = vsub.f32 %v3319, %v3546
      %v3548 = vand.u32 %v3547, 4294901760
      %v3549 = vsub.f32 %v3547, %v3548
      %v3550 = vand.u32 %v3549, 4294901760
      %3551 = vmatprep.mubr.f32.mxu0 %v3550
      %v3552 = vand.u32 %v3318, 4294901760
      %v3553 = vsub.f32 %v3318, %v3552
      %v3554 = vand.u32 %v3553, 4294901760
      %v3555 = vsub.f32 %v3553, %v3554
      %v3556 = vand.u32 %v3555, 4294901760
      %3557 = vmatmul.mubr.f32.gmra.mrb[0].mxu0 %v3556
      %v3558 = vpop.f32.mrb[0].mxu0
      %v3559 = vadd.f32 0.0, %v3558
      %v3560 = vpop.f32.mrb[0].mxu0
      %v3561 = vand.u32 %v3322, 4294901760
      %v3562 = vsub.f32 %v3322, %v3561
      %v3563 = vand.u32 %v3562, 4294901760
      %v3564 = vsub.f32 %v3562, %v3563
      %v3565 = vand.u32 %v3564, 4294901760
      %3566 = vmatprep.mubr.f32.mxu0 %v3565
      %v3567 = vand.u32 %v3321, 4294901760
      %v3568 = vsub.f32 %v3321, %v3567
      %v3569 = vand.u32 %v3568, 4294901760
      %v3570 = vsub.f32 %v3568, %v3569
      %v3571 = vand.u32 %v3570, 4294901760
      %3572 = vmatmul.mubr.f32.gmra.mrb[0].mxu0 %v3571
      %v3573 = vpop.f32.mrb[0].mxu0
      %v3574 = vadd.f32 0.0, %v3573
      %v3575 = vpop.f32.mrb[0].mxu0
      %v3576 = vand.u32 %v3325, 4294901760
      %v3577 = vsub.f32 %v3325, %v3576
      %v3578 = vand.u32 %v3577, 4294901760
      %v3579 = vsub.f32 %v3577, %v3578
      %v3580 = vand.u32 %v3579, 4294901760
      %3581 = vmatprep.mubr.f32.mxu0 %v3580
      %v3582 = vand.u32 %v3324, 4294901760
      %v3583 = vsub.f32 %v3324, %v3582
      %v3584 = vand.u32 %v3583, 4294901760
      %v3585 = vsub.f32 %v3583, %v3584
      %v3586 = vand.u32 %v3585, 4294901760
      %3587 = vmatmul.mubr.f32.gmra.mrb[0].mxu0 %v3586
      %v3588 = vpop.f32.mrb[0].mxu0
      %v3589 = vadd.f32 0.0, %v3588
      %v3590 = vpop.f32.mrb[0].mxu0
      %v3591 = vand.u32 %v3328, 4294901760
      %v3592 = vsub.f32 %v3328, %v3591
      %v3593 = vand.u32 %v3592, 4294901760
      %v3594 = vsub.f32 %v3592, %v3593
      %v3595 = vand.u32 %v3594, 4294901760
      %3596 = vmatprep.mubr.f32.mxu0 %v3595
      %v3597 = vand.u32 %v3327, 4294901760
      %v3598 = vsub.f32 %v3327, %v3597
      %v3599 = vand.u32 %v3598, 4294901760
      %v3600 = vsub.f32 %v3598, %v3599
      %v3601 = vand.u32 %v3600, 4294901760
      %3602 = vmatmul.mubr.f32.gmra.mrb[0].mxu0 %v3601
      %v3603 = vpop.f32.mrb[0].mxu0
      %v3604 = vadd.f32 0.0, %v3603
      %v3605 = vpop.f32.mrb[0].mxu0
      %v3606 = vand.u32 %v3331, 4294901760
      %v3607 = vsub.f32 %v3331, %v3606
      %v3608 = vand.u32 %v3607, 4294901760
      %v3609 = vsub.f32 %v3607, %v3608
      %v3610 = vand.u32 %v3609, 4294901760
      %3611 = vmatprep.mubr.f32.mxu0 %v3610
      %v3612 = vand.u32 %v3330, 4294901760
      %v3613 = vsub.f32 %v3330, %v3612
      %v3614 = vand.u32 %v3613, 4294901760
      %v3615 = vsub.f32 %v3613, %v3614
      %v3616 = vand.u32 %v3615, 4294901760
      %3617 = vmatmul.mubr.f32.gmra.mrb[0].mxu0 %v3616
      %v3618 = vpop.f32.mrb[0].mxu0
      %v3619 = vadd.f32 0.0, %v3618
      %v3620 = vpop.f32.mrb[0].mxu0
      %v3621 = vand.u32 %v3334, 4294901760
      %v3622 = vsub.f32 %v3334, %v3621
      %v3623 = vand.u32 %v3622, 4294901760
      %v3624 = vsub.f32 %v3622, %v3623
      %v3625 = vand.u32 %v3624, 4294901760
      %3626 = vmatprep.mubr.f32.mxu0 %v3625
      %v3627 = vand.u32 %v3333, 4294901760
      %v3628 = vsub.f32 %v3333, %v3627
      %v3629 = vand.u32 %v3628, 4294901760
      %v3630 = vsub.f32 %v3628, %v3629
      %v3631 = vand.u32 %v3630, 4294901760
      %3632 = vmatmul.mubr.f32.gmra.mrb[0].mxu0 %v3631
      %v3633 = vpop.f32.mrb[0].mxu0
      %v3634 = vadd.f32 0.0, %v3633
      %v3635 = vpop.f32.mrb[0].mxu0
      %v3636 = vand.u32 %v3337, 4294901760
      %v3637 = vsub.f32 %v3337, %v3636
      %v3638 = vand.u32 %v3637, 4294901760
      %v3639 = vsub.f32 %v3637, %v3638
      %v3640 = vand.u32 %v3639, 4294901760
      %3641 = vmatprep.mubr.f32.mxu0 %v3640
      %v3642 = vand.u32 %v3336, 4294901760
      %v3643 = vsub.f32 %v3336, %v3642
      %v3644 = vand.u32 %v3643, 4294901760
      %v3645 = vsub.f32 %v3643, %v3644
      %v3646 = vand.u32 %v3645, 4294901760
      %3647 = vmatmul.mubr.f32.gmra.mrb[0].mxu0 %v3646
      %v3648 = vpop.f32.mrb[0].mxu0
      %v3649 = vadd.f32 0.0, %v3648
      %v3650 = vpop.f32.mrb[0].mxu0
      %v3651 = vand.u32 %v3340, 4294901760
      %v3652 = vsub.f32 %v3340, %v3651
      %v3653 = vand.u32 %v3652, 4294901760
      %v3654 = vsub.f32 %v3652, %v3653
      %v3655 = vand.u32 %v3654, 4294901760
      %3656 = vmatprep.mubr.f32.mxu0 %v3655
      %v3657 = vand.u32 %v3339, 4294901760
      %v3658 = vsub.f32 %v3339, %v3657
      %v3659 = vand.u32 %v3658, 4294901760
      %v3660 = vsub.f32 %v3658, %v3659
      %v3661 = vand.u32 %v3660, 4294901760
      %3662 = vmatmul.mubr.f32.gmra.mrb[0].mxu0 %v3661
      %v3663 = vpop.f32.mrb[0].mxu0
      %v3664 = vadd.f32 0.0, %v3663
      %v3665 = vpop.f32.mrb[0].mxu0
      %v3666 = vand.u32 %v3343, 4294901760
      %v3667 = vsub.f32 %v3343, %v3666
      %v3668 = vand.u32 %v3667, 4294901760
      %v3669 = vsub.f32 %v3667, %v3668
      %v3670 = vand.u32 %v3669, 4294901760
      %3671 = vmatprep.mubr.f32.mxu0 %v3670
      %v3672 = vand.u32 %v3342, 4294901760
      %v3673 = vsub.f32 %v3342, %v3672
      %v3674 = vand.u32 %v3673, 4294901760
      %v3675 = vsub.f32 %v3673, %v3674
      %v3676 = vand.u32 %v3675, 4294901760
      %3677 = vmatmul.mubr.f32.gmra.mrb[0].mxu0 %v3676
      %v3678 = vpop.f32.mrb[0].mxu0
      %v3679 = vadd.f32 0.0, %v3678
      %v3680 = vpop.f32.mrb[0].mxu0
      %v3681 = vand.u32 %v3346, 4294901760
      %v3682 = vsub.f32 %v3346, %v3681
      %v3683 = vand.u32 %v3682, 4294901760
      %v3684 = vsub.f32 %v3682, %v3683
      %v3685 = vand.u32 %v3684, 4294901760
      %3686 = vmatprep.mubr.f32.mxu0 %v3685
      %v3687 = vand.u32 %v3345, 4294901760
      %v3688 = vsub.f32 %v3345, %v3687
      %v3689 = vand.u32 %v3688, 4294901760
      %v3690 = vsub.f32 %v3688, %v3689
      %v3691 = vand.u32 %v3690, 4294901760
      %3692 = vmatmul.mubr.f32.gmra.mrb[0].mxu0 %v3691
      %v3693 = vpop.f32.mrb[0].mxu0
      %v3694 = vadd.f32 0.0, %v3693
      %v3695 = vpop.f32.mrb[0].mxu0
      %v3696 = vand.u32 %v3349, 4294901760
      %v3697 = vsub.f32 %v3349, %v3696
      %v3698 = vand.u32 %v3697, 4294901760
      %v3699 = vsub.f32 %v3697, %v3698
      %v3700 = vand.u32 %v3699, 4294901760
      %3701 = vmatprep.mubr.f32.mxu0 %v3700
      %v3702 = vand.u32 %v3348, 4294901760
      %v3703 = vsub.f32 %v3348, %v3702
      %v3704 = vand.u32 %v3703, 4294901760
      %v3705 = vsub.f32 %v3703, %v3704
      %v3706 = vand.u32 %v3705, 4294901760
      %3707 = vmatmul.mubr.f32.gmra.mrb[0].mxu0 %v3706
      %v3708 = vpop.f32.mrb[0].mxu0
      %v3709 = vadd.f32 0.0, %v3708
      %v3710 = vpop.f32.mrb[0].mxu0
      %v3711 = vand.u32 %v3352, 4294901760
      %v3712 = vsub.f32 %v3352, %v3711
      %v3713 = vand.u32 %v3712, 4294901760
      %v3714 = vsub.f32 %v3712, %v3713
      %v3715 = vand.u32 %v3714, 4294901760
      %3716 = vmatprep.mubr.f32.mxu0 %v3715
      %v3717 = vand.u32 %v3351, 4294901760
      %v3718 = vsub.f32 %v3351, %v3717
      %v3719 = vand.u32 %v3718, 4294901760
      %v3720 = vsub.f32 %v3718, %v3719
      %v3721 = vand.u32 %v3720, 4294901760
      %3722 = vmatmul.mubr.f32.gmra.mrb[0].mxu0 %v3721
      %v3723 = vpop.f32.mrb[0].mxu0
      %v3724 = vadd.f32 0.0, %v3723
      %v3725 = vpop.f32.mrb[0].mxu0
      %v3726 = vand.u32 %v3355, 4294901760
      %v3727 = vsub.f32 %v3355, %v3726
      %v3728 = vand.u32 %v3727, 4294901760
      %v3729 = vsub.f32 %v3727, %v3728
      %v3730 = vand.u32 %v3729, 4294901760
      %3731 = vmatprep.mubr.f32.mxu0 %v3730
      %v3732 = vand.u32 %v3354, 4294901760
      %v3733 = vsub.f32 %v3354, %v3732
      %v3734 = vand.u32 %v3733, 4294901760
      %v3735 = vsub.f32 %v3733, %v3734
      %v3736 = vand.u32 %v3735, 4294901760
      %3737 = vmatmul.mubr.f32.gmra.mrb[0].mxu0 %v3736
      %v3738 = vpop.f32.mrb[0].mxu0
      %v3739 = vadd.f32 0.0, %v3738
      %v3740 = vpop.f32.mrb[0].mxu0
      %3741 = vdwg.mxu0
      %3742 = vmatprep.subr.mxu0 0.0
      %v3743 = vand.u32 %v3357, 4294901760
      %v3744 = vsub.f32 %v3357, %v3743
      %v3745 = vand.u32 %v3744, 4294901760
      %v3746 = vsub.f32 %v3744, %v3745
      %v3747 = vand.u32 %v3746, 4294901760
      %3748 = vmatpush1.msra.mxu0 %v3747
      %3749 = vmatprep.subr.mxu0 0.0
      %v3750 = vand.u32 %v3358, 4294901760
      %v3751 = vsub.f32 %v3358, %v3750
      %v3752 = vand.u32 %v3751, 4294901760
      %v3753 = vsub.f32 %v3751, %v3752
      %v3754 = vand.u32 %v3753, 4294901760
      %3755 = vmatpush1.msra.mxu0 %v3754
      %3756 = vmatprep.subr.mxu0 0.0
      %v3757 = vand.u32 %v3359, 4294901760
      %v3758 = vsub.f32 %v3359, %v3757
      %v3759 = vand.u32 %v3758, 4294901760
      %v3760 = vsub.f32 %v3758, %v3759
      %v3761 = vand.u32 %v3760, 4294901760
      %3762 = vmatpush1.msra.mxu0 %v3761
      %3763 = vmatprep.subr.mxu0 0.0
      %v3764 = vand.u32 %v3360, 4294901760
      %v3765 = vsub.f32 %v3360, %v3764
      %v3766 = vand.u32 %v3765, 4294901760
      %v3767 = vsub.f32 %v3765, %v3766
      %v3768 = vand.u32 %v3767, 4294901760
      %3769 = vmatpush1.msra.mxu0 %v3768
      %3770 = vmatprep.subr.mxu0 0.0
      %v3771 = vand.u32 %v3361, 4294901760
      %v3772 = vsub.f32 %v3361, %v3771
      %v3773 = vand.u32 %v3772, 4294901760
      %v3774 = vsub.f32 %v3772, %v3773
      %v3775 = vand.u32 %v3774, 4294901760
      %3776 = vmatpush1.msra.mxu0 %v3775
      %3777 = vmatprep.subr.mxu0 0.0
      %v3778 = vand.u32 %v3362, 4294901760
      %v3779 = vsub.f32 %v3362, %v3778
      %v3780 = vand.u32 %v3779, 4294901760
      %v3781 = vsub.f32 %v3779, %v3780
      %v3782 = vand.u32 %v3781, 4294901760
      %3783 = vmatpush1.msra.mxu0 %v3782
      %3784 = vmatprep.subr.mxu0 0.0
      %v3785 = vand.u32 %v3363, 4294901760
      %v3786 = vsub.f32 %v3363, %v3785
      %v3787 = vand.u32 %v3786, 4294901760
      %v3788 = vsub.f32 %v3786, %v3787
      %v3789 = vand.u32 %v3788, 4294901760
      %3790 = vmatpush1.msra.mxu0 %v3789
      %3791 = vmatprep.subr.mxu0 0.0
      %v3792 = vand.u32 %v3364, 4294901760
      %v3793 = vsub.f32 %v3364, %v3792
      %v3794 = vand.u32 %v3793, 4294901760
      %v3795 = vsub.f32 %v3793, %v3794
      %v3796 = vand.u32 %v3795, 4294901760
      %3797 = vmatpush1.msra.mxu0 %v3796
      %3798 = vmatprep.subr.mxu0 0.0
      %v3799 = vand.u32 %v3365, 4294901760
      %v3800 = vsub.f32 %v3365, %v3799
      %v3801 = vand.u32 %v3800, 4294901760
      %v3802 = vsub.f32 %v3800, %v3801
      %v3803 = vand.u32 %v3802, 4294901760
      %3804 = vmatpush1.msra.mxu0 %v3803
      %3805 = vmatprep.subr.mxu0 0.0
      %v3806 = vand.u32 %v3366, 4294901760
      %v3807 = vsub.f32 %v3366, %v3806
      %v3808 = vand.u32 %v3807, 4294901760
      %v3809 = vsub.f32 %v3807, %v3808
      %v3810 = vand.u32 %v3809, 4294901760
      %3811 = vmatpush1.msra.mxu0 %v3810
      %3812 = vmatprep.subr.mxu0 0.0
      %v3813 = vand.u32 %v3367, 4294901760
      %v3814 = vsub.f32 %v3367, %v3813
      %v3815 = vand.u32 %v3814, 4294901760
      %v3816 = vsub.f32 %v3814, %v3815
      %v3817 = vand.u32 %v3816, 4294901760
      %3818 = vmatpush1.msra.mxu0 %v3817
      %3819 = vmatprep.subr.mxu0 0.0
      %v3820 = vand.u32 %v3368, 4294901760
      %v3821 = vsub.f32 %v3368, %v3820
      %v3822 = vand.u32 %v3821, 4294901760
      %v3823 = vsub.f32 %v3821, %v3822
      %v3824 = vand.u32 %v3823, 4294901760
      %3825 = vmatpush1.msra.mxu0 %v3824
      %3826 = vmatprep.subr.mxu0 0.0
      %v3827 = vand.u32 %v3369, 4294901760
      %v3828 = vsub.f32 %v3369, %v3827
      %v3829 = vand.u32 %v3828, 4294901760
      %v3830 = vsub.f32 %v3828, %v3829
      %v3831 = vand.u32 %v3830, 4294901760
      %3832 = vmatpush1.msra.mxu0 %v3831
      %3833 = vmatprep.subr.mxu0 0.0
      %v3834 = vand.u32 %v3370, 4294901760
      %v3835 = vsub.f32 %v3370, %v3834
      %v3836 = vand.u32 %v3835, 4294901760
      %v3837 = vsub.f32 %v3835, %v3836
      %v3838 = vand.u32 %v3837, 4294901760
      %3839 = vmatpush1.msra.mxu0 %v3838
      %3840 = vmatprep.subr.mxu0 0.0
      %v3841 = vand.u32 %v3371, 4294901760
      %v3842 = vsub.f32 %v3371, %v3841
      %v3843 = vand.u32 %v3842, 4294901760
      %v3844 = vsub.f32 %v3842, %v3843
      %v3845 = vand.u32 %v3844, 4294901760
      %3846 = vmatpush1.msra.mxu0 %v3845
      %3847 = vmatprep.subr.mxu0 0.0
      %v3848 = vand.u32 %v3372, 4294901760
      %v3849 = vsub.f32 %v3372, %v3848
      %v3850 = vand.u32 %v3849, 4294901760
      %v3851 = vsub.f32 %v3849, %v3850
      %v3852 = vand.u32 %v3851, 4294901760
      %3853 = vmatpush1.msra.mxu0 %v3852
      %3854 = vmatprep.subr.mxu0 0.0
      %v3855 = vand.u32 %v3373, 4294901760
      %v3856 = vsub.f32 %v3373, %v3855
      %v3857 = vand.u32 %v3856, 4294901760
      %v3858 = vsub.f32 %v3856, %v3857
      %v3859 = vand.u32 %v3858, 4294901760
      %3860 = vmatpush1.msra.mxu0 %v3859
      %3861 = vmatprep.subr.mxu0 0.0
      %v3862 = vand.u32 %v3374, 4294901760
      %v3863 = vsub.f32 %v3374, %v3862
      %v3864 = vand.u32 %v3863, 4294901760
      %v3865 = vsub.f32 %v3863, %v3864
      %v3866 = vand.u32 %v3865, 4294901760
      %3867 = vmatpush1.msra.mxu0 %v3866
      %3868 = vmatprep.subr.mxu0 0.0
      %v3869 = vand.u32 %v3375, 4294901760
      %v3870 = vsub.f32 %v3375, %v3869
      %v3871 = vand.u32 %v3870, 4294901760
      %v3872 = vsub.f32 %v3870, %v3871
      %v3873 = vand.u32 %v3872, 4294901760
      %3874 = vmatpush1.msra.mxu0 %v3873
      %3875 = vmatprep.subr.mxu0 0.0
      %v3876 = vand.u32 %v3376, 4294901760
      %v3877 = vsub.f32 %v3376, %v3876
      %v3878 = vand.u32 %v3877, 4294901760
      %v3879 = vsub.f32 %v3877, %v3878
      %v3880 = vand.u32 %v3879, 4294901760
      %3881 = vmatpush1.msra.mxu0 %v3880
      %3882 = vmatprep.subr.mxu0 0.0
      %v3883 = vand.u32 %v3377, 4294901760
      %v3884 = vsub.f32 %v3377, %v3883
      %v3885 = vand.u32 %v3884, 4294901760
      %v3886 = vsub.f32 %v3884, %v3885
      %v3887 = vand.u32 %v3886, 4294901760
      %3888 = vmatpush1.msra.mxu0 %v3887
      %3889 = vmatprep.subr.mxu0 0.0
      %v3890 = vand.u32 %v3378, 4294901760
      %v3891 = vsub.f32 %v3378, %v3890
      %v3892 = vand.u32 %v3891, 4294901760
      %v3893 = vsub.f32 %v3891, %v3892
      %v3894 = vand.u32 %v3893, 4294901760
      %3895 = vmatpush1.msra.mxu0 %v3894
      %3896 = vmatprep.subr.mxu0 0.0
      %v3897 = vand.u32 %v3379, 4294901760
      %v3898 = vsub.f32 %v3379, %v3897
      %v3899 = vand.u32 %v3898, 4294901760
      %v3900 = vsub.f32 %v3898, %v3899
      %v3901 = vand.u32 %v3900, 4294901760
      %3902 = vmatpush1.msra.mxu0 %v3901
      %3903 = vmatprep.subr.mxu0 0.0
      %v3904 = vand.u32 %v3380, 4294901760
      %v3905 = vsub.f32 %v3380, %v3904
      %v3906 = vand.u32 %v3905, 4294901760
      %v3907 = vsub.f32 %v3905, %v3906
      %v3908 = vand.u32 %v3907, 4294901760
      %3909 = vmatpush1.msra.mxu0 %v3908
      %3910 = vmatprep.subr.mxu0 0.0
      %v3911 = vand.u32 %v3381, 4294901760
      %v3912 = vsub.f32 %v3381, %v3911
      %v3913 = vand.u32 %v3912, 4294901760
      %v3914 = vsub.f32 %v3912, %v3913
      %v3915 = vand.u32 %v3914, 4294901760
      %3916 = vmatpush1.msra.mxu0 %v3915
      %3917 = vmatprep.subr.mxu0 0.0
      %v3918 = vand.u32 %v3382, 4294901760
      %v3919 = vsub.f32 %v3382, %v3918
      %v3920 = vand.u32 %v3919, 4294901760
      %v3921 = vsub.f32 %v3919, %v3920
      %v3922 = vand.u32 %v3921, 4294901760
      %3923 = vmatpush1.msra.mxu0 %v3922
      %3924 = vmatprep.subr.mxu0 0.0
      %v3925 = vand.u32 %v3383, 4294901760
      %v3926 = vsub.f32 %v3383, %v3925
      %v3927 = vand.u32 %v3926, 4294901760
      %v3928 = vsub.f32 %v3926, %v3927
      %v3929 = vand.u32 %v3928, 4294901760
      %3930 = vmatpush1.msra.mxu0 %v3929
      %3931 = vmatprep.subr.mxu0 0.0
      %v3932 = vand.u32 %v3384, 4294901760
      %v3933 = vsub.f32 %v3384, %v3932
      %v3934 = vand.u32 %v3933, 4294901760
      %v3935 = vsub.f32 %v3933, %v3934
      %v3936 = vand.u32 %v3935, 4294901760
      %3937 = vmatpush1.msra.mxu0 %v3936
      %3938 = vmatprep.subr.mxu0 0.0
      %v3939 = vand.u32 %v3385, 4294901760
      %v3940 = vsub.f32 %v3385, %v3939
      %v3941 = vand.u32 %v3940, 4294901760
      %v3942 = vsub.f32 %v3940, %v3941
      %v3943 = vand.u32 %v3942, 4294901760
      %3944 = vmatpush1.msra.mxu0 %v3943
      %3945 = vmatprep.subr.mxu0 0.0
      %v3946 = vand.u32 %v3386, 4294901760
      %v3947 = vsub.f32 %v3386, %v3946
      %v3948 = vand.u32 %v3947, 4294901760
      %v3949 = vsub.f32 %v3947, %v3948
      %v3950 = vand.u32 %v3949, 4294901760
      %3951 = vmatpush1.msra.mxu0 %v3950
      %3952 = vmatprep.subr.mxu0 0.0
      %v3953 = vand.u32 %v3387, 4294901760
      %v3954 = vsub.f32 %v3387, %v3953
      %v3955 = vand.u32 %v3954, 4294901760
      %v3956 = vsub.f32 %v3954, %v3955
      %v3957 = vand.u32 %v3956, 4294901760
      %3958 = vmatpush1.msra.mxu0 %v3957
      %3959 = vmatprep.subr.mxu0 0.0
      %v3960 = vand.u32 %v3388, 4294901760
      %v3961 = vsub.f32 %v3388, %v3960
      %v3962 = vand.u32 %v3961, 4294901760
      %v3963 = vsub.f32 %v3961, %v3962
      %v3964 = vand.u32 %v3963, 4294901760
      %3965 = vmatpush1.msra.mxu0 %v3964
      %v3966 = vand.u32 %v3310, 4294901760
      %3967 = vmatprep.mubr.f32.mxu0 %v3966
      %v3968 = vand.u32 %v3309, 4294901760
      %3969 = vmatmul.mubr.f32.gmra.mrb[0].mxu0 %v3968
      %v3970 = vpop.f32.mrb[0].mxu0
      %v3971 = vadd.f32 %v3514, %v3970
      %v3972 = vpop.f32.mrb[0].mxu0
      %v3973 = vand.u32 %v3313, 4294901760
      %3974 = vmatprep.mubr.f32.mxu0 %v3973
      %v3975 = vand.u32 %v3312, 4294901760
      %3976 = vmatmul.mubr.f32.gmra.mrb[0].mxu0 %v3975
      %v3977 = vpop.f32.mrb[0].mxu0
      %v3978 = vadd.f32 %v3529, %v3977
      %v3979 = vpop.f32.mrb[0].mxu0
      %v3980 = vand.u32 %v3316, 4294901760
      %3981 = vmatprep.mubr.f32.mxu0 %v3980
      %v3982 = vand.u32 %v3315, 4294901760
      %3983 = vmatmul.mubr.f32.gmra.mrb[0].mxu0 %v3982
      %v3984 = vpop.f32.mrb[0].mxu0
      %v3985 = vadd.f32 %v3544, %v3984
      %v3986 = vpop.f32.mrb[0].mxu0
      %v3987 = vand.u32 %v3319, 4294901760
      %3988 = vmatprep.mubr.f32.mxu0 %v3987
      %v3989 = vand.u32 %v3318, 4294901760
      %3990 = vmatmul.mubr.f32.gmra.mrb[0].mxu0 %v3989
      %v3991 = vpop.f32.mrb[0].mxu0
      %v3992 = vadd.f32 %v3559, %v3991
      %v3993 = vpop.f32.mrb[0].mxu0
      %v3994 = vand.u32 %v3322, 4294901760
      %3995 = vmatprep.mubr.f32.mxu0 %v3994
      %v3996 = vand.u32 %v3321, 4294901760
      %3997 = vmatmul.mubr.f32.gmra.mrb[0].mxu0 %v3996
      %v3998 = vpop.f32.mrb[0].mxu0
      %v3999 = vadd.f32 %v3574, %v3998
      %v4000 = vpop.f32.mrb[0].mxu0
      %v4001 = vand.u32 %v3325, 4294901760
      %4002 = vmatprep.mubr.f32.mxu0 %v4001
      %v4003 = vand.u32 %v3324, 4294901760
      %4004 = vmatmul.mubr.f32.gmra.mrb[0].mxu0 %v4003
      %v4005 = vpop.f32.mrb[0].mxu0
      %v4006 = vadd.f32 %v3589, %v4005
      %v4007 = vpop.f32.mrb[0].mxu0
      %v4008 = vand.u32 %v3328, 4294901760
      %4009 = vmatprep.mubr.f32.mxu0 %v4008
      %v4010 = vand.u32 %v3327, 4294901760
      %4011 = vmatmul.mubr.f32.gmra.mrb[0].mxu0 %v4010
      %v4012 = vpop.f32.mrb[0].mxu0
      %v4013 = vadd.f32 %v3604, %v4012
      %v4014 = vpop.f32.mrb[0].mxu0
      %v4015 = vand.u32 %v3331, 4294901760
      %4016 = vmatprep.mubr.f32.mxu0 %v4015
      %v4017 = vand.u32 %v3330, 4294901760
      %4018 = vmatmul.mubr.f32.gmra.mrb[0].mxu0 %v4017
      %v4019 = vpop.f32.mrb[0].mxu0
      %v4020 = vadd.f32 %v3619, %v4019
      %v4021 = vpop.f32.mrb[0].mxu0
      %v4022 = vand.u32 %v3334, 4294901760
      %4023 = vmatprep.mubr.f32.mxu0 %v4022
      %v4024 = vand.u32 %v3333, 4294901760
      %4025 = vmatmul.mubr.f32.gmra.mrb[0].mxu0 %v4024
      %v4026 = vpop.f32.mrb[0].mxu0
      %v4027 = vadd.f32 %v3634, %v4026
      %v4028 = vpop.f32.mrb[0].mxu0
      %v4029 = vand.u32 %v3337, 4294901760
      %4030 = vmatprep.mubr.f32.mxu0 %v4029
      %v4031 = vand.u32 %v3336, 4294901760
      %4032 = vmatmul.mubr.f32.gmra.mrb[0].mxu0 %v4031
      %v4033 = vpop.f32.mrb[0].mxu0
      %v4034 = vadd.f32 %v3649, %v4033
      %v4035 = vpop.f32.mrb[0].mxu0
      %v4036 = vand.u32 %v3340, 4294901760
      %4037 = vmatprep.mubr.f32.mxu0 %v4036
      %v4038 = vand.u32 %v3339, 4294901760
      %4039 = vmatmul.mubr.f32.gmra.mrb[0].mxu0 %v4038
      %v4040 = vpop.f32.mrb[0].mxu0
      %v4041 = vadd.f32 %v3664, %v4040
      %v4042 = vpop.f32.mrb[0].mxu0
      %v4043 = vand.u32 %v3343, 4294901760
      %4044 = vmatprep.mubr.f32.mxu0 %v4043
      %v4045 = vand.u32 %v3342, 4294901760
      %4046 = vmatmul.mubr.f32.gmra.mrb[0].mxu0 %v4045
      %v4047 = vpop.f32.mrb[0].mxu0
      %v4048 = vadd.f32 %v3679, %v4047
      %v4049 = vpop.f32.mrb[0].mxu0
      %v4050 = vand.u32 %v3346, 4294901760
      %4051 = vmatprep.mubr.f32.mxu0 %v4050
      %v4052 = vand.u32 %v3345, 4294901760
      %4053 = vmatmul.mubr.f32.gmra.mrb[0].mxu0 %v4052
      %v4054 = vpop.f32.mrb[0].mxu0
      %v4055 = vadd.f32 %v3694, %v4054
      %v4056 = vpop.f32.mrb[0].mxu0
      %v4057 = vand.u32 %v3349, 4294901760
      %4058 = vmatprep.mubr.f32.mxu0 %v4057
      %v4059 = vand.u32 %v3348, 4294901760
      %4060 = vmatmul.mubr.f32.gmra.mrb[0].mxu0 %v4059
      %v4061 = vpop.f32.mrb[0].mxu0
      %v4062 = vadd.f32 %v3709, %v4061
      %v4063 = vpop.f32.mrb[0].mxu0
      %v4064 = vand.u32 %v3352, 4294901760
      %4065 = vmatprep.mubr.f32.mxu0 %v4064
      %v4066 = vand.u32 %v3351, 4294901760
      %4067 = vmatmul.mubr.f32.gmra.mrb[0].mxu0 %v4066
      %v4068 = vpop.f32.mrb[0].mxu0
      %v4069 = vadd.f32 %v3724, %v4068
      %v4070 = vpop.f32.mrb[0].mxu0
      %v4071 = vand.u32 %v3355, 4294901760
      %4072 = vmatprep.mubr.f32.mxu0 %v4071
      %v4073 = vand.u32 %v3354, 4294901760
      %4074 = vmatmul.mubr.f32.gmra.mrb[0].mxu0 %v4073
      %v4075 = vpop.f32.mrb[0].mxu0
      %v4076 = vadd.f32 %v3739, %v4075
      %v4077 = vpop.f32.mrb[0].mxu0
      %4078 = vdwg.mxu0
      %4079 = vmatprep.subr.mxu0 0.0
      %v4080 = vand.u32 %v3357, 4294901760
      %v4081 = vsub.f32 %v3357, %v4080
      %4082 = vmatpush1.msra.mxu0 %v4081
      %4083 = vmatprep.subr.mxu0 0.0
      %v4084 = vand.u32 %v3358, 4294901760
      %v4085 = vsub.f32 %v3358, %v4084
      %4086 = vmatpush1.msra.mxu0 %v4085
      %4087 = vmatprep.subr.mxu0 0.0
      %v4088 = vand.u32 %v3359, 4294901760
      %v4089 = vsub.f32 %v3359, %v4088
      %4090 = vmatpush1.msra.mxu0 %v4089
      %4091 = vmatprep.subr.mxu0 0.0
      %v4092 = vand.u32 %v3360, 4294901760
      %v4093 = vsub.f32 %v3360, %v4092
      %4094 = vmatpush1.msra.mxu0 %v4093
      %4095 = vmatprep.subr.mxu0 0.0
      %v4096 = vand.u32 %v3361, 4294901760
      %v4097 = vsub.f32 %v3361, %v4096
      %4098 = vmatpush1.msra.mxu0 %v4097
      %4099 = vmatprep.subr.mxu0 0.0
      %v4100 = vand.u32 %v3362, 4294901760
      %v4101 = vsub.f32 %v3362, %v4100
      %4102 = vmatpush1.msra.mxu0 %v4101
      %4103 = vmatprep.subr.mxu0 0.0
      %v4104 = vand.u32 %v3363, 4294901760
      %v4105 = vsub.f32 %v3363, %v4104
      %4106 = vmatpush1.msra.mxu0 %v4105
      %4107 = vmatprep.subr.mxu0 0.0
      %v4108 = vand.u32 %v3364, 4294901760
      %v4109 = vsub.f32 %v3364, %v4108
      %4110 = vmatpush1.msra.mxu0 %v4109
      %4111 = vmatprep.subr.mxu0 0.0
      %v4112 = vand.u32 %v3365, 4294901760
      %v4113 = vsub.f32 %v3365, %v4112
      %4114 = vmatpush1.msra.mxu0 %v4113
      %4115 = vmatprep.subr.mxu0 0.0
      %v4116 = vand.u32 %v3366, 4294901760
      %v4117 = vsub.f32 %v3366, %v4116
      %4118 = vmatpush1.msra.mxu0 %v4117
      %4119 = vmatprep.subr.mxu0 0.0
      %v4120 = vand.u32 %v3367, 4294901760
      %v4121 = vsub.f32 %v3367, %v4120
      %4122 = vmatpush1.msra.mxu0 %v4121
      %4123 = vmatprep.subr.mxu0 0.0
      %v4124 = vand.u32 %v3368, 4294901760
      %v4125 = vsub.f32 %v3368, %v4124
      %4126 = vmatpush1.msra.mxu0 %v4125
      %4127 = vmatprep.subr.mxu0 0.0
      %v4128 = vand.u32 %v3369, 4294901760
      %v4129 = vsub.f32 %v3369, %v4128
      %4130 = vmatpush1.msra.mxu0 %v4129
      %4131 = vmatprep.subr.mxu0 0.0
      %v4132 = vand.u32 %v3370, 4294901760
      %v4133 = vsub.f32 %v3370, %v4132
      %4134 = vmatpush1.msra.mxu0 %v4133
      %4135 = vmatprep.subr.mxu0 0.0
      %v4136 = vand.u32 %v3371, 4294901760
      %v4137 = vsub.f32 %v3371, %v4136
      %4138 = vmatpush1.msra.mxu0 %v4137
      %4139 = vmatprep.subr.mxu0 0.0
      %v4140 = vand.u32 %v3372, 4294901760
      %v4141 = vsub.f32 %v3372, %v4140
      %4142 = vmatpush1.msra.mxu0 %v4141
      %4143 = vmatprep.subr.mxu0 0.0
      %v4144 = vand.u32 %v3373, 4294901760
      %v4145 = vsub.f32 %v3373, %v4144
      %4146 = vmatpush1.msra.mxu0 %v4145
      %4147 = vmatprep.subr.mxu0 0.0
      %v4148 = vand.u32 %v3374, 4294901760
      %v4149 = vsub.f32 %v3374, %v4148
      %4150 = vmatpush1.msra.mxu0 %v4149
      %4151 = vmatprep.subr.mxu0 0.0
      %v4152 = vand.u32 %v3375, 4294901760
      %v4153 = vsub.f32 %v3375, %v4152
      %4154 = vmatpush1.msra.mxu0 %v4153
      %4155 = vmatprep.subr.mxu0 0.0
      %v4156 = vand.u32 %v3376, 4294901760
      %v4157 = vsub.f32 %v3376, %v4156
      %4158 = vmatpush1.msra.mxu0 %v4157
      %4159 = vmatprep.subr.mxu0 0.0
      %v4160 = vand.u32 %v3377, 4294901760
      %v4161 = vsub.f32 %v3377, %v4160
      %4162 = vmatpush1.msra.mxu0 %v4161
      %4163 = vmatprep.subr.mxu0 0.0
      %v4164 = vand.u32 %v3378, 4294901760
      %v4165 = vsub.f32 %v3378, %v4164
      %4166 = vmatpush1.msra.mxu0 %v4165
      %4167 = vmatprep.subr.mxu0 0.0
      %v4168 = vand.u32 %v3379, 4294901760
      %v4169 = vsub.f32 %v3379, %v4168
      %4170 = vmatpush1.msra.mxu0 %v4169
      %4171 = vmatprep.subr.mxu0 0.0
      %v4172 = vand.u32 %v3380, 4294901760
      %v4173 = vsub.f32 %v3380, %v4172
      %4174 = vmatpush1.msra.mxu0 %v4173
      %4175 = vmatprep.subr.mxu0 0.0
      %v4176 = vand.u32 %v3381, 4294901760
      %v4177 = vsub.f32 %v3381, %v4176
      %4178 = vmatpush1.msra.mxu0 %v4177
      %4179 = vmatprep.subr.mxu0 0.0
      %v4180 = vand.u32 %v3382, 4294901760
      %v4181 = vsub.f32 %v3382, %v4180
      %4182 = vmatpush1.msra.mxu0 %v4181
      %4183 = vmatprep.subr.mxu0 0.0
      %v4184 = vand.u32 %v3383, 4294901760
      %v4185 = vsub.f32 %v3383, %v4184
      %4186 = vmatpush1.msra.mxu0 %v4185
      %4187 = vmatprep.subr.mxu0 0.0
      %v4188 = vand.u32 %v3384, 4294901760
      %v4189 = vsub.f32 %v3384, %v4188
      %4190 = vmatpush1.msra.mxu0 %v4189
      %4191 = vmatprep.subr.mxu0 0.0
      %v4192 = vand.u32 %v3385, 4294901760
      %v4193 = vsub.f32 %v3385, %v4192
      %4194 = vmatpush1.msra.mxu0 %v4193
      %4195 = vmatprep.subr.mxu0 0.0
      %v4196 = vand.u32 %v3386, 4294901760
      %v4197 = vsub.f32 %v3386, %v4196
      %4198 = vmatpush1.msra.mxu0 %v4197
      %4199 = vmatprep.subr.mxu0 0.0
      %v4200 = vand.u32 %v3387, 4294901760
      %v4201 = vsub.f32 %v3387, %v4200
      %4202 = vmatpush1.msra.mxu0 %v4201
      %4203 = vmatprep.subr.mxu0 0.0
      %v4204 = vand.u32 %v3388, 4294901760
      %v4205 = vsub.f32 %v3388, %v4204
      %4206 = vmatpush1.msra.mxu0 %v4205
      %v4207 = vand.u32 %v3310, 4294901760
      %v4208 = vsub.f32 %v3310, %v4207
      %4209 = vmatprep.mubr.f32.mxu0 %v4208
      %v4210 = vand.u32 %v3309, 4294901760
      %v4211 = vsub.f32 %v3309, %v4210
      %4212 = vmatmul.mubr.f32.gmra.mrb[0].mxu0 %v4211
      %v4213 = vpop.f32.mrb[0].mxu0
      %v4214 = vadd.f32 %v3971, %v4213
      %v4215 = vpop.f32.mrb[0].mxu0
      %v4216 = vand.u32 %v3313, 4294901760
      %v4217 = vsub.f32 %v3313, %v4216
      %4218 = vmatprep.mubr.f32.mxu0 %v4217
      %v4219 = vand.u32 %v3312, 4294901760
      %v4220 = vsub.f32 %v3312, %v4219
      %4221 = vmatmul.mubr.f32.gmra.mrb[0].mxu0 %v4220
      %v4222 = vpop.f32.mrb[0].mxu0
      %v4223 = vadd.f32 %v3978, %v4222
      %v4224 = vpop.f32.mrb[0].mxu0
      %v4225 = vand.u32 %v3316, 4294901760
      %v4226 = vsub.f32 %v3316, %v4225
      %4227 = vmatprep.mubr.f32.mxu0 %v4226
      %v4228 = vand.u32 %v3315, 4294901760
      %v4229 = vsub.f32 %v3315, %v4228
      %4230 = vmatmul.mubr.f32.gmra.mrb[0].mxu0 %v4229
      %v4231 = vpop.f32.mrb[0].mxu0
      %v4232 = vadd.f32 %v3985, %v4231
      %v4233 = vpop.f32.mrb[0].mxu0
      %v4234 = vand.u32 %v3319, 4294901760
      %v4235 = vsub.f32 %v3319, %v4234
      %4236 = vmatprep.mubr.f32.mxu0 %v4235
      %v4237 = vand.u32 %v3318, 4294901760
      %v4238 = vsub.f32 %v3318, %v4237
      %4239 = vmatmul.mubr.f32.gmra.mrb[0].mxu0 %v4238
      %v4240 = vpop.f32.mrb[0].mxu0
      %v4241 = vadd.f32 %v3992, %v4240
      %v4242 = vpop.f32.mrb[0].mxu0
      %v4243 = vand.u32 %v3322, 4294901760
      %v4244 = vsub.f32 %v3322, %v4243
      %4245 = vmatprep.mubr.f32.mxu0 %v4244
      %v4246 = vand.u32 %v3321, 4294901760
      %v4247 = vsub.f32 %v3321, %v4246
      %4248 = vmatmul.mubr.f32.gmra.mrb[0].mxu0 %v4247
      %v4249 = vpop.f32.mrb[0].mxu0
      %v4250 = vadd.f32 %v3999, %v4249
      %v4251 = vpop.f32.mrb[0].mxu0
      %v4252 = vand.u32 %v3325, 4294901760
      %v4253 = vsub.f32 %v3325, %v4252
      %4254 = vmatprep.mubr.f32.mxu0 %v4253
      %v4255 = vand.u32 %v3324, 4294901760
      %v4256 = vsub.f32 %v3324, %v4255
      %4257 = vmatmul.mubr.f32.gmra.mrb[0].mxu0 %v4256
      %v4258 = vpop.f32.mrb[0].mxu0
      %v4259 = vadd.f32 %v4006, %v4258
      %v4260 = vpop.f32.mrb[0].mxu0
      %v4261 = vand.u32 %v3328, 4294901760
      %v4262 = vsub.f32 %v3328, %v4261
      %4263 = vmatprep.mubr.f32.mxu0 %v4262
      %v4264 = vand.u32 %v3327, 4294901760
      %v4265 = vsub.f32 %v3327, %v4264
      %4266 = vmatmul.mubr.f32.gmra.mrb[0].mxu0 %v4265
      %v4267 = vpop.f32.mrb[0].mxu0
      %v4268 = vadd.f32 %v4013, %v4267
      %v4269 = vpop.f32.mrb[0].mxu0
      %v4270 = vand.u32 %v3331, 4294901760
      %v4271 = vsub.f32 %v3331, %v4270
      %4272 = vmatprep.mubr.f32.mxu0 %v4271
      %v4273 = vand.u32 %v3330, 4294901760
      %v4274 = vsub.f32 %v3330, %v4273
      %4275 = vmatmul.mubr.f32.gmra.mrb[0].mxu0 %v4274
      %v4276 = vpop.f32.mrb[0].mxu0
      %v4277 = vadd.f32 %v4020, %v4276
      %v4278 = vpop.f32.mrb[0].mxu0
      %v4279 = vand.u32 %v3334, 4294901760
      %v4280 = vsub.f32 %v3334, %v4279
      %4281 = vmatprep.mubr.f32.mxu0 %v4280
      %v4282 = vand.u32 %v3333, 4294901760
      %v4283 = vsub.f32 %v3333, %v4282
      %4284 = vmatmul.mubr.f32.gmra.mrb[0].mxu0 %v4283
      %v4285 = vpop.f32.mrb[0].mxu0
      %v4286 = vadd.f32 %v4027, %v4285
      %v4287 = vpop.f32.mrb[0].mxu0
      %v4288 = vand.u32 %v3337, 4294901760
      %v4289 = vsub.f32 %v3337, %v4288
      %4290 = vmatprep.mubr.f32.mxu0 %v4289
      %v4291 = vand.u32 %v3336, 4294901760
      %v4292 = vsub.f32 %v3336, %v4291
      %4293 = vmatmul.mubr.f32.gmra.mrb[0].mxu0 %v4292
      %v4294 = vpop.f32.mrb[0].mxu0
      %v4295 = vadd.f32 %v4034, %v4294
      %v4296 = vpop.f32.mrb[0].mxu0
      %v4297 = vand.u32 %v3340, 4294901760
      %v4298 = vsub.f32 %v3340, %v4297
      %4299 = vmatprep.mubr.f32.mxu0 %v4298
      %v4300 = vand.u32 %v3339, 4294901760
      %v4301 = vsub.f32 %v3339, %v4300
      %4302 = vmatmul.mubr.f32.gmra.mrb[0].mxu0 %v4301
      %v4303 = vpop.f32.mrb[0].mxu0
      %v4304 = vadd.f32 %v4041, %v4303
      %v4305 = vpop.f32.mrb[0].mxu0
      %v4306 = vand.u32 %v3343, 4294901760
      %v4307 = vsub.f32 %v3343, %v4306
      %4308 = vmatprep.mubr.f32.mxu0 %v4307
      %v4309 = vand.u32 %v3342, 4294901760
      %v4310 = vsub.f32 %v3342, %v4309
      %4311 = vmatmul.mubr.f32.gmra.mrb[0].mxu0 %v4310
      %v4312 = vpop.f32.mrb[0].mxu0
      %v4313 = vadd.f32 %v4048, %v4312
      %v4314 = vpop.f32.mrb[0].mxu0
      %v4315 = vand.u32 %v3346, 4294901760
      %v4316 = vsub.f32 %v3346, %v4315
      %4317 = vmatprep.mubr.f32.mxu0 %v4316
      %v4318 = vand.u32 %v3345, 4294901760
      %v4319 = vsub.f32 %v3345, %v4318
      %4320 = vmatmul.mubr.f32.gmra.mrb[0].mxu0 %v4319
      %v4321 = vpop.f32.mrb[0].mxu0
      %v4322 = vadd.f32 %v4055, %v4321
      %v4323 = vpop.f32.mrb[0].mxu0
      %v4324 = vand.u32 %v3349, 4294901760
      %v4325 = vsub.f32 %v3349, %v4324
      %4326 = vmatprep.mubr.f32.mxu0 %v4325
      %v4327 = vand.u32 %v3348, 4294901760
      %v4328 = vsub.f32 %v3348, %v4327
      %4329 = vmatmul.mubr.f32.gmra.mrb[0].mxu0 %v4328
      %v4330 = vpop.f32.mrb[0].mxu0
      %v4331 = vadd.f32 %v4062, %v4330
      %v4332 = vpop.f32.mrb[0].mxu0
      %v4333 = vand.u32 %v3352, 4294901760
      %v4334 = vsub.f32 %v3352, %v4333
      %4335 = vmatprep.mubr.f32.mxu0 %v4334
      %v4336 = vand.u32 %v3351, 4294901760
      %v4337 = vsub.f32 %v3351, %v4336
      %4338 = vmatmul.mubr.f32.gmra.mrb[0].mxu0 %v4337
      %v4339 = vpop.f32.mrb[0].mxu0
      %v4340 = vadd.f32 %v4069, %v4339
      %v4341 = vpop.f32.mrb[0].mxu0
      %v4342 = vand.u32 %v3355, 4294901760
      %v4343 = vsub.f32 %v3355, %v4342
      %4344 = vmatprep.mubr.f32.mxu0 %v4343
      %v4345 = vand.u32 %v3354, 4294901760
      %v4346 = vsub.f32 %v3354, %v4345
      %4347 = vmatmul.mubr.f32.gmra.mrb[0].mxu0 %v4346
      %v4348 = vpop.f32.mrb[0].mxu0
      %v4349 = vadd.f32 %v4076, %v4348
      %v4350 = vpop.f32.mrb[0].mxu0
      %4351 = vdwg.mxu0
      %4352 = vmatprep.subr.mxu0 0.0
      %v4353 = vand.u32 %v3357, 4294901760
      %4354 = vmatpush1.msra.mxu0 %v4353
      %4355 = vmatprep.subr.mxu0 0.0
      %v4356 = vand.u32 %v3358, 4294901760
      %4357 = vmatpush1.msra.mxu0 %v4356
      %4358 = vmatprep.subr.mxu0 0.0
      %v4359 = vand.u32 %v3359, 4294901760
      %4360 = vmatpush1.msra.mxu0 %v4359
      %4361 = vmatprep.subr.mxu0 0.0
      %v4362 = vand.u32 %v3360, 4294901760
      %4363 = vmatpush1.msra.mxu0 %v4362
      %4364 = vmatprep.subr.mxu0 0.0
      %v4365 = vand.u32 %v3361, 4294901760
      %4366 = vmatpush1.msra.mxu0 %v4365
      %4367 = vmatprep.subr.mxu0 0.0
      %v4368 = vand.u32 %v3362, 4294901760
      %4369 = vmatpush1.msra.mxu0 %v4368
      %4370 = vmatprep.subr.mxu0 0.0
      %v4371 = vand.u32 %v3363, 4294901760
      %4372 = vmatpush1.msra.mxu0 %v4371
      %4373 = vmatprep.subr.mxu0 0.0
      %v4374 = vand.u32 %v3364, 4294901760
      %4375 = vmatpush1.msra.mxu0 %v4374
      %4376 = vmatprep.subr.mxu0 0.0
      %v4377 = vand.u32 %v3365, 4294901760
      %4378 = vmatpush1.msra.mxu0 %v4377
      %4379 = vmatprep.subr.mxu0 0.0
      %v4380 = vand.u32 %v3366, 4294901760
      %4381 = vmatpush1.msra.mxu0 %v4380
      %4382 = vmatprep.subr.mxu0 0.0
      %v4383 = vand.u32 %v3367, 4294901760
      %4384 = vmatpush1.msra.mxu0 %v4383
      %4385 = vmatprep.subr.mxu0 0.0
      %v4386 = vand.u32 %v3368, 4294901760
      %4387 = vmatpush1.msra.mxu0 %v4386
      %4388 = vmatprep.subr.mxu0 0.0
      %v4389 = vand.u32 %v3369, 4294901760
      %4390 = vmatpush1.msra.mxu0 %v4389
      %4391 = vmatprep.subr.mxu0 0.0
      %v4392 = vand.u32 %v3370, 4294901760
      %4393 = vmatpush1.msra.mxu0 %v4392
      %4394 = vmatprep.subr.mxu0 0.0
      %v4395 = vand.u32 %v3371, 4294901760
      %4396 = vmatpush1.msra.mxu0 %v4395
      %4397 = vmatprep.subr.mxu0 0.0
      %v4398 = vand.u32 %v3372, 4294901760
      %4399 = vmatpush1.msra.mxu0 %v4398
      %4400 = vmatprep.subr.mxu0 0.0
      %v4401 = vand.u32 %v3373, 4294901760
      %4402 = vmatpush1.msra.mxu0 %v4401
      %4403 = vmatprep.subr.mxu0 0.0
      %v4404 = vand.u32 %v3374, 4294901760
      %4405 = vmatpush1.msra.mxu0 %v4404
      %4406 = vmatprep.subr.mxu0 0.0
      %v4407 = vand.u32 %v3375, 4294901760
      %4408 = vmatpush1.msra.mxu0 %v4407
      %4409 = vmatprep.subr.mxu0 0.0
      %v4410 = vand.u32 %v3376, 4294901760
      %4411 = vmatpush1.msra.mxu0 %v4410
      %4412 = vmatprep.subr.mxu0 0.0
      %v4413 = vand.u32 %v3377, 4294901760
      %4414 = vmatpush1.msra.mxu0 %v4413
      %4415 = vmatprep.subr.mxu0 0.0
      %v4416 = vand.u32 %v3378, 4294901760
      %4417 = vmatpush1.msra.mxu0 %v4416
      %4418 = vmatprep.subr.mxu0 0.0
      %v4419 = vand.u32 %v3379, 4294901760
      %4420 = vmatpush1.msra.mxu0 %v4419
      %4421 = vmatprep.subr.mxu0 0.0
      %v4422 = vand.u32 %v3380, 4294901760
      %4423 = vmatpush1.msra.mxu0 %v4422
      %4424 = vmatprep.subr.mxu0 0.0
      %v4425 = vand.u32 %v3381, 4294901760
      %4426 = vmatpush1.msra.mxu0 %v4425
      %4427 = vmatprep.subr.mxu0 0.0
      %v4428 = vand.u32 %v3382, 4294901760
      %4429 = vmatpush1.msra.mxu0 %v4428
      %4430 = vmatprep.subr.mxu0 0.0
      %v4431 = vand.u32 %v3383, 4294901760
      %4432 = vmatpush1.msra.mxu0 %v4431
      %4433 = vmatprep.subr.mxu0 0.0
      %v4434 = vand.u32 %v3384, 4294901760
      %4435 = vmatpush1.msra.mxu0 %v4434
      %4436 = vmatprep.subr.mxu0 0.0
      %v4437 = vand.u32 %v3385, 4294901760
      %4438 = vmatpush1.msra.mxu0 %v4437
      %4439 = vmatprep.subr.mxu0 0.0
      %v4440 = vand.u32 %v3386, 4294901760
      %4441 = vmatpush1.msra.mxu0 %v4440
      %4442 = vmatprep.subr.mxu0 0.0
      %v4443 = vand.u32 %v3387, 4294901760
      %4444 = vmatpush1.msra.mxu0 %v4443
      %4445 = vmatprep.subr.mxu0 0.0
      %v4446 = vand.u32 %v3388, 4294901760
      %4447 = vmatpush1.msra.mxu0 %v4446
      %v4448 = vand.u32 %v3310, 4294901760
      %v4449 = vsub.f32 %v3310, %v4448
      %v4450 = vand.u32 %v4449, 4294901760
      %4451 = vmatprep.mubr.f32.mxu0 %v4450
      %v4452 = vand.u32 %v3309, 4294901760
      %v4453 = vsub.f32 %v3309, %v4452
      %v4454 = vand.u32 %v4453, 4294901760
      %4455 = vmatmul.mubr.f32.gmra.mrb[0].mxu0 %v4454
      %v4456 = vpop.f32.mrb[0].mxu0
      %v4457 = vadd.f32 %v4214, %v4456
      %v4458 = vpop.f32.mrb[0].mxu0
      %v4459 = vand.u32 %v3313, 4294901760
      %v4460 = vsub.f32 %v3313, %v4459
      %v4461 = vand.u32 %v4460, 4294901760
      %4462 = vmatprep.mubr.f32.mxu0 %v4461
      %v4463 = vand.u32 %v3312, 4294901760
      %v4464 = vsub.f32 %v3312, %v4463
      %v4465 = vand.u32 %v4464, 4294901760
      %4466 = vmatmul.mubr.f32.gmra.mrb[0].mxu0 %v4465
      %v4467 = vpop.f32.mrb[0].mxu0
      %v4468 = vadd.f32 %v4223, %v4467
      %v4469 = vpop.f32.mrb[0].mxu0
      %v4470 = vand.u32 %v3316, 4294901760
      %v4471 = vsub.f32 %v3316, %v4470
      %v4472 = vand.u32 %v4471, 4294901760
      %4473 = vmatprep.mubr.f32.mxu0 %v4472
      %v4474 = vand.u32 %v3315, 4294901760
      %v4475 = vsub.f32 %v3315, %v4474
      %v4476 = vand.u32 %v4475, 4294901760
      %4477 = vmatmul.mubr.f32.gmra.mrb[0].mxu0 %v4476
      %v4478 = vpop.f32.mrb[0].mxu0
      %v4479 = vadd.f32 %v4232, %v4478
      %v4480 = vpop.f32.mrb[0].mxu0
      %v4481 = vand.u32 %v3319, 4294901760
      %v4482 = vsub.f32 %v3319, %v4481
      %v4483 = vand.u32 %v4482, 4294901760
      %4484 = vmatprep.mubr.f32.mxu0 %v4483
      %v4485 = vand.u32 %v3318, 4294901760
      %v4486 = vsub.f32 %v3318, %v4485
      %v4487 = vand.u32 %v4486, 4294901760
      %4488 = vmatmul.mubr.f32.gmra.mrb[0].mxu0 %v4487
      %v4489 = vpop.f32.mrb[0].mxu0
      %v4490 = vadd.f32 %v4241, %v4489
      %v4491 = vpop.f32.mrb[0].mxu0
      %v4492 = vand.u32 %v3322, 4294901760
      %v4493 = vsub.f32 %v3322, %v4492
      %v4494 = vand.u32 %v4493, 4294901760
      %4495 = vmatprep.mubr.f32.mxu0 %v4494
      %v4496 = vand.u32 %v3321, 4294901760
      %v4497 = vsub.f32 %v3321, %v4496
      %v4498 = vand.u32 %v4497, 4294901760
      %4499 = vmatmul.mubr.f32.gmra.mrb[0].mxu0 %v4498
      %v4500 = vpop.f32.mrb[0].mxu0
      %v4501 = vadd.f32 %v4250, %v4500
      %v4502 = vpop.f32.mrb[0].mxu0
      %v4503 = vand.u32 %v3325, 4294901760
      %v4504 = vsub.f32 %v3325, %v4503
      %v4505 = vand.u32 %v4504, 4294901760
      %4506 = vmatprep.mubr.f32.mxu0 %v4505
      %v4507 = vand.u32 %v3324, 4294901760
      %v4508 = vsub.f32 %v3324, %v4507
      %v4509 = vand.u32 %v4508, 4294901760
      %4510 = vmatmul.mubr.f32.gmra.mrb[0].mxu0 %v4509
      %v4511 = vpop.f32.mrb[0].mxu0
      %v4512 = vadd.f32 %v4259, %v4511
      %v4513 = vpop.f32.mrb[0].mxu0
      %v4514 = vand.u32 %v3328, 4294901760
      %v4515 = vsub.f32 %v3328, %v4514
      %v4516 = vand.u32 %v4515, 4294901760
      %4517 = vmatprep.mubr.f32.mxu0 %v4516
      %v4518 = vand.u32 %v3327, 4294901760
      %v4519 = vsub.f32 %v3327, %v4518
      %v4520 = vand.u32 %v4519, 4294901760
      %4521 = vmatmul.mubr.f32.gmra.mrb[0].mxu0 %v4520
      %v4522 = vpop.f32.mrb[0].mxu0
      %v4523 = vadd.f32 %v4268, %v4522
      %v4524 = vpop.f32.mrb[0].mxu0
      %v4525 = vand.u32 %v3331, 4294901760
      %v4526 = vsub.f32 %v3331, %v4525
      %v4527 = vand.u32 %v4526, 4294901760
      %4528 = vmatprep.mubr.f32.mxu0 %v4527
      %v4529 = vand.u32 %v3330, 4294901760
      %v4530 = vsub.f32 %v3330, %v4529
      %v4531 = vand.u32 %v4530, 4294901760
      %4532 = vmatmul.mubr.f32.gmra.mrb[0].mxu0 %v4531
      %v4533 = vpop.f32.mrb[0].mxu0
      %v4534 = vadd.f32 %v4277, %v4533
      %v4535 = vpop.f32.mrb[0].mxu0
      %v4536 = vand.u32 %v3334, 4294901760
      %v4537 = vsub.f32 %v3334, %v4536
      %v4538 = vand.u32 %v4537, 4294901760
      %4539 = vmatprep.mubr.f32.mxu0 %v4538
      %v4540 = vand.u32 %v3333, 4294901760
      %v4541 = vsub.f32 %v3333, %v4540
      %v4542 = vand.u32 %v4541, 4294901760
      %4543 = vmatmul.mubr.f32.gmra.mrb[0].mxu0 %v4542
      %v4544 = vpop.f32.mrb[0].mxu0
      %v4545 = vadd.f32 %v4286, %v4544
      %v4546 = vpop.f32.mrb[0].mxu0
      %v4547 = vand.u32 %v3337, 4294901760
      %v4548 = vsub.f32 %v3337, %v4547
      %v4549 = vand.u32 %v4548, 4294901760
      %4550 = vmatprep.mubr.f32.mxu0 %v4549
      %v4551 = vand.u32 %v3336, 4294901760
      %v4552 = vsub.f32 %v3336, %v4551
      %v4553 = vand.u32 %v4552, 4294901760
      %4554 = vmatmul.mubr.f32.gmra.mrb[0].mxu0 %v4553
      %v4555 = vpop.f32.mrb[0].mxu0
      %v4556 = vadd.f32 %v4295, %v4555
      %v4557 = vpop.f32.mrb[0].mxu0
      %v4558 = vand.u32 %v3340, 4294901760
      %v4559 = vsub.f32 %v3340, %v4558
      %v4560 = vand.u32 %v4559, 4294901760
      %4561 = vmatprep.mubr.f32.mxu0 %v4560
      %v4562 = vand.u32 %v3339, 4294901760
      %v4563 = vsub.f32 %v3339, %v4562
      %v4564 = vand.u32 %v4563, 4294901760
      %4565 = vmatmul.mubr.f32.gmra.mrb[0].mxu0 %v4564
      %v4566 = vpop.f32.mrb[0].mxu0
      %v4567 = vadd.f32 %v4304, %v4566
      %v4568 = vpop.f32.mrb[0].mxu0
      %v4569 = vand.u32 %v3343, 4294901760
      %v4570 = vsub.f32 %v3343, %v4569
      %v4571 = vand.u32 %v4570, 4294901760
      %4572 = vmatprep.mubr.f32.mxu0 %v4571
      %v4573 = vand.u32 %v3342, 4294901760
      %v4574 = vsub.f32 %v3342, %v4573
      %v4575 = vand.u32 %v4574, 4294901760
      %4576 = vmatmul.mubr.f32.gmra.mrb[0].mxu0 %v4575
      %v4577 = vpop.f32.mrb[0].mxu0
      %v4578 = vadd.f32 %v4313, %v4577
      %v4579 = vpop.f32.mrb[0].mxu0
      %v4580 = vand.u32 %v3346, 4294901760
      %v4581 = vsub.f32 %v3346, %v4580
      %v4582 = vand.u32 %v4581, 4294901760
      %4583 = vmatprep.mubr.f32.mxu0 %v4582
      %v4584 = vand.u32 %v3345, 4294901760
      %v4585 = vsub.f32 %v3345, %v4584
      %v4586 = vand.u32 %v4585, 4294901760
      %4587 = vmatmul.mubr.f32.gmra.mrb[0].mxu0 %v4586
      %v4588 = vpop.f32.mrb[0].mxu0
      %v4589 = vadd.f32 %v4322, %v4588
      %v4590 = vpop.f32.mrb[0].mxu0
      %v4591 = vand.u32 %v3349, 4294901760
      %v4592 = vsub.f32 %v3349, %v4591
      %v4593 = vand.u32 %v4592, 4294901760
      %4594 = vmatprep.mubr.f32.mxu0 %v4593
      %v4595 = vand.u32 %v3348, 4294901760
      %v4596 = vsub.f32 %v3348, %v4595
      %v4597 = vand.u32 %v4596, 4294901760
      %4598 = vmatmul.mubr.f32.gmra.mrb[0].mxu0 %v4597
      %v4599 = vpop.f32.mrb[0].mxu0
      %v4600 = vadd.f32 %v4331, %v4599
      %v4601 = vpop.f32.mrb[0].mxu0
      %v4602 = vand.u32 %v3352, 4294901760
      %v4603 = vsub.f32 %v3352, %v4602
      %v4604 = vand.u32 %v4603, 4294901760
      %4605 = vmatprep.mubr.f32.mxu0 %v4604
      %v4606 = vand.u32 %v3351, 4294901760
      %v4607 = vsub.f32 %v3351, %v4606
      %v4608 = vand.u32 %v4607, 4294901760
      %4609 = vmatmul.mubr.f32.gmra.mrb[0].mxu0 %v4608
      %v4610 = vpop.f32.mrb[0].mxu0
      %v4611 = vadd.f32 %v4340, %v4610
      %v4612 = vpop.f32.mrb[0].mxu0
      %v4613 = vand.u32 %v3355, 4294901760
      %v4614 = vsub.f32 %v3355, %v4613
      %v4615 = vand.u32 %v4614, 4294901760
      %4616 = vmatprep.mubr.f32.mxu0 %v4615
      %v4617 = vand.u32 %v3354, 4294901760
      %v4618 = vsub.f32 %v3354, %v4617
      %v4619 = vand.u32 %v4618, 4294901760
      %4620 = vmatmul.mubr.f32.gmra.mrb[0].mxu0 %v4619
      %v4621 = vpop.f32.mrb[0].mxu0
      %v4622 = vadd.f32 %v4349, %v4621
      %v4623 = vpop.f32.mrb[0].mxu0
      %4624 = vdwg.mxu0
      %4625 = vmatprep.subr.mxu0 0.0
      %v4626 = vand.u32 %v3357, 4294901760
      %v4627 = vsub.f32 %v3357, %v4626
      %v4628 = vand.u32 %v4627, 4294901760
      %4629 = vmatpush1.msra.mxu0 %v4628
      %4630 = vmatprep.subr.mxu0 0.0
      %v4631 = vand.u32 %v3358, 4294901760
      %v4632 = vsub.f32 %v3358, %v4631
      %v4633 = vand.u32 %v4632, 4294901760
      %4634 = vmatpush1.msra.mxu0 %v4633
      %4635 = vmatprep.subr.mxu0 0.0
      %v4636 = vand.u32 %v3359, 4294901760
      %v4637 = vsub.f32 %v3359, %v4636
      %v4638 = vand.u32 %v4637, 4294901760
      %4639 = vmatpush1.msra.mxu0 %v4638
      %4640 = vmatprep.subr.mxu0 0.0
      %v4641 = vand.u32 %v3360, 4294901760
      %v4642 = vsub.f32 %v3360, %v4641
      %v4643 = vand.u32 %v4642, 4294901760
      %4644 = vmatpush1.msra.mxu0 %v4643
      %4645 = vmatprep.subr.mxu0 0.0
      %v4646 = vand.u32 %v3361, 4294901760
      %v4647 = vsub.f32 %v3361, %v4646
      %v4648 = vand.u32 %v4647, 4294901760
      %4649 = vmatpush1.msra.mxu0 %v4648
      %4650 = vmatprep.subr.mxu0 0.0
      %v4651 = vand.u32 %v3362, 4294901760
      %v4652 = vsub.f32 %v3362, %v4651
      %v4653 = vand.u32 %v4652, 4294901760
      %4654 = vmatpush1.msra.mxu0 %v4653
      %4655 = vmatprep.subr.mxu0 0.0
      %v4656 = vand.u32 %v3363, 4294901760
      %v4657 = vsub.f32 %v3363, %v4656
      %v4658 = vand.u32 %v4657, 4294901760
      %4659 = vmatpush1.msra.mxu0 %v4658
      %4660 = vmatprep.subr.mxu0 0.0
      %v4661 = vand.u32 %v3364, 4294901760
      %v4662 = vsub.f32 %v3364, %v4661
      %v4663 = vand.u32 %v4662, 4294901760
      %4664 = vmatpush1.msra.mxu0 %v4663
      %4665 = vmatprep.subr.mxu0 0.0
      %v4666 = vand.u32 %v3365, 4294901760
      %v4667 = vsub.f32 %v3365, %v4666
      %v4668 = vand.u32 %v4667, 4294901760
      %4669 = vmatpush1.msra.mxu0 %v4668
      %4670 = vmatprep.subr.mxu0 0.0
      %v4671 = vand.u32 %v3366, 4294901760
      %v4672 = vsub.f32 %v3366, %v4671
      %v4673 = vand.u32 %v4672, 4294901760
      %4674 = vmatpush1.msra.mxu0 %v4673
      %4675 = vmatprep.subr.mxu0 0.0
      %v4676 = vand.u32 %v3367, 4294901760
      %v4677 = vsub.f32 %v3367, %v4676
      %v4678 = vand.u32 %v4677, 4294901760
      %4679 = vmatpush1.msra.mxu0 %v4678
      %4680 = vmatprep.subr.mxu0 0.0
      %v4681 = vand.u32 %v3368, 4294901760
      %v4682 = vsub.f32 %v3368, %v4681
      %v4683 = vand.u32 %v4682, 4294901760
      %4684 = vmatpush1.msra.mxu0 %v4683
      %4685 = vmatprep.subr.mxu0 0.0
      %v4686 = vand.u32 %v3369, 4294901760
      %v4687 = vsub.f32 %v3369, %v4686
      %v4688 = vand.u32 %v4687, 4294901760
      %4689 = vmatpush1.msra.mxu0 %v4688
      %4690 = vmatprep.subr.mxu0 0.0
      %v4691 = vand.u32 %v3370, 4294901760
      %v4692 = vsub.f32 %v3370, %v4691
      %v4693 = vand.u32 %v4692, 4294901760
      %4694 = vmatpush1.msra.mxu0 %v4693
      %4695 = vmatprep.subr.mxu0 0.0
      %v4696 = vand.u32 %v3371, 4294901760
      %v4697 = vsub.f32 %v3371, %v4696
      %v4698 = vand.u32 %v4697, 4294901760
      %4699 = vmatpush1.msra.mxu0 %v4698
      %4700 = vmatprep.subr.mxu0 0.0
      %v4701 = vand.u32 %v3372, 4294901760
      %v4702 = vsub.f32 %v3372, %v4701
      %v4703 = vand.u32 %v4702, 4294901760
      %4704 = vmatpush1.msra.mxu0 %v4703
      %4705 = vmatprep.subr.mxu0 0.0
      %v4706 = vand.u32 %v3373, 4294901760
      %v4707 = vsub.f32 %v3373, %v4706
      %v4708 = vand.u32 %v4707, 4294901760
      %4709 = vmatpush1.msra.mxu0 %v4708
      %4710 = vmatprep.subr.mxu0 0.0
      %v4711 = vand.u32 %v3374, 4294901760
      %v4712 = vsub.f32 %v3374, %v4711
      %v4713 = vand.u32 %v4712, 4294901760
      %4714 = vmatpush1.msra.mxu0 %v4713
      %4715 = vmatprep.subr.mxu0 0.0
      %v4716 = vand.u32 %v3375, 4294901760
      %v4717 = vsub.f32 %v3375, %v4716
      %v4718 = vand.u32 %v4717, 4294901760
      %4719 = vmatpush1.msra.mxu0 %v4718
      %4720 = vmatprep.subr.mxu0 0.0
      %v4721 = vand.u32 %v3376, 4294901760
      %v4722 = vsub.f32 %v3376, %v4721
      %v4723 = vand.u32 %v4722, 4294901760
      %4724 = vmatpush1.msra.mxu0 %v4723
      %4725 = vmatprep.subr.mxu0 0.0
      %v4726 = vand.u32 %v3377, 4294901760
      %v4727 = vsub.f32 %v3377, %v4726
      %v4728 = vand.u32 %v4727, 4294901760
      %4729 = vmatpush1.msra.mxu0 %v4728
      %4730 = vmatprep.subr.mxu0 0.0
      %v4731 = vand.u32 %v3378, 4294901760
      %v4732 = vsub.f32 %v3378, %v4731
      %v4733 = vand.u32 %v4732, 4294901760
      %4734 = vmatpush1.msra.mxu0 %v4733
      %4735 = vmatprep.subr.mxu0 0.0
      %v4736 = vand.u32 %v3379, 4294901760
      %v4737 = vsub.f32 %v3379, %v4736
      %v4738 = vand.u32 %v4737, 4294901760
      %4739 = vmatpush1.msra.mxu0 %v4738
      %4740 = vmatprep.subr.mxu0 0.0
      %v4741 = vand.u32 %v3380, 4294901760
      %v4742 = vsub.f32 %v3380, %v4741
      %v4743 = vand.u32 %v4742, 4294901760
      %4744 = vmatpush1.msra.mxu0 %v4743
      %4745 = vmatprep.subr.mxu0 0.0
      %v4746 = vand.u32 %v3381, 4294901760
      %v4747 = vsub.f32 %v3381, %v4746
      %v4748 = vand.u32 %v4747, 4294901760
      %4749 = vmatpush1.msra.mxu0 %v4748
      %4750 = vmatprep.subr.mxu0 0.0
      %v4751 = vand.u32 %v3382, 4294901760
      %v4752 = vsub.f32 %v3382, %v4751
      %v4753 = vand.u32 %v4752, 4294901760
      %4754 = vmatpush1.msra.mxu0 %v4753
      %4755 = vmatprep.subr.mxu0 0.0
      %v4756 = vand.u32 %v3383, 4294901760
      %v4757 = vsub.f32 %v3383, %v4756
      %v4758 = vand.u32 %v4757, 4294901760
      %4759 = vmatpush1.msra.mxu0 %v4758
      %4760 = vmatprep.subr.mxu0 0.0
      %v4761 = vand.u32 %v3384, 4294901760
      %v4762 = vsub.f32 %v3384, %v4761
      %v4763 = vand.u32 %v4762, 4294901760
      %4764 = vmatpush1.msra.mxu0 %v4763
      %4765 = vmatprep.subr.mxu0 0.0
      %v4766 = vand.u32 %v3385, 4294901760
      %v4767 = vsub.f32 %v3385, %v4766
      %v4768 = vand.u32 %v4767, 4294901760
      %4769 = vmatpush1.msra.mxu0 %v4768
      %4770 = vmatprep.subr.mxu0 0.0
      %v4771 = vand.u32 %v3386, 4294901760
      %v4772 = vsub.f32 %v3386, %v4771
      %v4773 = vand.u32 %v4772, 4294901760
      %4774 = vmatpush1.msra.mxu0 %v4773
      %4775 = vmatprep.subr.mxu0 0.0
      %v4776 = vand.u32 %v3387, 4294901760
      %v4777 = vsub.f32 %v3387, %v4776
      %v4778 = vand.u32 %v4777, 4294901760
      %4779 = vmatpush1.msra.mxu0 %v4778
      %4780 = vmatprep.subr.mxu0 0.0
      %v4781 = vand.u32 %v3388, 4294901760
      %v4782 = vsub.f32 %v3388, %v4781
      %v4783 = vand.u32 %v4782, 4294901760
      %4784 = vmatpush1.msra.mxu0 %v4783
      %v4785 = vand.u32 %v3310, 4294901760
      %4786 = vmatprep.mubr.f32.mxu0 %v4785
      %v4787 = vand.u32 %v3309, 4294901760
      %4788 = vmatmul.mubr.f32.gmra.mrb[0].mxu0 %v4787
      %v4789 = vpop.f32.mrb[0].mxu0
      %v4790 = vadd.f32 %v4457, %v4789
      %v4791 = vpop.f32.mrb[0].mxu0
      %v4792 = vand.u32 %v3313, 4294901760
      %4793 = vmatprep.mubr.f32.mxu0 %v4792
      %v4794 = vand.u32 %v3312, 4294901760
      %4795 = vmatmul.mubr.f32.gmra.mrb[0].mxu0 %v4794
      %v4796 = vpop.f32.mrb[0].mxu0
      %v4797 = vadd.f32 %v4468, %v4796
      %v4798 = vpop.f32.mrb[0].mxu0
      %v4799 = vand.u32 %v3316, 4294901760
      %4800 = vmatprep.mubr.f32.mxu0 %v4799
      %v4801 = vand.u32 %v3315, 4294901760
      %4802 = vmatmul.mubr.f32.gmra.mrb[0].mxu0 %v4801
      %v4803 = vpop.f32.mrb[0].mxu0
      %v4804 = vadd.f32 %v4479, %v4803
      %v4805 = vpop.f32.mrb[0].mxu0
      %v4806 = vand.u32 %v3319, 4294901760
      %4807 = vmatprep.mubr.f32.mxu0 %v4806
      %v4808 = vand.u32 %v3318, 4294901760
      %4809 = vmatmul.mubr.f32.gmra.mrb[0].mxu0 %v4808
      %v4810 = vpop.f32.mrb[0].mxu0
      %v4811 = vadd.f32 %v4490, %v4810
      %v4812 = vpop.f32.mrb[0].mxu0
      %v4813 = vand.u32 %v3322, 4294901760
      %4814 = vmatprep.mubr.f32.mxu0 %v4813
      %v4815 = vand.u32 %v3321, 4294901760
      %4816 = vmatmul.mubr.f32.gmra.mrb[0].mxu0 %v4815
      %v4817 = vpop.f32.mrb[0].mxu0
      %v4818 = vadd.f32 %v4501, %v4817
      %v4819 = vpop.f32.mrb[0].mxu0
      %v4820 = vand.u32 %v3325, 4294901760
      %4821 = vmatprep.mubr.f32.mxu0 %v4820
      %v4822 = vand.u32 %v3324, 4294901760
      %4823 = vmatmul.mubr.f32.gmra.mrb[0].mxu0 %v4822
      %v4824 = vpop.f32.mrb[0].mxu0
      %v4825 = vadd.f32 %v4512, %v4824
      %v4826 = vpop.f32.mrb[0].mxu0
      %v4827 = vand.u32 %v3328, 4294901760
      %4828 = vmatprep.mubr.f32.mxu0 %v4827
      %v4829 = vand.u32 %v3327, 4294901760
      %4830 = vmatmul.mubr.f32.gmra.mrb[0].mxu0 %v4829
      %v4831 = vpop.f32.mrb[0].mxu0
      %v4832 = vadd.f32 %v4523, %v4831
      %v4833 = vpop.f32.mrb[0].mxu0
      %v4834 = vand.u32 %v3331, 4294901760
      %4835 = vmatprep.mubr.f32.mxu0 %v4834
      %v4836 = vand.u32 %v3330, 4294901760
      %4837 = vmatmul.mubr.f32.gmra.mrb[0].mxu0 %v4836
      %v4838 = vpop.f32.mrb[0].mxu0
      %v4839 = vadd.f32 %v4534, %v4838
      %v4840 = vpop.f32.mrb[0].mxu0
      %v4841 = vand.u32 %v3334, 4294901760
      %4842 = vmatprep.mubr.f32.mxu0 %v4841
      %v4843 = vand.u32 %v3333, 4294901760
      %4844 = vmatmul.mubr.f32.gmra.mrb[0].mxu0 %v4843
      %v4845 = vpop.f32.mrb[0].mxu0
      %v4846 = vadd.f32 %v4545, %v4845
      %v4847 = vpop.f32.mrb[0].mxu0
      %v4848 = vand.u32 %v3337, 4294901760
      %4849 = vmatprep.mubr.f32.mxu0 %v4848
      %v4850 = vand.u32 %v3336, 4294901760
      %4851 = vmatmul.mubr.f32.gmra.mrb[0].mxu0 %v4850
      %v4852 = vpop.f32.mrb[0].mxu0
      %v4853 = vadd.f32 %v4556, %v4852
      %v4854 = vpop.f32.mrb[0].mxu0
      %v4855 = vand.u32 %v3340, 4294901760
      %4856 = vmatprep.mubr.f32.mxu0 %v4855
      %v4857 = vand.u32 %v3339, 4294901760
      %4858 = vmatmul.mubr.f32.gmra.mrb[0].mxu0 %v4857
      %v4859 = vpop.f32.mrb[0].mxu0
      %v4860 = vadd.f32 %v4567, %v4859
      %v4861 = vpop.f32.mrb[0].mxu0
      %v4862 = vand.u32 %v3343, 4294901760
      %4863 = vmatprep.mubr.f32.mxu0 %v4862
      %v4864 = vand.u32 %v3342, 4294901760
      %4865 = vmatmul.mubr.f32.gmra.mrb[0].mxu0 %v4864
      %v4866 = vpop.f32.mrb[0].mxu0
      %v4867 = vadd.f32 %v4578, %v4866
      %v4868 = vpop.f32.mrb[0].mxu0
      %v4869 = vand.u32 %v3346, 4294901760
      %4870 = vmatprep.mubr.f32.mxu0 %v4869
      %v4871 = vand.u32 %v3345, 4294901760
      %4872 = vmatmul.mubr.f32.gmra.mrb[0].mxu0 %v4871
      %v4873 = vpop.f32.mrb[0].mxu0
      %v4874 = vadd.f32 %v4589, %v4873
      %v4875 = vpop.f32.mrb[0].mxu0
      %v4876 = vand.u32 %v3349, 4294901760
      %4877 = vmatprep.mubr.f32.mxu0 %v4876
      %v4878 = vand.u32 %v3348, 4294901760
      %4879 = vmatmul.mubr.f32.gmra.mrb[0].mxu0 %v4878
      %v4880 = vpop.f32.mrb[0].mxu0
      %v4881 = vadd.f32 %v4600, %v4880
      %v4882 = vpop.f32.mrb[0].mxu0
      %v4883 = vand.u32 %v3352, 4294901760
      %4884 = vmatprep.mubr.f32.mxu0 %v4883
      %v4885 = vand.u32 %v3351, 4294901760
      %4886 = vmatmul.mubr.f32.gmra.mrb[0].mxu0 %v4885
      %v4887 = vpop.f32.mrb[0].mxu0
      %v4888 = vadd.f32 %v4611, %v4887
      %v4889 = vpop.f32.mrb[0].mxu0
      %v4890 = vand.u32 %v3355, 4294901760
      %4891 = vmatprep.mubr.f32.mxu0 %v4890
      %v4892 = vand.u32 %v3354, 4294901760
      %4893 = vmatmul.mubr.f32.gmra.mrb[0].mxu0 %v4892
      %v4894 = vpop.f32.mrb[0].mxu0
      %v4895 = vadd.f32 %v4622, %v4894
      %v4896 = vpop.f32.mrb[0].mxu0
      %4897 = vdwg.mxu0
      %4898 = vmatprep.subr.mxu0 0.0
      %v4899 = vand.u32 %v3357, 4294901760
      %4900 = vmatpush1.msra.mxu0 %v4899
      %4901 = vmatprep.subr.mxu0 0.0
      %v4902 = vand.u32 %v3358, 4294901760
      %4903 = vmatpush1.msra.mxu0 %v4902
      %4904 = vmatprep.subr.mxu0 0.0
      %v4905 = vand.u32 %v3359, 4294901760
      %4906 = vmatpush1.msra.mxu0 %v4905
      %4907 = vmatprep.subr.mxu0 0.0
      %v4908 = vand.u32 %v3360, 4294901760
      %4909 = vmatpush1.msra.mxu0 %v4908
      %4910 = vmatprep.subr.mxu0 0.0
      %v4911 = vand.u32 %v3361, 4294901760
      %4912 = vmatpush1.msra.mxu0 %v4911
      %4913 = vmatprep.subr.mxu0 0.0
      %v4914 = vand.u32 %v3362, 4294901760
      %4915 = vmatpush1.msra.mxu0 %v4914
      %4916 = vmatprep.subr.mxu0 0.0
      %v4917 = vand.u32 %v3363, 4294901760
      %4918 = vmatpush1.msra.mxu0 %v4917
      %4919 = vmatprep.subr.mxu0 0.0
      %v4920 = vand.u32 %v3364, 4294901760
      %4921 = vmatpush1.msra.mxu0 %v4920
      %4922 = vmatprep.subr.mxu0 0.0
      %v4923 = vand.u32 %v3365, 4294901760
      %4924 = vmatpush1.msra.mxu0 %v4923
      %4925 = vmatprep.subr.mxu0 0.0
      %v4926 = vand.u32 %v3366, 4294901760
      %4927 = vmatpush1.msra.mxu0 %v4926
      %4928 = vmatprep.subr.mxu0 0.0
      %v4929 = vand.u32 %v3367, 4294901760
      %4930 = vmatpush1.msra.mxu0 %v4929
      %4931 = vmatprep.subr.mxu0 0.0
      %v4932 = vand.u32 %v3368, 4294901760
      %4933 = vmatpush1.msra.mxu0 %v4932
      %4934 = vmatprep.subr.mxu0 0.0
      %v4935 = vand.u32 %v3369, 4294901760
      %4936 = vmatpush1.msra.mxu0 %v4935
      %4937 = vmatprep.subr.mxu0 0.0
      %v4938 = vand.u32 %v3370, 4294901760
      %4939 = vmatpush1.msra.mxu0 %v4938
      %4940 = vmatprep.subr.mxu0 0.0
      %v4941 = vand.u32 %v3371, 4294901760
      %4942 = vmatpush1.msra.mxu0 %v4941
      %4943 = vmatprep.subr.mxu0 0.0
      %v4944 = vand.u32 %v3372, 4294901760
      %4945 = vmatpush1.msra.mxu0 %v4944
      %4946 = vmatprep.subr.mxu0 0.0
      %v4947 = vand.u32 %v3373, 4294901760
      %4948 = vmatpush1.msra.mxu0 %v4947
      %4949 = vmatprep.subr.mxu0 0.0
      %v4950 = vand.u32 %v3374, 4294901760
      %4951 = vmatpush1.msra.mxu0 %v4950
      %4952 = vmatprep.subr.mxu0 0.0
      %v4953 = vand.u32 %v3375, 4294901760
      %4954 = vmatpush1.msra.mxu0 %v4953
      %4955 = vmatprep.subr.mxu0 0.0
      %v4956 = vand.u32 %v3376, 4294901760
      %4957 = vmatpush1.msra.mxu0 %v4956
      %4958 = vmatprep.subr.mxu0 0.0
      %v4959 = vand.u32 %v3377, 4294901760
      %4960 = vmatpush1.msra.mxu0 %v4959
      %4961 = vmatprep.subr.mxu0 0.0
      %v4962 = vand.u32 %v3378, 4294901760
      %4963 = vmatpush1.msra.mxu0 %v4962
      %4964 = vmatprep.subr.mxu0 0.0
      %v4965 = vand.u32 %v3379, 4294901760
      %4966 = vmatpush1.msra.mxu0 %v4965
      %4967 = vmatprep.subr.mxu0 0.0
      %v4968 = vand.u32 %v3380, 4294901760
      %4969 = vmatpush1.msra.mxu0 %v4968
      %4970 = vmatprep.subr.mxu0 0.0
      %v4971 = vand.u32 %v3381, 4294901760
      %4972 = vmatpush1.msra.mxu0 %v4971
      %4973 = vmatprep.subr.mxu0 0.0
      %v4974 = vand.u32 %v3382, 4294901760
      %4975 = vmatpush1.msra.mxu0 %v4974
      %4976 = vmatprep.subr.mxu0 0.0
      %v4977 = vand.u32 %v3383, 4294901760
      %4978 = vmatpush1.msra.mxu0 %v4977
      %4979 = vmatprep.subr.mxu0 0.0
      %v4980 = vand.u32 %v3384, 4294901760
      %4981 = vmatpush1.msra.mxu0 %v4980
      %4982 = vmatprep.subr.mxu0 0.0
      %v4983 = vand.u32 %v3385, 4294901760
      %4984 = vmatpush1.msra.mxu0 %v4983
      %4985 = vmatprep.subr.mxu0 0.0
      %v4986 = vand.u32 %v3386, 4294901760
      %4987 = vmatpush1.msra.mxu0 %v4986
      %4988 = vmatprep.subr.mxu0 0.0
      %v4989 = vand.u32 %v3387, 4294901760
      %4990 = vmatpush1.msra.mxu0 %v4989
      %4991 = vmatprep.subr.mxu0 0.0
      %v4992 = vand.u32 %v3388, 4294901760
      %4993 = vmatpush1.msra.mxu0 %v4992
      %v4994 = vand.u32 %v3310, 4294901760
      %4995 = vmatprep.mubr.f32.mxu0 %v4994
      %v4996 = vand.u32 %v3309, 4294901760
      %4997 = vmatmul.mubr.f32.gmra.mrb[0].mxu0 %v4996
      %v4998 = vpop.f32.mrb[0].mxu0
      %v4999 = vadd.f32 %v4790, %v4998
      %v5000 = vpop.f32.mrb[0].mxu0
      %v5001 = vand.u32 %v3313, 4294901760
      %5002 = vmatprep.mubr.f32.mxu0 %v5001
      %v5003 = vand.u32 %v3312, 4294901760
      %5004 = vmatmul.mubr.f32.gmra.mrb[0].mxu0 %v5003
      %v5005 = vpop.f32.mrb[0].mxu0
      %v5006 = vadd.f32 %v4797, %v5005
      %v5007 = vpop.f32.mrb[0].mxu0
      %v5008 = vand.u32 %v3316, 4294901760
      %5009 = vmatprep.mubr.f32.mxu0 %v5008
      %v5010 = vand.u32 %v3315, 4294901760
      %5011 = vmatmul.mubr.f32.gmra.mrb[0].mxu0 %v5010
      %v5012 = vpop.f32.mrb[0].mxu0
      %v5013 = vadd.f32 %v4804, %v5012
      %v5014 = vpop.f32.mrb[0].mxu0
      %v5015 = vand.u32 %v3319, 4294901760
      %5016 = vmatprep.mubr.f32.mxu0 %v5015
      %v5017 = vand.u32 %v3318, 4294901760
      %5018 = vmatmul.mubr.f32.gmra.mrb[0].mxu0 %v5017
      %v5019 = vpop.f32.mrb[0].mxu0
      %v5020 = vadd.f32 %v4811, %v5019
      %v5021 = vpop.f32.mrb[0].mxu0
      %v5022 = vand.u32 %v3322, 4294901760
      %5023 = vmatprep.mubr.f32.mxu0 %v5022
      %v5024 = vand.u32 %v3321, 4294901760
      %5025 = vmatmul.mubr.f32.gmra.mrb[0].mxu0 %v5024
      %v5026 = vpop.f32.mrb[0].mxu0
      %v5027 = vadd.f32 %v4818, %v5026
      %v5028 = vpop.f32.mrb[0].mxu0
      %v5029 = vand.u32 %v3325, 4294901760
      %5030 = vmatprep.mubr.f32.mxu0 %v5029
      %v5031 = vand.u32 %v3324, 4294901760
      %5032 = vmatmul.mubr.f32.gmra.mrb[0].mxu0 %v5031
      %v5033 = vpop.f32.mrb[0].mxu0
      %v5034 = vadd.f32 %v4825, %v5033
      %v5035 = vpop.f32.mrb[0].mxu0
      %v5036 = vand.u32 %v3328, 4294901760
      %5037 = vmatprep.mubr.f32.mxu0 %v5036
      %v5038 = vand.u32 %v3327, 4294901760
      %5039 = vmatmul.mubr.f32.gmra.mrb[0].mxu0 %v5038
      %v5040 = vpop.f32.mrb[0].mxu0
      %v5041 = vadd.f32 %v4832, %v5040
      %v5042 = vpop.f32.mrb[0].mxu0
      %v5043 = vand.u32 %v3331, 4294901760
      %5044 = vmatprep.mubr.f32.mxu0 %v5043
      %v5045 = vand.u32 %v3330, 4294901760
      %5046 = vmatmul.mubr.f32.gmra.mrb[0].mxu0 %v5045
      %v5047 = vpop.f32.mrb[0].mxu0
      %v5048 = vadd.f32 %v4839, %v5047
      %v5049 = vpop.f32.mrb[0].mxu0
      %v5050 = vand.u32 %v3334, 4294901760
      %5051 = vmatprep.mubr.f32.mxu0 %v5050
      %v5052 = vand.u32 %v3333, 4294901760
      %5053 = vmatmul.mubr.f32.gmra.mrb[0].mxu0 %v5052
      %v5054 = vpop.f32.mrb[0].mxu0
      %v5055 = vadd.f32 %v4846, %v5054
      %v5056 = vpop.f32.mrb[0].mxu0
      %v5057 = vand.u32 %v3337, 4294901760
      %5058 = vmatprep.mubr.f32.mxu0 %v5057
      %v5059 = vand.u32 %v3336, 4294901760
      %5060 = vmatmul.mubr.f32.gmra.mrb[0].mxu0 %v5059
      %v5061 = vpop.f32.mrb[0].mxu0
      %v5062 = vadd.f32 %v4853, %v5061
      %v5063 = vpop.f32.mrb[0].mxu0
      %v5064 = vand.u32 %v3340, 4294901760
      %5065 = vmatprep.mubr.f32.mxu0 %v5064
      %v5066 = vand.u32 %v3339, 4294901760
      %5067 = vmatmul.mubr.f32.gmra.mrb[0].mxu0 %v5066
      %v5068 = vpop.f32.mrb[0].mxu0
      %v5069 = vadd.f32 %v4860, %v5068
      %v5070 = vpop.f32.mrb[0].mxu0
      %v5071 = vand.u32 %v3343, 4294901760
      %5072 = vmatprep.mubr.f32.mxu0 %v5071
      %v5073 = vand.u32 %v3342, 4294901760
      %5074 = vmatmul.mubr.f32.gmra.mrb[0].mxu0 %v5073
      %v5075 = vpop.f32.mrb[0].mxu0
      %v5076 = vadd.f32 %v4867, %v5075
      %v5077 = vpop.f32.mrb[0].mxu0
      %v5078 = vand.u32 %v3346, 4294901760
      %5079 = vmatprep.mubr.f32.mxu0 %v5078
      %v5080 = vand.u32 %v3345, 4294901760
      %5081 = vmatmul.mubr.f32.gmra.mrb[0].mxu0 %v5080
      %v5082 = vpop.f32.mrb[0].mxu0
      %v5083 = vadd.f32 %v4874, %v5082
      %v5084 = vpop.f32.mrb[0].mxu0
      %v5085 = vand.u32 %v3349, 4294901760
      %5086 = vmatprep.mubr.f32.mxu0 %v5085
      %v5087 = vand.u32 %v3348, 4294901760
      %5088 = vmatmul.mubr.f32.gmra.mrb[0].mxu0 %v5087
      %v5089 = vpop.f32.mrb[0].mxu0
      %v5090 = vadd.f32 %v4881, %v5089
      %v5091 = vpop.f32.mrb[0].mxu0
      %v5092 = vand.u32 %v3352, 4294901760
      %5093 = vmatprep.mubr.f32.mxu0 %v5092
      %v5094 = vand.u32 %v3351, 4294901760
      %5095 = vmatmul.mubr.f32.gmra.mrb[0].mxu0 %v5094
      %v5096 = vpop.f32.mrb[0].mxu0
      %v5097 = vadd.f32 %v4888, %v5096
      %v5098 = vpop.f32.mrb[0].mxu0
      %v5099 = vand.u32 %v3355, 4294901760
      %5100 = vmatprep.mubr.f32.mxu0 %v5099
      %v5101 = vand.u32 %v3354, 4294901760
      %5102 = vmatmul.mubr.f32.gmra.mrb[0].mxu0 %v5101
      %v5103 = vpop.f32.mrb[0].mxu0
      %v5104 = vadd.f32 %v4895, %v5103
      %v5105 = vpop.f32.mrb[0].mxu0
      %5106 = vdwg.mxu0
      %5107 = vmatprep.subr.mxu0 0.0
      %v5108 = vand.u32 %v3389, 4294901760
      %5109 = vmatpush1.msra.mxu0 %v5108
      %5110 = vmatprep.subr.mxu0 0.0
      %v5111 = vand.u32 %v3390, 4294901760
      %5112 = vmatpush1.msra.mxu0 %v5111
      %5113 = vmatprep.subr.mxu0 0.0
      %v5114 = vand.u32 %v3391, 4294901760
      %5115 = vmatpush1.msra.mxu0 %v5114
      %5116 = vmatprep.subr.mxu0 0.0
      %v5117 = vand.u32 %v3392, 4294901760
      %5118 = vmatpush1.msra.mxu0 %v5117
      %5119 = vmatprep.subr.mxu0 0.0
      %v5120 = vand.u32 %v3393, 4294901760
      %5121 = vmatpush1.msra.mxu0 %v5120
      %5122 = vmatprep.subr.mxu0 0.0
      %v5123 = vand.u32 %v3394, 4294901760
      %5124 = vmatpush1.msra.mxu0 %v5123
      %5125 = vmatprep.subr.mxu0 0.0
      %v5126 = vand.u32 %v3395, 4294901760
      %5127 = vmatpush1.msra.mxu0 %v5126
      %5128 = vmatprep.subr.mxu0 0.0
      %v5129 = vand.u32 %v3396, 4294901760
      %5130 = vmatpush1.msra.mxu0 %v5129
      %5131 = vmatprep.subr.mxu0 0.0
      %v5132 = vand.u32 %v3397, 4294901760
      %5133 = vmatpush1.msra.mxu0 %v5132
      %5134 = vmatprep.subr.mxu0 0.0
      %v5135 = vand.u32 %v3398, 4294901760
      %5136 = vmatpush1.msra.mxu0 %v5135
      %5137 = vmatprep.subr.mxu0 0.0
      %v5138 = vand.u32 %v3399, 4294901760
      %5139 = vmatpush1.msra.mxu0 %v5138
      %5140 = vmatprep.subr.mxu0 0.0
      %v5141 = vand.u32 %v3400, 4294901760
      %5142 = vmatpush1.msra.mxu0 %v5141
      %5143 = vmatprep.subr.mxu0 0.0
      %v5144 = vand.u32 %v3401, 4294901760
      %5145 = vmatpush1.msra.mxu0 %v5144
      %5146 = vmatprep.subr.mxu0 0.0
      %v5147 = vand.u32 %v3402, 4294901760
      %5148 = vmatpush1.msra.mxu0 %v5147
      %5149 = vmatprep.subr.mxu0 0.0
      %v5150 = vand.u32 %v3403, 4294901760
      %5151 = vmatpush1.msra.mxu0 %v5150
      %5152 = vmatprep.subr.mxu0 0.0
      %v5153 = vand.u32 %v3404, 4294901760
      %5154 = vmatpush1.msra.mxu0 %v5153
      %5155 = vmatprep.subr.mxu0 0.0
      %5156 = vmatpush1.msra.mxu0 0.0
      %5157 = vmatprep.subr.mxu0 0.0
      %5158 = vmatpush1.msra.mxu0 0.0
      %5159 = vmatprep.subr.mxu0 0.0
      %5160 = vmatpush1.msra.mxu0 0.0
      %5161 = vmatprep.subr.mxu0 0.0
      %5162 = vmatpush1.msra.mxu0 0.0
      %5163 = vmatprep.subr.mxu0 0.0
      %5164 = vmatpush1.msra.mxu0 0.0
      %5165 = vmatprep.subr.mxu0 0.0
      %5166 = vmatpush1.msra.mxu0 0.0
      %5167 = vmatprep.subr.mxu0 0.0
      %5168 = vmatpush1.msra.mxu0 0.0
      %5169 = vmatprep.subr.mxu0 0.0
      %5170 = vmatpush1.msra.mxu0 0.0
      %5171 = vmatprep.subr.mxu0 0.0
      %5172 = vmatpush1.msra.mxu0 0.0
      %5173 = vmatprep.subr.mxu0 0.0
      %5174 = vmatpush1.msra.mxu0 0.0
      %5175 = vmatprep.subr.mxu0 0.0
      %5176 = vmatpush1.msra.mxu0 0.0
      %5177 = vmatprep.subr.mxu0 0.0
      %5178 = vmatpush1.msra.mxu0 0.0
      %5179 = vmatprep.subr.mxu0 0.0
      %5180 = vmatpush1.msra.mxu0 0.0
      %5181 = vmatprep.subr.mxu0 0.0
      %5182 = vmatpush1.msra.mxu0 0.0
      %5183 = vmatprep.subr.mxu0 0.0
      %5184 = vmatpush1.msra.mxu0 0.0
      %5185 = vmatprep.subr.mxu0 0.0
      %5186 = vmatpush1.msra.mxu0 0.0
      %5187 = vmatprep.mubr.f32.mxu0 0.0
      %v5188 = vand.u32 %v3311, 4294901760
      %v5189 = vsub.f32 %v3311, %v5188
      %v5190 = vand.u32 %v5189, 4294901760
      %v5191 = vsub.f32 %v5189, %v5190
      %v5192 = vand.u32 %v5191, 4294901760
      %5193 = vmatmul.mubr.f32.gmra.mrb[0].mxu0 %v5192
      %v5194 = vpop.f32.mrb[0].mxu0
      %v5195 = vadd.f32 %v4999, %v5194
      %v5196 = vpop.f32.mrb[0].mxu0
      %5197 = vmatprep.mubr.f32.mxu0 0.0
      %v5198 = vand.u32 %v3314, 4294901760
      %v5199 = vsub.f32 %v3314, %v5198
      %v5200 = vand.u32 %v5199, 4294901760
      %v5201 = vsub.f32 %v5199, %v5200
      %v5202 = vand.u32 %v5201, 4294901760
      %5203 = vmatmul.mubr.f32.gmra.mrb[0].mxu0 %v5202
      %v5204 = vpop.f32.mrb[0].mxu0
      %v5205 = vadd.f32 %v5006, %v5204
      %v5206 = vpop.f32.mrb[0].mxu0
      %5207 = vmatprep.mubr.f32.mxu0 0.0
      %v5208 = vand.u32 %v3317, 4294901760
      %v5209 = vsub.f32 %v3317, %v5208
      %v5210 = vand.u32 %v5209, 4294901760
      %v5211 = vsub.f32 %v5209, %v5210
      %v5212 = vand.u32 %v5211, 4294901760
      %5213 = vmatmul.mubr.f32.gmra.mrb[0].mxu0 %v5212
      %v5214 = vpop.f32.mrb[0].mxu0
      %v5215 = vadd.f32 %v5013, %v5214
      %v5216 = vpop.f32.mrb[0].mxu0
      %5217 = vmatprep.mubr.f32.mxu0 0.0
      %v5218 = vand.u32 %v3320, 4294901760
      %v5219 = vsub.f32 %v3320, %v5218
      %v5220 = vand.u32 %v5219, 4294901760
      %v5221 = vsub.f32 %v5219, %v5220
      %v5222 = vand.u32 %v5221, 4294901760
      %5223 = vmatmul.mubr.f32.gmra.mrb[0].mxu0 %v5222
      %v5224 = vpop.f32.mrb[0].mxu0
      %v5225 = vadd.f32 %v5020, %v5224
      %v5226 = vpop.f32.mrb[0].mxu0
      %5227 = vmatprep.mubr.f32.mxu0 0.0
      %v5228 = vand.u32 %v3323, 4294901760
      %v5229 = vsub.f32 %v3323, %v5228
      %v5230 = vand.u32 %v5229, 4294901760
      %v5231 = vsub.f32 %v5229, %v5230
      %v5232 = vand.u32 %v5231, 4294901760
      %5233 = vmatmul.mubr.f32.gmra.mrb[0].mxu0 %v5232
      %v5234 = vpop.f32.mrb[0].mxu0
      %v5235 = vadd.f32 %v5027, %v5234
      %v5236 = vpop.f32.mrb[0].mxu0
      %5237 = vmatprep.mubr.f32.mxu0 0.0
      %v5238 = vand.u32 %v3326, 4294901760
      %v5239 = vsub.f32 %v3326, %v5238
      %v5240 = vand.u32 %v5239, 4294901760
      %v5241 = vsub.f32 %v5239, %v5240
      %v5242 = vand.u32 %v5241, 4294901760
      %5243 = vmatmul.mubr.f32.gmra.mrb[0].mxu0 %v5242
      %v5244 = vpop.f32.mrb[0].mxu0
      %v5245 = vadd.f32 %v5034, %v5244
      %v5246 = vpop.f32.mrb[0].mxu0
      %5247 = vmatprep.mubr.f32.mxu0 0.0
      %v5248 = vand.u32 %v3329, 4294901760
      %v5249 = vsub.f32 %v3329, %v5248
      %v5250 = vand.u32 %v5249, 4294901760
      %v5251 = vsub.f32 %v5249, %v5250
      %v5252 = vand.u32 %v5251, 4294901760
      %5253 = vmatmul.mubr.f32.gmra.mrb[0].mxu0 %v5252
      %v5254 = vpop.f32.mrb[0].mxu0
      %v5255 = vadd.f32 %v5041, %v5254
      %v5256 = vpop.f32.mrb[0].mxu0
      %5257 = vmatprep.mubr.f32.mxu0 0.0
      %v5258 = vand.u32 %v3332, 4294901760
      %v5259 = vsub.f32 %v3332, %v5258
      %v5260 = vand.u32 %v5259, 4294901760
      %v5261 = vsub.f32 %v5259, %v5260
      %v5262 = vand.u32 %v5261, 4294901760
      %5263 = vmatmul.mubr.f32.gmra.mrb[0].mxu0 %v5262
      %v5264 = vpop.f32.mrb[0].mxu0
      %v5265 = vadd.f32 %v5048, %v5264
      %v5266 = vpop.f32.mrb[0].mxu0
      %5267 = vmatprep.mubr.f32.mxu0 0.0
      %v5268 = vand.u32 %v3335, 4294901760
      %v5269 = vsub.f32 %v3335, %v5268
      %v5270 = vand.u32 %v5269, 4294901760
      %v5271 = vsub.f32 %v5269, %v5270
      %v5272 = vand.u32 %v5271, 4294901760
      %5273 = vmatmul.mubr.f32.gmra.mrb[0].mxu0 %v5272
      %v5274 = vpop.f32.mrb[0].mxu0
      %v5275 = vadd.f32 %v5055, %v5274
      %v5276 = vpop.f32.mrb[0].mxu0
      %5277 = vmatprep.mubr.f32.mxu0 0.0
      %v5278 = vand.u32 %v3338, 4294901760
      %v5279 = vsub.f32 %v3338, %v5278
      %v5280 = vand.u32 %v5279, 4294901760
      %v5281 = vsub.f32 %v5279, %v5280
      %v5282 = vand.u32 %v5281, 4294901760
      %5283 = vmatmul.mubr.f32.gmra.mrb[0].mxu0 %v5282
      %v5284 = vpop.f32.mrb[0].mxu0
      %v5285 = vadd.f32 %v5062, %v5284
      %v5286 = vpop.f32.mrb[0].mxu0
      %5287 = vmatprep.mubr.f32.mxu0 0.0
      %v5288 = vand.u32 %v3341, 4294901760
      %v5289 = vsub.f32 %v3341, %v5288
      %v5290 = vand.u32 %v5289, 4294901760
      %v5291 = vsub.f32 %v5289, %v5290
      %v5292 = vand.u32 %v5291, 4294901760
      %5293 = vmatmul.mubr.f32.gmra.mrb[0].mxu0 %v5292
      %v5294 = vpop.f32.mrb[0].mxu0
      %v5295 = vadd.f32 %v5069, %v5294
      %v5296 = vpop.f32.mrb[0].mxu0
      %5297 = vmatprep.mubr.f32.mxu0 0.0
      %v5298 = vand.u32 %v3344, 4294901760
      %v5299 = vsub.f32 %v3344, %v5298
      %v5300 = vand.u32 %v5299, 4294901760
      %v5301 = vsub.f32 %v5299, %v5300
      %v5302 = vand.u32 %v5301, 4294901760
      %5303 = vmatmul.mubr.f32.gmra.mrb[0].mxu0 %v5302
      %v5304 = vpop.f32.mrb[0].mxu0
      %v5305 = vadd.f32 %v5076, %v5304
      %v5306 = vpop.f32.mrb[0].mxu0
      %5307 = vmatprep.mubr.f32.mxu0 0.0
      %v5308 = vand.u32 %v3347, 4294901760
      %v5309 = vsub.f32 %v3347, %v5308
      %v5310 = vand.u32 %v5309, 4294901760
      %v5311 = vsub.f32 %v5309, %v5310
      %v5312 = vand.u32 %v5311, 4294901760
      %5313 = vmatmul.mubr.f32.gmra.mrb[0].mxu0 %v5312
      %v5314 = vpop.f32.mrb[0].mxu0
      %v5315 = vadd.f32 %v5083, %v5314
      %v5316 = vpop.f32.mrb[0].mxu0
      %5317 = vmatprep.mubr.f32.mxu0 0.0
      %v5318 = vand.u32 %v3350, 4294901760
      %v5319 = vsub.f32 %v3350, %v5318
      %v5320 = vand.u32 %v5319, 4294901760
      %v5321 = vsub.f32 %v5319, %v5320
      %v5322 = vand.u32 %v5321, 4294901760
      %5323 = vmatmul.mubr.f32.gmra.mrb[0].mxu0 %v5322
      %v5324 = vpop.f32.mrb[0].mxu0
      %v5325 = vadd.f32 %v5090, %v5324
      %v5326 = vpop.f32.mrb[0].mxu0
      %5327 = vmatprep.mubr.f32.mxu0 0.0
      %v5328 = vand.u32 %v3353, 4294901760
      %v5329 = vsub.f32 %v3353, %v5328
      %v5330 = vand.u32 %v5329, 4294901760
      %v5331 = vsub.f32 %v5329, %v5330
      %v5332 = vand.u32 %v5331, 4294901760
      %5333 = vmatmul.mubr.f32.gmra.mrb[0].mxu0 %v5332
      %v5334 = vpop.f32.mrb[0].mxu0
      %v5335 = vadd.f32 %v5097, %v5334
      %v5336 = vpop.f32.mrb[0].mxu0
      %5337 = vmatprep.mubr.f32.mxu0 0.0
      %v5338 = vand.u32 %v3356, 4294901760
      %v5339 = vsub.f32 %v3356, %v5338
      %v5340 = vand.u32 %v5339, 4294901760
      %v5341 = vsub.f32 %v5339, %v5340
      %v5342 = vand.u32 %v5341, 4294901760
      %5343 = vmatmul.mubr.f32.gmra.mrb[0].mxu0 %v5342
      %v5344 = vpop.f32.mrb[0].mxu0
      %v5345 = vadd.f32 %v5104, %v5344
      %v5346 = vpop.f32.mrb[0].mxu0
      %5347 = vdwg.mxu0
      %5348 = vmatprep.subr.mxu0 0.0
      %v5349 = vand.u32 %v3389, 4294901760
      %v5350 = vsub.f32 %v3389, %v5349
      %v5351 = vand.u32 %v5350, 4294901760
      %v5352 = vsub.f32 %v5350, %v5351
      %v5353 = vand.u32 %v5352, 4294901760
      %5354 = vmatpush1.msra.mxu0 %v5353
      %5355 = vmatprep.subr.mxu0 0.0
      %v5356 = vand.u32 %v3390, 4294901760
      %v5357 = vsub.f32 %v3390, %v5356
      %v5358 = vand.u32 %v5357, 4294901760
      %v5359 = vsub.f32 %v5357, %v5358
      %v5360 = vand.u32 %v5359, 4294901760
      %5361 = vmatpush1.msra.mxu0 %v5360
      %5362 = vmatprep.subr.mxu0 0.0
      %v5363 = vand.u32 %v3391, 4294901760
      %v5364 = vsub.f32 %v3391, %v5363
      %v5365 = vand.u32 %v5364, 4294901760
      %v5366 = vsub.f32 %v5364, %v5365
      %v5367 = vand.u32 %v5366, 4294901760
      %5368 = vmatpush1.msra.mxu0 %v5367
      %5369 = vmatprep.subr.mxu0 0.0
      %v5370 = vand.u32 %v3392, 4294901760
      %v5371 = vsub.f32 %v3392, %v5370
      %v5372 = vand.u32 %v5371, 4294901760
      %v5373 = vsub.f32 %v5371, %v5372
      %v5374 = vand.u32 %v5373, 4294901760
      %5375 = vmatpush1.msra.mxu0 %v5374
      %5376 = vmatprep.subr.mxu0 0.0
      %v5377 = vand.u32 %v3393, 4294901760
      %v5378 = vsub.f32 %v3393, %v5377
      %v5379 = vand.u32 %v5378, 4294901760
      %v5380 = vsub.f32 %v5378, %v5379
      %v5381 = vand.u32 %v5380, 4294901760
      %5382 = vmatpush1.msra.mxu0 %v5381
      %5383 = vmatprep.subr.mxu0 0.0
      %v5384 = vand.u32 %v3394, 4294901760
      %v5385 = vsub.f32 %v3394, %v5384
      %v5386 = vand.u32 %v5385, 4294901760
      %v5387 = vsub.f32 %v5385, %v5386
      %v5388 = vand.u32 %v5387, 4294901760
      %5389 = vmatpush1.msra.mxu0 %v5388
      %5390 = vmatprep.subr.mxu0 0.0
      %v5391 = vand.u32 %v3395, 4294901760
      %v5392 = vsub.f32 %v3395, %v5391
      %v5393 = vand.u32 %v5392, 4294901760
      %v5394 = vsub.f32 %v5392, %v5393
      %v5395 = vand.u32 %v5394, 4294901760
      %5396 = vmatpush1.msra.mxu0 %v5395
      %5397 = vmatprep.subr.mxu0 0.0
      %v5398 = vand.u32 %v3396, 4294901760
      %v5399 = vsub.f32 %v3396, %v5398
      %v5400 = vand.u32 %v5399, 4294901760
      %v5401 = vsub.f32 %v5399, %v5400
      %v5402 = vand.u32 %v5401, 4294901760
      %5403 = vmatpush1.msra.mxu0 %v5402
      %5404 = vmatprep.subr.mxu0 0.0
      %v5405 = vand.u32 %v3397, 4294901760
      %v5406 = vsub.f32 %v3397, %v5405
      %v5407 = vand.u32 %v5406, 4294901760
      %v5408 = vsub.f32 %v5406, %v5407
      %v5409 = vand.u32 %v5408, 4294901760
      %5410 = vmatpush1.msra.mxu0 %v5409
      %5411 = vmatprep.subr.mxu0 0.0
      %v5412 = vand.u32 %v3398, 4294901760
      %v5413 = vsub.f32 %v3398, %v5412
      %v5414 = vand.u32 %v5413, 4294901760
      %v5415 = vsub.f32 %v5413, %v5414
      %v5416 = vand.u32 %v5415, 4294901760
      %5417 = vmatpush1.msra.mxu0 %v5416
      %5418 = vmatprep.subr.mxu0 0.0
      %v5419 = vand.u32 %v3399, 4294901760
      %v5420 = vsub.f32 %v3399, %v5419
      %v5421 = vand.u32 %v5420, 4294901760
      %v5422 = vsub.f32 %v5420, %v5421
      %v5423 = vand.u32 %v5422, 4294901760
      %5424 = vmatpush1.msra.mxu0 %v5423
      %5425 = vmatprep.subr.mxu0 0.0
      %v5426 = vand.u32 %v3400, 4294901760
      %v5427 = vsub.f32 %v3400, %v5426
      %v5428 = vand.u32 %v5427, 4294901760
      %v5429 = vsub.f32 %v5427, %v5428
      %v5430 = vand.u32 %v5429, 4294901760
      %5431 = vmatpush1.msra.mxu0 %v5430
      %5432 = vmatprep.subr.mxu0 0.0
      %v5433 = vand.u32 %v3401, 4294901760
      %v5434 = vsub.f32 %v3401, %v5433
      %v5435 = vand.u32 %v5434, 4294901760
      %v5436 = vsub.f32 %v5434, %v5435
      %v5437 = vand.u32 %v5436, 4294901760
      %5438 = vmatpush1.msra.mxu0 %v5437
      %5439 = vmatprep.subr.mxu0 0.0
      %v5440 = vand.u32 %v3402, 4294901760
      %v5441 = vsub.f32 %v3402, %v5440
      %v5442 = vand.u32 %v5441, 4294901760
      %v5443 = vsub.f32 %v5441, %v5442
      %v5444 = vand.u32 %v5443, 4294901760
      %5445 = vmatpush1.msra.mxu0 %v5444
      %5446 = vmatprep.subr.mxu0 0.0
      %v5447 = vand.u32 %v3403, 4294901760
      %v5448 = vsub.f32 %v3403, %v5447
      %v5449 = vand.u32 %v5448, 4294901760
      %v5450 = vsub.f32 %v5448, %v5449
      %v5451 = vand.u32 %v5450, 4294901760
      %5452 = vmatpush1.msra.mxu0 %v5451
      %5453 = vmatprep.subr.mxu0 0.0
      %v5454 = vand.u32 %v3404, 4294901760
      %v5455 = vsub.f32 %v3404, %v5454
      %v5456 = vand.u32 %v5455, 4294901760
      %v5457 = vsub.f32 %v5455, %v5456
      %v5458 = vand.u32 %v5457, 4294901760
      %5459 = vmatpush1.msra.mxu0 %v5458
      %5460 = vmatprep.subr.mxu0 0.0
      %5461 = vmatpush1.msra.mxu0 0.0
      %5462 = vmatprep.subr.mxu0 0.0
      %5463 = vmatpush1.msra.mxu0 0.0
      %5464 = vmatprep.subr.mxu0 0.0
      %5465 = vmatpush1.msra.mxu0 0.0
      %5466 = vmatprep.subr.mxu0 0.0
      %5467 = vmatpush1.msra.mxu0 0.0
      %5468 = vmatprep.subr.mxu0 0.0
      %5469 = vmatpush1.msra.mxu0 0.0
      %5470 = vmatprep.subr.mxu0 0.0
      %5471 = vmatpush1.msra.mxu0 0.0
      %5472 = vmatprep.subr.mxu0 0.0
      %5473 = vmatpush1.msra.mxu0 0.0
      %5474 = vmatprep.subr.mxu0 0.0
      %5475 = vmatpush1.msra.mxu0 0.0
      %5476 = vmatprep.subr.mxu0 0.0
      %5477 = vmatpush1.msra.mxu0 0.0
      %5478 = vmatprep.subr.mxu0 0.0
      %5479 = vmatpush1.msra.mxu0 0.0
      %5480 = vmatprep.subr.mxu0 0.0
      %5481 = vmatpush1.msra.mxu0 0.0
      %5482 = vmatprep.subr.mxu0 0.0
      %5483 = vmatpush1.msra.mxu0 0.0
      %5484 = vmatprep.subr.mxu0 0.0
      %5485 = vmatpush1.msra.mxu0 0.0
      %5486 = vmatprep.subr.mxu0 0.0
      %5487 = vmatpush1.msra.mxu0 0.0
      %5488 = vmatprep.subr.mxu0 0.0
      %5489 = vmatpush1.msra.mxu0 0.0
      %5490 = vmatprep.subr.mxu0 0.0
      %5491 = vmatpush1.msra.mxu0 0.0
      %5492 = vmatprep.mubr.f32.mxu0 0.0
      %v5493 = vand.u32 %v3311, 4294901760
      %5494 = vmatmul.mubr.f32.gmra.mrb[0].mxu0 %v5493
      %v5495 = vpop.f32.mrb[0].mxu0
      %v5496 = vadd.f32 %v5195, %v5495
      %v5497 = vpop.f32.mrb[0].mxu0
      %5498 = vmatprep.mubr.f32.mxu0 0.0
      %v5499 = vand.u32 %v3314, 4294901760
      %5500 = vmatmul.mubr.f32.gmra.mrb[0].mxu0 %v5499
      %v5501 = vpop.f32.mrb[0].mxu0
      %v5502 = vadd.f32 %v5205, %v5501
      %v5503 = vpop.f32.mrb[0].mxu0
      %5504 = vmatprep.mubr.f32.mxu0 0.0
      %v5505 = vand.u32 %v3317, 4294901760
      %5506 = vmatmul.mubr.f32.gmra.mrb[0].mxu0 %v5505
      %v5507 = vpop.f32.mrb[0].mxu0
      %v5508 = vadd.f32 %v5215, %v5507
      %v5509 = vpop.f32.mrb[0].mxu0
      %5510 = vmatprep.mubr.f32.mxu0 0.0
      %v5511 = vand.u32 %v3320, 4294901760
      %5512 = vmatmul.mubr.f32.gmra.mrb[0].mxu0 %v5511
      %v5513 = vpop.f32.mrb[0].mxu0
      %v5514 = vadd.f32 %v5225, %v5513
      %v5515 = vpop.f32.mrb[0].mxu0
      %5516 = vmatprep.mubr.f32.mxu0 0.0
      %v5517 = vand.u32 %v3323, 4294901760
      %5518 = vmatmul.mubr.f32.gmra.mrb[0].mxu0 %v5517
      %v5519 = vpop.f32.mrb[0].mxu0
      %v5520 = vadd.f32 %v5235, %v5519
      %v5521 = vpop.f32.mrb[0].mxu0
      %5522 = vmatprep.mubr.f32.mxu0 0.0
      %v5523 = vand.u32 %v3326, 4294901760
      %5524 = vmatmul.mubr.f32.gmra.mrb[0].mxu0 %v5523
      %v5525 = vpop.f32.mrb[0].mxu0
      %v5526 = vadd.f32 %v5245, %v5525
      %v5527 = vpop.f32.mrb[0].mxu0
      %5528 = vmatprep.mubr.f32.mxu0 0.0
      %v5529 = vand.u32 %v3329, 4294901760
      %5530 = vmatmul.mubr.f32.gmra.mrb[0].mxu0 %v5529
      %v5531 = vpop.f32.mrb[0].mxu0
      %v5532 = vadd.f32 %v5255, %v5531
      %v5533 = vpop.f32.mrb[0].mxu0
      %5534 = vmatprep.mubr.f32.mxu0 0.0
      %v5535 = vand.u32 %v3332, 4294901760
      %5536 = vmatmul.mubr.f32.gmra.mrb[0].mxu0 %v5535
      %v5537 = vpop.f32.mrb[0].mxu0
      %v5538 = vadd.f32 %v5265, %v5537
      %v5539 = vpop.f32.mrb[0].mxu0
      %5540 = vmatprep.mubr.f32.mxu0 0.0
      %v5541 = vand.u32 %v3335, 4294901760
      %5542 = vmatmul.mubr.f32.gmra.mrb[0].mxu0 %v5541
      %v5543 = vpop.f32.mrb[0].mxu0
      %v5544 = vadd.f32 %v5275, %v5543
      %v5545 = vpop.f32.mrb[0].mxu0
      %5546 = vmatprep.mubr.f32.mxu0 0.0
      %v5547 = vand.u32 %v3338, 4294901760
      %5548 = vmatmul.mubr.f32.gmra.mrb[0].mxu0 %v5547
      %v5549 = vpop.f32.mrb[0].mxu0
      %v5550 = vadd.f32 %v5285, %v5549
      %v5551 = vpop.f32.mrb[0].mxu0
      %5552 = vmatprep.mubr.f32.mxu0 0.0
      %v5553 = vand.u32 %v3341, 4294901760
      %5554 = vmatmul.mubr.f32.gmra.mrb[0].mxu0 %v5553
      %v5555 = vpop.f32.mrb[0].mxu0
      %v5556 = vadd.f32 %v5295, %v5555
      %v5557 = vpop.f32.mrb[0].mxu0
      %5558 = vmatprep.mubr.f32.mxu0 0.0
      %v5559 = vand.u32 %v3344, 4294901760
      %5560 = vmatmul.mubr.f32.gmra.mrb[0].mxu0 %v5559
      %v5561 = vpop.f32.mrb[0].mxu0
      %v5562 = vadd.f32 %v5305, %v5561
      %v5563 = vpop.f32.mrb[0].mxu0
      %5564 = vmatprep.mubr.f32.mxu0 0.0
      %v5565 = vand.u32 %v3347, 4294901760
      %5566 = vmatmul.mubr.f32.gmra.mrb[0].mxu0 %v5565
      %v5567 = vpop.f32.mrb[0].mxu0
      %v5568 = vadd.f32 %v5315, %v5567
      %v5569 = vpop.f32.mrb[0].mxu0
      %5570 = vmatprep.mubr.f32.mxu0 0.0
      %v5571 = vand.u32 %v3350, 4294901760
      %5572 = vmatmul.mubr.f32.gmra.mrb[0].mxu0 %v5571
      %v5573 = vpop.f32.mrb[0].mxu0
      %v5574 = vadd.f32 %v5325, %v5573
      %v5575 = vpop.f32.mrb[0].mxu0
      %5576 = vmatprep.mubr.f32.mxu0 0.0
      %v5577 = vand.u32 %v3353, 4294901760
      %5578 = vmatmul.mubr.f32.gmra.mrb[0].mxu0 %v5577
      %v5579 = vpop.f32.mrb[0].mxu0
      %v5580 = vadd.f32 %v5335, %v5579
      %v5581 = vpop.f32.mrb[0].mxu0
      %5582 = vmatprep.mubr.f32.mxu0 0.0
      %v5583 = vand.u32 %v3356, 4294901760
      %5584 = vmatmul.mubr.f32.gmra.mrb[0].mxu0 %v5583
      %v5585 = vpop.f32.mrb[0].mxu0
      %v5586 = vadd.f32 %v5345, %v5585
      %v5587 = vpop.f32.mrb[0].mxu0
      %5588 = vdwg.mxu0
      %5589 = vmatprep.subr.mxu0 0.0
      %v5590 = vand.u32 %v3389, 4294901760
      %v5591 = vsub.f32 %v3389, %v5590
      %5592 = vmatpush1.msra.mxu0 %v5591
      %5593 = vmatprep.subr.mxu0 0.0
      %v5594 = vand.u32 %v3390, 4294901760
      %v5595 = vsub.f32 %v3390, %v5594
      %5596 = vmatpush1.msra.mxu0 %v5595
      %5597 = vmatprep.subr.mxu0 0.0
      %v5598 = vand.u32 %v3391, 4294901760
      %v5599 = vsub.f32 %v3391, %v5598
      %5600 = vmatpush1.msra.mxu0 %v5599
      %5601 = vmatprep.subr.mxu0 0.0
      %v5602 = vand.u32 %v3392, 4294901760
      %v5603 = vsub.f32 %v3392, %v5602
      %5604 = vmatpush1.msra.mxu0 %v5603
      %5605 = vmatprep.subr.mxu0 0.0
      %v5606 = vand.u32 %v3393, 4294901760
      %v5607 = vsub.f32 %v3393, %v5606
      %5608 = vmatpush1.msra.mxu0 %v5607
      %5609 = vmatprep.subr.mxu0 0.0
      %v5610 = vand.u32 %v3394, 4294901760
      %v5611 = vsub.f32 %v3394, %v5610
      %5612 = vmatpush1.msra.mxu0 %v5611
      %5613 = vmatprep.subr.mxu0 0.0
      %v5614 = vand.u32 %v3395, 4294901760
      %v5615 = vsub.f32 %v3395, %v5614
      %5616 = vmatpush1.msra.mxu0 %v5615
      %5617 = vmatprep.subr.mxu0 0.0
      %v5618 = vand.u32 %v3396, 4294901760
      %v5619 = vsub.f32 %v3396, %v5618
      %5620 = vmatpush1.msra.mxu0 %v5619
      %5621 = vmatprep.subr.mxu0 0.0
      %v5622 = vand.u32 %v3397, 4294901760
      %v5623 = vsub.f32 %v3397, %v5622
      %5624 = vmatpush1.msra.mxu0 %v5623
      %5625 = vmatprep.subr.mxu0 0.0
      %v5626 = vand.u32 %v3398, 4294901760
      %v5627 = vsub.f32 %v3398, %v5626
      %5628 = vmatpush1.msra.mxu0 %v5627
      %5629 = vmatprep.subr.mxu0 0.0
      %v5630 = vand.u32 %v3399, 4294901760
      %v5631 = vsub.f32 %v3399, %v5630
      %5632 = vmatpush1.msra.mxu0 %v5631
      %5633 = vmatprep.subr.mxu0 0.0
      %v5634 = vand.u32 %v3400, 4294901760
      %v5635 = vsub.f32 %v3400, %v5634
      %5636 = vmatpush1.msra.mxu0 %v5635
      %5637 = vmatprep.subr.mxu0 0.0
      %v5638 = vand.u32 %v3401, 4294901760
      %v5639 = vsub.f32 %v3401, %v5638
      %5640 = vmatpush1.msra.mxu0 %v5639
      %5641 = vmatprep.subr.mxu0 0.0
      %v5642 = vand.u32 %v3402, 4294901760
      %v5643 = vsub.f32 %v3402, %v5642
      %5644 = vmatpush1.msra.mxu0 %v5643
      %5645 = vmatprep.subr.mxu0 0.0
      %v5646 = vand.u32 %v3403, 4294901760
      %v5647 = vsub.f32 %v3403, %v5646
      %5648 = vmatpush1.msra.mxu0 %v5647
      %5649 = vmatprep.subr.mxu0 0.0
      %v5650 = vand.u32 %v3404, 4294901760
      %v5651 = vsub.f32 %v3404, %v5650
      %5652 = vmatpush1.msra.mxu0 %v5651
      %5653 = vmatprep.subr.mxu0 0.0
      %5654 = vmatpush1.msra.mxu0 0.0
      %5655 = vmatprep.subr.mxu0 0.0
      %5656 = vmatpush1.msra.mxu0 0.0
      %5657 = vmatprep.subr.mxu0 0.0
      %5658 = vmatpush1.msra.mxu0 0.0
      %5659 = vmatprep.subr.mxu0 0.0
      %5660 = vmatpush1.msra.mxu0 0.0
      %5661 = vmatprep.subr.mxu0 0.0
      %5662 = vmatpush1.msra.mxu0 0.0
      %5663 = vmatprep.subr.mxu0 0.0
      %5664 = vmatpush1.msra.mxu0 0.0
      %5665 = vmatprep.subr.mxu0 0.0
      %5666 = vmatpush1.msra.mxu0 0.0
      %5667 = vmatprep.subr.mxu0 0.0
      %5668 = vmatpush1.msra.mxu0 0.0
      %5669 = vmatprep.subr.mxu0 0.0
      %5670 = vmatpush1.msra.mxu0 0.0
      %5671 = vmatprep.subr.mxu0 0.0
      %5672 = vmatpush1.msra.mxu0 0.0
      %5673 = vmatprep.subr.mxu0 0.0
      %5674 = vmatpush1.msra.mxu0 0.0
      %5675 = vmatprep.subr.mxu0 0.0
      %5676 = vmatpush1.msra.mxu0 0.0
      %5677 = vmatprep.subr.mxu0 0.0
      %5678 = vmatpush1.msra.mxu0 0.0
      %5679 = vmatprep.subr.mxu0 0.0
      %5680 = vmatpush1.msra.mxu0 0.0
      %5681 = vmatprep.subr.mxu0 0.0
      %5682 = vmatpush1.msra.mxu0 0.0
      %5683 = vmatprep.subr.mxu0 0.0
      %5684 = vmatpush1.msra.mxu0 0.0
      %5685 = vmatprep.mubr.f32.mxu0 0.0
      %v5686 = vand.u32 %v3311, 4294901760
      %v5687 = vsub.f32 %v3311, %v5686
      %5688 = vmatmul.mubr.f32.gmra.mrb[0].mxu0 %v5687
      %v5689 = vpop.f32.mrb[0].mxu0
      %v5690 = vadd.f32 %v5496, %v5689
      %v5691 = vpop.f32.mrb[0].mxu0
      %5692 = vmatprep.mubr.f32.mxu0 0.0
      %v5693 = vand.u32 %v3314, 4294901760
      %v5694 = vsub.f32 %v3314, %v5693
      %5695 = vmatmul.mubr.f32.gmra.mrb[0].mxu0 %v5694
      %v5696 = vpop.f32.mrb[0].mxu0
      %v5697 = vadd.f32 %v5502, %v5696
      %v5698 = vpop.f32.mrb[0].mxu0
      %5699 = vmatprep.mubr.f32.mxu0 0.0
      %v5700 = vand.u32 %v3317, 4294901760
      %v5701 = vsub.f32 %v3317, %v5700
      %5702 = vmatmul.mubr.f32.gmra.mrb[0].mxu0 %v5701
      %v5703 = vpop.f32.mrb[0].mxu0
      %v5704 = vadd.f32 %v5508, %v5703
      %v5705 = vpop.f32.mrb[0].mxu0
      %5706 = vmatprep.mubr.f32.mxu0 0.0
      %v5707 = vand.u32 %v3320, 4294901760
      %v5708 = vsub.f32 %v3320, %v5707
      %5709 = vmatmul.mubr.f32.gmra.mrb[0].mxu0 %v5708
      %v5710 = vpop.f32.mrb[0].mxu0
      %v5711 = vadd.f32 %v5514, %v5710
      %v5712 = vpop.f32.mrb[0].mxu0
      %5713 = vmatprep.mubr.f32.mxu0 0.0
      %v5714 = vand.u32 %v3323, 4294901760
      %v5715 = vsub.f32 %v3323, %v5714
      %5716 = vmatmul.mubr.f32.gmra.mrb[0].mxu0 %v5715
      %v5717 = vpop.f32.mrb[0].mxu0
      %v5718 = vadd.f32 %v5520, %v5717
      %v5719 = vpop.f32.mrb[0].mxu0
      %5720 = vmatprep.mubr.f32.mxu0 0.0
      %v5721 = vand.u32 %v3326, 4294901760
      %v5722 = vsub.f32 %v3326, %v5721
      %5723 = vmatmul.mubr.f32.gmra.mrb[0].mxu0 %v5722
      %v5724 = vpop.f32.mrb[0].mxu0
      %v5725 = vadd.f32 %v5526, %v5724
      %v5726 = vpop.f32.mrb[0].mxu0
      %5727 = vmatprep.mubr.f32.mxu0 0.0
      %v5728 = vand.u32 %v3329, 4294901760
      %v5729 = vsub.f32 %v3329, %v5728
      %5730 = vmatmul.mubr.f32.gmra.mrb[0].mxu0 %v5729
      %v5731 = vpop.f32.mrb[0].mxu0
      %v5732 = vadd.f32 %v5532, %v5731
      %v5733 = vpop.f32.mrb[0].mxu0
      %5734 = vmatprep.mubr.f32.mxu0 0.0
      %v5735 = vand.u32 %v3332, 4294901760
      %v5736 = vsub.f32 %v3332, %v5735
      %5737 = vmatmul.mubr.f32.gmra.mrb[0].mxu0 %v5736
      %v5738 = vpop.f32.mrb[0].mxu0
      %v5739 = vadd.f32 %v5538, %v5738
      %v5740 = vpop.f32.mrb[0].mxu0
      %5741 = vmatprep.mubr.f32.mxu0 0.0
      %v5742 = vand.u32 %v3335, 4294901760
      %v5743 = vsub.f32 %v3335, %v5742
      %5744 = vmatmul.mubr.f32.gmra.mrb[0].mxu0 %v5743
      %v5745 = vpop.f32.mrb[0].mxu0
      %v5746 = vadd.f32 %v5544, %v5745
      %v5747 = vpop.f32.mrb[0].mxu0
      %5748 = vmatprep.mubr.f32.mxu0 0.0
      %v5749 = vand.u32 %v3338, 4294901760
      %v5750 = vsub.f32 %v3338, %v5749
      %5751 = vmatmul.mubr.f32.gmra.mrb[0].mxu0 %v5750
      %v5752 = vpop.f32.mrb[0].mxu0
      %v5753 = vadd.f32 %v5550, %v5752
      %v5754 = vpop.f32.mrb[0].mxu0
      %5755 = vmatprep.mubr.f32.mxu0 0.0
      %v5756 = vand.u32 %v3341, 4294901760
      %v5757 = vsub.f32 %v3341, %v5756
      %5758 = vmatmul.mubr.f32.gmra.mrb[0].mxu0 %v5757
      %v5759 = vpop.f32.mrb[0].mxu0
      %v5760 = vadd.f32 %v5556, %v5759
      %v5761 = vpop.f32.mrb[0].mxu0
      %5762 = vmatprep.mubr.f32.mxu0 0.0
      %v5763 = vand.u32 %v3344, 4294901760
      %v5764 = vsub.f32 %v3344, %v5763
      %5765 = vmatmul.mubr.f32.gmra.mrb[0].mxu0 %v5764
      %v5766 = vpop.f32.mrb[0].mxu0
      %v5767 = vadd.f32 %v5562, %v5766
      %v5768 = vpop.f32.mrb[0].mxu0
      %5769 = vmatprep.mubr.f32.mxu0 0.0
      %v5770 = vand.u32 %v3347, 4294901760
      %v5771 = vsub.f32 %v3347, %v5770
      %5772 = vmatmul.mubr.f32.gmra.mrb[0].mxu0 %v5771
      %v5773 = vpop.f32.mrb[0].mxu0
      %v5774 = vadd.f32 %v5568, %v5773
      %v5775 = vpop.f32.mrb[0].mxu0
      %5776 = vmatprep.mubr.f32.mxu0 0.0
      %v5777 = vand.u32 %v3350, 4294901760
      %v5778 = vsub.f32 %v3350, %v5777
      %5779 = vmatmul.mubr.f32.gmra.mrb[0].mxu0 %v5778
      %v5780 = vpop.f32.mrb[0].mxu0
      %v5781 = vadd.f32 %v5574, %v5780
      %v5782 = vpop.f32.mrb[0].mxu0
      %5783 = vmatprep.mubr.f32.mxu0 0.0
      %v5784 = vand.u32 %v3353, 4294901760
      %v5785 = vsub.f32 %v3353, %v5784
      %5786 = vmatmul.mubr.f32.gmra.mrb[0].mxu0 %v5785
      %v5787 = vpop.f32.mrb[0].mxu0
      %v5788 = vadd.f32 %v5580, %v5787
      %v5789 = vpop.f32.mrb[0].mxu0
      %5790 = vmatprep.mubr.f32.mxu0 0.0
      %v5791 = vand.u32 %v3356, 4294901760
      %v5792 = vsub.f32 %v3356, %v5791
      %5793 = vmatmul.mubr.f32.gmra.mrb[0].mxu0 %v5792
      %v5794 = vpop.f32.mrb[0].mxu0
      %v5795 = vadd.f32 %v5586, %v5794
      %v5796 = vpop.f32.mrb[0].mxu0
      %5797 = vdwg.mxu0
      %5798 = vmatprep.subr.mxu0 0.0
      %v5799 = vand.u32 %v3389, 4294901760
      %5800 = vmatpush1.msra.mxu0 %v5799
      %5801 = vmatprep.subr.mxu0 0.0
      %v5802 = vand.u32 %v3390, 4294901760
      %5803 = vmatpush1.msra.mxu0 %v5802
      %5804 = vmatprep.subr.mxu0 0.0
      %v5805 = vand.u32 %v3391, 4294901760
      %5806 = vmatpush1.msra.mxu0 %v5805
      %5807 = vmatprep.subr.mxu0 0.0
      %v5808 = vand.u32 %v3392, 4294901760
      %5809 = vmatpush1.msra.mxu0 %v5808
      %5810 = vmatprep.subr.mxu0 0.0
      %v5811 = vand.u32 %v3393, 4294901760
      %5812 = vmatpush1.msra.mxu0 %v5811
      %5813 = vmatprep.subr.mxu0 0.0
      %v5814 = vand.u32 %v3394, 4294901760
      %5815 = vmatpush1.msra.mxu0 %v5814
      %5816 = vmatprep.subr.mxu0 0.0
      %v5817 = vand.u32 %v3395, 4294901760
      %5818 = vmatpush1.msra.mxu0 %v5817
      %5819 = vmatprep.subr.mxu0 0.0
      %v5820 = vand.u32 %v3396, 4294901760
      %5821 = vmatpush1.msra.mxu0 %v5820
      %5822 = vmatprep.subr.mxu0 0.0
      %v5823 = vand.u32 %v3397, 4294901760
      %5824 = vmatpush1.msra.mxu0 %v5823
      %5825 = vmatprep.subr.mxu0 0.0
      %v5826 = vand.u32 %v3398, 4294901760
      %5827 = vmatpush1.msra.mxu0 %v5826
      %5828 = vmatprep.subr.mxu0 0.0
      %v5829 = vand.u32 %v3399, 4294901760
      %5830 = vmatpush1.msra.mxu0 %v5829
      %5831 = vmatprep.subr.mxu0 0.0
      %v5832 = vand.u32 %v3400, 4294901760
      %5833 = vmatpush1.msra.mxu0 %v5832
      %5834 = vmatprep.subr.mxu0 0.0
      %v5835 = vand.u32 %v3401, 4294901760
      %5836 = vmatpush1.msra.mxu0 %v5835
      %5837 = vmatprep.subr.mxu0 0.0
      %v5838 = vand.u32 %v3402, 4294901760
      %5839 = vmatpush1.msra.mxu0 %v5838
      %5840 = vmatprep.subr.mxu0 0.0
      %v5841 = vand.u32 %v3403, 4294901760
      %5842 = vmatpush1.msra.mxu0 %v5841
      %5843 = vmatprep.subr.mxu0 0.0
      %v5844 = vand.u32 %v3404, 4294901760
      %5845 = vmatpush1.msra.mxu0 %v5844
      %5846 = vmatprep.subr.mxu0 0.0
      %5847 = vmatpush1.msra.mxu0 0.0
      %5848 = vmatprep.subr.mxu0 0.0
      %5849 = vmatpush1.msra.mxu0 0.0
      %5850 = vmatprep.subr.mxu0 0.0
      %5851 = vmatpush1.msra.mxu0 0.0
      %5852 = vmatprep.subr.mxu0 0.0
      %5853 = vmatpush1.msra.mxu0 0.0
      %5854 = vmatprep.subr.mxu0 0.0
      %5855 = vmatpush1.msra.mxu0 0.0
      %5856 = vmatprep.subr.mxu0 0.0
      %5857 = vmatpush1.msra.mxu0 0.0
      %5858 = vmatprep.subr.mxu0 0.0
      %5859 = vmatpush1.msra.mxu0 0.0
      %5860 = vmatprep.subr.mxu0 0.0
      %5861 = vmatpush1.msra.mxu0 0.0
      %5862 = vmatprep.subr.mxu0 0.0
      %5863 = vmatpush1.msra.mxu0 0.0
      %5864 = vmatprep.subr.mxu0 0.0
      %5865 = vmatpush1.msra.mxu0 0.0
      %5866 = vmatprep.subr.mxu0 0.0
      %5867 = vmatpush1.msra.mxu0 0.0
      %5868 = vmatprep.subr.mxu0 0.0
      %5869 = vmatpush1.msra.mxu0 0.0
      %5870 = vmatprep.subr.mxu0 0.0
      %5871 = vmatpush1.msra.mxu0 0.0
      %5872 = vmatprep.subr.mxu0 0.0
      %5873 = vmatpush1.msra.mxu0 0.0
      %5874 = vmatprep.subr.mxu0 0.0
      %5875 = vmatpush1.msra.mxu0 0.0
      %5876 = vmatprep.subr.mxu0 0.0
      %5877 = vmatpush1.msra.mxu0 0.0
      %5878 = vmatprep.mubr.f32.mxu0 0.0
      %v5879 = vand.u32 %v3311, 4294901760
      %v5880 = vsub.f32 %v3311, %v5879
      %v5881 = vand.u32 %v5880, 4294901760
      %5882 = vmatmul.mubr.f32.gmra.mrb[0].mxu0 %v5881
      %v5883 = vpop.f32.mrb[0].mxu0
      %v5884 = vadd.f32 %v5690, %v5883
      %v5885 = vpop.f32.mrb[0].mxu0
      %5886 = vmatprep.mubr.f32.mxu0 0.0
      %v5887 = vand.u32 %v3314, 4294901760
      %v5888 = vsub.f32 %v3314, %v5887
      %v5889 = vand.u32 %v5888, 4294901760
      %5890 = vmatmul.mubr.f32.gmra.mrb[0].mxu0 %v5889
      %v5891 = vpop.f32.mrb[0].mxu0
      %v5892 = vadd.f32 %v5697, %v5891
      %v5893 = vpop.f32.mrb[0].mxu0
      %5894 = vmatprep.mubr.f32.mxu0 0.0
      %v5895 = vand.u32 %v3317, 4294901760
      %v5896 = vsub.f32 %v3317, %v5895
      %v5897 = vand.u32 %v5896, 4294901760
      %5898 = vmatmul.mubr.f32.gmra.mrb[0].mxu0 %v5897
      %v5899 = vpop.f32.mrb[0].mxu0
      %v5900 = vadd.f32 %v5704, %v5899
      %v5901 = vpop.f32.mrb[0].mxu0
      %5902 = vmatprep.mubr.f32.mxu0 0.0
      %v5903 = vand.u32 %v3320, 4294901760
      %v5904 = vsub.f32 %v3320, %v5903
      %v5905 = vand.u32 %v5904, 4294901760
      %5906 = vmatmul.mubr.f32.gmra.mrb[0].mxu0 %v5905
      %v5907 = vpop.f32.mrb[0].mxu0
      %v5908 = vadd.f32 %v5711, %v5907
      %v5909 = vpop.f32.mrb[0].mxu0
      %5910 = vmatprep.mubr.f32.mxu0 0.0
      %v5911 = vand.u32 %v3323, 4294901760
      %v5912 = vsub.f32 %v3323, %v5911
      %v5913 = vand.u32 %v5912, 4294901760
      %5914 = vmatmul.mubr.f32.gmra.mrb[0].mxu0 %v5913
      %v5915 = vpop.f32.mrb[0].mxu0
      %v5916 = vadd.f32 %v5718, %v5915
      %v5917 = vpop.f32.mrb[0].mxu0
      %5918 = vmatprep.mubr.f32.mxu0 0.0
      %v5919 = vand.u32 %v3326, 4294901760
      %v5920 = vsub.f32 %v3326, %v5919
      %v5921 = vand.u32 %v5920, 4294901760
      %5922 = vmatmul.mubr.f32.gmra.mrb[0].mxu0 %v5921
      %v5923 = vpop.f32.mrb[0].mxu0
      %v5924 = vadd.f32 %v5725, %v5923
      %v5925 = vpop.f32.mrb[0].mxu0
      %5926 = vmatprep.mubr.f32.mxu0 0.0
      %v5927 = vand.u32 %v3329, 4294901760
      %v5928 = vsub.f32 %v3329, %v5927
      %v5929 = vand.u32 %v5928, 4294901760
      %5930 = vmatmul.mubr.f32.gmra.mrb[0].mxu0 %v5929
      %v5931 = vpop.f32.mrb[0].mxu0
      %v5932 = vadd.f32 %v5732, %v5931
      %v5933 = vpop.f32.mrb[0].mxu0
      %5934 = vmatprep.mubr.f32.mxu0 0.0
      %v5935 = vand.u32 %v3332, 4294901760
      %v5936 = vsub.f32 %v3332, %v5935
      %v5937 = vand.u32 %v5936, 4294901760
      %5938 = vmatmul.mubr.f32.gmra.mrb[0].mxu0 %v5937
      %v5939 = vpop.f32.mrb[0].mxu0
      %v5940 = vadd.f32 %v5739, %v5939
      %v5941 = vpop.f32.mrb[0].mxu0
      %5942 = vmatprep.mubr.f32.mxu0 0.0
      %v5943 = vand.u32 %v3335, 4294901760
      %v5944 = vsub.f32 %v3335, %v5943
      %v5945 = vand.u32 %v5944, 4294901760
      %5946 = vmatmul.mubr.f32.gmra.mrb[0].mxu0 %v5945
      %v5947 = vpop.f32.mrb[0].mxu0
      %v5948 = vadd.f32 %v5746, %v5947
      %v5949 = vpop.f32.mrb[0].mxu0
      %5950 = vmatprep.mubr.f32.mxu0 0.0
      %v5951 = vand.u32 %v3338, 4294901760
      %v5952 = vsub.f32 %v3338, %v5951
      %v5953 = vand.u32 %v5952, 4294901760
      %5954 = vmatmul.mubr.f32.gmra.mrb[0].mxu0 %v5953
      %v5955 = vpop.f32.mrb[0].mxu0
      %v5956 = vadd.f32 %v5753, %v5955
      %v5957 = vpop.f32.mrb[0].mxu0
      %5958 = vmatprep.mubr.f32.mxu0 0.0
      %v5959 = vand.u32 %v3341, 4294901760
      %v5960 = vsub.f32 %v3341, %v5959
      %v5961 = vand.u32 %v5960, 4294901760
      %5962 = vmatmul.mubr.f32.gmra.mrb[0].mxu0 %v5961
      %v5963 = vpop.f32.mrb[0].mxu0
      %v5964 = vadd.f32 %v5760, %v5963
      %v5965 = vpop.f32.mrb[0].mxu0
      %5966 = vmatprep.mubr.f32.mxu0 0.0
      %v5967 = vand.u32 %v3344, 4294901760
      %v5968 = vsub.f32 %v3344, %v5967
      %v5969 = vand.u32 %v5968, 4294901760
      %5970 = vmatmul.mubr.f32.gmra.mrb[0].mxu0 %v5969
      %v5971 = vpop.f32.mrb[0].mxu0
      %v5972 = vadd.f32 %v5767, %v5971
      %v5973 = vpop.f32.mrb[0].mxu0
      %5974 = vmatprep.mubr.f32.mxu0 0.0
      %v5975 = vand.u32 %v3347, 4294901760
      %v5976 = vsub.f32 %v3347, %v5975
      %v5977 = vand.u32 %v5976, 4294901760
      %5978 = vmatmul.mubr.f32.gmra.mrb[0].mxu0 %v5977
      %v5979 = vpop.f32.mrb[0].mxu0
      %v5980 = vadd.f32 %v5774, %v5979
      %v5981 = vpop.f32.mrb[0].mxu0
      %5982 = vmatprep.mubr.f32.mxu0 0.0
      %v5983 = vand.u32 %v3350, 4294901760
      %v5984 = vsub.f32 %v3350, %v5983
      %v5985 = vand.u32 %v5984, 4294901760
      %5986 = vmatmul.mubr.f32.gmra.mrb[0].mxu0 %v5985
      %v5987 = vpop.f32.mrb[0].mxu0
      %v5988 = vadd.f32 %v5781, %v5987
      %v5989 = vpop.f32.mrb[0].mxu0
      %5990 = vmatprep.mubr.f32.mxu0 0.0
      %v5991 = vand.u32 %v3353, 4294901760
      %v5992 = vsub.f32 %v3353, %v5991
      %v5993 = vand.u32 %v5992, 4294901760
      %5994 = vmatmul.mubr.f32.gmra.mrb[0].mxu0 %v5993
      %v5995 = vpop.f32.mrb[0].mxu0
      %v5996 = vadd.f32 %v5788, %v5995
      %v5997 = vpop.f32.mrb[0].mxu0
      %5998 = vmatprep.mubr.f32.mxu0 0.0
      %v5999 = vand.u32 %v3356, 4294901760
      %v6000 = vsub.f32 %v3356, %v5999
      %v6001 = vand.u32 %v6000, 4294901760
      %6002 = vmatmul.mubr.f32.gmra.mrb[0].mxu0 %v6001
      %v6003 = vpop.f32.mrb[0].mxu0
      %v6004 = vadd.f32 %v5795, %v6003
      %v6005 = vpop.f32.mrb[0].mxu0
      %6006 = vdwg.mxu0
      %6007 = vmatprep.subr.mxu0 0.0
      %v6008 = vand.u32 %v3389, 4294901760
      %v6009 = vsub.f32 %v3389, %v6008
      %v6010 = vand.u32 %v6009, 4294901760
      %6011 = vmatpush1.msra.mxu0 %v6010
      %6012 = vmatprep.subr.mxu0 0.0
      %v6013 = vand.u32 %v3390, 4294901760
      %v6014 = vsub.f32 %v3390, %v6013
      %v6015 = vand.u32 %v6014, 4294901760
      %6016 = vmatpush1.msra.mxu0 %v6015
      %6017 = vmatprep.subr.mxu0 0.0
      %v6018 = vand.u32 %v3391, 4294901760
      %v6019 = vsub.f32 %v3391, %v6018
      %v6020 = vand.u32 %v6019, 4294901760
      %6021 = vmatpush1.msra.mxu0 %v6020
      %6022 = vmatprep.subr.mxu0 0.0
      %v6023 = vand.u32 %v3392, 4294901760
      %v6024 = vsub.f32 %v3392, %v6023
      %v6025 = vand.u32 %v6024, 4294901760
      %6026 = vmatpush1.msra.mxu0 %v6025
      %6027 = vmatprep.subr.mxu0 0.0
      %v6028 = vand.u32 %v3393, 4294901760
      %v6029 = vsub.f32 %v3393, %v6028
      %v6030 = vand.u32 %v6029, 4294901760
      %6031 = vmatpush1.msra.mxu0 %v6030
      %6032 = vmatprep.subr.mxu0 0.0
      %v6033 = vand.u32 %v3394, 4294901760
      %v6034 = vsub.f32 %v3394, %v6033
      %v6035 = vand.u32 %v6034, 4294901760
      %6036 = vmatpush1.msra.mxu0 %v6035
      %6037 = vmatprep.subr.mxu0 0.0
      %v6038 = vand.u32 %v3395, 4294901760
      %v6039 = vsub.f32 %v3395, %v6038
      %v6040 = vand.u32 %v6039, 4294901760
      %6041 = vmatpush1.msra.mxu0 %v6040
      %6042 = vmatprep.subr.mxu0 0.0
      %v6043 = vand.u32 %v3396, 4294901760
      %v6044 = vsub.f32 %v3396, %v6043
      %v6045 = vand.u32 %v6044, 4294901760
      %6046 = vmatpush1.msra.mxu0 %v6045
      %6047 = vmatprep.subr.mxu0 0.0
      %v6048 = vand.u32 %v3397, 4294901760
      %v6049 = vsub.f32 %v3397, %v6048
      %v6050 = vand.u32 %v6049, 4294901760
      %6051 = vmatpush1.msra.mxu0 %v6050
      %6052 = vmatprep.subr.mxu0 0.0
      %v6053 = vand.u32 %v3398, 4294901760
      %v6054 = vsub.f32 %v3398, %v6053
      %v6055 = vand.u32 %v6054, 4294901760
      %6056 = vmatpush1.msra.mxu0 %v6055
      %6057 = vmatprep.subr.mxu0 0.0
      %v6058 = vand.u32 %v3399, 4294901760
      %v6059 = vsub.f32 %v3399, %v6058
      %v6060 = vand.u32 %v6059, 4294901760
      %6061 = vmatpush1.msra.mxu0 %v6060
      %6062 = vmatprep.subr.mxu0 0.0
      %v6063 = vand.u32 %v3400, 4294901760
      %v6064 = vsub.f32 %v3400, %v6063
      %v6065 = vand.u32 %v6064, 4294901760
      %6066 = vmatpush1.msra.mxu0 %v6065
      %6067 = vmatprep.subr.mxu0 0.0
      %v6068 = vand.u32 %v3401, 4294901760
      %v6069 = vsub.f32 %v3401, %v6068
      %v6070 = vand.u32 %v6069, 4294901760
      %6071 = vmatpush1.msra.mxu0 %v6070
      %6072 = vmatprep.subr.mxu0 0.0
      %v6073 = vand.u32 %v3402, 4294901760
      %v6074 = vsub.f32 %v3402, %v6073
      %v6075 = vand.u32 %v6074, 4294901760
      %6076 = vmatpush1.msra.mxu0 %v6075
      %6077 = vmatprep.subr.mxu0 0.0
      %v6078 = vand.u32 %v3403, 4294901760
      %v6079 = vsub.f32 %v3403, %v6078
      %v6080 = vand.u32 %v6079, 4294901760
      %6081 = vmatpush1.msra.mxu0 %v6080
      %6082 = vmatprep.subr.mxu0 0.0
      %v6083 = vand.u32 %v3404, 4294901760
      %v6084 = vsub.f32 %v3404, %v6083
      %v6085 = vand.u32 %v6084, 4294901760
      %6086 = vmatpush1.msra.mxu0 %v6085
      %6087 = vmatprep.subr.mxu0 0.0
      %6088 = vmatpush1.msra.mxu0 0.0
      %6089 = vmatprep.subr.mxu0 0.0
      %6090 = vmatpush1.msra.mxu0 0.0
      %6091 = vmatprep.subr.mxu0 0.0
      %6092 = vmatpush1.msra.mxu0 0.0
      %6093 = vmatprep.subr.mxu0 0.0
      %6094 = vmatpush1.msra.mxu0 0.0
      %6095 = vmatprep.subr.mxu0 0.0
      %6096 = vmatpush1.msra.mxu0 0.0
      %6097 = vmatprep.subr.mxu0 0.0
      %6098 = vmatpush1.msra.mxu0 0.0
      %6099 = vmatprep.subr.mxu0 0.0
      %6100 = vmatpush1.msra.mxu0 0.0
      %6101 = vmatprep.subr.mxu0 0.0
      %6102 = vmatpush1.msra.mxu0 0.0
      %6103 = vmatprep.subr.mxu0 0.0
      %6104 = vmatpush1.msra.mxu0 0.0
      %6105 = vmatprep.subr.mxu0 0.0
      %6106 = vmatpush1.msra.mxu0 0.0
      %6107 = vmatprep.subr.mxu0 0.0
      %6108 = vmatpush1.msra.mxu0 0.0
      %6109 = vmatprep.subr.mxu0 0.0
      %6110 = vmatpush1.msra.mxu0 0.0
      %6111 = vmatprep.subr.mxu0 0.0
      %6112 = vmatpush1.msra.mxu0 0.0
      %6113 = vmatprep.subr.mxu0 0.0
      %6114 = vmatpush1.msra.mxu0 0.0
      %6115 = vmatprep.subr.mxu0 0.0
      %6116 = vmatpush1.msra.mxu0 0.0
      %6117 = vmatprep.subr.mxu0 0.0
      %6118 = vmatpush1.msra.mxu0 0.0
      %6119 = vmatprep.mubr.f32.mxu0 0.0
      %v6120 = vand.u32 %v3311, 4294901760
      %6121 = vmatmul.mubr.f32.gmra.mrb[0].mxu0 %v6120
      %v6122 = vpop.f32.mrb[0].mxu0
      %v6123 = vadd.f32 %v5884, %v6122
      %v6124 = vpop.f32.mrb[0].mxu0
      %6125 = vmatprep.mubr.f32.mxu0 0.0
      %v6126 = vand.u32 %v3314, 4294901760
      %6127 = vmatmul.mubr.f32.gmra.mrb[0].mxu0 %v6126
      %v6128 = vpop.f32.mrb[0].mxu0
      %v6129 = vadd.f32 %v5892, %v6128
      %v6130 = vpop.f32.mrb[0].mxu0
      %6131 = vmatprep.mubr.f32.mxu0 0.0
      %v6132 = vand.u32 %v3317, 4294901760
      %6133 = vmatmul.mubr.f32.gmra.mrb[0].mxu0 %v6132
      %v6134 = vpop.f32.mrb[0].mxu0
      %v6135 = vadd.f32 %v5900, %v6134
      %v6136 = vpop.f32.mrb[0].mxu0
      %6137 = vmatprep.mubr.f32.mxu0 0.0
      %v6138 = vand.u32 %v3320, 4294901760
      %6139 = vmatmul.mubr.f32.gmra.mrb[0].mxu0 %v6138
      %v6140 = vpop.f32.mrb[0].mxu0
      %v6141 = vadd.f32 %v5908, %v6140
      %v6142 = vpop.f32.mrb[0].mxu0
      %6143 = vmatprep.mubr.f32.mxu0 0.0
      %v6144 = vand.u32 %v3323, 4294901760
      %6145 = vmatmul.mubr.f32.gmra.mrb[0].mxu0 %v6144
      %v6146 = vpop.f32.mrb[0].mxu0
      %v6147 = vadd.f32 %v5916, %v6146
      %v6148 = vpop.f32.mrb[0].mxu0
      %6149 = vmatprep.mubr.f32.mxu0 0.0
      %v6150 = vand.u32 %v3326, 4294901760
      %6151 = vmatmul.mubr.f32.gmra.mrb[0].mxu0 %v6150
      %v6152 = vpop.f32.mrb[0].mxu0
      %v6153 = vadd.f32 %v5924, %v6152
      %v6154 = vpop.f32.mrb[0].mxu0
      %6155 = vmatprep.mubr.f32.mxu0 0.0
      %v6156 = vand.u32 %v3329, 4294901760
      %6157 = vmatmul.mubr.f32.gmra.mrb[0].mxu0 %v6156
      %v6158 = vpop.f32.mrb[0].mxu0
      %v6159 = vadd.f32 %v5932, %v6158
      %v6160 = vpop.f32.mrb[0].mxu0
      %6161 = vmatprep.mubr.f32.mxu0 0.0
      %v6162 = vand.u32 %v3332, 4294901760
      %6163 = vmatmul.mubr.f32.gmra.mrb[0].mxu0 %v6162
      %v6164 = vpop.f32.mrb[0].mxu0
      %v6165 = vadd.f32 %v5940, %v6164
      %v6166 = vpop.f32.mrb[0].mxu0
      %6167 = vmatprep.mubr.f32.mxu0 0.0
      %v6168 = vand.u32 %v3335, 4294901760
      %6169 = vmatmul.mubr.f32.gmra.mrb[0].mxu0 %v6168
      %v6170 = vpop.f32.mrb[0].mxu0
      %v6171 = vadd.f32 %v5948, %v6170
      %v6172 = vpop.f32.mrb[0].mxu0
      %6173 = vmatprep.mubr.f32.mxu0 0.0
      %v6174 = vand.u32 %v3338, 4294901760
      %6175 = vmatmul.mubr.f32.gmra.mrb[0].mxu0 %v6174
      %v6176 = vpop.f32.mrb[0].mxu0
      %v6177 = vadd.f32 %v5956, %v6176
      %v6178 = vpop.f32.mrb[0].mxu0
      %6179 = vmatprep.mubr.f32.mxu0 0.0
      %v6180 = vand.u32 %v3341, 4294901760
      %6181 = vmatmul.mubr.f32.gmra.mrb[0].mxu0 %v6180
      %v6182 = vpop.f32.mrb[0].mxu0
      %v6183 = vadd.f32 %v5964, %v6182
      %v6184 = vpop.f32.mrb[0].mxu0
      %6185 = vmatprep.mubr.f32.mxu0 0.0
      %v6186 = vand.u32 %v3344, 4294901760
      %6187 = vmatmul.mubr.f32.gmra.mrb[0].mxu0 %v6186
      %v6188 = vpop.f32.mrb[0].mxu0
      %v6189 = vadd.f32 %v5972, %v6188
      %v6190 = vpop.f32.mrb[0].mxu0
      %6191 = vmatprep.mubr.f32.mxu0 0.0
      %v6192 = vand.u32 %v3347, 4294901760
      %6193 = vmatmul.mubr.f32.gmra.mrb[0].mxu0 %v6192
      %v6194 = vpop.f32.mrb[0].mxu0
      %v6195 = vadd.f32 %v5980, %v6194
      %v6196 = vpop.f32.mrb[0].mxu0
      %6197 = vmatprep.mubr.f32.mxu0 0.0
      %v6198 = vand.u32 %v3350, 4294901760
      %6199 = vmatmul.mubr.f32.gmra.mrb[0].mxu0 %v6198
      %v6200 = vpop.f32.mrb[0].mxu0
      %v6201 = vadd.f32 %v5988, %v6200
      %v6202 = vpop.f32.mrb[0].mxu0
      %6203 = vmatprep.mubr.f32.mxu0 0.0
      %v6204 = vand.u32 %v3353, 4294901760
      %6205 = vmatmul.mubr.f32.gmra.mrb[0].mxu0 %v6204
      %v6206 = vpop.f32.mrb[0].mxu0
      %v6207 = vadd.f32 %v5996, %v6206
      %v6208 = vpop.f32.mrb[0].mxu0
      %6209 = vmatprep.mubr.f32.mxu0 0.0
      %v6210 = vand.u32 %v3356, 4294901760
      %6211 = vmatmul.mubr.f32.gmra.mrb[0].mxu0 %v6210
      %v6212 = vpop.f32.mrb[0].mxu0
      %v6213 = vadd.f32 %v6004, %v6212
      %v6214 = vpop.f32.mrb[0].mxu0
      %6215 = vdwg.mxu0
      %6216 = vmatprep.subr.mxu0 0.0
      %v6217 = vand.u32 %v3389, 4294901760
      %6218 = vmatpush1.msra.mxu0 %v6217
      %6219 = vmatprep.subr.mxu0 0.0
      %v6220 = vand.u32 %v3390, 4294901760
      %6221 = vmatpush1.msra.mxu0 %v6220
      %6222 = vmatprep.subr.mxu0 0.0
      %v6223 = vand.u32 %v3391, 4294901760
      %6224 = vmatpush1.msra.mxu0 %v6223
      %6225 = vmatprep.subr.mxu0 0.0
      %v6226 = vand.u32 %v3392, 4294901760
      %6227 = vmatpush1.msra.mxu0 %v6226
      %6228 = vmatprep.subr.mxu0 0.0
      %v6229 = vand.u32 %v3393, 4294901760
      %6230 = vmatpush1.msra.mxu0 %v6229
      %6231 = vmatprep.subr.mxu0 0.0
      %v6232 = vand.u32 %v3394, 4294901760
      %6233 = vmatpush1.msra.mxu0 %v6232
      %6234 = vmatprep.subr.mxu0 0.0
      %v6235 = vand.u32 %v3395, 4294901760
      %6236 = vmatpush1.msra.mxu0 %v6235
      %6237 = vmatprep.subr.mxu0 0.0
      %v6238 = vand.u32 %v3396, 4294901760
      %6239 = vmatpush1.msra.mxu0 %v6238
      %6240 = vmatprep.subr.mxu0 0.0
      %v6241 = vand.u32 %v3397, 4294901760
      %6242 = vmatpush1.msra.mxu0 %v6241
      %6243 = vmatprep.subr.mxu0 0.0
      %v6244 = vand.u32 %v3398, 4294901760
      %6245 = vmatpush1.msra.mxu0 %v6244
      %6246 = vmatprep.subr.mxu0 0.0
      %v6247 = vand.u32 %v3399, 4294901760
      %6248 = vmatpush1.msra.mxu0 %v6247
      %6249 = vmatprep.subr.mxu0 0.0
      %v6250 = vand.u32 %v3400, 4294901760
      %6251 = vmatpush1.msra.mxu0 %v6250
      %6252 = vmatprep.subr.mxu0 0.0
      %v6253 = vand.u32 %v3401, 4294901760
      %6254 = vmatpush1.msra.mxu0 %v6253
      %6255 = vmatprep.subr.mxu0 0.0
      %v6256 = vand.u32 %v3402, 4294901760
      %6257 = vmatpush1.msra.mxu0 %v6256
      %6258 = vmatprep.subr.mxu0 0.0
      %v6259 = vand.u32 %v3403, 4294901760
      %6260 = vmatpush1.msra.mxu0 %v6259
      %6261 = vmatprep.subr.mxu0 0.0
      %v6262 = vand.u32 %v3404, 4294901760
      %6263 = vmatpush1.msra.mxu0 %v6262
      %6264 = vmatprep.subr.mxu0 0.0
      %6265 = vmatpush1.msra.mxu0 0.0
      %6266 = vmatprep.subr.mxu0 0.0
      %6267 = vmatpush1.msra.mxu0 0.0
      %6268 = vmatprep.subr.mxu0 0.0
      %6269 = vmatpush1.msra.mxu0 0.0
      %6270 = vmatprep.subr.mxu0 0.0
      %6271 = vmatpush1.msra.mxu0 0.0
      %6272 = vmatprep.subr.mxu0 0.0
      %6273 = vmatpush1.msra.mxu0 0.0
      %6274 = vmatprep.subr.mxu0 0.0
      %6275 = vmatpush1.msra.mxu0 0.0
      %6276 = vmatprep.subr.mxu0 0.0
      %6277 = vmatpush1.msra.mxu0 0.0
      %6278 = vmatprep.subr.mxu0 0.0
      %6279 = vmatpush1.msra.mxu0 0.0
      %6280 = vmatprep.subr.mxu0 0.0
      %6281 = vmatpush1.msra.mxu0 0.0
      %6282 = vmatprep.subr.mxu0 0.0
      %6283 = vmatpush1.msra.mxu0 0.0
      %6284 = vmatprep.subr.mxu0 0.0
      %6285 = vmatpush1.msra.mxu0 0.0
      %6286 = vmatprep.subr.mxu0 0.0
      %6287 = vmatpush1.msra.mxu0 0.0
      %6288 = vmatprep.subr.mxu0 0.0
      %6289 = vmatpush1.msra.mxu0 0.0
      %6290 = vmatprep.subr.mxu0 0.0
      %6291 = vmatpush1.msra.mxu0 0.0
      %6292 = vmatprep.subr.mxu0 0.0
      %6293 = vmatpush1.msra.mxu0 0.0
      %6294 = vmatprep.subr.mxu0 0.0
      %6295 = vmatpush1.msra.mxu0 0.0
      %6296 = vmatprep.mubr.f32.mxu0 0.0
      %v6297 = vand.u32 %v3311, 4294901760
      %6298 = vmatmul.mubr.f32.gmra.mrb[0].mxu0 %v6297
      %v6299 = vpop.f32.mrb[0].mxu0
      %v6300 = vadd.f32 %v6123, %v6299
      %v6301 = vpop.f32.mrb[0].mxu0
      %6302 = vmatprep.mubr.f32.mxu0 0.0
      %v6303 = vand.u32 %v3314, 4294901760
      %6304 = vmatmul.mubr.f32.gmra.mrb[0].mxu0 %v6303
      %v6305 = vpop.f32.mrb[0].mxu0
      %v6306 = vadd.f32 %v6129, %v6305
      %v6307 = vpop.f32.mrb[0].mxu0
      %6308 = vmatprep.mubr.f32.mxu0 0.0
      %v6309 = vand.u32 %v3317, 4294901760
      %6310 = vmatmul.mubr.f32.gmra.mrb[0].mxu0 %v6309
      %v6311 = vpop.f32.mrb[0].mxu0
      %v6312 = vadd.f32 %v6135, %v6311
      %v6313 = vpop.f32.mrb[0].mxu0
      %6314 = vmatprep.mubr.f32.mxu0 0.0
      %v6315 = vand.u32 %v3320, 4294901760
      %6316 = vmatmul.mubr.f32.gmra.mrb[0].mxu0 %v6315
      %v6317 = vpop.f32.mrb[0].mxu0
      %v6318 = vadd.f32 %v6141, %v6317
      %v6319 = vpop.f32.mrb[0].mxu0
      %6320 = vmatprep.mubr.f32.mxu0 0.0
      %v6321 = vand.u32 %v3323, 4294901760
      %6322 = vmatmul.mubr.f32.gmra.mrb[0].mxu0 %v6321
      %v6323 = vpop.f32.mrb[0].mxu0
      %v6324 = vadd.f32 %v6147, %v6323
      %v6325 = vpop.f32.mrb[0].mxu0
      %6326 = vmatprep.mubr.f32.mxu0 0.0
      %v6327 = vand.u32 %v3326, 4294901760
      %6328 = vmatmul.mubr.f32.gmra.mrb[0].mxu0 %v6327
      %v6329 = vpop.f32.mrb[0].mxu0
      %v6330 = vadd.f32 %v6153, %v6329
      %v6331 = vpop.f32.mrb[0].mxu0
      %6332 = vmatprep.mubr.f32.mxu0 0.0
      %v6333 = vand.u32 %v3329, 4294901760
      %6334 = vmatmul.mubr.f32.gmra.mrb[0].mxu0 %v6333
      %v6335 = vpop.f32.mrb[0].mxu0
      %v6336 = vadd.f32 %v6159, %v6335
      %v6337 = vpop.f32.mrb[0].mxu0
      %6338 = vmatprep.mubr.f32.mxu0 0.0
      %v6339 = vand.u32 %v3332, 4294901760
      %6340 = vmatmul.mubr.f32.gmra.mrb[0].mxu0 %v6339
      %v6341 = vpop.f32.mrb[0].mxu0
      %v6342 = vadd.f32 %v6165, %v6341
      %v6343 = vpop.f32.mrb[0].mxu0
      %6344 = vmatprep.mubr.f32.mxu0 0.0
      %v6345 = vand.u32 %v3335, 4294901760
      %6346 = vmatmul.mubr.f32.gmra.mrb[0].mxu0 %v6345
      %v6347 = vpop.f32.mrb[0].mxu0
      %v6348 = vadd.f32 %v6171, %v6347
      %v6349 = vpop.f32.mrb[0].mxu0
      %6350 = vmatprep.mubr.f32.mxu0 0.0
      %v6351 = vand.u32 %v3338, 4294901760
      %6352 = vmatmul.mubr.f32.gmra.mrb[0].mxu0 %v6351
      %v6353 = vpop.f32.mrb[0].mxu0
      %v6354 = vadd.f32 %v6177, %v6353
      %v6355 = vpop.f32.mrb[0].mxu0
      %6356 = vmatprep.mubr.f32.mxu0 0.0
      %v6357 = vand.u32 %v3341, 4294901760
      %6358 = vmatmul.mubr.f32.gmra.mrb[0].mxu0 %v6357
      %v6359 = vpop.f32.mrb[0].mxu0
      %v6360 = vadd.f32 %v6183, %v6359
      %v6361 = vpop.f32.mrb[0].mxu0
      %6362 = vmatprep.mubr.f32.mxu0 0.0
      %v6363 = vand.u32 %v3344, 4294901760
      %6364 = vmatmul.mubr.f32.gmra.mrb[0].mxu0 %v6363
      %v6365 = vpop.f32.mrb[0].mxu0
      %v6366 = vadd.f32 %v6189, %v6365
      %v6367 = vpop.f32.mrb[0].mxu0
      %6368 = vmatprep.mubr.f32.mxu0 0.0
      %v6369 = vand.u32 %v3347, 4294901760
      %6370 = vmatmul.mubr.f32.gmra.mrb[0].mxu0 %v6369
      %v6371 = vpop.f32.mrb[0].mxu0
      %v6372 = vadd.f32 %v6195, %v6371
      %v6373 = vpop.f32.mrb[0].mxu0
      %6374 = vmatprep.mubr.f32.mxu0 0.0
      %v6375 = vand.u32 %v3350, 4294901760
      %6376 = vmatmul.mubr.f32.gmra.mrb[0].mxu0 %v6375
      %v6377 = vpop.f32.mrb[0].mxu0
      %v6378 = vadd.f32 %v6201, %v6377
      %v6379 = vpop.f32.mrb[0].mxu0
      %6380 = vmatprep.mubr.f32.mxu0 0.0
      %v6381 = vand.u32 %v3353, 4294901760
      %6382 = vmatmul.mubr.f32.gmra.mrb[0].mxu0 %v6381
      %v6383 = vpop.f32.mrb[0].mxu0
      %v6384 = vadd.f32 %v6207, %v6383
      %v6385 = vpop.f32.mrb[0].mxu0
      %6386 = vmatprep.mubr.f32.mxu0 0.0
      %v6387 = vand.u32 %v3356, 4294901760
      %6388 = vmatmul.mubr.f32.gmra.mrb[0].mxu0 %v6387
      %v6389 = vpop.f32.mrb[0].mxu0
      %v6390 = vadd.f32 %v6213, %v6389
      %v6391 = vpop.f32.mrb[0].mxu0
      %6392 = vdwg.mxu0
      %v6393 = vmul.f32 %v3216, %v3216
      %v6394 = vmul.f32 %v3222, %v3222
      %v6395 = vmul.f32 %v3228, %v3228
      %v6396 = vmul.f32 %v3234, %v3234
      %v6397 = vmul.f32 %v3240, %v3240
      %v6398 = vmul.f32 %v3246, %v3246
      %v6399 = vmul.f32 %v3252, %v3252
      %v6400 = vmul.f32 %v3258, %v3258
      %v6401 = vmul.f32 %v3264, %v3264
      %v6402 = vmul.f32 %v3270, %v3270
      %v6403 = vmul.f32 %v3276, %v3276
      %v6404 = vmul.f32 %v3282, %v3282
      %v6405 = vmul.f32 %v3288, %v3288
      %v6406 = vmul.f32 %v3294, %v3294
      %v6407 = vmul.f32 %v3300, %v3300
      %v6408 = vmul.f32 %v3306, %v3306
      %v6409 = vsub.f32 %v6393, %v6300
      %v6410 = vsub.f32 %v6394, %v6306
      %v6411 = vsub.f32 %v6395, %v6312
      %v6412 = vsub.f32 %v6396, %v6318
      %v6413 = vsub.f32 %v6397, %v6324
      %v6414 = vsub.f32 %v6398, %v6330
      %v6415 = vsub.f32 %v6399, %v6336
      %v6416 = vsub.f32 %v6400, %v6342
      %v6417 = vsub.f32 %v6401, %v6348
      %v6418 = vsub.f32 %v6402, %v6354
      %v6419 = vsub.f32 %v6403, %v6360
      %v6420 = vsub.f32 %v6404, %v6366
      %v6421 = vsub.f32 %v6405, %v6372
      %v6422 = vsub.f32 %v6406, %v6378
      %v6423 = vsub.f32 %v6407, %v6384
      %v6424 = vsub.f32 %v6408, %v6390
      %6441 = vrot.lane.b32.xlu0 %v3216, 127
      %v6442 = vpop.permute.xlu0 %6441
      %6443 = vrot.lane.b32.xlu0 %v3222, 127
      %v6444 = vpop.permute.xlu0 %6443
      %6445 = vrot.lane.b32.xlu0 %v3228, 127
      %v6446 = vpop.permute.xlu0 %6445
      %6447 = vrot.lane.b32.xlu0 %v3234, 127
      %v6448 = vpop.permute.xlu0 %6447
      %6449 = vrot.lane.b32.xlu0 %v3240, 127
      %v6450 = vpop.permute.xlu0 %6449
      %6451 = vrot.lane.b32.xlu0 %v3246, 127
      %v6452 = vpop.permute.xlu0 %6451
      %6453 = vrot.lane.b32.xlu0 %v3252, 127
      %v6454 = vpop.permute.xlu0 %6453
      %6455 = vrot.lane.b32.xlu0 %v3258, 127
      %v6456 = vpop.permute.xlu0 %6455
      %6457 = vrot.lane.b32.xlu0 %v3264, 127
      %v6458 = vpop.permute.xlu0 %6457
      %6459 = vrot.lane.b32.xlu0 %v3270, 127
      %v6460 = vpop.permute.xlu0 %6459
      %6461 = vrot.lane.b32.xlu0 %v3276, 127
      %v6462 = vpop.permute.xlu0 %6461
      %6463 = vrot.lane.b32.xlu0 %v3282, 127
      %v6464 = vpop.permute.xlu0 %6463
      %6465 = vrot.lane.b32.xlu0 %v3288, 127
      %v6466 = vpop.permute.xlu0 %6465
      %6467 = vrot.lane.b32.xlu0 %v3294, 127
      %v6468 = vpop.permute.xlu0 %6467
      %6469 = vrot.lane.b32.xlu0 %v3300, 127
      %v6470 = vpop.permute.xlu0 %6469
      %6471 = vrot.lane.b32.xlu0 %v3306, 127
      %v6472 = vpop.permute.xlu0 %6471
      %6505 = vrot.lane.b32.xlu0 %v6409, 1
      %v6506 = vpop.permute.xlu0 %6505
      %6507 = vrot.lane.b32.xlu0 %v6410, 1
      %v6508 = vpop.permute.xlu0 %6507
      %6509 = vrot.lane.b32.xlu0 %v6411, 1
      %v6510 = vpop.permute.xlu0 %6509
      %6511 = vrot.lane.b32.xlu0 %v6412, 1
      %v6512 = vpop.permute.xlu0 %6511
      %6513 = vrot.lane.b32.xlu0 %v6413, 1
      %v6514 = vpop.permute.xlu0 %6513
      %6515 = vrot.lane.b32.xlu0 %v6414, 1
      %v6516 = vpop.permute.xlu0 %6515
      %6517 = vrot.lane.b32.xlu0 %v6415, 1
      %v6518 = vpop.permute.xlu0 %6517
      %6519 = vrot.lane.b32.xlu0 %v6416, 1
      %v6520 = vpop.permute.xlu0 %6519
      %6521 = vrot.lane.b32.xlu0 %v6417, 1
      %v6522 = vpop.permute.xlu0 %6521
      %6523 = vrot.lane.b32.xlu0 %v6418, 1
      %v6524 = vpop.permute.xlu0 %6523
      %6525 = vrot.lane.b32.xlu0 %v6419, 1
      %v6526 = vpop.permute.xlu0 %6525
      %6527 = vrot.lane.b32.xlu0 %v6420, 1
      %v6528 = vpop.permute.xlu0 %6527
      %6529 = vrot.lane.b32.xlu0 %v6421, 1
      %v6530 = vpop.permute.xlu0 %6529
      %6531 = vrot.lane.b32.xlu0 %v6422, 1
      %v6532 = vpop.permute.xlu0 %6531
      %6533 = vrot.lane.b32.xlu0 %v6423, 1
      %v6534 = vpop.permute.xlu0 %6533
      %6535 = vrot.lane.b32.xlu0 %v6424, 1
      %v6536 = vpop.permute.xlu0 %6535
      %vm6553 = vcmask 7168
      %v6554 = vsel %vm6553, %v6442, %v6506
      %v6555 = vsel %vm6553, %v6444, %v6508
      %v6556 = vsel %vm6553, %v6446, %v6510
      %v6557 = vsel %vm6553, %v6448, %v6512
      %v6558 = vsel %vm6553, %v6450, %v6514
      %v6559 = vsel %vm6553, %v6452, %v6516
      %v6560 = vsel %vm6553, %v6454, %v6518
      %v6561 = vsel %vm6553, %v6456, %v6520
      %v6562 = vsel %vm6553, %v6458, %v6522
      %v6563 = vsel %vm6553, %v6460, %v6524
      %v6564 = vsel %vm6553, %v6462, %v6526
      %v6565 = vsel %vm6553, %v6464, %v6528
      %v6566 = vsel %vm6553, %v6466, %v6530
      %v6567 = vsel %vm6553, %v6468, %v6532
      %v6568 = vsel %vm6553, %v6470, %v6534
      %v6569 = vsel %vm6553, %v6472, %v6536
      %vm6570 = vcmask 15360
      %6571 = vst.msk [vmem:[%s175] sm:$0xff] %vm6570, %v6554
      %6572 = vst.msk [vmem:[%s175 + $0x8] sm:$0xff] %vm6570, %v6555
      %6573 = vst.msk [vmem:[%s175 + $0x10] sm:$0xff] %vm6570, %v6556
      %6574 = vst.msk [vmem:[%s175 + $0x18] sm:$0xff] %vm6570, %v6557
      %6575 = vst.msk [vmem:[%s175 + $0x20] sm:$0xff] %vm6570, %v6558
      %6576 = vst.msk [vmem:[%s175 + $0x28] sm:$0xff] %vm6570, %v6559
      %6577 = vst.msk [vmem:[%s175 + $0x30] sm:$0xff] %vm6570, %v6560
      %6578 = vst.msk [vmem:[%s175 + $0x38] sm:$0xff] %vm6570, %v6561
      %6579 = vst.msk [vmem:[%s175 + $0x40] sm:$0xff] %vm6570, %v6562
      %6580 = vst.msk [vmem:[%s175 + $0x48] sm:$0xff] %vm6570, %v6563
      %6581 = vst.msk [vmem:[%s175 + $0x50] sm:$0xff] %vm6570, %v6564
      %6582 = vst.msk [vmem:[%s175 + $0x58] sm:$0xff] %vm6570, %v6565
      %6583 = vst.msk [vmem:[%s175 + $0x60] sm:$0xff] %vm6570, %v6566
      %6584 = vst.msk [vmem:[%s175 + $0x68] sm:$0xff] %vm6570, %v6567
      %6585 = vst.msk [vmem:[%s175 + $0x70] sm:$0xff] %vm6570, %v6568
      %6586 = vst.msk [vmem:[%s175 + $0x78] sm:$0xff] %vm6570, %v6569
      %s6587 = smul.u32 16, %s14
      %p6588 = scmp.lt.s32.totalorder %s6587, 31
      %s6589 = scalar_select %p6588, %s6587, 31
      %s6590 = smul.addr %s6589, 8
      %s6591 = scalar_lea.vmem %s3, %s6590
      // Predicated region
      $region33: #{fm_forward.1} parent=31 // pred_check
        %p6592 = pneg %p100
      $region34: #{fm_forward.1} parent=31 // pred_check_branch
        %6594 = sbr.rel (%p6592) target = $region36
      $region35: #{fm_forward.1} parent=31 // pred_region
        %s6595 = smul.u32 16, %s14
      $region36: #{fm_forward.1} parent=31 // pred_fallthru
        _
    $region32: #{fm_forward.1} parent=5 // pred_fallthru
      _
    %p6596 = scmp.le.s32.totalorder 2, %s9
    // Predicated region
    $region37: #{fm_forward.1} parent=5 // pred_check
      %p6597 = pneg %p6596
    $region38: #{fm_forward.1} parent=5 // pred_check_branch
      %6599 = sbr.rel (%p6597) target = $region40
    $region39: #{fm_forward.1} parent=5 // pred_region
      %s6600 = ssub.s32 %s9, 2
      // Predicated region
      $region41: #{fm_forward.1} parent=39 // pred_check
        %p6601 = pneg %p106
      $region42: #{fm_forward.1} parent=39 // pred_check_branch
        %6603 = sbr.rel (%p6601) target = $region44
      $region43: #{fm_forward.1} parent=39 // pred_region
        %s6604 = smul.u32 16, %s15
        %p6605 = scmp.lt.s32.totalorder %s6604, 31
        %s6606 = scalar_select %p6605, %s6604, 31
        %s6607 = smul.addr %s6606, 8
        %s6608 = scalar_lea.vmem %s3, %s6607
      $region44: #{fm_forward.1} parent=39 // pred_fallthru
        _
    $region40: #{fm_forward.1} parent=5 // pred_fallthru
      _
  $region6: #{fm_forward.1} parent=0 // loop_footer
    %s13 = sadd.s32 1, %s9
  $region7: #{fm_forward.1} parent=0 // loop_footer_branch
    %8 = sbr.rel target = $region3
  $region8: #{fm_forward.1} parent=0 // loop_exit
    _

</llo_original>
